<compile_context>
chip_gen: v7x
topology: tpu7x:2x2x1
jax: 0.10.0
libtpu: 0.0.40
codegen_flags: <defaults>
</compile_context>

<pallas_src>
import functools

import jax
import jax.numpy as jnp
from jax import lax
from jax.experimental import pallas as pl
from jax.experimental.pallas import tpu as pltpu


_SUBLANE_PACK = 16                 # bf16 sublanes per vreg tile
_SLAB_BUDGET = 4 * 1024 * 1024     # max bytes of im2col slab per matmul chunk


# ----------------------------- Pallas kernel --------------------------------

def _conv_epilogue_kernel(*refs, offsets, tap_chunk, l_out, epilogue, groups,
                          inv_cnt, eps, has_bias):
    """Fused stride-1 conv (optional bias) + InstanceNorm/ReLU/Tanh epilogue.

    refs (in order):
      x_ref : (Cin_p, Lin)       bf16  one padded sample, spatial on lanes
      w_ref : (CoutT, T*Cin_p)   bf16  im2col-folded weights for this cout tile
      b_ref : (CoutT, 1)         f32   (only if has_bias)
      m_ref : (1, Lout)          f32   validity mask (only for IN epilogues)
      o_ref : (CoutT, Lout)      bf16 / f32
    """
    it = iter(refs)
    x_ref = next(it)
    w_ref = next(it)
    b_ref = next(it) if has_bias else None
    m_ref = next(it) if epilogue in ("in", "in_relu") else None
    o_ref = next(it)

    x = x_ref[...]                                      # (Cin_p, Lin) bf16
    cin = x.shape[0]
    n_taps = len(offsets)

    acc = jnp.zeros(o_ref.shape, jnp.float32)
    # Kernel taps folded into the MXU contraction dim: build a
    # (chunk*Cin_p, Lout) im2col slab from contiguous lane slices and issue one
    # matmul per chunk (a single matmul when the whole slab fits the budget).
    for c0 in range(0, n_taps, tap_chunk):
        taps = offsets[c0:c0 + tap_chunk]
        if len(taps) == 1:
            slab = x[:, taps[0]:taps[0] + l_out]
        else:
            slab = jnp.concatenate(
                [x[:, off:off + l_out] for off in taps], axis=0)
        w_chunk = w_ref[:, c0 * cin:(c0 + len(taps)) * cin]
        acc = acc + jnp.dot(w_chunk, slab, preferred_element_type=jnp.float32)

    if has_bias:
        acc = acc + b_ref[...]                          # only for the tanh layer

    if epilogue == "tanh":
        y = jnp.tanh(acc)
    elif epilogue == "none":
        y = acc
    else:
        # Masked InstanceNorm (affine=False, biased variance), optional ReLU.
        mask = m_ref[...]                               # (1, Lout)

        def _group_total(v):                            # per-group sums (CoutT, 1)
            if groups == 1:
                return v
            oc = v.shape[0] // groups
            tot = v[0:oc]
            for g in range(1, groups):
                tot = tot + v[g * oc:(g + 1) * oc]
            return jnp.concatenate([tot] * groups, axis=0)

        s1 = _group_total(jnp.sum(acc * mask, axis=-1, keepdims=True))
        mean = s1 * inv_cnt
        xc = (acc - mean) * mask                        # reused for var AND output
        s2 = _group_total(jnp.sum(xc * xc, axis=-1, keepdims=True))
        y = xc * lax.rsqrt(s2 * inv_cnt + eps)
        if epilogue == "in_relu":
            y = jnp.maximum(y, 0.0)

    o_ref[...] = y.astype(o_ref.dtype)


# --------------------------- Fused conv wrapper ------------------------------

def _pick_cout_tile(cout, groups):
    # Grouped IN (sub-pixel upsample) needs all parity groups in one tile.
    if groups > 1 or cout <= 128:
        return cout
    for t in range(128, 7, -1):
        if cout % t == 0 and t % 8 == 0:
            return t
    return cout


def _vmem_limit(block_bytes):
    try:
        cap = pltpu.get_tpu_info().vmem_capacity_bytes
    except Exception:
        cap = 64 * 1024 * 1024                          # conservative (v7x)
    want = max(32 * 1024 * 1024, 2 * block_bytes)
    return int(min(want, (cap * 3) // 4))


def _fused_conv(x, w, b=None, *, pad_h=(0, 0), pad_w=(0, 0),
                pad_mode="constant", epilogue="in_relu", groups=1,
                out_dtype=jnp.bfloat16):
    """stride-1 Conv2d (+bias only when it is not cancelled by IN) with a fused
    InstanceNorm/ReLU/Tanh epilogue.

    x: (N, Cin, H, W), w: (Cout, Cin, kh, kw), b: (Cout,) or None.
    Returns (N, Cout, Ho, Wo) in `out_dtype`.
    """
    n, cin = x.shape[0], x.shape[1]
    cout, _, kh, kw = w.shape
    if max(pad_h) > 0 or max(pad_w) > 0:
        x = jnp.pad(x, ((0, 0), (0, 0), pad_h, pad_w), mode=pad_mode)
    hp, wp = x.shape[2], x.shape[3]
    ho, wo = hp - kh + 1, wp - kw + 1
    l_out = ho * wp
    l_in = hp * wp + wp
    cin_p = -(-cin // _SUBLANE_PACK) * _SUBLANE_PACK

    # One fused pad: lane tail (keeps the last tap slice in bounds) and zero
    # channels up to a multiple of the bf16 sublane tile (aligned im2col concat).
    xf = x.reshape(n, cin, hp * wp)
    xf = jnp.pad(xf, ((0, 0), (0, cin_p - cin), (0, wp))).astype(jnp.bfloat16)

    # Weights (Cout, Cin, kh, kw) -> (Cout, T*Cin_p), tap-major / channel-minor,
    # matching the in-kernel im2col slab ordering.
    w_taps = jnp.transpose(w, (2, 3, 0, 1)).reshape(kh * kw, cout, cin)
    w_taps = jnp.pad(w_taps, ((0, 0), (0, 0), (0, cin_p - cin)))
    w2d = jnp.transpose(w_taps, (1, 0, 2)).reshape(cout, kh * kw * cin_p)
    w2d = w2d.astype(jnp.bfloat16)

    offsets = tuple(ky * wp + kx for ky in range(kh) for kx in range(kw))
    tap_chunk = max(1, min(len(offsets), _SLAB_BUDGET // (cin_p * l_out * 2)))

    has_bias = (b is not None) and epilogue in ("tanh", "none")
    needs_mask = epilogue in ("in", "in_relu")
    cout_t = _pick_cout_tile(cout, groups)

    kernel = functools.partial(
        _conv_epilogue_kernel, offsets=offsets, tap_chunk=tap_chunk,
        l_out=l_out, epilogue=epilogue, groups=groups,
        inv_cnt=1.0 / float(groups * ho * wo), eps=1e-5, has_bias=has_bias)

    inputs = [xf, w2d]
    in_specs = [
        pl.BlockSpec((None, cin_p, l_in), lambda i, j: (i, 0, 0)),
        pl.BlockSpec((cout_t, kh * kw * cin_p), lambda i, j: (j, 0)),
    ]
    if has_bias:
        inputs.append(b.reshape(cout, 1).astype(jnp.float32))
        in_specs.append(pl.BlockSpec((cout_t, 1), lambda i, j: (j, 0)))
    if needs_mask:
        # Lanes whose column index wraps past Wo are excluded from IN stats.
        mask = (jnp.arange(l_out, dtype=jnp.int32) % wp < wo)
        inputs.append(mask.astype(jnp.float32).reshape(1, l_out))
        in_specs.append(pl.BlockSpec((1, l_out), lambda i, j: (0, 0)))

    block_bytes = (2 * cin_p * l_in * 2                      # x (double-buffered)
                   + cout * kh * kw * cin_p * 2              # weights
                   + 2 * cout_t * l_out * jnp.dtype(out_dtype).itemsize
                   + cout_t * l_out * 4                      # f32 accumulator
                   + tap_chunk * cin_p * l_out * 2)          # im2col slab chunk

    out = pl.pallas_call(
        kernel,
        out_shape=jax.ShapeDtypeStruct((n, cout, l_out), out_dtype),
        grid=(n, cout // cout_t),
        in_specs=in_specs,
        out_specs=pl.BlockSpec((None, cout_t, l_out), lambda i, j: (i, j, 0)),
        compiler_params=pltpu.CompilerParams(
            dimension_semantics=("parallel", "parallel"),
            vmem_limit_bytes=_vmem_limit(block_bytes),
        ),
    )(*inputs)

    # Crop the wrap-around columns; the slice fuses with the consumer in XLA.
    return out.reshape(n, cout, ho, wp)[:, :, :, :wo]


# --------------------- Layer lowerings (all stride-1 convs) ------------------

def _downsample(x, w):
    """Conv2d(k=3, s=2, p=1) + InstanceNorm + ReLU via space-to-depth +
    stride-1 2x2 conv (no strided loads, no wasted MACs).  Bias omitted: it is
    cancelled exactly by affine-free InstanceNorm."""
    n, c, h, wd = x.shape
    assert h % 2 == 0 and wd % 2 == 0
    cout = w.shape[0]
    xp = jnp.pad(x, ((0, 0), (0, 0), (1, 1), (1, 1)))
    hp, wp = h + 2, wd + 2
    xs = xp.reshape(n, c, hp // 2, 2, wp // 2, 2)
    xs = jnp.transpose(xs, (0, 3, 5, 1, 2, 4)).reshape(n, 4 * c, hp // 2, wp // 2)
    wpad = jnp.pad(w, ((0, 0), (0, 0), (0, 1), (0, 1)))        # (cout, c, 4, 4)
    k2 = wpad.reshape(cout, c, 2, 2, 2, 2)                     # (.., dy, py, dx, px)
    k2 = jnp.transpose(k2, (0, 3, 5, 1, 2, 4)).reshape(cout, 4 * c, 2, 2)
    return _fused_conv(xs, k2, epilogue="in_relu")


def _upsample(x, w_t):
    """ConvTranspose2d(k=3, s=2, p=1, output_padding=1) + InstanceNorm + ReLU
    via a sub-pixel stride-1 2x2 conv (4*out_c channels, grouped IN) +
    depth-to-space.  w_t uses the PyTorch layout (in_c, out_c, kh, kw).
    Bias omitted: cancelled exactly by the (grouped) affine-free IN."""
    n, _, h, wd = x.shape
    cin, cout = w_t.shape[0], w_t.shape[1]
    zero = jnp.zeros((cin, cout), w_t.dtype)
    parts = []
    for py in range(2):
        for px in range(2):
            rows = []
            for dy in range(2):
                cols = []
                for dx in range(2):
                    ky, kx = py + 1 - 2 * dy, px + 1 - 2 * dx
                    cols.append(w_t[:, :, ky, kx]
                                if (0 <= ky < 3 and 0 <= kx < 3) else zero)
                rows.append(jnp.stack(cols, axis=-1))          # (cin, cout, 2)
            k_pp = jnp.stack(rows, axis=-2)                    # (cin, cout, 2, 2)
            parts.append(jnp.transpose(k_pp, (1, 0, 2, 3)))    # (cout, cin, 2, 2)
    k_sp = jnp.concatenate(parts, axis=0)                      # (4*cout, cin, 2, 2)
    y = _fused_conv(x, k_sp, pad_h=(0, 1), pad_w=(0, 1),
                    pad_mode="constant", epilogue="in_relu", groups=4)
    # depth-to-space: (N, 4*cout, H, W) -> (N, cout, 2H, 2W)
    y = y.reshape(n, 2, 2, cout, h, wd)
    y = jnp.transpose(y, (0, 3, 4, 1, 5, 2)).reshape(n, cout, 2 * h, 2 * wd)
    return y


# ------------------------------ Model wiring ---------------------------------

def init_params(key, input_nc, output_nc, ngf, n_blocks):
    params = {}

    def _w(k, shape):
        return 0.02 * jax.random.normal(k, shape, dtype=jnp.float32)

    keys = iter(jax.random.split(key, 64))
    params["c0_w"] = _w(next(keys), (ngf, input_nc, 7, 7))
    params["c0_b"] = jnp.zeros((ngf,), jnp.float32)
    for i in range(2):
        mult = 2 ** i
        params[f"d{i}_w"] = _w(next(keys), (ngf * mult * 2, ngf * mult, 3, 3))
        params[f"d{i}_b"] = jnp.zeros((ngf * mult * 2,), jnp.float32)
    dim = ngf * 4
    for i in range(n_blocks):
        params[f"r{i}_w1"] = _w(next(keys), (dim, dim, 3, 3))
        params[f"r{i}_b1"] = jnp.zeros((dim,), jnp.float32)
        params[f"r{i}_w2"] = _w(next(keys), (dim, dim, 3, 3))
        params[f"r{i}_b2"] = jnp.zeros((dim,), jnp.float32)
    for i in range(2):
        mult = 2 ** (2 - i)
        params[f"u{i}_w"] = _w(next(keys), (ngf * mult, ngf * mult // 2, 3, 3))
        params[f"u{i}_b"] = jnp.zeros((ngf * mult // 2,), jnp.float32)
    params["cf_w"] = _w(next(keys), (output_nc, ngf, 7, 7))
    params["cf_b"] = jnp.zeros((output_nc,), jnp.float32)
    return params


def resnet_generator_forward(params, x_nchw, n_blocks):
    h = x_nchw.astype(jnp.float32)

    # NOTE: biases of convs followed by affine-free InstanceNorm are omitted —
    # they are cancelled exactly by the per-channel mean subtraction.

    # ReflectionPad(3) + Conv7x7 + InstanceNorm + ReLU (single fused kernel)
    h = _fused_conv(h, params["c0_w"],
                    pad_h=(3, 3), pad_w=(3, 3), pad_mode="reflect",
                    epilogue="in_relu")

    # two stride-2 downsampling convs
    for i in range(2):
        h = _downsample(h, params[f"d{i}_w"])

    # resnet blocks (reflect padding, no dropout)
    for i in range(n_blocks):
        r = _fused_conv(h, params[f"r{i}_w1"],
                        pad_h=(1, 1), pad_w=(1, 1), pad_mode="reflect",
                        epilogue="in_relu")
        r = _fused_conv(r, params[f"r{i}_w2"],
                        pad_h=(1, 1), pad_w=(1, 1), pad_mode="reflect",
                        epilogue="in")
        h = h + r   # residual add fuses with the conv-output crop in XLA

    # two stride-2 transposed convs (sub-pixel lowering)
    for i in range(2):
        h = _upsample(h, params[f"u{i}_w"])

    # ReflectionPad(3) + Conv7x7 + bias + Tanh (fused into the conv epilogue)
    h = _fused_conv(h, params["cf_w"], params["cf_b"],
                    pad_h=(3, 3), pad_w=(3, 3), pad_mode="reflect",
                    epilogue="tanh", out_dtype=jnp.float32)
    return h  # NCHW, f32


# ---------------------------------- Main -------------------------------------

if __name__ == "__main__":
    INPUT_NC, OUTPUT_NC, NGF, N_BLOCKS = 3, 3, 8, 2
    N, H, W = 2, 16, 16

    key = jax.random.PRNGKey(0)
    k_param, k_x = jax.random.split(key)
    params = init_params(k_param, INPUT_NC, OUTPUT_NC, NGF, N_BLOCKS)
    x = jax.random.normal(k_x, (N, INPUT_NC, H, W), dtype=jnp.float32)

    fwd = jax.jit(functools.partial(resnet_generator_forward, n_blocks=N_BLOCKS))
    out = fwd(params, x)
    out = jax.block_until_ready(out)

    assert out.shape == (N, OUTPUT_NC, H, W), out.shape
    assert bool(jnp.all(jnp.isfinite(out)))
    assert bool(jnp.all(jnp.abs(out) <= 1.0 + 1e-6))  # tanh range
    print("KERNEL_OK")
</pallas_src>

<mosaic_0001>
module attributes {stable_mosaic.version = 11 : i64} {
  func.func @_conv_epilogue_kernel(%arg0: i32, %arg1: i32, %arg2: memref<1x16x506xbf16, #tpu.memory_space<vmem>>, %arg3: memref<8x784xbf16, #tpu.memory_space<vmem>>, %arg4: memref<1x352xf32, #tpu.memory_space<vmem>>, %arg5: memref<1x8x352xbf16, #tpu.memory_space<vmem>>) attributes {dimension_semantics = [#tpu.dimension_semantics<parallel>, #tpu.dimension_semantics<parallel>], iteration_bounds = array<i64: 2, 1>, scalar_prefetch = 0 : i64, scratch_operands = 0 : i64, tpu.core_type = #tpu.core_type<tc>, window_params = [{transform_indices = @transform_0, window_bounds = array<i64: 1, 16, 506>}, {transform_indices = @transform_1, window_bounds = array<i64: 8, 784>}, {pipeline_mode = #tpu.pipeline_mode<synchronous>, transform_indices = @transform_2, window_bounds = array<i64: 1, 352>}, {transform_indices = @transform_3, window_bounds = array<i64: 1, 8, 352>}]} {
    %c0 = arith.constant 0 : index
    %c0_0 = arith.constant 0 : index
    %c0_1 = arith.constant 0 : index
    %0 = vector.load %arg2[%c0, %c0_0, %c0_1] : memref<1x16x506xbf16, #tpu.memory_space<vmem>>, vector<1x16x506xbf16>
    %1 = vector.shape_cast %0 : vector<1x16x506xbf16> to vector<16x506xbf16>
    %cst = arith.constant 0.000000e+00 : f32
    %2 = vector.broadcast %cst : f32 to vector<8x352xf32>
    %3 = vector.extract_strided_slice %1 {offsets = [0, 0], sizes = [16, 352], strides = [1, 1]} : vector<16x506xbf16> to vector<16x352xbf16>
    %4 = vector.extract_strided_slice %1 {offsets = [0, 1], sizes = [16, 352], strides = [1, 1]} : vector<16x506xbf16> to vector<16x352xbf16>
    %5 = vector.extract_strided_slice %1 {offsets = [0, 2], sizes = [16, 352], strides = [1, 1]} : vector<16x506xbf16> to vector<16x352xbf16>
    %6 = vector.extract_strided_slice %1 {offsets = [0, 3], sizes = [16, 352], strides = [1, 1]} : vector<16x506xbf16> to vector<16x352xbf16>
    %7 = vector.extract_strided_slice %1 {offsets = [0, 4], sizes = [16, 352], strides = [1, 1]} : vector<16x506xbf16> to vector<16x352xbf16>
    %8 = vector.extract_strided_slice %1 {offsets = [0, 5], sizes = [16, 352], strides = [1, 1]} : vector<16x506xbf16> to vector<16x352xbf16>
    %9 = vector.extract_strided_slice %1 {offsets = [0, 6], sizes = [16, 352], strides = [1, 1]} : vector<16x506xbf16> to vector<16x352xbf16>
    %10 = vector.extract_strided_slice %1 {offsets = [0, 22], sizes = [16, 352], strides = [1, 1]} : vector<16x506xbf16> to vector<16x352xbf16>
    %11 = vector.extract_strided_slice %1 {offsets = [0, 23], sizes = [16, 352], strides = [1, 1]} : vector<16x506xbf16> to vector<16x352xbf16>
    %12 = vector.extract_strided_slice %1 {offsets = [0, 24], sizes = [16, 352], strides = [1, 1]} : vector<16x506xbf16> to vector<16x352xbf16>
    %13 = vector.extract_strided_slice %1 {offsets = [0, 25], sizes = [16, 352], strides = [1, 1]} : vector<16x506xbf16> to vector<16x352xbf16>
    %14 = vector.extract_strided_slice %1 {offsets = [0, 26], sizes = [16, 352], strides = [1, 1]} : vector<16x506xbf16> to vector<16x352xbf16>
    %15 = vector.extract_strided_slice %1 {offsets = [0, 27], sizes = [16, 352], strides = [1, 1]} : vector<16x506xbf16> to vector<16x352xbf16>
    %16 = vector.extract_strided_slice %1 {offsets = [0, 28], sizes = [16, 352], strides = [1, 1]} : vector<16x506xbf16> to vector<16x352xbf16>
    %17 = vector.extract_strided_slice %1 {offsets = [0, 44], sizes = [16, 352], strides = [1, 1]} : vector<16x506xbf16> to vector<16x352xbf16>
    %18 = vector.extract_strided_slice %1 {offsets = [0, 45], sizes = [16, 352], strides = [1, 1]} : vector<16x506xbf16> to vector<16x352xbf16>
    %19 = vector.extract_strided_slice %1 {offsets = [0, 46], sizes = [16, 352], strides = [1, 1]} : vector<16x506xbf16> to vector<16x352xbf16>
    %20 = vector.extract_strided_slice %1 {offsets = [0, 47], sizes = [16, 352], strides = [1, 1]} : vector<16x506xbf16> to vector<16x352xbf16>
    %21 = vector.extract_strided_slice %1 {offsets = [0, 48], sizes = [16, 352], strides = [1, 1]} : vector<16x506xbf16> to vector<16x352xbf16>
    %22 = vector.extract_strided_slice %1 {offsets = [0, 49], sizes = [16, 352], strides = [1, 1]} : vector<16x506xbf16> to vector<16x352xbf16>
    %23 = vector.extract_strided_slice %1 {offsets = [0, 50], sizes = [16, 352], strides = [1, 1]} : vector<16x506xbf16> to vector<16x352xbf16>
    %24 = vector.extract_strided_slice %1 {offsets = [0, 66], sizes = [16, 352], strides = [1, 1]} : vector<16x506xbf16> to vector<16x352xbf16>
    %25 = vector.extract_strided_slice %1 {offsets = [0, 67], sizes = [16, 352], strides = [1, 1]} : vector<16x506xbf16> to vector<16x352xbf16>
    %26 = vector.extract_strided_slice %1 {offsets = [0, 68], sizes = [16, 352], strides = [1, 1]} : vector<16x506xbf16> to vector<16x352xbf16>
    %27 = vector.extract_strided_slice %1 {offsets = [0, 69], sizes = [16, 352], strides = [1, 1]} : vector<16x506xbf16> to vector<16x352xbf16>
    %28 = vector.extract_strided_slice %1 {offsets = [0, 70], sizes = [16, 352], strides = [1, 1]} : vector<16x506xbf16> to vector<16x352xbf16>
    %29 = vector.extract_strided_slice %1 {offsets = [0, 71], sizes = [16, 352], strides = [1, 1]} : vector<16x506xbf16> to vector<16x352xbf16>
    %30 = vector.extract_strided_slice %1 {offsets = [0, 72], sizes = [16, 352], strides = [1, 1]} : vector<16x506xbf16> to vector<16x352xbf16>
    %31 = vector.extract_strided_slice %1 {offsets = [0, 88], sizes = [16, 352], strides = [1, 1]} : vector<16x506xbf16> to vector<16x352xbf16>
    %32 = vector.extract_strided_slice %1 {offsets = [0, 89], sizes = [16, 352], strides = [1, 1]} : vector<16x506xbf16> to vector<16x352xbf16>
    %33 = vector.extract_strided_slice %1 {offsets = [0, 90], sizes = [16, 352], strides = [1, 1]} : vector<16x506xbf16> to vector<16x352xbf16>
    %34 = vector.extract_strided_slice %1 {offsets = [0, 91], sizes = [16, 352], strides = [1, 1]} : vector<16x506xbf16> to vector<16x352xbf16>
    %35 = vector.extract_strided_slice %1 {offsets = [0, 92], sizes = [16, 352], strides = [1, 1]} : vector<16x506xbf16> to vector<16x352xbf16>
    %36 = vector.extract_strided_slice %1 {offsets = [0, 93], sizes = [16, 352], strides = [1, 1]} : vector<16x506xbf16> to vector<16x352xbf16>
    %37 = vector.extract_strided_slice %1 {offsets = [0, 94], sizes = [16, 352], strides = [1, 1]} : vector<16x506xbf16> to vector<16x352xbf16>
    %38 = vector.extract_strided_slice %1 {offsets = [0, 110], sizes = [16, 352], strides = [1, 1]} : vector<16x506xbf16> to vector<16x352xbf16>
    %39 = vector.extract_strided_slice %1 {offsets = [0, 111], sizes = [16, 352], strides = [1, 1]} : vector<16x506xbf16> to vector<16x352xbf16>
    %40 = vector.extract_strided_slice %1 {offsets = [0, 112], sizes = [16, 352], strides = [1, 1]} : vector<16x506xbf16> to vector<16x352xbf16>
    %41 = vector.extract_strided_slice %1 {offsets = [0, 113], sizes = [16, 352], strides = [1, 1]} : vector<16x506xbf16> to vector<16x352xbf16>
    %42 = vector.extract_strided_slice %1 {offsets = [0, 114], sizes = [16, 352], strides = [1, 1]} : vector<16x506xbf16> to vector<16x352xbf16>
    %43 = vector.extract_strided_slice %1 {offsets = [0, 115], sizes = [16, 352], strides = [1, 1]} : vector<16x506xbf16> to vector<16x352xbf16>
    %44 = vector.extract_strided_slice %1 {offsets = [0, 116], sizes = [16, 352], strides = [1, 1]} : vector<16x506xbf16> to vector<16x352xbf16>
    %45 = vector.extract_strided_slice %1 {offsets = [0, 132], sizes = [16, 352], strides = [1, 1]} : vector<16x506xbf16> to vector<16x352xbf16>
    %46 = vector.extract_strided_slice %1 {offsets = [0, 133], sizes = [16, 352], strides = [1, 1]} : vector<16x506xbf16> to vector<16x352xbf16>
    %47 = vector.extract_strided_slice %1 {offsets = [0, 134], sizes = [16, 352], strides = [1, 1]} : vector<16x506xbf16> to vector<16x352xbf16>
    %48 = vector.extract_strided_slice %1 {offsets = [0, 135], sizes = [16, 352], strides = [1, 1]} : vector<16x506xbf16> to vector<16x352xbf16>
    %49 = vector.extract_strided_slice %1 {offsets = [0, 136], sizes = [16, 352], strides = [1, 1]} : vector<16x506xbf16> to vector<16x352xbf16>
    %50 = vector.extract_strided_slice %1 {offsets = [0, 137], sizes = [16, 352], strides = [1, 1]} : vector<16x506xbf16> to vector<16x352xbf16>
    %51 = vector.extract_strided_slice %1 {offsets = [0, 138], sizes = [16, 352], strides = [1, 1]} : vector<16x506xbf16> to vector<16x352xbf16>
    %52 = tpu.concatenate %3, %4, %5, %6, %7, %8, %9, %10, %11, %12, %13, %14, %15, %16, %17, %18 in 0 : vector<16x352xbf16>, vector<16x352xbf16>, vector<16x352xbf16>, vector<16x352xbf16>, vector<16x352xbf16>, vector<16x352xbf16>, vector<16x352xbf16>, vector<16x352xbf16>, vector<16x352xbf16>, vector<16x352xbf16>, vector<16x352xbf16>, vector<16x352xbf16>, vector<16x352xbf16>, vector<16x352xbf16>, vector<16x352xbf16>, vector<16x352xbf16> -> vector<256x352xbf16>
    %53 = tpu.concatenate %19, %20, %21, %22, %23, %24, %25, %26, %27, %28, %29, %30, %31, %32, %33, %34 in 0 : vector<16x352xbf16>, vector<16x352xbf16>, vector<16x352xbf16>, vector<16x352xbf16>, vector<16x352xbf16>, vector<16x352xbf16>, vector<16x352xbf16>, vector<16x352xbf16>, vector<16x352xbf16>, vector<16x352xbf16>, vector<16x352xbf16>, vector<16x352xbf16>, vector<16x352xbf16>, vector<16x352xbf16>, vector<16x352xbf16>, vector<16x352xbf16> -> vector<256x352xbf16>
    %54 = tpu.concatenate %35, %36, %37, %38, %39, %40, %41, %42, %43, %44, %45, %46, %47, %48, %49, %50 in 0 : vector<16x352xbf16>, vector<16x352xbf16>, vector<16x352xbf16>, vector<16x352xbf16>, vector<16x352xbf16>, vector<16x352xbf16>, vector<16x352xbf16>, vector<16x352xbf16>, vector<16x352xbf16>, vector<16x352xbf16>, vector<16x352xbf16>, vector<16x352xbf16>, vector<16x352xbf16>, vector<16x352xbf16>, vector<16x352xbf16>, vector<16x352xbf16> -> vector<256x352xbf16>
    %55 = tpu.concatenate %52, %53, %54, %51 in 0 : vector<256x352xbf16>, vector<256x352xbf16>, vector<256x352xbf16>, vector<16x352xbf16> -> vector<784x352xbf16>
    %c0_2 = arith.constant 0 : index
    %c0_3 = arith.constant 0 : index
    %56 = vector.load %arg3[%c0_2, %c0_3] : memref<8x784xbf16, #tpu.memory_space<vmem>>, vector<8x784xbf16>
    %cst_4 = arith.constant dense<0.000000e+00> : vector<8x352xf32>
    %57 = tpu.matmul %56, %55, %cst_4 {dimension_numbers = #tpu.dot_dimension_numbers<[1], [0], [0], [1], [0, 0, 1, 1], [], []>} : vector<8x784xbf16>, vector<784x352xbf16>, vector<8x352xf32> -> vector<8x352xf32>
    %58 = arith.addf %2, %57 : vector<8x352xf32>
    %c0_5 = arith.constant 0 : index
    %c0_6 = arith.constant 0 : index
    %59 = vector.load %arg4[%c0_5, %c0_6] : memref<1x352xf32, #tpu.memory_space<vmem>>, vector<1x352xf32>
    %60 = vector.broadcast %59 : vector<1x352xf32> to vector<8x352xf32>
    %61 = arith.mulf %58, %60 : vector<8x352xf32>
    %cst_7 = arith.constant dense<0.000000e+00> : vector<8xf32>
    %62 = vector.multi_reduction <add>, %61, %cst_7 [1] : vector<8x352xf32> to vector<8xf32>
    %63 = vector.shape_cast %62 : vector<8xf32> to vector<8x1xf32>
    %cst_8 = arith.constant 3.906250e-03 : f32
    %64 = vector.broadcast %cst_8 : f32 to vector<8x1xf32>
    %65 = arith.mulf %63, %64 : vector<8x1xf32>
    %66 = vector.broadcast %65 : vector<8x1xf32> to vector<8x352xf32>
    %67 = arith.subf %58, %66 : vector<8x352xf32>
    %68 = vector.broadcast %59 : vector<1x352xf32> to vector<8x352xf32>
    %69 = arith.mulf %67, %68 : vector<8x352xf32>
    %70 = arith.mulf %69, %69 : vector<8x352xf32>
    %cst_9 = arith.constant dense<0.000000e+00> : vector<8xf32>
    %71 = vector.multi_reduction <add>, %70, %cst_9 [1] : vector<8x352xf32> to vector<8xf32>
    %72 = vector.shape_cast %71 : vector<8xf32> to vector<8x1xf32>
    %cst_10 = arith.constant 3.906250e-03 : f32
    %73 = vector.broadcast %cst_10 : f32 to vector<8x1xf32>
    %74 = arith.mulf %72, %73 : vector<8x1xf32>
    %cst_11 = arith.constant 9.99999974E-6 : f32
    %75 = vector.broadcast %cst_11 : f32 to vector<8x1xf32>
    %76 = arith.addf %74, %75 : vector<8x1xf32>
    %77 = math.rsqrt %76 : vector<8x1xf32>
    %78 = vector.broadcast %77 : vector<8x1xf32> to vector<8x352xf32>
    %79 = arith.mulf %69, %78 : vector<8x352xf32>
    %cst_12 = arith.constant 0.000000e+00 : f32
    %80 = vector.broadcast %cst_12 : f32 to vector<8x352xf32>
    %81 = arith.maximumf %79, %80 : vector<8x352xf32>
    %82 = arith.truncf %81 : vector<8x352xf32> to vector<8x352xbf16>
    %c0_13 = arith.constant 0 : index
    %c0_14 = arith.constant 0 : index
    %c0_15 = arith.constant 0 : index
    %83 = vector.load %arg5[%c0_13, %c0_14, %c0_15] : memref<1x8x352xbf16, #tpu.memory_space<vmem>>, vector<1x8x352xbf16>
    %84 = vector.shape_cast %83 : vector<1x8x352xbf16> to vector<8x352xbf16>
    %85 = vector.shape_cast %82 : vector<8x352xbf16> to vector<1x8x352xbf16>
    tpu.vector_store %arg5[%c0_13, %c0_14, %c0_15], %85 {strides = array<i32>} : memref<1x8x352xbf16, #tpu.memory_space<vmem>>, vector<1x8x352xbf16>,
    return
  }
  func.func @transform_0(%arg0: i32, %arg1: i32) -> (i32, i32, i32) {
    %c0_i32 = arith.constant 0 : i32
    %c0_i32_0 = arith.constant 0 : i32
    %c0_i32_1 = arith.constant 0 : i32
    return %arg0, %c0_i32, %c0_i32_0 : i32, i32, i32
  }
  func.func @transform_1(%arg0: i32, %arg1: i32) -> (i32, i32) {
    %c0_i32 = arith.constant 0 : i32
    %c0_i32_0 = arith.constant 0 : i32
    return %arg1, %c0_i32 : i32, i32
  }
  func.func @transform_2(%arg0: i32, %arg1: i32) -> (i32, i32) {
    %c0_i32 = arith.constant 0 : i32
    %c0_i32_0 = arith.constant 0 : i32
    %c0_i32_1 = arith.constant 0 : i32
    return %c0_i32, %c0_i32_0 : i32, i32
  }
  func.func @transform_3(%arg0: i32, %arg1: i32) -> (i32, i32, i32) {
    %c0_i32 = arith.constant 0 : i32
    %c0_i32_0 = arith.constant 0 : i32
    return %arg0, %arg1, %c0_i32 : i32, i32, i32
  }
}

module attributes {stable_mosaic.version = 11 : i64} {
  func.func @_conv_epilogue_kernel(%arg0: i32, %arg1: i32, %arg2: memref<1x32x90xbf16, #tpu.memory_space<vmem>>, %arg3: memref<16x128xbf16, #tpu.memory_space<vmem>>, %arg4: memref<1x72xf32, #tpu.memory_space<vmem>>, %arg5: memref<1x16x72xbf16, #tpu.memory_space<vmem>>) attributes {dimension_semantics = [#tpu.dimension_semantics<parallel>, #tpu.dimension_semantics<parallel>], iteration_bounds = array<i64: 2, 1>, scalar_prefetch = 0 : i64, scratch_operands = 0 : i64, tpu.core_type = #tpu.core_type<tc>, window_params = [{transform_indices = @transform_0, window_bounds = array<i64: 1, 32, 90>}, {transform_indices = @transform_1, window_bounds = array<i64: 16, 128>}, {pipeline_mode = #tpu.pipeline_mode<synchronous>, transform_indices = @transform_2, window_bounds = array<i64: 1, 72>}, {transform_indices = @transform_3, window_bounds = array<i64: 1, 16, 72>}]} {
    %c0 = arith.constant 0 : index
    %c0_0 = arith.constant 0 : index
    %c0_1 = arith.constant 0 : index
    %0 = vector.load %arg2[%c0, %c0_0, %c0_1] : memref<1x32x90xbf16, #tpu.memory_space<vmem>>, vector<1x32x90xbf16>
    %1 = vector.shape_cast %0 : vector<1x32x90xbf16> to vector<32x90xbf16>
    %cst = arith.constant 0.000000e+00 : f32
    %2 = vector.broadcast %cst : f32 to vector<16x72xf32>
    %3 = vector.extract_strided_slice %1 {offsets = [0, 0], sizes = [32, 72], strides = [1, 1]} : vector<32x90xbf16> to vector<32x72xbf16>
    %4 = vector.extract_strided_slice %1 {offsets = [0, 1], sizes = [32, 72], strides = [1, 1]} : vector<32x90xbf16> to vector<32x72xbf16>
    %5 = vector.extract_strided_slice %1 {offsets = [0, 9], sizes = [32, 72], strides = [1, 1]} : vector<32x90xbf16> to vector<32x72xbf16>
    %6 = vector.extract_strided_slice %1 {offsets = [0, 10], sizes = [32, 72], strides = [1, 1]} : vector<32x90xbf16> to vector<32x72xbf16>
    %7 = tpu.concatenate %3, %4, %5, %6 in 0 : vector<32x72xbf16>, vector<32x72xbf16>, vector<32x72xbf16>, vector<32x72xbf16> -> vector<128x72xbf16>
    %c0_2 = arith.constant 0 : index
    %c0_3 = arith.constant 0 : index
    %8 = vector.load %arg3[%c0_2, %c0_3] : memref<16x128xbf16, #tpu.memory_space<vmem>>, vector<16x128xbf16>
    %cst_4 = arith.constant dense<0.000000e+00> : vector<16x72xf32>
    %9 = tpu.matmul %8, %7, %cst_4 {dimension_numbers = #tpu.dot_dimension_numbers<[1], [0], [0], [1], [0, 0, 1, 1], [], []>} : vector<16x128xbf16>, vector<128x72xbf16>, vector<16x72xf32> -> vector<16x72xf32>
    %10 = arith.addf %2, %9 : vector<16x72xf32>
    %c0_5 = arith.constant 0 : index
    %c0_6 = arith.constant 0 : index
    %11 = vector.load %arg4[%c0_5, %c0_6] : memref<1x72xf32, #tpu.memory_space<vmem>>, vector<1x72xf32>
    %12 = vector.broadcast %11 : vector<1x72xf32> to vector<16x72xf32>
    %13 = arith.mulf %10, %12 : vector<16x72xf32>
    %cst_7 = arith.constant dense<0.000000e+00> : vector<16xf32>
    %14 = vector.multi_reduction <add>, %13, %cst_7 [1] : vector<16x72xf32> to vector<16xf32>
    %15 = vector.shape_cast %14 : vector<16xf32> to vector<16x1xf32>
    %cst_8 = arith.constant 1.562500e-02 : f32
    %16 = vector.broadcast %cst_8 : f32 to vector<16x1xf32>
    %17 = arith.mulf %15, %16 : vector<16x1xf32>
    %18 = vector.broadcast %17 : vector<16x1xf32> to vector<16x72xf32>
    %19 = arith.subf %10, %18 : vector<16x72xf32>
    %20 = vector.broadcast %11 : vector<1x72xf32> to vector<16x72xf32>
    %21 = arith.mulf %19, %20 : vector<16x72xf32>
    %22 = arith.mulf %21, %21 : vector<16x72xf32>
    %cst_9 = arith.constant dense<0.000000e+00> : vector<16xf32>
    %23 = vector.multi_reduction <add>, %22, %cst_9 [1] : vector<16x72xf32> to vector<16xf32>
    %24 = vector.shape_cast %23 : vector<16xf32> to vector<16x1xf32>
    %cst_10 = arith.constant 1.562500e-02 : f32
    %25 = vector.broadcast %cst_10 : f32 to vector<16x1xf32>
    %26 = arith.mulf %24, %25 : vector<16x1xf32>
    %cst_11 = arith.constant 9.99999974E-6 : f32
    %27 = vector.broadcast %cst_11 : f32 to vector<16x1xf32>
    %28 = arith.addf %26, %27 : vector<16x1xf32>
    %29 = math.rsqrt %28 : vector<16x1xf32>
    %30 = vector.broadcast %29 : vector<16x1xf32> to vector<16x72xf32>
    %31 = arith.mulf %21, %30 : vector<16x72xf32>
    %cst_12 = arith.constant 0.000000e+00 : f32
    %32 = vector.broadcast %cst_12 : f32 to vector<16x72xf32>
    %33 = arith.maximumf %31, %32 : vector<16x72xf32>
    %34 = arith.truncf %33 : vector<16x72xf32> to vector<16x72xbf16>
    %c0_13 = arith.constant 0 : index
    %c0_14 = arith.constant 0 : index
    %c0_15 = arith.constant 0 : index
    %35 = vector.load %arg5[%c0_13, %c0_14, %c0_15] : memref<1x16x72xbf16, #tpu.memory_space<vmem>>, vector<1x16x72xbf16>
    %36 = vector.shape_cast %35 : vector<1x16x72xbf16> to vector<16x72xbf16>
    %37 = vector.shape_cast %34 : vector<16x72xbf16> to vector<1x16x72xbf16>
    tpu.vector_store %arg5[%c0_13, %c0_14, %c0_15], %37 {strides = array<i32>} : memref<1x16x72xbf16, #tpu.memory_space<vmem>>, vector<1x16x72xbf16>,
    return
  }
  func.func @transform_0(%arg0: i32, %arg1: i32) -> (i32, i32, i32) {
    %c0_i32 = arith.constant 0 : i32
    %c0_i32_0 = arith.constant 0 : i32
    %c0_i32_1 = arith.constant 0 : i32
    return %arg0, %c0_i32, %c0_i32_0 : i32, i32, i32
  }
  func.func @transform_1(%arg0: i32, %arg1: i32) -> (i32, i32) {
    %c0_i32 = arith.constant 0 : i32
    %c0_i32_0 = arith.constant 0 : i32
    return %arg1, %c0_i32 : i32, i32
  }
  func.func @transform_2(%arg0: i32, %arg1: i32) -> (i32, i32) {
    %c0_i32 = arith.constant 0 : i32
    %c0_i32_0 = arith.constant 0 : i32
    %c0_i32_1 = arith.constant 0 : i32
    return %c0_i32, %c0_i32_0 : i32, i32
  }
  func.func @transform_3(%arg0: i32, %arg1: i32) -> (i32, i32, i32) {
    %c0_i32 = arith.constant 0 : i32
    %c0_i32_0 = arith.constant 0 : i32
    return %arg0, %arg1, %c0_i32 : i32, i32, i32
  }
}

module attributes {stable_mosaic.version = 11 : i64} {
  func.func @_conv_epilogue_kernel(%arg0: i32, %arg1: i32, %arg2: memref<1x64x30xbf16, #tpu.memory_space<vmem>>, %arg3: memref<32x256xbf16, #tpu.memory_space<vmem>>, %arg4: memref<1x20xf32, #tpu.memory_space<vmem>>, %arg5: memref<1x32x20xbf16, #tpu.memory_space<vmem>>) attributes {dimension_semantics = [#tpu.dimension_semantics<parallel>, #tpu.dimension_semantics<parallel>], iteration_bounds = array<i64: 2, 1>, scalar_prefetch = 0 : i64, scratch_operands = 0 : i64, tpu.core_type = #tpu.core_type<tc>, window_params = [{transform_indices = @transform_0, window_bounds = array<i64: 1, 64, 30>}, {transform_indices = @transform_1, window_bounds = array<i64: 32, 256>}, {pipeline_mode = #tpu.pipeline_mode<synchronous>, transform_indices = @transform_2, window_bounds = array<i64: 1, 20>}, {transform_indices = @transform_3, window_bounds = array<i64: 1, 32, 20>}]} {
    %c0 = arith.constant 0 : index
    %c0_0 = arith.constant 0 : index
    %c0_1 = arith.constant 0 : index
    %0 = vector.load %arg2[%c0, %c0_0, %c0_1] : memref<1x64x30xbf16, #tpu.memory_space<vmem>>, vector<1x64x30xbf16>
    %1 = vector.shape_cast %0 : vector<1x64x30xbf16> to vector<64x30xbf16>
    %cst = arith.constant 0.000000e+00 : f32
    %2 = vector.broadcast %cst : f32 to vector<32x20xf32>
    %3 = vector.extract_strided_slice %1 {offsets = [0, 0], sizes = [64, 20], strides = [1, 1]} : vector<64x30xbf16> to vector<64x20xbf16>
    %4 = vector.extract_strided_slice %1 {offsets = [0, 1], sizes = [64, 20], strides = [1, 1]} : vector<64x30xbf16> to vector<64x20xbf16>
    %5 = vector.extract_strided_slice %1 {offsets = [0, 5], sizes = [64, 20], strides = [1, 1]} : vector<64x30xbf16> to vector<64x20xbf16>
    %6 = vector.extract_strided_slice %1 {offsets = [0, 6], sizes = [64, 20], strides = [1, 1]} : vector<64x30xbf16> to vector<64x20xbf16>
    %7 = tpu.concatenate %3, %4, %5, %6 in 0 : vector<64x20xbf16>, vector<64x20xbf16>, vector<64x20xbf16>, vector<64x20xbf16> -> vector<256x20xbf16>
    %c0_2 = arith.constant 0 : index
    %c0_3 = arith.constant 0 : index
    %8 = vector.load %arg3[%c0_2, %c0_3] : memref<32x256xbf16, #tpu.memory_space<vmem>>, vector<32x256xbf16>
    %cst_4 = arith.constant dense<0.000000e+00> : vector<32x20xf32>
    %9 = tpu.matmul %8, %7, %cst_4 {dimension_numbers = #tpu.dot_dimension_numbers<[1], [0], [0], [1], [0, 0, 1, 1], [], []>} : vector<32x256xbf16>, vector<256x20xbf16>, vector<32x20xf32> -> vector<32x20xf32>
    %10 = arith.addf %2, %9 : vector<32x20xf32>
    %c0_5 = arith.constant 0 : index
    %c0_6 = arith.constant 0 : index
    %11 = vector.load %arg4[%c0_5, %c0_6] : memref<1x20xf32, #tpu.memory_space<vmem>>, vector<1x20xf32>
    %12 = vector.broadcast %11 : vector<1x20xf32> to vector<32x20xf32>
    %13 = arith.mulf %10, %12 : vector<32x20xf32>
    %cst_7 = arith.constant dense<0.000000e+00> : vector<32xf32>
    %14 = vector.multi_reduction <add>, %13, %cst_7 [1] : vector<32x20xf32> to vector<32xf32>
    %15 = vector.shape_cast %14 : vector<32xf32> to vector<32x1xf32>
    %cst_8 = arith.constant 6.250000e-02 : f32
    %16 = vector.broadcast %cst_8 : f32 to vector<32x1xf32>
    %17 = arith.mulf %15, %16 : vector<32x1xf32>
    %18 = vector.broadcast %17 : vector<32x1xf32> to vector<32x20xf32>
    %19 = arith.subf %10, %18 : vector<32x20xf32>
    %20 = vector.broadcast %11 : vector<1x20xf32> to vector<32x20xf32>
    %21 = arith.mulf %19, %20 : vector<32x20xf32>
    %22 = arith.mulf %21, %21 : vector<32x20xf32>
    %cst_9 = arith.constant dense<0.000000e+00> : vector<32xf32>
    %23 = vector.multi_reduction <add>, %22, %cst_9 [1] : vector<32x20xf32> to vector<32xf32>
    %24 = vector.shape_cast %23 : vector<32xf32> to vector<32x1xf32>
    %cst_10 = arith.constant 6.250000e-02 : f32
    %25 = vector.broadcast %cst_10 : f32 to vector<32x1xf32>
    %26 = arith.mulf %24, %25 : vector<32x1xf32>
    %cst_11 = arith.constant 9.99999974E-6 : f32
    %27 = vector.broadcast %cst_11 : f32 to vector<32x1xf32>
    %28 = arith.addf %26, %27 : vector<32x1xf32>
    %29 = math.rsqrt %28 : vector<32x1xf32>
    %30 = vector.broadcast %29 : vector<32x1xf32> to vector<32x20xf32>
    %31 = arith.mulf %21, %30 : vector<32x20xf32>
    %cst_12 = arith.constant 0.000000e+00 : f32
    %32 = vector.broadcast %cst_12 : f32 to vector<32x20xf32>
    %33 = arith.maximumf %31, %32 : vector<32x20xf32>
    %34 = arith.truncf %33 : vector<32x20xf32> to vector<32x20xbf16>
    %c0_13 = arith.constant 0 : index
    %c0_14 = arith.constant 0 : index
    %c0_15 = arith.constant 0 : index
    %35 = vector.load %arg5[%c0_13, %c0_14, %c0_15] : memref<1x32x20xbf16, #tpu.memory_space<vmem>>, vector<1x32x20xbf16>
    %36 = vector.shape_cast %35 : vector<1x32x20xbf16> to vector<32x20xbf16>
    %37 = vector.shape_cast %34 : vector<32x20xbf16> to vector<1x32x20xbf16>
    tpu.vector_store %arg5[%c0_13, %c0_14, %c0_15], %37 {strides = array<i32>} : memref<1x32x20xbf16, #tpu.memory_space<vmem>>, vector<1x32x20xbf16>,
    return
  }
  func.func @transform_0(%arg0: i32, %arg1: i32) -> (i32, i32, i32) {
    %c0_i32 = arith.constant 0 : i32
    %c0_i32_0 = arith.constant 0 : i32
    %c0_i32_1 = arith.constant 0 : i32
    return %arg0, %c0_i32, %c0_i32_0 : i32, i32, i32
  }
  func.func @transform_1(%arg0: i32, %arg1: i32) -> (i32, i32) {
    %c0_i32 = arith.constant 0 : i32
    %c0_i32_0 = arith.constant 0 : i32
    return %arg1, %c0_i32 : i32, i32
  }
  func.func @transform_2(%arg0: i32, %arg1: i32) -> (i32, i32) {
    %c0_i32 = arith.constant 0 : i32
    %c0_i32_0 = arith.constant 0 : i32
    %c0_i32_1 = arith.constant 0 : i32
    return %c0_i32, %c0_i32_0 : i32, i32
  }
  func.func @transform_3(%arg0: i32, %arg1: i32) -> (i32, i32, i32) {
    %c0_i32 = arith.constant 0 : i32
    %c0_i32_0 = arith.constant 0 : i32
    return %arg0, %arg1, %c0_i32 : i32, i32, i32
  }
}

module attributes {stable_mosaic.version = 11 : i64} {
  func.func @_conv_epilogue_kernel(%arg0: i32, %arg1: i32, %arg2: memref<1x32x42xbf16, #tpu.memory_space<vmem>>, %arg3: memref<32x288xbf16, #tpu.memory_space<vmem>>, %arg4: memref<1x24xf32, #tpu.memory_space<vmem>>, %arg5: memref<1x32x24xbf16, #tpu.memory_space<vmem>>) attributes {dimension_semantics = [#tpu.dimension_semantics<parallel>, #tpu.dimension_semantics<parallel>], iteration_bounds = array<i64: 2, 1>, scalar_prefetch = 0 : i64, scratch_operands = 0 : i64, tpu.core_type = #tpu.core_type<tc>, window_params = [{transform_indices = @transform_0, window_bounds = array<i64: 1, 32, 42>}, {transform_indices = @transform_1, window_bounds = array<i64: 32, 288>}, {pipeline_mode = #tpu.pipeline_mode<synchronous>, transform_indices = @transform_2, window_bounds = array<i64: 1, 24>}, {transform_indices = @transform_3, window_bounds = array<i64: 1, 32, 24>}]} {
    %c0 = arith.constant 0 : index
    %c0_0 = arith.constant 0 : index
    %c0_1 = arith.constant 0 : index
    %0 = vector.load %arg2[%c0, %c0_0, %c0_1] : memref<1x32x42xbf16, #tpu.memory_space<vmem>>, vector<1x32x42xbf16>
    %1 = vector.shape_cast %0 : vector<1x32x42xbf16> to vector<32x42xbf16>
    %cst = arith.constant 0.000000e+00 : f32
    %2 = vector.broadcast %cst : f32 to vector<32x24xf32>
    %3 = vector.extract_strided_slice %1 {offsets = [0, 0], sizes = [32, 24], strides = [1, 1]} : vector<32x42xbf16> to vector<32x24xbf16>
    %4 = vector.extract_strided_slice %1 {offsets = [0, 1], sizes = [32, 24], strides = [1, 1]} : vector<32x42xbf16> to vector<32x24xbf16>
    %5 = vector.extract_strided_slice %1 {offsets = [0, 2], sizes = [32, 24], strides = [1, 1]} : vector<32x42xbf16> to vector<32x24xbf16>
    %6 = vector.extract_strided_slice %1 {offsets = [0, 6], sizes = [32, 24], strides = [1, 1]} : vector<32x42xbf16> to vector<32x24xbf16>
    %7 = vector.extract_strided_slice %1 {offsets = [0, 7], sizes = [32, 24], strides = [1, 1]} : vector<32x42xbf16> to vector<32x24xbf16>
    %8 = vector.extract_strided_slice %1 {offsets = [0, 8], sizes = [32, 24], strides = [1, 1]} : vector<32x42xbf16> to vector<32x24xbf16>
    %9 = vector.extract_strided_slice %1 {offsets = [0, 12], sizes = [32, 24], strides = [1, 1]} : vector<32x42xbf16> to vector<32x24xbf16>
    %10 = vector.extract_strided_slice %1 {offsets = [0, 13], sizes = [32, 24], strides = [1, 1]} : vector<32x42xbf16> to vector<32x24xbf16>
    %11 = vector.extract_strided_slice %1 {offsets = [0, 14], sizes = [32, 24], strides = [1, 1]} : vector<32x42xbf16> to vector<32x24xbf16>
    %12 = tpu.concatenate %3, %4, %5, %6, %7, %8, %9, %10, %11 in 0 : vector<32x24xbf16>, vector<32x24xbf16>, vector<32x24xbf16>, vector<32x24xbf16>, vector<32x24xbf16>, vector<32x24xbf16>, vector<32x24xbf16>, vector<32x24xbf16>, vector<32x24xbf16> -> vector<288x24xbf16>
    %c0_2 = arith.constant 0 : index
    %c0_3 = arith.constant 0 : index
    %13 = vector.load %arg3[%c0_2, %c0_3] : memref<32x288xbf16, #tpu.memory_space<vmem>>, vector<32x288xbf16>
    %cst_4 = arith.constant dense<0.000000e+00> : vector<32x24xf32>
    %14 = tpu.matmul %13, %12, %cst_4 {dimension_numbers = #tpu.dot_dimension_numbers<[1], [0], [0], [1], [0, 0, 1, 1], [], []>} : vector<32x288xbf16>, vector<288x24xbf16>, vector<32x24xf32> -> vector<32x24xf32>
    %15 = arith.addf %2, %14 : vector<32x24xf32>
    %c0_5 = arith.constant 0 : index
    %c0_6 = arith.constant 0 : index
    %16 = vector.load %arg4[%c0_5, %c0_6] : memref<1x24xf32, #tpu.memory_space<vmem>>, vector<1x24xf32>
    %17 = vector.broadcast %16 : vector<1x24xf32> to vector<32x24xf32>
    %18 = arith.mulf %15, %17 : vector<32x24xf32>
    %cst_7 = arith.constant dense<0.000000e+00> : vector<32xf32>
    %19 = vector.multi_reduction <add>, %18, %cst_7 [1] : vector<32x24xf32> to vector<32xf32>
    %20 = vector.shape_cast %19 : vector<32xf32> to vector<32x1xf32>
    %cst_8 = arith.constant 6.250000e-02 : f32
    %21 = vector.broadcast %cst_8 : f32 to vector<32x1xf32>
    %22 = arith.mulf %20, %21 : vector<32x1xf32>
    %23 = vector.broadcast %22 : vector<32x1xf32> to vector<32x24xf32>
    %24 = arith.subf %15, %23 : vector<32x24xf32>
    %25 = vector.broadcast %16 : vector<1x24xf32> to vector<32x24xf32>
    %26 = arith.mulf %24, %25 : vector<32x24xf32>
    %27 = arith.mulf %26, %26 : vector<32x24xf32>
    %cst_9 = arith.constant dense<0.000000e+00> : vector<32xf32>
    %28 = vector.multi_reduction <add>, %27, %cst_9 [1] : vector<32x24xf32> to vector<32xf32>
    %29 = vector.shape_cast %28 : vector<32xf32> to vector<32x1xf32>
    %cst_10 = arith.constant 6.250000e-02 : f32
    %30 = vector.broadcast %cst_10 : f32 to vector<32x1xf32>
    %31 = arith.mulf %29, %30 : vector<32x1xf32>
    %cst_11 = arith.constant 9.99999974E-6 : f32
    %32 = vector.broadcast %cst_11 : f32 to vector<32x1xf32>
    %33 = arith.addf %31, %32 : vector<32x1xf32>
    %34 = math.rsqrt %33 : vector<32x1xf32>
    %35 = vector.broadcast %34 : vector<32x1xf32> to vector<32x24xf32>
    %36 = arith.mulf %26, %35 : vector<32x24xf32>
    %37 = arith.truncf %36 : vector<32x24xf32> to vector<32x24xbf16>
    %c0_12 = arith.constant 0 : index
    %c0_13 = arith.constant 0 : index
    %c0_14 = arith.constant 0 : index
    %38 = vector.load %arg5[%c0_12, %c0_13, %c0_14] : memref<1x32x24xbf16, #tpu.memory_space<vmem>>, vector<1x32x24xbf16>
    %39 = vector.shape_cast %38 : vector<1x32x24xbf16> to vector<32x24xbf16>
    %40 = vector.shape_cast %37 : vector<32x24xbf16> to vector<1x32x24xbf16>
    tpu.vector_store %arg5[%c0_12, %c0_13, %c0_14], %40 {strides = array<i32>} : memref<1x32x24xbf16, #tpu.memory_space<vmem>>, vector<1x32x24xbf16>,
    return
  }
  func.func @transform_0(%arg0: i32, %arg1: i32) -> (i32, i32, i32) {
    %c0_i32 = arith.constant 0 : i32
    %c0_i32_0 = arith.constant 0 : i32
    %c0_i32_1 = arith.constant 0 : i32
    return %arg0, %c0_i32, %c0_i32_0 : i32, i32, i32
  }
  func.func @transform_1(%arg0: i32, %arg1: i32) -> (i32, i32) {
    %c0_i32 = arith.constant 0 : i32
    %c0_i32_0 = arith.constant 0 : i32
    return %arg1, %c0_i32 : i32, i32
  }
  func.func @transform_2(%arg0: i32, %arg1: i32) -> (i32, i32) {
    %c0_i32 = arith.constant 0 : i32
    %c0_i32_0 = arith.constant 0 : i32
    %c0_i32_1 = arith.constant 0 : i32
    return %c0_i32, %c0_i32_0 : i32, i32
  }
  func.func @transform_3(%arg0: i32, %arg1: i32) -> (i32, i32, i32) {
    %c0_i32 = arith.constant 0 : i32
    %c0_i32_0 = arith.constant 0 : i32
    return %arg0, %arg1, %c0_i32 : i32, i32, i32
  }
}

module attributes {stable_mosaic.version = 11 : i64} {
  func.func @_conv_epilogue_kernel(%arg0: i32, %arg1: i32, %arg2: memref<1x32x42xbf16, #tpu.memory_space<vmem>>, %arg3: memref<32x288xbf16, #tpu.memory_space<vmem>>, %arg4: memref<1x24xf32, #tpu.memory_space<vmem>>, %arg5: memref<1x32x24xbf16, #tpu.memory_space<vmem>>) attributes {dimension_semantics = [#tpu.dimension_semantics<parallel>, #tpu.dimension_semantics<parallel>], iteration_bounds = array<i64: 2, 1>, scalar_prefetch = 0 : i64, scratch_operands = 0 : i64, tpu.core_type = #tpu.core_type<tc>, window_params = [{transform_indices = @transform_0, window_bounds = array<i64: 1, 32, 42>}, {transform_indices = @transform_1, window_bounds = array<i64: 32, 288>}, {pipeline_mode = #tpu.pipeline_mode<synchronous>, transform_indices = @transform_2, window_bounds = array<i64: 1, 24>}, {transform_indices = @transform_3, window_bounds = array<i64: 1, 32, 24>}]} {
    %c0 = arith.constant 0 : index
    %c0_0 = arith.constant 0 : index
    %c0_1 = arith.constant 0 : index
    %0 = vector.load %arg2[%c0, %c0_0, %c0_1] : memref<1x32x42xbf16, #tpu.memory_space<vmem>>, vector<1x32x42xbf16>
    %1 = vector.shape_cast %0 : vector<1x32x42xbf16> to vector<32x42xbf16>
    %cst = arith.constant 0.000000e+00 : f32
    %2 = vector.broadcast %cst : f32 to vector<32x24xf32>
    %3 = vector.extract_strided_slice %1 {offsets = [0, 0], sizes = [32, 24], strides = [1, 1]} : vector<32x42xbf16> to vector<32x24xbf16>
    %4 = vector.extract_strided_slice %1 {offsets = [0, 1], sizes = [32, 24], strides = [1, 1]} : vector<32x42xbf16> to vector<32x24xbf16>
    %5 = vector.extract_strided_slice %1 {offsets = [0, 2], sizes = [32, 24], strides = [1, 1]} : vector<32x42xbf16> to vector<32x24xbf16>
    %6 = vector.extract_strided_slice %1 {offsets = [0, 6], sizes = [32, 24], strides = [1, 1]} : vector<32x42xbf16> to vector<32x24xbf16>
    %7 = vector.extract_strided_slice %1 {offsets = [0, 7], sizes = [32, 24], strides = [1, 1]} : vector<32x42xbf16> to vector<32x24xbf16>
    %8 = vector.extract_strided_slice %1 {offsets = [0, 8], sizes = [32, 24], strides = [1, 1]} : vector<32x42xbf16> to vector<32x24xbf16>
    %9 = vector.extract_strided_slice %1 {offsets = [0, 12], sizes = [32, 24], strides = [1, 1]} : vector<32x42xbf16> to vector<32x24xbf16>
    %10 = vector.extract_strided_slice %1 {offsets = [0, 13], sizes = [32, 24], strides = [1, 1]} : vector<32x42xbf16> to vector<32x24xbf16>
    %11 = vector.extract_strided_slice %1 {offsets = [0, 14], sizes = [32, 24], strides = [1, 1]} : vector<32x42xbf16> to vector<32x24xbf16>
    %12 = tpu.concatenate %3, %4, %5, %6, %7, %8, %9, %10, %11 in 0 : vector<32x24xbf16>, vector<32x24xbf16>, vector<32x24xbf16>, vector<32x24xbf16>, vector<32x24xbf16>, vector<32x24xbf16>, vector<32x24xbf16>, vector<32x24xbf16>, vector<32x24xbf16> -> vector<288x24xbf16>
    %c0_2 = arith.constant 0 : index
    %c0_3 = arith.constant 0 : index
    %13 = vector.load %arg3[%c0_2, %c0_3] : memref<32x288xbf16, #tpu.memory_space<vmem>>, vector<32x288xbf16>
    %cst_4 = arith.constant dense<0.000000e+00> : vector<32x24xf32>
    %14 = tpu.matmul %13, %12, %cst_4 {dimension_numbers = #tpu.dot_dimension_numbers<[1], [0], [0], [1], [0, 0, 1, 1], [], []>} : vector<32x288xbf16>, vector<288x24xbf16>, vector<32x24xf32> -> vector<32x24xf32>
    %15 = arith.addf %2, %14 : vector<32x24xf32>
    %c0_5 = arith.constant 0 : index
    %c0_6 = arith.constant 0 : index
    %16 = vector.load %arg4[%c0_5, %c0_6] : memref<1x24xf32, #tpu.memory_space<vmem>>, vector<1x24xf32>
    %17 = vector.broadcast %16 : vector<1x24xf32> to vector<32x24xf32>
    %18 = arith.mulf %15, %17 : vector<32x24xf32>
    %cst_7 = arith.constant dense<0.000000e+00> : vector<32xf32>
    %19 = vector.multi_reduction <add>, %18, %cst_7 [1] : vector<32x24xf32> to vector<32xf32>
    %20 = vector.shape_cast %19 : vector<32xf32> to vector<32x1xf32>
    %cst_8 = arith.constant 6.250000e-02 : f32
    %21 = vector.broadcast %cst_8 : f32 to vector<32x1xf32>
    %22 = arith.mulf %20, %21 : vector<32x1xf32>
    %23 = vector.broadcast %22 : vector<32x1xf32> to vector<32x24xf32>
    %24 = arith.subf %15, %23 : vector<32x24xf32>
    %25 = vector.broadcast %16 : vector<1x24xf32> to vector<32x24xf32>
    %26 = arith.mulf %24, %25 : vector<32x24xf32>
    %27 = arith.mulf %26, %26 : vector<32x24xf32>
    %cst_9 = arith.constant dense<0.000000e+00> : vector<32xf32>
    %28 = vector.multi_reduction <add>, %27, %cst_9 [1] : vector<32x24xf32> to vector<32xf32>
    %29 = vector.shape_cast %28 : vector<32xf32> to vector<32x1xf32>
    %cst_10 = arith.constant 6.250000e-02 : f32
    %30 = vector.broadcast %cst_10 : f32 to vector<32x1xf32>
    %31 = arith.mulf %29, %30 : vector<32x1xf32>
    %cst_11 = arith.constant 9.99999974E-6 : f32
    %32 = vector.broadcast %cst_11 : f32 to vector<32x1xf32>
    %33 = arith.addf %31, %32 : vector<32x1xf32>
    %34 = math.rsqrt %33 : vector<32x1xf32>
    %35 = vector.broadcast %34 : vector<32x1xf32> to vector<32x24xf32>
    %36 = arith.mulf %26, %35 : vector<32x24xf32>
    %cst_12 = arith.constant 0.000000e+00 : f32
    %37 = vector.broadcast %cst_12 : f32 to vector<32x24xf32>
    %38 = arith.maximumf %36, %37 : vector<32x24xf32>
    %39 = arith.truncf %38 : vector<32x24xf32> to vector<32x24xbf16>
    %c0_13 = arith.constant 0 : index
    %c0_14 = arith.constant 0 : index
    %c0_15 = arith.constant 0 : index
    %40 = vector.load %arg5[%c0_13, %c0_14, %c0_15] : memref<1x32x24xbf16, #tpu.memory_space<vmem>>, vector<1x32x24xbf16>
    %41 = vector.shape_cast %40 : vector<1x32x24xbf16> to vector<32x24xbf16>
    %42 = vector.shape_cast %39 : vector<32x24xbf16> to vector<1x32x24xbf16>
    tpu.vector_store %arg5[%c0_13, %c0_14, %c0_15], %42 {strides = array<i32>} : memref<1x32x24xbf16, #tpu.memory_space<vmem>>, vector<1x32x24xbf16>,
    return
  }
  func.func @transform_0(%arg0: i32, %arg1: i32) -> (i32, i32, i32) {
    %c0_i32 = arith.constant 0 : i32
    %c0_i32_0 = arith.constant 0 : i32
    %c0_i32_1 = arith.constant 0 : i32
    return %arg0, %c0_i32, %c0_i32_0 : i32, i32, i32
  }
  func.func @transform_1(%arg0: i32, %arg1: i32) -> (i32, i32) {
    %c0_i32 = arith.constant 0 : i32
    %c0_i32_0 = arith.constant 0 : i32
    return %arg1, %c0_i32 : i32, i32
  }
  func.func @transform_2(%arg0: i32, %arg1: i32) -> (i32, i32) {
    %c0_i32 = arith.constant 0 : i32
    %c0_i32_0 = arith.constant 0 : i32
    %c0_i32_1 = arith.constant 0 : i32
    return %c0_i32, %c0_i32_0 : i32, i32
  }
  func.func @transform_3(%arg0: i32, %arg1: i32) -> (i32, i32, i32) {
    %c0_i32 = arith.constant 0 : i32
    %c0_i32_0 = arith.constant 0 : i32
    return %arg0, %arg1, %c0_i32 : i32, i32, i32
  }
}

module attributes {stable_mosaic.version = 11 : i64} {
  func.func @_conv_epilogue_kernel(%arg0: i32, %arg1: i32, %arg2: memref<1x32x30xbf16, #tpu.memory_space<vmem>>, %arg3: memref<64x128xbf16, #tpu.memory_space<vmem>>, %arg4: memref<1x20xf32, #tpu.memory_space<vmem>>, %arg5: memref<1x64x20xbf16, #tpu.memory_space<vmem>>) attributes {dimension_semantics = [#tpu.dimension_semantics<parallel>, #tpu.dimension_semantics<parallel>], iteration_bounds = array<i64: 2, 1>, scalar_prefetch = 0 : i64, scratch_operands = 0 : i64, tpu.core_type = #tpu.core_type<tc>, window_params = [{transform_indices = @transform_0, window_bounds = array<i64: 1, 32, 30>}, {transform_indices = @transform_1, window_bounds = array<i64: 64, 128>}, {pipeline_mode = #tpu.pipeline_mode<synchronous>, transform_indices = @transform_2, window_bounds = array<i64: 1, 20>}, {transform_indices = @transform_3, window_bounds = array<i64: 1, 64, 20>}]} {
    %c0 = arith.constant 0 : index
    %c0_0 = arith.constant 0 : index
    %c0_1 = arith.constant 0 : index
    %0 = vector.load %arg2[%c0, %c0_0, %c0_1] : memref<1x32x30xbf16, #tpu.memory_space<vmem>>, vector<1x32x30xbf16>
    %1 = vector.shape_cast %0 : vector<1x32x30xbf16> to vector<32x30xbf16>
    %cst = arith.constant 0.000000e+00 : f32
    %2 = vector.broadcast %cst : f32 to vector<64x20xf32>
    %3 = vector.extract_strided_slice %1 {offsets = [0, 0], sizes = [32, 20], strides = [1, 1]} : vector<32x30xbf16> to vector<32x20xbf16>
    %4 = vector.extract_strided_slice %1 {offsets = [0, 1], sizes = [32, 20], strides = [1, 1]} : vector<32x30xbf16> to vector<32x20xbf16>
    %5 = vector.extract_strided_slice %1 {offsets = [0, 5], sizes = [32, 20], strides = [1, 1]} : vector<32x30xbf16> to vector<32x20xbf16>
    %6 = vector.extract_strided_slice %1 {offsets = [0, 6], sizes = [32, 20], strides = [1, 1]} : vector<32x30xbf16> to vector<32x20xbf16>
    %7 = tpu.concatenate %3, %4, %5, %6 in 0 : vector<32x20xbf16>, vector<32x20xbf16>, vector<32x20xbf16>, vector<32x20xbf16> -> vector<128x20xbf16>
    %c0_2 = arith.constant 0 : index
    %c0_3 = arith.constant 0 : index
    %8 = vector.load %arg3[%c0_2, %c0_3] : memref<64x128xbf16, #tpu.memory_space<vmem>>, vector<64x128xbf16>
    %cst_4 = arith.constant dense<0.000000e+00> : vector<64x20xf32>
    %9 = tpu.matmul %8, %7, %cst_4 {dimension_numbers = #tpu.dot_dimension_numbers<[1], [0], [0], [1], [0, 0, 1, 1], [], []>} : vector<64x128xbf16>, vector<128x20xbf16>, vector<64x20xf32> -> vector<64x20xf32>
    %10 = arith.addf %2, %9 : vector<64x20xf32>
    %c0_5 = arith.constant 0 : index
    %c0_6 = arith.constant 0 : index
    %11 = vector.load %arg4[%c0_5, %c0_6] : memref<1x20xf32, #tpu.memory_space<vmem>>, vector<1x20xf32>
    %12 = vector.broadcast %11 : vector<1x20xf32> to vector<64x20xf32>
    %13 = arith.mulf %10, %12 : vector<64x20xf32>
    %cst_7 = arith.constant dense<0.000000e+00> : vector<64xf32>
    %14 = vector.multi_reduction <add>, %13, %cst_7 [1] : vector<64x20xf32> to vector<64xf32>
    %15 = vector.shape_cast %14 : vector<64xf32> to vector<64x1xf32>
    %16 = vector.extract_strided_slice %15 {offsets = [0, 0], sizes = [16, 1], strides = [1, 1]} : vector<64x1xf32> to vector<16x1xf32>
    %17 = vector.extract_strided_slice %15 {offsets = [16, 0], sizes = [16, 1], strides = [1, 1]} : vector<64x1xf32> to vector<16x1xf32>
    %18 = arith.addf %16, %17 : vector<16x1xf32>
    %19 = vector.extract_strided_slice %15 {offsets = [32, 0], sizes = [16, 1], strides = [1, 1]} : vector<64x1xf32> to vector<16x1xf32>
    %20 = arith.addf %18, %19 : vector<16x1xf32>
    %21 = vector.extract_strided_slice %15 {offsets = [48, 0], sizes = [16, 1], strides = [1, 1]} : vector<64x1xf32> to vector<16x1xf32>
    %22 = arith.addf %20, %21 : vector<16x1xf32>
    %23 = tpu.concatenate %22, %22, %22, %22 in 0 : vector<16x1xf32>, vector<16x1xf32>, vector<16x1xf32>, vector<16x1xf32> -> vector<64x1xf32>
    %cst_8 = arith.constant 1.562500e-02 : f32
    %24 = vector.broadcast %cst_8 : f32 to vector<64x1xf32>
    %25 = arith.mulf %23, %24 : vector<64x1xf32>
    %26 = vector.broadcast %25 : vector<64x1xf32> to vector<64x20xf32>
    %27 = arith.subf %10, %26 : vector<64x20xf32>
    %28 = vector.broadcast %11 : vector<1x20xf32> to vector<64x20xf32>
    %29 = arith.mulf %27, %28 : vector<64x20xf32>
    %30 = arith.mulf %29, %29 : vector<64x20xf32>
    %cst_9 = arith.constant dense<0.000000e+00> : vector<64xf32>
    %31 = vector.multi_reduction <add>, %30, %cst_9 [1] : vector<64x20xf32> to vector<64xf32>
    %32 = vector.shape_cast %31 : vector<64xf32> to vector<64x1xf32>
    %33 = vector.extract_strided_slice %32 {offsets = [0, 0], sizes = [16, 1], strides = [1, 1]} : vector<64x1xf32> to vector<16x1xf32>
    %34 = vector.extract_strided_slice %32 {offsets = [16, 0], sizes = [16, 1], strides = [1, 1]} : vector<64x1xf32> to vector<16x1xf32>
    %35 = arith.addf %33, %34 : vector<16x1xf32>
    %36 = vector.extract_strided_slice %32 {offsets = [32, 0], sizes = [16, 1], strides = [1, 1]} : vector<64x1xf32> to vector<16x1xf32>
    %37 = arith.addf %35, %36 : vector<16x1xf32>
    %38 = vector.extract_strided_slice %32 {offsets = [48, 0], sizes = [16, 1], strides = [1, 1]} : vector<64x1xf32> to vector<16x1xf32>
    %39 = arith.addf %37, %38 : vector<16x1xf32>
    %40 = tpu.concatenate %39, %39, %39, %39 in 0 : vector<16x1xf32>, vector<16x1xf32>, vector<16x1xf32>, vector<16x1xf32> -> vector<64x1xf32>
    %cst_10 = arith.constant 1.562500e-02 : f32
    %41 = vector.broadcast %cst_10 : f32 to vector<64x1xf32>
    %42 = arith.mulf %40, %41 : vector<64x1xf32>
    %cst_11 = arith.constant 9.99999974E-6 : f32
    %43 = vector.broadcast %cst_11 : f32 to vector<64x1xf32>
    %44 = arith.addf %42, %43 : vector<64x1xf32>
    %45 = math.rsqrt %44 : vector<64x1xf32>
    %46 = vector.broadcast %45 : vector<64x1xf32> to vector<64x20xf32>
    %47 = arith.mulf %29, %46 : vector<64x20xf32>
    %cst_12 = arith.constant 0.000000e+00 : f32
    %48 = vector.broadcast %cst_12 : f32 to vector<64x20xf32>
    %49 = arith.maximumf %47, %48 : vector<64x20xf32>
    %50 = arith.truncf %49 : vector<64x20xf32> to vector<64x20xbf16>
    %c0_13 = arith.constant 0 : index
    %c0_14 = arith.constant 0 : index
    %c0_15 = arith.constant 0 : index
    %51 = vector.load %arg5[%c0_13, %c0_14, %c0_15] : memref<1x64x20xbf16, #tpu.memory_space<vmem>>, vector<1x64x20xbf16>
    %52 = vector.shape_cast %51 : vector<1x64x20xbf16> to vector<64x20xbf16>
    %53 = vector.shape_cast %50 : vector<64x20xbf16> to vector<1x64x20xbf16>
    tpu.vector_store %arg5[%c0_13, %c0_14, %c0_15], %53 {strides = array<i32>} : memref<1x64x20xbf16, #tpu.memory_space<vmem>>, vector<1x64x20xbf16>,
    return
  }
  func.func @transform_0(%arg0: i32, %arg1: i32) -> (i32, i32, i32) {
    %c0_i32 = arith.constant 0 : i32
    %c0_i32_0 = arith.constant 0 : i32
    %c0_i32_1 = arith.constant 0 : i32
    return %arg0, %c0_i32, %c0_i32_0 : i32, i32, i32
  }
  func.func @transform_1(%arg0: i32, %arg1: i32) -> (i32, i32) {
    %c0_i32 = arith.constant 0 : i32
    %c0_i32_0 = arith.constant 0 : i32
    return %arg1, %c0_i32 : i32, i32
  }
  func.func @transform_2(%arg0: i32, %arg1: i32) -> (i32, i32) {
    %c0_i32 = arith.constant 0 : i32
    %c0_i32_0 = arith.constant 0 : i32
    %c0_i32_1 = arith.constant 0 : i32
    return %c0_i32, %c0_i32_0 : i32, i32
  }
  func.func @transform_3(%arg0: i32, %arg1: i32) -> (i32, i32, i32) {
    %c0_i32 = arith.constant 0 : i32
    %c0_i32_0 = arith.constant 0 : i32
    return %arg0, %arg1, %c0_i32 : i32, i32, i32
  }
}

module attributes {stable_mosaic.version = 11 : i64} {
  func.func @_conv_epilogue_kernel(%arg0: i32, %arg1: i32, %arg2: memref<1x16x90xbf16, #tpu.memory_space<vmem>>, %arg3: memref<32x64xbf16, #tpu.memory_space<vmem>>, %arg4: memref<1x72xf32, #tpu.memory_space<vmem>>, %arg5: memref<1x32x72xbf16, #tpu.memory_space<vmem>>) attributes {dimension_semantics = [#tpu.dimension_semantics<parallel>, #tpu.dimension_semantics<parallel>], iteration_bounds = array<i64: 2, 1>, scalar_prefetch = 0 : i64, scratch_operands = 0 : i64, tpu.core_type = #tpu.core_type<tc>, window_params = [{transform_indices = @transform_0, window_bounds = array<i64: 1, 16, 90>}, {transform_indices = @transform_1, window_bounds = array<i64: 32, 64>}, {pipeline_mode = #tpu.pipeline_mode<synchronous>, transform_indices = @transform_2, window_bounds = array<i64: 1, 72>}, {transform_indices = @transform_3, window_bounds = array<i64: 1, 32, 72>}]} {
    %c0 = arith.constant 0 : index
    %c0_0 = arith.constant 0 : index
    %c0_1 = arith.constant 0 : index
    %0 = vector.load %arg2[%c0, %c0_0, %c0_1] : memref<1x16x90xbf16, #tpu.memory_space<vmem>>, vector<1x16x90xbf16>
    %1 = vector.shape_cast %0 : vector<1x16x90xbf16> to vector<16x90xbf16>
    %cst = arith.constant 0.000000e+00 : f32
    %2 = vector.broadcast %cst : f32 to vector<32x72xf32>
    %3 = vector.extract_strided_slice %1 {offsets = [0, 0], sizes = [16, 72], strides = [1, 1]} : vector<16x90xbf16> to vector<16x72xbf16>
    %4 = vector.extract_strided_slice %1 {offsets = [0, 1], sizes = [16, 72], strides = [1, 1]} : vector<16x90xbf16> to vector<16x72xbf16>
    %5 = vector.extract_strided_slice %1 {offsets = [0, 9], sizes = [16, 72], strides = [1, 1]} : vector<16x90xbf16> to vector<16x72xbf16>
    %6 = vector.extract_strided_slice %1 {offsets = [0, 10], sizes = [16, 72], strides = [1, 1]} : vector<16x90xbf16> to vector<16x72xbf16>
    %7 = tpu.concatenate %3, %4, %5, %6 in 0 : vector<16x72xbf16>, vector<16x72xbf16>, vector<16x72xbf16>, vector<16x72xbf16> -> vector<64x72xbf16>
    %c0_2 = arith.constant 0 : index
    %c0_3 = arith.constant 0 : index
    %8 = vector.load %arg3[%c0_2, %c0_3] : memref<32x64xbf16, #tpu.memory_space<vmem>>, vector<32x64xbf16>
    %cst_4 = arith.constant dense<0.000000e+00> : vector<32x72xf32>
    %9 = tpu.matmul %8, %7, %cst_4 {dimension_numbers = #tpu.dot_dimension_numbers<[1], [0], [0], [1], [0, 0, 1, 1], [], []>} : vector<32x64xbf16>, vector<64x72xbf16>, vector<32x72xf32> -> vector<32x72xf32>
    %10 = arith.addf %2, %9 : vector<32x72xf32>
    %c0_5 = arith.constant 0 : index
    %c0_6 = arith.constant 0 : index
    %11 = vector.load %arg4[%c0_5, %c0_6] : memref<1x72xf32, #tpu.memory_space<vmem>>, vector<1x72xf32>
    %12 = vector.broadcast %11 : vector<1x72xf32> to vector<32x72xf32>
    %13 = arith.mulf %10, %12 : vector<32x72xf32>
    %cst_7 = arith.constant dense<0.000000e+00> : vector<32xf32>
    %14 = vector.multi_reduction <add>, %13, %cst_7 [1] : vector<32x72xf32> to vector<32xf32>
    %15 = vector.shape_cast %14 : vector<32xf32> to vector<32x1xf32>
    %16 = vector.extract_strided_slice %15 {offsets = [0, 0], sizes = [8, 1], strides = [1, 1]} : vector<32x1xf32> to vector<8x1xf32>
    %17 = vector.extract_strided_slice %15 {offsets = [8, 0], sizes = [8, 1], strides = [1, 1]} : vector<32x1xf32> to vector<8x1xf32>
    %18 = arith.addf %16, %17 : vector<8x1xf32>
    %19 = vector.extract_strided_slice %15 {offsets = [16, 0], sizes = [8, 1], strides = [1, 1]} : vector<32x1xf32> to vector<8x1xf32>
    %20 = arith.addf %18, %19 : vector<8x1xf32>
    %21 = vector.extract_strided_slice %15 {offsets = [24, 0], sizes = [8, 1], strides = [1, 1]} : vector<32x1xf32> to vector<8x1xf32>
    %22 = arith.addf %20, %21 : vector<8x1xf32>
    %23 = tpu.concatenate %22, %22, %22, %22 in 0 : vector<8x1xf32>, vector<8x1xf32>, vector<8x1xf32>, vector<8x1xf32> -> vector<32x1xf32>
    %cst_8 = arith.constant 3.906250e-03 : f32
    %24 = vector.broadcast %cst_8 : f32 to vector<32x1xf32>
    %25 = arith.mulf %23, %24 : vector<32x1xf32>
    %26 = vector.broadcast %25 : vector<32x1xf32> to vector<32x72xf32>
    %27 = arith.subf %10, %26 : vector<32x72xf32>
    %28 = vector.broadcast %11 : vector<1x72xf32> to vector<32x72xf32>
    %29 = arith.mulf %27, %28 : vector<32x72xf32>
    %30 = arith.mulf %29, %29 : vector<32x72xf32>
    %cst_9 = arith.constant dense<0.000000e+00> : vector<32xf32>
    %31 = vector.multi_reduction <add>, %30, %cst_9 [1] : vector<32x72xf32> to vector<32xf32>
    %32 = vector.shape_cast %31 : vector<32xf32> to vector<32x1xf32>
    %33 = vector.extract_strided_slice %32 {offsets = [0, 0], sizes = [8, 1], strides = [1, 1]} : vector<32x1xf32> to vector<8x1xf32>
    %34 = vector.extract_strided_slice %32 {offsets = [8, 0], sizes = [8, 1], strides = [1, 1]} : vector<32x1xf32> to vector<8x1xf32>
    %35 = arith.addf %33, %34 : vector<8x1xf32>
    %36 = vector.extract_strided_slice %32 {offsets = [16, 0], sizes = [8, 1], strides = [1, 1]} : vector<32x1xf32> to vector<8x1xf32>
    %37 = arith.addf %35, %36 : vector<8x1xf32>
    %38 = vector.extract_strided_slice %32 {offsets = [24, 0], sizes = [8, 1], strides = [1, 1]} : vector<32x1xf32> to vector<8x1xf32>
    %39 = arith.addf %37, %38 : vector<8x1xf32>
    %40 = tpu.concatenate %39, %39, %39, %39 in 0 : vector<8x1xf32>, vector<8x1xf32>, vector<8x1xf32>, vector<8x1xf32> -> vector<32x1xf32>
    %cst_10 = arith.constant 3.906250e-03 : f32
    %41 = vector.broadcast %cst_10 : f32 to vector<32x1xf32>
    %42 = arith.mulf %40, %41 : vector<32x1xf32>
    %cst_11 = arith.constant 9.99999974E-6 : f32
    %43 = vector.broadcast %cst_11 : f32 to vector<32x1xf32>
    %44 = arith.addf %42, %43 : vector<32x1xf32>
    %45 = math.rsqrt %44 : vector<32x1xf32>
    %46 = vector.broadcast %45 : vector<32x1xf32> to vector<32x72xf32>
    %47 = arith.mulf %29, %46 : vector<32x72xf32>
    %cst_12 = arith.constant 0.000000e+00 : f32
    %48 = vector.broadcast %cst_12 : f32 to vector<32x72xf32>
    %49 = arith.maximumf %47, %48 : vector<32x72xf32>
    %50 = arith.truncf %49 : vector<32x72xf32> to vector<32x72xbf16>
    %c0_13 = arith.constant 0 : index
    %c0_14 = arith.constant 0 : index
    %c0_15 = arith.constant 0 : index
    %51 = vector.load %arg5[%c0_13, %c0_14, %c0_15] : memref<1x32x72xbf16, #tpu.memory_space<vmem>>, vector<1x32x72xbf16>
    %52 = vector.shape_cast %51 : vector<1x32x72xbf16> to vector<32x72xbf16>
    %53 = vector.shape_cast %50 : vector<32x72xbf16> to vector<1x32x72xbf16>
    tpu.vector_store %arg5[%c0_13, %c0_14, %c0_15], %53 {strides = array<i32>} : memref<1x32x72xbf16, #tpu.memory_space<vmem>>, vector<1x32x72xbf16>,
    return
  }
  func.func @transform_0(%arg0: i32, %arg1: i32) -> (i32, i32, i32) {
    %c0_i32 = arith.constant 0 : i32
    %c0_i32_0 = arith.constant 0 : i32
    %c0_i32_1 = arith.constant 0 : i32
    return %arg0, %c0_i32, %c0_i32_0 : i32, i32, i32
  }
  func.func @transform_1(%arg0: i32, %arg1: i32) -> (i32, i32) {
    %c0_i32 = arith.constant 0 : i32
    %c0_i32_0 = arith.constant 0 : i32
    return %arg1, %c0_i32 : i32, i32
  }
  func.func @transform_2(%arg0: i32, %arg1: i32) -> (i32, i32) {
    %c0_i32 = arith.constant 0 : i32
    %c0_i32_0 = arith.constant 0 : i32
    %c0_i32_1 = arith.constant 0 : i32
    return %c0_i32, %c0_i32_0 : i32, i32
  }
  func.func @transform_3(%arg0: i32, %arg1: i32) -> (i32, i32, i32) {
    %c0_i32 = arith.constant 0 : i32
    %c0_i32_0 = arith.constant 0 : i32
    return %arg0, %arg1, %c0_i32 : i32, i32, i32
  }
}

module attributes {stable_mosaic.version = 11 : i64} {
  func.func @_conv_epilogue_kernel(%arg0: i32, %arg1: i32, %arg2: memref<1x16x506xbf16, #tpu.memory_space<vmem>>, %arg3: memref<3x784xbf16, #tpu.memory_space<vmem>>, %arg4: memref<3x1xf32, #tpu.memory_space<vmem>>, %arg5: memref<1x3x352xf32, #tpu.memory_space<vmem>>) attributes {dimension_semantics = [#tpu.dimension_semantics<parallel>, #tpu.dimension_semantics<parallel>], iteration_bounds = array<i64: 2, 1>, scalar_prefetch = 0 : i64, scratch_operands = 0 : i64, tpu.core_type = #tpu.core_type<tc>, window_params = [{transform_indices = @transform_0, window_bounds = array<i64: 1, 16, 506>}, {transform_indices = @transform_1, window_bounds = array<i64: 3, 784>}, {transform_indices = @transform_2, window_bounds = array<i64: 3, 1>}, {transform_indices = @transform_3, window_bounds = array<i64: 1, 3, 352>}]} {
    %c0 = arith.constant 0 : index
    %c0_0 = arith.constant 0 : index
    %c0_1 = arith.constant 0 : index
    %0 = vector.load %arg2[%c0, %c0_0, %c0_1] : memref<1x16x506xbf16, #tpu.memory_space<vmem>>, vector<1x16x506xbf16>
    %1 = vector.shape_cast %0 : vector<1x16x506xbf16> to vector<16x506xbf16>
    %cst = arith.constant 0.000000e+00 : f32
    %2 = vector.broadcast %cst : f32 to vector<3x352xf32>
    %3 = vector.extract_strided_slice %1 {offsets = [0, 0], sizes = [16, 352], strides = [1, 1]} : vector<16x506xbf16> to vector<16x352xbf16>
    %4 = vector.extract_strided_slice %1 {offsets = [0, 1], sizes = [16, 352], strides = [1, 1]} : vector<16x506xbf16> to vector<16x352xbf16>
    %5 = vector.extract_strided_slice %1 {offsets = [0, 2], sizes = [16, 352], strides = [1, 1]} : vector<16x506xbf16> to vector<16x352xbf16>
    %6 = vector.extract_strided_slice %1 {offsets = [0, 3], sizes = [16, 352], strides = [1, 1]} : vector<16x506xbf16> to vector<16x352xbf16>
    %7 = vector.extract_strided_slice %1 {offsets = [0, 4], sizes = [16, 352], strides = [1, 1]} : vector<16x506xbf16> to vector<16x352xbf16>
    %8 = vector.extract_strided_slice %1 {offsets = [0, 5], sizes = [16, 352], strides = [1, 1]} : vector<16x506xbf16> to vector<16x352xbf16>
    %9 = vector.extract_strided_slice %1 {offsets = [0, 6], sizes = [16, 352], strides = [1, 1]} : vector<16x506xbf16> to vector<16x352xbf16>
    %10 = vector.extract_strided_slice %1 {offsets = [0, 22], sizes = [16, 352], strides = [1, 1]} : vector<16x506xbf16> to vector<16x352xbf16>
    %11 = vector.extract_strided_slice %1 {offsets = [0, 23], sizes = [16, 352], strides = [1, 1]} : vector<16x506xbf16> to vector<16x352xbf16>
    %12 = vector.extract_strided_slice %1 {offsets = [0, 24], sizes = [16, 352], strides = [1, 1]} : vector<16x506xbf16> to vector<16x352xbf16>
    %13 = vector.extract_strided_slice %1 {offsets = [0, 25], sizes = [16, 352], strides = [1, 1]} : vector<16x506xbf16> to vector<16x352xbf16>
    %14 = vector.extract_strided_slice %1 {offsets = [0, 26], sizes = [16, 352], strides = [1, 1]} : vector<16x506xbf16> to vector<16x352xbf16>
    %15 = vector.extract_strided_slice %1 {offsets = [0, 27], sizes = [16, 352], strides = [1, 1]} : vector<16x506xbf16> to vector<16x352xbf16>
    %16 = vector.extract_strided_slice %1 {offsets = [0, 28], sizes = [16, 352], strides = [1, 1]} : vector<16x506xbf16> to vector<16x352xbf16>
    %17 = vector.extract_strided_slice %1 {offsets = [0, 44], sizes = [16, 352], strides = [1, 1]} : vector<16x506xbf16> to vector<16x352xbf16>
    %18 = vector.extract_strided_slice %1 {offsets = [0, 45], sizes = [16, 352], strides = [1, 1]} : vector<16x506xbf16> to vector<16x352xbf16>
    %19 = vector.extract_strided_slice %1 {offsets = [0, 46], sizes = [16, 352], strides = [1, 1]} : vector<16x506xbf16> to vector<16x352xbf16>
    %20 = vector.extract_strided_slice %1 {offsets = [0, 47], sizes = [16, 352], strides = [1, 1]} : vector<16x506xbf16> to vector<16x352xbf16>
    %21 = vector.extract_strided_slice %1 {offsets = [0, 48], sizes = [16, 352], strides = [1, 1]} : vector<16x506xbf16> to vector<16x352xbf16>
    %22 = vector.extract_strided_slice %1 {offsets = [0, 49], sizes = [16, 352], strides = [1, 1]} : vector<16x506xbf16> to vector<16x352xbf16>
    %23 = vector.extract_strided_slice %1 {offsets = [0, 50], sizes = [16, 352], strides = [1, 1]} : vector<16x506xbf16> to vector<16x352xbf16>
    %24 = vector.extract_strided_slice %1 {offsets = [0, 66], sizes = [16, 352], strides = [1, 1]} : vector<16x506xbf16> to vector<16x352xbf16>
    %25 = vector.extract_strided_slice %1 {offsets = [0, 67], sizes = [16, 352], strides = [1, 1]} : vector<16x506xbf16> to vector<16x352xbf16>
    %26 = vector.extract_strided_slice %1 {offsets = [0, 68], sizes = [16, 352], strides = [1, 1]} : vector<16x506xbf16> to vector<16x352xbf16>
    %27 = vector.extract_strided_slice %1 {offsets = [0, 69], sizes = [16, 352], strides = [1, 1]} : vector<16x506xbf16> to vector<16x352xbf16>
    %28 = vector.extract_strided_slice %1 {offsets = [0, 70], sizes = [16, 352], strides = [1, 1]} : vector<16x506xbf16> to vector<16x352xbf16>
    %29 = vector.extract_strided_slice %1 {offsets = [0, 71], sizes = [16, 352], strides = [1, 1]} : vector<16x506xbf16> to vector<16x352xbf16>
    %30 = vector.extract_strided_slice %1 {offsets = [0, 72], sizes = [16, 352], strides = [1, 1]} : vector<16x506xbf16> to vector<16x352xbf16>
    %31 = vector.extract_strided_slice %1 {offsets = [0, 88], sizes = [16, 352], strides = [1, 1]} : vector<16x506xbf16> to vector<16x352xbf16>
    %32 = vector.extract_strided_slice %1 {offsets = [0, 89], sizes = [16, 352], strides = [1, 1]} : vector<16x506xbf16> to vector<16x352xbf16>
    %33 = vector.extract_strided_slice %1 {offsets = [0, 90], sizes = [16, 352], strides = [1, 1]} : vector<16x506xbf16> to vector<16x352xbf16>
    %34 = vector.extract_strided_slice %1 {offsets = [0, 91], sizes = [16, 352], strides = [1, 1]} : vector<16x506xbf16> to vector<16x352xbf16>
    %35 = vector.extract_strided_slice %1 {offsets = [0, 92], sizes = [16, 352], strides = [1, 1]} : vector<16x506xbf16> to vector<16x352xbf16>
    %36 = vector.extract_strided_slice %1 {offsets = [0, 93], sizes = [16, 352], strides = [1, 1]} : vector<16x506xbf16> to vector<16x352xbf16>
    %37 = vector.extract_strided_slice %1 {offsets = [0, 94], sizes = [16, 352], strides = [1, 1]} : vector<16x506xbf16> to vector<16x352xbf16>
    %38 = vector.extract_strided_slice %1 {offsets = [0, 110], sizes = [16, 352], strides = [1, 1]} : vector<16x506xbf16> to vector<16x352xbf16>
    %39 = vector.extract_strided_slice %1 {offsets = [0, 111], sizes = [16, 352], strides = [1, 1]} : vector<16x506xbf16> to vector<16x352xbf16>
    %40 = vector.extract_strided_slice %1 {offsets = [0, 112], sizes = [16, 352], strides = [1, 1]} : vector<16x506xbf16> to vector<16x352xbf16>
    %41 = vector.extract_strided_slice %1 {offsets = [0, 113], sizes = [16, 352], strides = [1, 1]} : vector<16x506xbf16> to vector<16x352xbf16>
    %42 = vector.extract_strided_slice %1 {offsets = [0, 114], sizes = [16, 352], strides = [1, 1]} : vector<16x506xbf16> to vector<16x352xbf16>
    %43 = vector.extract_strided_slice %1 {offsets = [0, 115], sizes = [16, 352], strides = [1, 1]} : vector<16x506xbf16> to vector<16x352xbf16>
    %44 = vector.extract_strided_slice %1 {offsets = [0, 116], sizes = [16, 352], strides = [1, 1]} : vector<16x506xbf16> to vector<16x352xbf16>
    %45 = vector.extract_strided_slice %1 {offsets = [0, 132], sizes = [16, 352], strides = [1, 1]} : vector<16x506xbf16> to vector<16x352xbf16>
    %46 = vector.extract_strided_slice %1 {offsets = [0, 133], sizes = [16, 352], strides = [1, 1]} : vector<16x506xbf16> to vector<16x352xbf16>
    %47 = vector.extract_strided_slice %1 {offsets = [0, 134], sizes = [16, 352], strides = [1, 1]} : vector<16x506xbf16> to vector<16x352xbf16>
    %48 = vector.extract_strided_slice %1 {offsets = [0, 135], sizes = [16, 352], strides = [1, 1]} : vector<16x506xbf16> to vector<16x352xbf16>
    %49 = vector.extract_strided_slice %1 {offsets = [0, 136], sizes = [16, 352], strides = [1, 1]} : vector<16x506xbf16> to vector<16x352xbf16>
    %50 = vector.extract_strided_slice %1 {offsets = [0, 137], sizes = [16, 352], strides = [1, 1]} : vector<16x506xbf16> to vector<16x352xbf16>
    %51 = vector.extract_strided_slice %1 {offsets = [0, 138], sizes = [16, 352], strides = [1, 1]} : vector<16x506xbf16> to vector<16x352xbf16>
    %52 = tpu.concatenate %3, %4, %5, %6, %7, %8, %9, %10, %11, %12, %13, %14, %15, %16, %17, %18 in 0 : vector<16x352xbf16>, vector<16x352xbf16>, vector<16x352xbf16>, vector<16x352xbf16>, vector<16x352xbf16>, vector<16x352xbf16>, vector<16x352xbf16>, vector<16x352xbf16>, vector<16x352xbf16>, vector<16x352xbf16>, vector<16x352xbf16>, vector<16x352xbf16>, vector<16x352xbf16>, vector<16x352xbf16>, vector<16x352xbf16>, vector<16x352xbf16> -> vector<256x352xbf16>
    %53 = tpu.concatenate %19, %20, %21, %22, %23, %24, %25, %26, %27, %28, %29, %30, %31, %32, %33, %34 in 0 : vector<16x352xbf16>, vector<16x352xbf16>, vector<16x352xbf16>, vector<16x352xbf16>, vector<16x352xbf16>, vector<16x352xbf16>, vector<16x352xbf16>, vector<16x352xbf16>, vector<16x352xbf16>, vector<16x352xbf16>, vector<16x352xbf16>, vector<16x352xbf16>, vector<16x352xbf16>, vector<16x352xbf16>, vector<16x352xbf16>, vector<16x352xbf16> -> vector<256x352xbf16>
    %54 = tpu.concatenate %35, %36, %37, %38, %39, %40, %41, %42, %43, %44, %45, %46, %47, %48, %49, %50 in 0 : vector<16x352xbf16>, vector<16x352xbf16>, vector<16x352xbf16>, vector<16x352xbf16>, vector<16x352xbf16>, vector<16x352xbf16>, vector<16x352xbf16>, vector<16x352xbf16>, vector<16x352xbf16>, vector<16x352xbf16>, vector<16x352xbf16>, vector<16x352xbf16>, vector<16x352xbf16>, vector<16x352xbf16>, vector<16x352xbf16>, vector<16x352xbf16> -> vector<256x352xbf16>
    %55 = tpu.concatenate %52, %53, %54, %51 in 0 : vector<256x352xbf16>, vector<256x352xbf16>, vector<256x352xbf16>, vector<16x352xbf16> -> vector<784x352xbf16>
    %c0_2 = arith.constant 0 : index
    %c0_3 = arith.constant 0 : index
    %56 = vector.load %arg3[%c0_2, %c0_3] : memref<3x784xbf16, #tpu.memory_space<vmem>>, vector<3x784xbf16>
    %cst_4 = arith.constant dense<0.000000e+00> : vector<3x352xf32>
    %57 = tpu.matmul %56, %55, %cst_4 {dimension_numbers = #tpu.dot_dimension_numbers<[1], [0], [0], [1], [0, 0, 1, 1], [], []>} : vector<3x784xbf16>, vector<784x352xbf16>, vector<3x352xf32> -> vector<3x352xf32>
    %58 = arith.addf %2, %57 : vector<3x352xf32>
    %c0_5 = arith.constant 0 : index
    %c0_6 = arith.constant 0 : index
    %59 = vector.load %arg4[%c0_5, %c0_6] : memref<3x1xf32, #tpu.memory_space<vmem>>, vector<3x1xf32>
    %60 = vector.broadcast %59 : vector<3x1xf32> to vector<3x352xf32>
    %61 = arith.addf %58, %60 : vector<3x352xf32>
    %62 = math.tanh %61 : vector<3x352xf32>
    %c0_7 = arith.constant 0 : index
    %c0_8 = arith.constant 0 : index
    %c0_9 = arith.constant 0 : index
    %63 = vector.load %arg5[%c0_7, %c0_8, %c0_9] : memref<1x3x352xf32, #tpu.memory_space<vmem>>, vector<1x3x352xf32>
    %64 = vector.shape_cast %63 : vector<1x3x352xf32> to vector<3x352xf32>
    %65 = vector.shape_cast %62 : vector<3x352xf32> to vector<1x3x352xf32>
    tpu.vector_store %arg5[%c0_7, %c0_8, %c0_9], %65 {strides = array<i32>} : memref<1x3x352xf32, #tpu.memory_space<vmem>>, vector<1x3x352xf32>,
    return
  }
  func.func @transform_0(%arg0: i32, %arg1: i32) -> (i32, i32, i32) {
    %c0_i32 = arith.constant 0 : i32
    %c0_i32_0 = arith.constant 0 : i32
    %c0_i32_1 = arith.constant 0 : i32
    return %arg0, %c0_i32, %c0_i32_0 : i32, i32, i32
  }
  func.func @transform_1(%arg0: i32, %arg1: i32) -> (i32, i32) {
    %c0_i32 = arith.constant 0 : i32
    %c0_i32_0 = arith.constant 0 : i32
    return %arg1, %c0_i32 : i32, i32
  }
  func.func @transform_2(%arg0: i32, %arg1: i32) -> (i32, i32) {
    %c0_i32 = arith.constant 0 : i32
    %c0_i32_0 = arith.constant 0 : i32
    return %arg1, %c0_i32 : i32, i32
  }
  func.func @transform_3(%arg0: i32, %arg1: i32) -> (i32, i32, i32) {
    %c0_i32 = arith.constant 0 : i32
    %c0_i32_0 = arith.constant 0 : i32
    return %arg0, %arg1, %c0_i32 : i32, i32, i32
  }
}

</mosaic_0001>

<llo_original>
// kernel: resnet_generator_forward.10
$region0: #{resnet_generator_forward.10}
  #allocation0 [shape = 'u32[]', space=smem, size = 0x4, offset = 0x4, fixed_abs, tag = 'smem constant byte address 0x4 - core index']
  #allocation1 [shape = 'u32[144,128]{1,0:T(1,128)}', space=vmem, size = 0x12000, scoped, tag = 'internal scratch']
  %s0 = inlined_call_operand.vmem [shape: bf16[2,16,506], index: 0, kind: input, shape index: {}]
  %s1 = inlined_call_operand.vmem [shape: bf16[8,784], index: 1, kind: input, shape index: {}]
  %s2 = inlined_call_operand.vmem [shape: f32[1,352], index: 2, kind: input, shape index: {}]
  %s3 = inlined_call_operand.vmem [shape: bf16[2,8,352], index: 3, kind: output, shape index: {}]
  %s4 = sld [smem:[#allocation0]]
  $region45: #{resnet_generator_forward.10} parent=0
    _
  %s6 = ssub.s32 1, %s4
  %s7 = scalar_select 0, %s6, %s4
  loop: start=0, step=1, limit=4
  $region2: #{resnet_generator_forward.10} parent=0 // loop_pre_header
    _
  $region3: #{resnet_generator_forward.10} parent=0 // loop_header
    %s9 = sphi 0, %s13
    %p10 = scmp.ge.s32.totalorder %s9, 4
    %s16 = sphi 0, %s28
    %s17 = sphi 0, %s24
    %s18 = sphi 0, %s16
    %s19 = sphi 0, %s17
    %s20 = sphi 0, %s18
    %s21 = sphi 0, %s19
    %s31 = sphi 0, %s33
    %s34 = sphi 0, %s31
    %s35 = sphi 0, %s34
    %s51 = sphi 0, %s35
    %s57 = sphi 0, %s59
    %s60 = sphi 0, %s57
    %s61 = sphi 0, %s60
    %s77 = sphi 0, %s61
    %s81 = sphi 0, %s81
    %s83 = sphi 0, %s81
    %s84 = sphi 0, %s83
    %s98 = sphi 0, %s84
    %s106 = sphi 0, %s108
    %s109 = sphi 0, %s106
    %s110 = sphi 0, %s109
    %s126 = sphi 0, %s110
  $region4: #{resnet_generator_forward.10} parent=0 // loop_header_branch
    %12 = sbr.rel (%p10) target = $region8
  $region5: #{resnet_generator_forward.10} parent=0 // loop_body
    %s14 = ssub.s32 %s9, 1
    %s15 = ssub.s32 %s9, 2
    %s22 = sadd.s32 1, %s17
    %p23 = scmp.ge.s32.totalorder %s22, 1
    %s24 = scalar_select %p23, 0, %s22
    %s25 = sadd.s32 1, %s16
    %s26 = scalar_select %p23, %s25, %s16
    %p27 = scmp.ge.s32.totalorder %s26, 2
    %s28 = scalar_select %p27, 0, %s26
    %s29 = ssub.s32 %s16, %s28
    %p30 = scmp.eq.s32.totalorder %s29, 0
    %s32 = sadd.s32 %s31, 1
    %s33 = scalar_select %p30, %s31, %s32
    %p36 = pneg %p30
    %p37 = scmp.eq.s32.totalorder %s9, 1
    %p38 = por %p36, %p37
    %p39 = scmp.ne.s32.totalorder %s31, %s34
    %p40 = scmp.eq.s32.totalorder %s9, 0
    %p41 = por %p39, %p40
    %p42 = scmp.ne.s32.totalorder %s31, %s34
    %p43 = scmp.eq.s32.totalorder %s14, 1
    %p44 = por %p42, %p43
    %p45 = scmp.ne.s32.totalorder %s34, %s35
    %p46 = scmp.eq.s32.totalorder %s14, 0
    %p47 = por %p45, %p46
    %p48 = scmp.ne.s32.totalorder %s34, %s35
    %p49 = scmp.eq.s32.totalorder %s15, 1
    %p50 = por %p48, %p49
    %p52 = scmp.ne.s32.totalorder %s35, %s51
    %p53 = scmp.eq.s32.totalorder %s15, 0
    %p54 = por %p52, %p53
    %s55 = ssub.s32 %s17, %s24
    %p56 = scmp.eq.s32.totalorder %s55, 0
    %s58 = sadd.s32 %s57, 1
    %s59 = scalar_select %p56, %s57, %s58
    %p62 = pneg %p56
    %p63 = scmp.eq.s32.totalorder %s9, 1
    %p64 = por %p62, %p63
    %p65 = scmp.ne.s32.totalorder %s57, %s60
    %p66 = scmp.eq.s32.totalorder %s9, 0
    %p67 = por %p65, %p66
    %p68 = scmp.ne.s32.totalorder %s57, %s60
    %p69 = scmp.eq.s32.totalorder %s14, 1
    %p70 = por %p68, %p69
    %p71 = scmp.ne.s32.totalorder %s60, %s61
    %p72 = scmp.eq.s32.totalorder %s14, 0
    %p73 = por %p71, %p72
    %p74 = scmp.ne.s32.totalorder %s60, %s61
    %p75 = scmp.eq.s32.totalorder %s15, 1
    %p76 = por %p74, %p75
    %p78 = scmp.ne.s32.totalorder %s61, %s77
    %p79 = scmp.eq.s32.totalorder %s15, 0
    %p80 = por %p78, %p79
    %s82 = sadd.s32 %s81, 1
    %p85 = scmp.eq.s32.totalorder %s9, 1
    %p86 = scmp.ne.s32.totalorder %s81, %s83
    %p87 = scmp.eq.s32.totalorder %s9, 0
    %p88 = por %p86, %p87
    %p89 = scmp.ne.s32.totalorder %s81, %s83
    %p90 = scmp.eq.s32.totalorder %s14, 1
    %p91 = por %p89, %p90
    %p92 = scmp.ne.s32.totalorder %s83, %s84
    %p93 = scmp.eq.s32.totalorder %s14, 0
    %p94 = por %p92, %p93
    %p95 = scmp.ne.s32.totalorder %s83, %s84
    %p96 = scmp.eq.s32.totalorder %s15, 1
    %p97 = por %p95, %p96
    %p99 = scmp.ne.s32.totalorder %s84, %s98
    %p100 = scmp.eq.s32.totalorder %s15, 0
    %p101 = por %p99, %p100
    %s102 = ssub.s32 %s16, %s28
    %s103 = ssub.s32 %s17, %s24
    %s104 = sor.u32 %s102, %s103
    %p105 = scmp.eq.s32.totalorder %s104, 0
    %s107 = sadd.s32 %s106, 1
    %s108 = scalar_select %p105, %s106, %s107
    %p111 = pneg %p105
    %p112 = scmp.eq.s32.totalorder %s9, 1
    %p113 = por %p111, %p112
    %p114 = scmp.ne.s32.totalorder %s106, %s109
    %p115 = scmp.eq.s32.totalorder %s9, 0
    %p116 = por %p114, %p115
    %p117 = scmp.ne.s32.totalorder %s106, %s109
    %p118 = scmp.eq.s32.totalorder %s14, 1
    %p119 = por %p117, %p118
    %p120 = scmp.ne.s32.totalorder %s109, %s110
    %p121 = scmp.eq.s32.totalorder %s14, 0
    %p122 = por %p120, %p121
    %p123 = scmp.ne.s32.totalorder %s109, %s110
    %p124 = scmp.eq.s32.totalorder %s15, 1
    %p125 = por %p123, %p124
    %p127 = scmp.ne.s32.totalorder %s110, %s126
    %p128 = scmp.eq.s32.totalorder %s15, 0
    %p129 = por %p127, %p128
    %p130 = scmp.le.s32.totalorder 1, %s9
    %p131 = scmp.lt.s32.totalorder %s9, 3
    %p132 = pnand %p130, %p131
    %p133 = pneg %p132
    // Predicated region
    $region9: #{resnet_generator_forward.10} parent=5 // pred_check
      _
    $region10: #{resnet_generator_forward.10} parent=5 // pred_check_branch
      %135 = sbr.rel (%p132) target = $region12
    $region11: #{resnet_generator_forward.10} parent=5 // pred_region
      %s136 = ssub.s32 %s9, 1
      // Predicated region
      $region13: #{resnet_generator_forward.10} parent=11 // pred_check
        %p137 = pneg %p73
      $region14: #{resnet_generator_forward.10} parent=11 // pred_check_branch
        %139 = sbr.rel (%p137) target = $region16
      $region15: #{resnet_generator_forward.10} parent=11 // pred_region
        %p140 = scmp.lt.s32.totalorder %s19, 0
        %s141 = scalar_select %p140, %s19, 0
        %s142 = smul.addr %s141, 7
        %s143 = smul.addr %s142, 4
        %s144 = scalar_lea.vmem %s1, %s143
      $region16: #{resnet_generator_forward.10} parent=11 // pred_fallthru
        _
      // Predicated region
      $region17: #{resnet_generator_forward.10} parent=11 // pred_check
        %p145 = pneg %p94
      $region18: #{resnet_generator_forward.10} parent=11 // pred_check_branch
        %147 = sbr.rel (%p145) target = $region20
      $region19: #{resnet_generator_forward.10} parent=11 // pred_region
        _
      $region20: #{resnet_generator_forward.10} parent=11 // pred_fallthru
        _
    $region12: #{resnet_generator_forward.10} parent=5 // pred_fallthru
      _
    %p148 = scmp.lt.s32.totalorder %s9, 2
    // Predicated region
    $region21: #{resnet_generator_forward.10} parent=5 // pred_check
      %p149 = pneg %p148
    $region22: #{resnet_generator_forward.10} parent=5 // pred_check_branch
      %151 = sbr.rel (%p149) target = $region24
    $region23: #{resnet_generator_forward.10} parent=5 // pred_region
      // Predicated region
      $region25: #{resnet_generator_forward.10} parent=23 // pred_check
        %p152 = pneg %p41
      $region26: #{resnet_generator_forward.10} parent=23 // pred_check_branch
        %154 = sbr.rel (%p152) target = $region28
      $region27: #{resnet_generator_forward.10} parent=23 // pred_region
        %p155 = scmp.lt.s32.totalorder %s16, 1
        %s156 = scalar_select %p155, %s16, 1
        %s157 = smul.addr %s156, 8
        %s158 = smul.addr %s157, 4
        %s159 = scalar_lea.vmem %s0, %s158
      $region28: #{resnet_generator_forward.10} parent=23 // pred_fallthru
        _
    $region24: #{resnet_generator_forward.10} parent=5 // pred_fallthru
      _
    %p160 = scmp.le.s32.totalorder 1, %s9
    %p161 = scmp.lt.s32.totalorder %s9, 3
    %p162 = pnand %p160, %p161
    %p163 = pneg %p162
    // Predicated region
    $region29: #{resnet_generator_forward.10} parent=5 // pred_check
      _
    $region30: #{resnet_generator_forward.10} parent=5 // pred_check_branch
      %165 = sbr.rel (%p162) target = $region32
    $region31: #{resnet_generator_forward.10} parent=5 // pred_region
      %s166 = ssub.s32 %s9, 1
      %p167 = scmp.lt.s32.totalorder %s18, 1
      %s168 = scalar_select %p167, %s18, 1
      %s169 = smul.addr %s168, 8
      %s170 = smul.addr %s169, 4
      %s171 = scalar_lea.vmem %s0, %s170
      %p172 = pneg %p47
      %p173 = pneg %p44
      %p174 = scmp.lt.s32.totalorder %s19, 0
      %s175 = scalar_select %p174, %s19, 0
      %s176 = smul.addr %s175, 7
      %s177 = smul.addr %s176, 4
      %s178 = scalar_lea.vmem %s1, %s177
      %p179 = pneg %p73
      %p180 = pneg %p70
      %p181 = pneg %p94
      %p182 = pneg %p91
      %p183 = pneg %p122
      %p184 = pneg %p119
      %p185 = scmp.lt.s32.totalorder %s18, 1
      %s186 = scalar_select %p185, %s18, 1
      %p187 = scmp.lt.s32.totalorder %s19, 0
      %s188 = scalar_select %p187, %s19, 0
      %s189 = smul.addr %s188, 3
      %s190 = smul.addr %s186, 3
      %s191 = sadd.s32 %s189, %s190
      %s192 = smul.addr %s191, 4
      %s193 = scalar_lea.vmem %s3, %s192
      %p194 = scmp.lt.s32.totalorder %s18, 1
      %s195 = scalar_select %p194, %s18, 1
      %s196 = smul.addr %s195, 8
      %s197 = smul.addr %s196, 4
      %s198 = scalar_lea.vmem %s0, %s197
      %p199 = scmp.lt.s32.totalorder %s19, 0
      %s200 = scalar_select %p199, %s19, 0
      %s201 = smul.addr %s200, 7
      %s202 = smul.addr %s201, 4
      %s203 = scalar_lea.vmem %s1, %s202
      %p204 = scmp.lt.s32.totalorder %s18, 1
      %s205 = scalar_select %p204, %s18, 1
      %p206 = scmp.lt.s32.totalorder %s19, 0
      %s207 = scalar_select %p206, %s19, 0
      %s208 = smul.addr %s207, 3
      %s209 = smul.addr %s205, 3
      %s210 = sadd.s32 %s208, %s209
      %s211 = smul.addr %s210, 4
      %s212 = scalar_lea.vmem %s3, %s211
      %v214 = vld [vmem:[%s198] sm:$0xff]
      %v215 = vld [vmem:[%s198 + $0x8] sm:$0xff]
      %v216 = vld [vmem:[%s198 + $0x10] sm:$0xff]
      %v217 = vld [vmem:[%s198 + $0x18] sm:$0xff]
      %v222 = vunpack.c.l.b16 %v214
      %v223 = vunpack.c.h.b16 %v214
      %v224 = vunpack.c.l.b16 %v215
      %v225 = vunpack.c.l.b16 %v216
      %v226 = vunpack.c.h.b16 %v216
      %v227 = vunpack.c.l.b16 %v217
      %v228 = vpack.c.b16 %v225, %v222
      %v229 = vpack.c.b16 %v226, %v223
      %v230 = vpack.c.b16 %v227, %v224
      %234 = vrot.lane.b32.xlu0 %v228, 127
      %v235 = vpop.permute.xlu0 %234
      %236 = vrot.lane.b32.xlu0 %v229, 127
      %v237 = vpop.permute.xlu0 %236
      %238 = vrot.lane.b32.xlu0 %v230, 127
      %v239 = vpop.permute.xlu0 %238
      %vm240 = vcmask 1039360
      %v241 = vsel %vm240, %v235, %v237
      %v242 = vsel %vm240, %v237, %v239
      %246 = vrot.lane.b32.xlu0 %v228, 126
      %v247 = vpop.permute.xlu0 %246
      %248 = vrot.lane.b32.xlu0 %v229, 126
      %v249 = vpop.permute.xlu0 %248
      %250 = vrot.lane.b32.xlu0 %v230, 126
      %v251 = vpop.permute.xlu0 %250
      %vm252 = vcmask 1031168
      %v253 = vsel %vm252, %v247, %v249
      %v254 = vsel %vm252, %v249, %v251
      %258 = vrot.lane.b32.xlu0 %v228, 125
      %v259 = vpop.permute.xlu0 %258
      %260 = vrot.lane.b32.xlu0 %v229, 125
      %v261 = vpop.permute.xlu0 %260
      %262 = vrot.lane.b32.xlu0 %v230, 125
      %v263 = vpop.permute.xlu0 %262
      %vm264 = vcmask 1022976
      %v265 = vsel %vm264, %v259, %v261
      %v266 = vsel %vm264, %v261, %v263
      %270 = vrot.lane.b32.xlu0 %v228, 124
      %v271 = vpop.permute.xlu0 %270
      %272 = vrot.lane.b32.xlu0 %v229, 124
      %v273 = vpop.permute.xlu0 %272
      %274 = vrot.lane.b32.xlu0 %v230, 124
      %v275 = vpop.permute.xlu0 %274
      %vm276 = vcmask 1014784
      %v277 = vsel %vm276, %v271, %v273
      %v278 = vsel %vm276, %v273, %v275
      %282 = vrot.lane.b32.xlu0 %v228, 123
      %v283 = vpop.permute.xlu0 %282
      %284 = vrot.lane.b32.xlu0 %v229, 123
      %v285 = vpop.permute.xlu0 %284
      %286 = vrot.lane.b32.xlu0 %v230, 123
      %v287 = vpop.permute.xlu0 %286
      %vm288 = vcmask 1006592
      %v289 = vsel %vm288, %v283, %v285
      %v290 = vsel %vm288, %v285, %v287
      %294 = vrot.lane.b32.xlu0 %v228, 122
      %v295 = vpop.permute.xlu0 %294
      %296 = vrot.lane.b32.xlu0 %v229, 122
      %v297 = vpop.permute.xlu0 %296
      %298 = vrot.lane.b32.xlu0 %v230, 122
      %v299 = vpop.permute.xlu0 %298
      %vm300 = vcmask 998400
      %v301 = vsel %vm300, %v295, %v297
      %v302 = vsel %vm300, %v297, %v299
      %306 = vrot.lane.b32.xlu0 %v228, 106
      %v307 = vpop.permute.xlu0 %306
      %308 = vrot.lane.b32.xlu0 %v229, 106
      %v309 = vpop.permute.xlu0 %308
      %310 = vrot.lane.b32.xlu0 %v230, 106
      %v311 = vpop.permute.xlu0 %310
      %vm312 = vcmask 867328
      %v313 = vsel %vm312, %v307, %v309
      %v314 = vsel %vm312, %v309, %v311
      %318 = vrot.lane.b32.xlu0 %v228, 105
      %v319 = vpop.permute.xlu0 %318
      %320 = vrot.lane.b32.xlu0 %v229, 105
      %v321 = vpop.permute.xlu0 %320
      %322 = vrot.lane.b32.xlu0 %v230, 105
      %v323 = vpop.permute.xlu0 %322
      %vm324 = vcmask 859136
      %v325 = vsel %vm324, %v319, %v321
      %v326 = vsel %vm324, %v321, %v323
      %330 = vrot.lane.b32.xlu0 %v228, 104
      %v331 = vpop.permute.xlu0 %330
      %332 = vrot.lane.b32.xlu0 %v229, 104
      %v333 = vpop.permute.xlu0 %332
      %334 = vrot.lane.b32.xlu0 %v230, 104
      %v335 = vpop.permute.xlu0 %334
      %vm336 = vcmask 850944
      %v337 = vsel %vm336, %v331, %v333
      %v338 = vsel %vm336, %v333, %v335
      %342 = vrot.lane.b32.xlu0 %v228, 103
      %v343 = vpop.permute.xlu0 %342
      %344 = vrot.lane.b32.xlu0 %v229, 103
      %v345 = vpop.permute.xlu0 %344
      %346 = vrot.lane.b32.xlu0 %v230, 103
      %v347 = vpop.permute.xlu0 %346
      %vm348 = vcmask 842752
      %v349 = vsel %vm348, %v343, %v345
      %v350 = vsel %vm348, %v345, %v347
      %354 = vrot.lane.b32.xlu0 %v228, 102
      %v355 = vpop.permute.xlu0 %354
      %356 = vrot.lane.b32.xlu0 %v229, 102
      %v357 = vpop.permute.xlu0 %356
      %358 = vrot.lane.b32.xlu0 %v230, 102
      %v359 = vpop.permute.xlu0 %358
      %vm360 = vcmask 834560
      %v361 = vsel %vm360, %v355, %v357
      %v362 = vsel %vm360, %v357, %v359
      %366 = vrot.lane.b32.xlu0 %v228, 101
      %v367 = vpop.permute.xlu0 %366
      %368 = vrot.lane.b32.xlu0 %v229, 101
      %v369 = vpop.permute.xlu0 %368
      %370 = vrot.lane.b32.xlu0 %v230, 101
      %v371 = vpop.permute.xlu0 %370
      %vm372 = vcmask 826368
      %v373 = vsel %vm372, %v367, %v369
      %v374 = vsel %vm372, %v369, %v371
      %378 = vrot.lane.b32.xlu0 %v228, 100
      %v379 = vpop.permute.xlu0 %378
      %380 = vrot.lane.b32.xlu0 %v229, 100
      %v381 = vpop.permute.xlu0 %380
      %382 = vrot.lane.b32.xlu0 %v230, 100
      %v383 = vpop.permute.xlu0 %382
      %vm384 = vcmask 818176
      %v385 = vsel %vm384, %v379, %v381
      %v386 = vsel %vm384, %v381, %v383
      %v390 = vunpack.c.h.b16 %v215
      %v391 = vunpack.c.h.b16 %v217
      %v392 = vpack.c.b16 %v391, %v390
      %393 = vrot.lane.b32.xlu0 %v228, 84
      %v394 = vpop.permute.xlu0 %393
      %395 = vrot.lane.b32.xlu0 %v229, 84
      %v396 = vpop.permute.xlu0 %395
      %397 = vrot.lane.b32.xlu0 %v230, 84
      %v398 = vpop.permute.xlu0 %397
      %399 = vrot.lane.b32.xlu0 %v392, 84
      %v400 = vpop.permute.xlu0 %399
      %vm401 = vcmask 687104
      %v402 = vsel %vm401, %v394, %v396
      %v403 = vsel %vm401, %v396, %v398
      %v404 = vsel %vm401, %v398, %v400
      %408 = vrot.lane.b32.xlu0 %v228, 83
      %v409 = vpop.permute.xlu0 %408
      %410 = vrot.lane.b32.xlu0 %v229, 83
      %v411 = vpop.permute.xlu0 %410
      %412 = vrot.lane.b32.xlu0 %v230, 83
      %v413 = vpop.permute.xlu0 %412
      %414 = vrot.lane.b32.xlu0 %v392, 83
      %v415 = vpop.permute.xlu0 %414
      %vm416 = vcmask 678912
      %v417 = vsel %vm416, %v409, %v411
      %v418 = vsel %vm416, %v411, %v413
      %v419 = vsel %vm416, %v413, %v415
      %423 = vrot.lane.b32.xlu0 %v392, 127
      %v424 = vpop.permute.xlu0 %423
      %v425 = vsel %vm240, %v239, %v424
      %426 = vrot.lane.b32.xlu0 %v392, 126
      %v427 = vpop.permute.xlu0 %426
      %v428 = vsel %vm252, %v251, %v427
      %429 = vrot.lane.b32.xlu0 %v392, 125
      %v430 = vpop.permute.xlu0 %429
      %v431 = vsel %vm264, %v263, %v430
      %432 = vrot.lane.b32.xlu0 %v392, 124
      %v433 = vpop.permute.xlu0 %432
      %v434 = vsel %vm276, %v275, %v433
      %435 = vrot.lane.b32.xlu0 %v228, 108
      %v436 = vpop.permute.xlu0 %435
      %437 = vrot.lane.b32.xlu0 %v229, 108
      %v438 = vpop.permute.xlu0 %437
      %439 = vrot.lane.b32.xlu0 %v230, 108
      %v440 = vpop.permute.xlu0 %439
      %441 = vrot.lane.b32.xlu0 %v392, 108
      %v442 = vpop.permute.xlu0 %441
      %vm443 = vcmask 883712
      %v444 = vsel %vm443, %v436, %v438
      %v445 = vsel %vm443, %v438, %v440
      %v446 = vsel %vm443, %v440, %v442
      %447 = vrot.lane.b32.xlu0 %v228, 107
      %v448 = vpop.permute.xlu0 %447
      %449 = vrot.lane.b32.xlu0 %v229, 107
      %v450 = vpop.permute.xlu0 %449
      %451 = vrot.lane.b32.xlu0 %v230, 107
      %v452 = vpop.permute.xlu0 %451
      %453 = vrot.lane.b32.xlu0 %v392, 107
      %v454 = vpop.permute.xlu0 %453
      %vm455 = vcmask 875520
      %v456 = vsel %vm455, %v448, %v450
      %v457 = vsel %vm455, %v450, %v452
      %v458 = vsel %vm455, %v452, %v454
      %459 = vrot.lane.b32.xlu0 %v392, 106
      %v460 = vpop.permute.xlu0 %459
      %v461 = vsel %vm312, %v311, %v460
      %462 = vrot.lane.b32.xlu0 %v392, 105
      %v463 = vpop.permute.xlu0 %462
      %v464 = vsel %vm324, %v323, %v463
      %465 = vrot.lane.b32.xlu0 %v392, 104
      %v466 = vpop.permute.xlu0 %465
      %v467 = vsel %vm336, %v335, %v466
      %468 = vrot.lane.b32.xlu0 %v392, 103
      %v469 = vpop.permute.xlu0 %468
      %v470 = vsel %vm348, %v347, %v469
      %471 = vrot.lane.b32.xlu0 %v392, 102
      %v472 = vpop.permute.xlu0 %471
      %v473 = vsel %vm360, %v359, %v472
      %474 = vrot.lane.b32.xlu0 %v228, 86
      %v475 = vpop.permute.xlu0 %474
      %476 = vrot.lane.b32.xlu0 %v229, 86
      %v477 = vpop.permute.xlu0 %476
      %478 = vrot.lane.b32.xlu0 %v230, 86
      %v479 = vpop.permute.xlu0 %478
      %480 = vrot.lane.b32.xlu0 %v392, 86
      %v481 = vpop.permute.xlu0 %480
      %vm482 = vcmask 703488
      %v483 = vsel %vm482, %v475, %v477
      %v484 = vsel %vm482, %v477, %v479
      %v485 = vsel %vm482, %v479, %v481
      %486 = vrot.lane.b32.xlu0 %v228, 85
      %v487 = vpop.permute.xlu0 %486
      %488 = vrot.lane.b32.xlu0 %v229, 85
      %v489 = vpop.permute.xlu0 %488
      %490 = vrot.lane.b32.xlu0 %v230, 85
      %v491 = vpop.permute.xlu0 %490
      %492 = vrot.lane.b32.xlu0 %v392, 85
      %v493 = vpop.permute.xlu0 %492
      %vm494 = vcmask 695296
      %v495 = vsel %vm494, %v487, %v489
      %v496 = vsel %vm494, %v489, %v491
      %v497 = vsel %vm494, %v491, %v493
      %498 = vrot.lane.b32.xlu0 %v228, 110
      %v499 = vpop.permute.xlu0 %498
      %500 = vrot.lane.b32.xlu0 %v229, 110
      %v501 = vpop.permute.xlu0 %500
      %502 = vrot.lane.b32.xlu0 %v230, 110
      %v503 = vpop.permute.xlu0 %502
      %504 = vrot.lane.b32.xlu0 %v392, 110
      %v505 = vpop.permute.xlu0 %504
      %vm506 = vcmask 900096
      %v507 = vsel %vm506, %v499, %v501
      %v508 = vsel %vm506, %v501, %v503
      %v509 = vsel %vm506, %v503, %v505
      %510 = vrot.lane.b32.xlu0 %v228, 109
      %v511 = vpop.permute.xlu0 %510
      %512 = vrot.lane.b32.xlu0 %v229, 109
      %v513 = vpop.permute.xlu0 %512
      %514 = vrot.lane.b32.xlu0 %v230, 109
      %v515 = vpop.permute.xlu0 %514
      %516 = vrot.lane.b32.xlu0 %v392, 109
      %v517 = vpop.permute.xlu0 %516
      %vm518 = vcmask 891904
      %v519 = vsel %vm518, %v511, %v513
      %v520 = vsel %vm518, %v513, %v515
      %v521 = vsel %vm518, %v515, %v517
      %522 = vrot.lane.b32.xlu0 %v229, 88
      %v523 = vpop.permute.xlu0 %522
      %524 = vrot.lane.b32.xlu0 %v230, 88
      %v525 = vpop.permute.xlu0 %524
      %526 = vrot.lane.b32.xlu0 %v392, 88
      %v527 = vpop.permute.xlu0 %526
      %vm528 = vcmask 719872
      %v529 = vsel %vm528, %v523, %v525
      %v530 = vsel %vm528, %v525, %v527
      %531 = vrot.lane.b32.xlu0 %v229, 87
      %v532 = vpop.permute.xlu0 %531
      %533 = vrot.lane.b32.xlu0 %v230, 87
      %v534 = vpop.permute.xlu0 %533
      %535 = vrot.lane.b32.xlu0 %v392, 87
      %v536 = vpop.permute.xlu0 %535
      %vm537 = vcmask 711680
      %v538 = vsel %vm537, %v532, %v534
      %v539 = vsel %vm537, %v534, %v536
      %540 = vrot.lane.b32.xlu0 %v228, 82
      %v541 = vpop.permute.xlu0 %540
      %542 = vrot.lane.b32.xlu0 %v229, 82
      %v543 = vpop.permute.xlu0 %542
      %544 = vrot.lane.b32.xlu0 %v230, 82
      %v545 = vpop.permute.xlu0 %544
      %546 = vrot.lane.b32.xlu0 %v392, 82
      %v547 = vpop.permute.xlu0 %546
      %548 = vrot.lane.b32.xlu0 %v241, 82
      %v549 = vpop.permute.xlu0 %548
      %550 = vrot.lane.b32.xlu0 %v242, 82
      %v551 = vpop.permute.xlu0 %550
      %552 = vrot.lane.b32.xlu0 %v425, 82
      %v553 = vpop.permute.xlu0 %552
      %554 = vrot.lane.b32.xlu0 %v424, 82
      %v555 = vpop.permute.xlu0 %554
      %556 = vrot.lane.b32.xlu0 %v253, 82
      %v557 = vpop.permute.xlu0 %556
      %558 = vrot.lane.b32.xlu0 %v254, 82
      %v559 = vpop.permute.xlu0 %558
      %560 = vrot.lane.b32.xlu0 %v428, 82
      %v561 = vpop.permute.xlu0 %560
      %562 = vrot.lane.b32.xlu0 %v427, 82
      %v563 = vpop.permute.xlu0 %562
      %564 = vrot.lane.b32.xlu0 %v265, 82
      %v565 = vpop.permute.xlu0 %564
      %566 = vrot.lane.b32.xlu0 %v266, 82
      %v567 = vpop.permute.xlu0 %566
      %568 = vrot.lane.b32.xlu0 %v431, 82
      %v569 = vpop.permute.xlu0 %568
      %570 = vrot.lane.b32.xlu0 %v430, 82
      %v571 = vpop.permute.xlu0 %570
      %572 = vrot.lane.b32.xlu0 %v277, 82
      %v573 = vpop.permute.xlu0 %572
      %574 = vrot.lane.b32.xlu0 %v278, 82
      %v575 = vpop.permute.xlu0 %574
      %576 = vrot.lane.b32.xlu0 %v434, 82
      %v577 = vpop.permute.xlu0 %576
      %578 = vrot.lane.b32.xlu0 %v433, 82
      %v579 = vpop.permute.xlu0 %578
      %580 = vrot.lane.b32.xlu0 %v444, 82
      %v581 = vpop.permute.xlu0 %580
      %582 = vrot.lane.b32.xlu0 %v445, 82
      %v583 = vpop.permute.xlu0 %582
      %584 = vrot.lane.b32.xlu0 %v446, 82
      %v585 = vpop.permute.xlu0 %584
      %586 = vrot.lane.b32.xlu0 %v442, 82
      %v587 = vpop.permute.xlu0 %586
      %588 = vrot.lane.b32.xlu0 %v456, 82
      %v589 = vpop.permute.xlu0 %588
      %590 = vrot.lane.b32.xlu0 %v457, 82
      %v591 = vpop.permute.xlu0 %590
      %592 = vrot.lane.b32.xlu0 %v458, 82
      %v593 = vpop.permute.xlu0 %592
      %594 = vrot.lane.b32.xlu0 %v454, 82
      %v595 = vpop.permute.xlu0 %594
      %596 = vrot.lane.b32.xlu0 %v313, 82
      %v597 = vpop.permute.xlu0 %596
      %598 = vrot.lane.b32.xlu0 %v314, 82
      %v599 = vpop.permute.xlu0 %598
      %600 = vrot.lane.b32.xlu0 %v461, 82
      %v601 = vpop.permute.xlu0 %600
      %602 = vrot.lane.b32.xlu0 %v460, 82
      %v603 = vpop.permute.xlu0 %602
      %604 = vrot.lane.b32.xlu0 %v325, 82
      %v605 = vpop.permute.xlu0 %604
      %606 = vrot.lane.b32.xlu0 %v326, 82
      %v607 = vpop.permute.xlu0 %606
      %608 = vrot.lane.b32.xlu0 %v464, 82
      %v609 = vpop.permute.xlu0 %608
      %610 = vrot.lane.b32.xlu0 %v463, 82
      %v611 = vpop.permute.xlu0 %610
      %612 = vrot.lane.b32.xlu0 %v337, 82
      %v613 = vpop.permute.xlu0 %612
      %614 = vrot.lane.b32.xlu0 %v338, 82
      %v615 = vpop.permute.xlu0 %614
      %616 = vrot.lane.b32.xlu0 %v467, 82
      %v617 = vpop.permute.xlu0 %616
      %618 = vrot.lane.b32.xlu0 %v466, 82
      %v619 = vpop.permute.xlu0 %618
      %620 = vrot.lane.b32.xlu0 %v349, 82
      %v621 = vpop.permute.xlu0 %620
      %622 = vrot.lane.b32.xlu0 %v350, 82
      %v623 = vpop.permute.xlu0 %622
      %624 = vrot.lane.b32.xlu0 %v470, 82
      %v625 = vpop.permute.xlu0 %624
      %626 = vrot.lane.b32.xlu0 %v469, 82
      %v627 = vpop.permute.xlu0 %626
      %628 = vrot.lane.b32.xlu0 %v361, 82
      %v629 = vpop.permute.xlu0 %628
      %630 = vrot.lane.b32.xlu0 %v362, 82
      %v631 = vpop.permute.xlu0 %630
      %632 = vrot.lane.b32.xlu0 %v473, 82
      %v633 = vpop.permute.xlu0 %632
      %634 = vrot.lane.b32.xlu0 %v472, 82
      %v635 = vpop.permute.xlu0 %634
      %636 = vrot.lane.b32.xlu0 %v483, 82
      %v637 = vpop.permute.xlu0 %636
      %638 = vrot.lane.b32.xlu0 %v484, 82
      %v639 = vpop.permute.xlu0 %638
      %640 = vrot.lane.b32.xlu0 %v485, 82
      %v641 = vpop.permute.xlu0 %640
      %642 = vrot.lane.b32.xlu0 %v481, 82
      %v643 = vpop.permute.xlu0 %642
      %644 = vrot.lane.b32.xlu0 %v495, 82
      %v645 = vpop.permute.xlu0 %644
      %646 = vrot.lane.b32.xlu0 %v496, 82
      %v647 = vpop.permute.xlu0 %646
      %648 = vrot.lane.b32.xlu0 %v497, 82
      %v649 = vpop.permute.xlu0 %648
      %650 = vrot.lane.b32.xlu0 %v493, 82
      %v651 = vpop.permute.xlu0 %650
      %652 = vrot.lane.b32.xlu0 %v402, 82
      %v653 = vpop.permute.xlu0 %652
      %654 = vrot.lane.b32.xlu0 %v403, 82
      %v655 = vpop.permute.xlu0 %654
      %656 = vrot.lane.b32.xlu0 %v404, 82
      %v657 = vpop.permute.xlu0 %656
      %658 = vrot.lane.b32.xlu0 %v400, 82
      %v659 = vpop.permute.xlu0 %658
      %660 = vrot.lane.b32.xlu0 %v417, 82
      %v661 = vpop.permute.xlu0 %660
      %662 = vrot.lane.b32.xlu0 %v418, 82
      %v663 = vpop.permute.xlu0 %662
      %664 = vrot.lane.b32.xlu0 %v419, 82
      %v665 = vpop.permute.xlu0 %664
      %666 = vrot.lane.b32.xlu0 %v415, 82
      %v667 = vpop.permute.xlu0 %666
      %vm668 = vcmask 670720
      %v669 = vsel %vm668, %v541, %v543
      %v670 = vsel %vm668, %v543, %v545
      %v671 = vsel %vm668, %v545, %v547
      %v672 = vsel %vm668, %v549, %v551
      %v673 = vsel %vm668, %v551, %v553
      %v674 = vsel %vm668, %v553, %v555
      %v675 = vsel %vm668, %v557, %v559
      %v676 = vsel %vm668, %v559, %v561
      %v677 = vsel %vm668, %v561, %v563
      %v678 = vsel %vm668, %v565, %v567
      %v679 = vsel %vm668, %v567, %v569
      %v680 = vsel %vm668, %v569, %v571
      %v681 = vsel %vm668, %v573, %v575
      %v682 = vsel %vm668, %v575, %v577
      %v683 = vsel %vm668, %v577, %v579
      %v684 = vsel %vm668, %v581, %v583
      %v685 = vsel %vm668, %v583, %v585
      %v686 = vsel %vm668, %v585, %v587
      %v687 = vsel %vm668, %v589, %v591
      %v688 = vsel %vm668, %v591, %v593
      %v689 = vsel %vm668, %v593, %v595
      %v690 = vsel %vm668, %v597, %v599
      %v691 = vsel %vm668, %v599, %v601
      %v692 = vsel %vm668, %v601, %v603
      %v693 = vsel %vm668, %v605, %v607
      %v694 = vsel %vm668, %v607, %v609
      %v695 = vsel %vm668, %v609, %v611
      %v696 = vsel %vm668, %v613, %v615
      %v697 = vsel %vm668, %v615, %v617
      %v698 = vsel %vm668, %v617, %v619
      %v699 = vsel %vm668, %v621, %v623
      %v700 = vsel %vm668, %v623, %v625
      %v701 = vsel %vm668, %v625, %v627
      %v702 = vsel %vm668, %v629, %v631
      %v703 = vsel %vm668, %v631, %v633
      %v704 = vsel %vm668, %v633, %v635
      %v705 = vsel %vm668, %v637, %v639
      %v706 = vsel %vm668, %v639, %v641
      %v707 = vsel %vm668, %v641, %v643
      %v708 = vsel %vm668, %v645, %v647
      %v709 = vsel %vm668, %v647, %v649
      %v710 = vsel %vm668, %v649, %v651
      %v711 = vsel %vm668, %v653, %v655
      %v712 = vsel %vm668, %v655, %v657
      %v713 = vsel %vm668, %v657, %v659
      %v714 = vsel %vm668, %v661, %v663
      %v715 = vsel %vm668, %v663, %v665
      %v716 = vsel %vm668, %v665, %v667
      %765 = vrot.lane.b32.xlu0 %v228, 36
      %v766 = vpop.permute.xlu0 %765
      %767 = vrot.lane.b32.xlu0 %v229, 36
      %v768 = vpop.permute.xlu0 %767
      %769 = vrot.lane.b32.xlu0 %v230, 36
      %v770 = vpop.permute.xlu0 %769
      %771 = vrot.lane.b32.xlu0 %v392, 36
      %v772 = vpop.permute.xlu0 %771
      %773 = vrot.lane.b32.xlu0 %v241, 36
      %v774 = vpop.permute.xlu0 %773
      %775 = vrot.lane.b32.xlu0 %v242, 36
      %v776 = vpop.permute.xlu0 %775
      %777 = vrot.lane.b32.xlu0 %v425, 36
      %v778 = vpop.permute.xlu0 %777
      %779 = vrot.lane.b32.xlu0 %v424, 36
      %v780 = vpop.permute.xlu0 %779
      %781 = vrot.lane.b32.xlu0 %v253, 36
      %v782 = vpop.permute.xlu0 %781
      %783 = vrot.lane.b32.xlu0 %v254, 36
      %v784 = vpop.permute.xlu0 %783
      %785 = vrot.lane.b32.xlu0 %v428, 36
      %v786 = vpop.permute.xlu0 %785
      %787 = vrot.lane.b32.xlu0 %v427, 36
      %v788 = vpop.permute.xlu0 %787
      %789 = vrot.lane.b32.xlu0 %v507, 36
      %v790 = vpop.permute.xlu0 %789
      %791 = vrot.lane.b32.xlu0 %v508, 36
      %v792 = vpop.permute.xlu0 %791
      %793 = vrot.lane.b32.xlu0 %v509, 36
      %v794 = vpop.permute.xlu0 %793
      %795 = vrot.lane.b32.xlu0 %v505, 36
      %v796 = vpop.permute.xlu0 %795
      %797 = vrot.lane.b32.xlu0 %v519, 36
      %v798 = vpop.permute.xlu0 %797
      %799 = vrot.lane.b32.xlu0 %v520, 36
      %v800 = vpop.permute.xlu0 %799
      %801 = vrot.lane.b32.xlu0 %v521, 36
      %v802 = vpop.permute.xlu0 %801
      %803 = vrot.lane.b32.xlu0 %v517, 36
      %v804 = vpop.permute.xlu0 %803
      %805 = vrot.lane.b32.xlu0 %v444, 36
      %v806 = vpop.permute.xlu0 %805
      %807 = vrot.lane.b32.xlu0 %v445, 36
      %v808 = vpop.permute.xlu0 %807
      %809 = vrot.lane.b32.xlu0 %v446, 36
      %v810 = vpop.permute.xlu0 %809
      %811 = vrot.lane.b32.xlu0 %v442, 36
      %v812 = vpop.permute.xlu0 %811
      %813 = vrot.lane.b32.xlu0 %v456, 36
      %v814 = vpop.permute.xlu0 %813
      %815 = vrot.lane.b32.xlu0 %v457, 36
      %v816 = vpop.permute.xlu0 %815
      %817 = vrot.lane.b32.xlu0 %v458, 36
      %v818 = vpop.permute.xlu0 %817
      %819 = vrot.lane.b32.xlu0 %v454, 36
      %v820 = vpop.permute.xlu0 %819
      %821 = vrot.lane.b32.xlu0 %v313, 36
      %v822 = vpop.permute.xlu0 %821
      %823 = vrot.lane.b32.xlu0 %v314, 36
      %v824 = vpop.permute.xlu0 %823
      %825 = vrot.lane.b32.xlu0 %v461, 36
      %v826 = vpop.permute.xlu0 %825
      %827 = vrot.lane.b32.xlu0 %v460, 36
      %v828 = vpop.permute.xlu0 %827
      %829 = vrot.lane.b32.xlu0 %v325, 36
      %v830 = vpop.permute.xlu0 %829
      %831 = vrot.lane.b32.xlu0 %v326, 36
      %v832 = vpop.permute.xlu0 %831
      %833 = vrot.lane.b32.xlu0 %v464, 36
      %v834 = vpop.permute.xlu0 %833
      %835 = vrot.lane.b32.xlu0 %v463, 36
      %v836 = vpop.permute.xlu0 %835
      %837 = vrot.lane.b32.xlu0 %v337, 36
      %v838 = vpop.permute.xlu0 %837
      %839 = vrot.lane.b32.xlu0 %v338, 36
      %v840 = vpop.permute.xlu0 %839
      %841 = vrot.lane.b32.xlu0 %v467, 36
      %v842 = vpop.permute.xlu0 %841
      %843 = vrot.lane.b32.xlu0 %v466, 36
      %v844 = vpop.permute.xlu0 %843
      %845 = vrot.lane.b32.xlu0 %v523, 36
      %v846 = vpop.permute.xlu0 %845
      %847 = vrot.lane.b32.xlu0 %v529, 36
      %v848 = vpop.permute.xlu0 %847
      %849 = vrot.lane.b32.xlu0 %v530, 36
      %v850 = vpop.permute.xlu0 %849
      %851 = vrot.lane.b32.xlu0 %v527, 36
      %v852 = vpop.permute.xlu0 %851
      %853 = vrot.lane.b32.xlu0 %v532, 36
      %v854 = vpop.permute.xlu0 %853
      %855 = vrot.lane.b32.xlu0 %v538, 36
      %v856 = vpop.permute.xlu0 %855
      %857 = vrot.lane.b32.xlu0 %v539, 36
      %v858 = vpop.permute.xlu0 %857
      %859 = vrot.lane.b32.xlu0 %v536, 36
      %v860 = vpop.permute.xlu0 %859
      %861 = vrot.lane.b32.xlu0 %v477, 36
      %v862 = vpop.permute.xlu0 %861
      %863 = vrot.lane.b32.xlu0 %v484, 36
      %v864 = vpop.permute.xlu0 %863
      %865 = vrot.lane.b32.xlu0 %v485, 36
      %v866 = vpop.permute.xlu0 %865
      %867 = vrot.lane.b32.xlu0 %v481, 36
      %v868 = vpop.permute.xlu0 %867
      %869 = vrot.lane.b32.xlu0 %v489, 36
      %v870 = vpop.permute.xlu0 %869
      %871 = vrot.lane.b32.xlu0 %v496, 36
      %v872 = vpop.permute.xlu0 %871
      %873 = vrot.lane.b32.xlu0 %v497, 36
      %v874 = vpop.permute.xlu0 %873
      %875 = vrot.lane.b32.xlu0 %v493, 36
      %v876 = vpop.permute.xlu0 %875
      %877 = vrot.lane.b32.xlu0 %v396, 36
      %v878 = vpop.permute.xlu0 %877
      %879 = vrot.lane.b32.xlu0 %v403, 36
      %v880 = vpop.permute.xlu0 %879
      %881 = vrot.lane.b32.xlu0 %v404, 36
      %v882 = vpop.permute.xlu0 %881
      %883 = vrot.lane.b32.xlu0 %v400, 36
      %v884 = vpop.permute.xlu0 %883
      %885 = vrot.lane.b32.xlu0 %v411, 36
      %v886 = vpop.permute.xlu0 %885
      %887 = vrot.lane.b32.xlu0 %v418, 36
      %v888 = vpop.permute.xlu0 %887
      %889 = vrot.lane.b32.xlu0 %v419, 36
      %v890 = vpop.permute.xlu0 %889
      %891 = vrot.lane.b32.xlu0 %v415, 36
      %v892 = vpop.permute.xlu0 %891
      %vm893 = vcmask 293888
      %v894 = vsel %vm893, %v766, %v768
      %v895 = vsel %vm893, %v768, %v770
      %v896 = vsel %vm893, %v770, %v772
      %v897 = vsel %vm893, %v774, %v776
      %v898 = vsel %vm893, %v776, %v778
      %v899 = vsel %vm893, %v778, %v780
      %v900 = vsel %vm893, %v782, %v784
      %v901 = vsel %vm893, %v784, %v786
      %v902 = vsel %vm893, %v786, %v788
      %v903 = vsel %vm893, %v790, %v792
      %v904 = vsel %vm893, %v792, %v794
      %v905 = vsel %vm893, %v794, %v796
      %v906 = vsel %vm893, %v798, %v800
      %v907 = vsel %vm893, %v800, %v802
      %v908 = vsel %vm893, %v802, %v804
      %v909 = vsel %vm893, %v806, %v808
      %v910 = vsel %vm893, %v808, %v810
      %v911 = vsel %vm893, %v810, %v812
      %v912 = vsel %vm893, %v814, %v816
      %v913 = vsel %vm893, %v816, %v818
      %v914 = vsel %vm893, %v818, %v820
      %v915 = vsel %vm893, %v822, %v824
      %v916 = vsel %vm893, %v824, %v826
      %v917 = vsel %vm893, %v826, %v828
      %v918 = vsel %vm893, %v830, %v832
      %v919 = vsel %vm893, %v832, %v834
      %v920 = vsel %vm893, %v834, %v836
      %v921 = vsel %vm893, %v838, %v840
      %v922 = vsel %vm893, %v840, %v842
      %v923 = vsel %vm893, %v842, %v844
      %v924 = vsel %vm893, %v846, %v848
      %v925 = vsel %vm893, %v848, %v850
      %v926 = vsel %vm893, %v850, %v852
      %v927 = vsel %vm893, %v854, %v856
      %v928 = vsel %vm893, %v856, %v858
      %v929 = vsel %vm893, %v858, %v860
      %v930 = vsel %vm893, %v862, %v864
      %v931 = vsel %vm893, %v864, %v866
      %v932 = vsel %vm893, %v866, %v868
      %v933 = vsel %vm893, %v870, %v872
      %v934 = vsel %vm893, %v872, %v874
      %v935 = vsel %vm893, %v874, %v876
      %v936 = vsel %vm893, %v878, %v880
      %v937 = vsel %vm893, %v880, %v882
      %v938 = vsel %vm893, %v882, %v884
      %v939 = vsel %vm893, %v886, %v888
      %v940 = vsel %vm893, %v888, %v890
      %v941 = vsel %vm893, %v890, %v892
      %990 = vrot.lane.b32.xlu0 %v229, 118
      %v991 = vpop.permute.xlu0 %990
      %992 = vrot.lane.b32.xlu0 %v230, 118
      %v993 = vpop.permute.xlu0 %992
      %994 = vrot.lane.b32.xlu0 %v392, 118
      %v995 = vpop.permute.xlu0 %994
      %vm996 = vcmask 965632
      %v997 = vsel %vm996, %v991, %v993
      %v998 = vsel %vm996, %v993, %v995
      %v1002 = vld [vmem:[%s203] sm:$0xff]
      %v1003 = vld [vmem:[%s203 + $0x8] sm:$0xff]
      %v1004 = vld [vmem:[%s203 + $0x10] sm:$0xff]
      %v1005 = vld [vmem:[%s203 + $0x18] sm:$0xf]
      %v1010 = vunpack.c.l.b16 %v1002
      %v1011 = vunpack.c.h.b16 %v1002
      %v1012 = vunpack.c.l.b16 %v1003
      %v1013 = vunpack.c.h.b16 %v1003
      %v1014 = vunpack.c.l.b16 %v1004
      %v1015 = vunpack.c.h.b16 %v1004
      %v1016 = vunpack.c.l.b16 %v1005
      %v1017 = vpack.c.b16 %v1010, %v1010
      %v1018 = vpack.c.b16 %v1011, %v1011
      %v1019 = vpack.c.b16 %v1012, %v1012
      %v1020 = vpack.c.b16 %v1013, %v1013
      %v1021 = vpack.c.b16 %v1014, %v1014
      %v1022 = vpack.c.b16 %v1015, %v1015
      %v1023 = vpack.c.b16 %v1016, %v1016
      %vm1030 = vcmask 130048
      %v1032 = vsel %vm1030, %v1023, 0
      %1034 = vmatprep.subr.bf16.mxu0 %v229
      %1035 = vmatpush1.bf16.msra.mxu0 %v228
      %1036 = vmatprep.subr.bf16.mxu0 %v242
      %1037 = vmatpush1.bf16.msra.mxu0 %v241
      %1038 = vmatprep.subr.bf16.mxu0 %v254
      %1039 = vmatpush1.bf16.msra.mxu0 %v253
      %1040 = vmatprep.subr.bf16.mxu0 %v266
      %1041 = vmatpush1.bf16.msra.mxu0 %v265
      %1042 = vmatprep.subr.bf16.mxu0 %v278
      %1043 = vmatpush1.bf16.msra.mxu0 %v277
      %1044 = vmatprep.subr.bf16.mxu0 %v290
      %1045 = vmatpush1.bf16.msra.mxu0 %v289
      %1046 = vmatprep.subr.bf16.mxu0 %v302
      %1047 = vmatpush1.bf16.msra.mxu0 %v301
      %1048 = vmatprep.subr.bf16.mxu0 %v314
      %1049 = vmatpush1.bf16.msra.mxu0 %v313
      %1050 = vmatprep.subr.bf16.mxu0 %v326
      %1051 = vmatpush1.bf16.msra.mxu0 %v325
      %1052 = vmatprep.subr.bf16.mxu0 %v338
      %1053 = vmatpush1.bf16.msra.mxu0 %v337
      %1054 = vmatprep.subr.bf16.mxu0 %v350
      %1055 = vmatpush1.bf16.msra.mxu0 %v349
      %1056 = vmatprep.subr.bf16.mxu0 %v362
      %1057 = vmatpush1.bf16.msra.mxu0 %v361
      %1058 = vmatprep.subr.bf16.mxu0 %v374
      %1059 = vmatpush1.bf16.msra.mxu0 %v373
      %1060 = vmatprep.subr.bf16.mxu0 %v386
      %1061 = vmatpush1.bf16.msra.mxu0 %v385
      %1062 = vmatprep.subr.bf16.mxu0 %v403
      %1063 = vmatpush1.bf16.msra.mxu0 %v402
      %1064 = vmatprep.subr.bf16.mxu0 %v418
      %1065 = vmatpush1.bf16.msra.mxu0 %v417
      %1066 = vmatprep.mubr.bf16.mxu0 %v1018
      %1067 = vmatmul.mubr.bf16.gmra.mrb[0].mxu0 %v1017
      %v1068 = vpop.f32.mrb[0].mxu0
      %v1069 = vadd.f32 0.0, %v1068
      %v1070 = vpop.f32.mrb[0].mxu0
      %v1071 = vadd.f32 0.0, %v1070
      %v1072 = vpop.f32.mrb[0].mxu0
      %v1073 = vpop.f32.mrb[0].mxu0
      %1074 = vdwg.mxu0
      %1075 = vmatprep.subr.bf16.mxu0 %v670
      %1076 = vmatpush1.bf16.msra.mxu0 %v669
      %1077 = vmatprep.subr.bf16.mxu0 %v673
      %1078 = vmatpush1.bf16.msra.mxu0 %v672
      %1079 = vmatprep.subr.bf16.mxu0 %v676
      %1080 = vmatpush1.bf16.msra.mxu0 %v675
      %1081 = vmatprep.subr.bf16.mxu0 %v679
      %1082 = vmatpush1.bf16.msra.mxu0 %v678
      %1083 = vmatprep.subr.bf16.mxu0 %v682
      %1084 = vmatpush1.bf16.msra.mxu0 %v681
      %1085 = vmatprep.subr.bf16.mxu0 %v685
      %1086 = vmatpush1.bf16.msra.mxu0 %v684
      %1087 = vmatprep.subr.bf16.mxu0 %v688
      %1088 = vmatpush1.bf16.msra.mxu0 %v687
      %1089 = vmatprep.subr.bf16.mxu0 %v691
      %1090 = vmatpush1.bf16.msra.mxu0 %v690
      %1091 = vmatprep.subr.bf16.mxu0 %v694
      %1092 = vmatpush1.bf16.msra.mxu0 %v693
      %1093 = vmatprep.subr.bf16.mxu0 %v697
      %1094 = vmatpush1.bf16.msra.mxu0 %v696
      %1095 = vmatprep.subr.bf16.mxu0 %v700
      %1096 = vmatpush1.bf16.msra.mxu0 %v699
      %1097 = vmatprep.subr.bf16.mxu0 %v703
      %1098 = vmatpush1.bf16.msra.mxu0 %v702
      %1099 = vmatprep.subr.bf16.mxu0 %v706
      %1100 = vmatpush1.bf16.msra.mxu0 %v705
      %1101 = vmatprep.subr.bf16.mxu0 %v709
      %1102 = vmatpush1.bf16.msra.mxu0 %v708
      %1103 = vmatprep.subr.bf16.mxu0 %v712
      %1104 = vmatpush1.bf16.msra.mxu0 %v711
      %1105 = vmatprep.subr.bf16.mxu0 %v715
      %1106 = vmatpush1.bf16.msra.mxu0 %v714
      %1107 = vmatprep.mubr.bf16.mxu0 %v1020
      %1108 = vmatmul.mubr.bf16.gmra.mrb[0].mxu0 %v1019
      %v1109 = vpop.f32.mrb[0].mxu0
      %v1110 = vadd.f32 %v1069, %v1109
      %v1111 = vpop.f32.mrb[0].mxu0
      %v1112 = vadd.f32 %v1071, %v1111
      %v1113 = vpop.f32.mrb[0].mxu0
      %v1114 = vpop.f32.mrb[0].mxu0
      %1115 = vdwg.mxu0
      %1116 = vmatprep.subr.bf16.mxu0 %v895
      %1117 = vmatpush1.bf16.msra.mxu0 %v894
      %1118 = vmatprep.subr.bf16.mxu0 %v898
      %1119 = vmatpush1.bf16.msra.mxu0 %v897
      %1120 = vmatprep.subr.bf16.mxu0 %v901
      %1121 = vmatpush1.bf16.msra.mxu0 %v900
      %1122 = vmatprep.subr.bf16.mxu0 %v904
      %1123 = vmatpush1.bf16.msra.mxu0 %v903
      %1124 = vmatprep.subr.bf16.mxu0 %v907
      %1125 = vmatpush1.bf16.msra.mxu0 %v906
      %1126 = vmatprep.subr.bf16.mxu0 %v910
      %1127 = vmatpush1.bf16.msra.mxu0 %v909
      %1128 = vmatprep.subr.bf16.mxu0 %v913
      %1129 = vmatpush1.bf16.msra.mxu0 %v912
      %1130 = vmatprep.subr.bf16.mxu0 %v916
      %1131 = vmatpush1.bf16.msra.mxu0 %v915
      %1132 = vmatprep.subr.bf16.mxu0 %v919
      %1133 = vmatpush1.bf16.msra.mxu0 %v918
      %1134 = vmatprep.subr.bf16.mxu0 %v922
      %1135 = vmatpush1.bf16.msra.mxu0 %v921
      %1136 = vmatprep.subr.bf16.mxu0 %v925
      %1137 = vmatpush1.bf16.msra.mxu0 %v924
      %1138 = vmatprep.subr.bf16.mxu0 %v928
      %1139 = vmatpush1.bf16.msra.mxu0 %v927
      %1140 = vmatprep.subr.bf16.mxu0 %v931
      %1141 = vmatpush1.bf16.msra.mxu0 %v930
      %1142 = vmatprep.subr.bf16.mxu0 %v934
      %1143 = vmatpush1.bf16.msra.mxu0 %v933
      %1144 = vmatprep.subr.bf16.mxu0 %v937
      %1145 = vmatpush1.bf16.msra.mxu0 %v936
      %1146 = vmatprep.subr.bf16.mxu0 %v940
      %1147 = vmatpush1.bf16.msra.mxu0 %v939
      %1148 = vmatprep.mubr.bf16.mxu0 %v1022
      %1149 = vmatmul.mubr.bf16.gmra.mrb[0].mxu0 %v1021
      %v1150 = vpop.f32.mrb[0].mxu0
      %v1151 = vadd.f32 %v1110, %v1150
      %v1152 = vpop.f32.mrb[0].mxu0
      %v1153 = vadd.f32 %v1112, %v1152
      %v1154 = vpop.f32.mrb[0].mxu0
      %v1155 = vpop.f32.mrb[0].mxu0
      %1156 = vdwg.mxu0
      %1157 = vmatprep.subr.bf16.mxu0 %v998
      %1158 = vmatpush1.bf16.msra.mxu0 %v997
      %1159 = vmatprep.subr.bf16.mxu0 0
      %1160 = vmatpush1.bf16.msra.mxu0 0
      %1161 = vmatprep.subr.bf16.mxu0 0
      %1162 = vmatpush1.bf16.msra.mxu0 0
      %1163 = vmatprep.subr.bf16.mxu0 0
      %1164 = vmatpush1.bf16.msra.mxu0 0
      %1165 = vmatprep.subr.bf16.mxu0 0
      %1166 = vmatpush1.bf16.msra.mxu0 0
      %1167 = vmatprep.subr.bf16.mxu0 0
      %1168 = vmatpush1.bf16.msra.mxu0 0
      %1169 = vmatprep.subr.bf16.mxu0 0
      %1170 = vmatpush1.bf16.msra.mxu0 0
      %1171 = vmatprep.subr.bf16.mxu0 0
      %1172 = vmatpush1.bf16.msra.mxu0 0
      %1173 = vmatprep.subr.bf16.mxu0 0
      %1174 = vmatpush1.bf16.msra.mxu0 0
      %1175 = vmatprep.subr.bf16.mxu0 0
      %1176 = vmatpush1.bf16.msra.mxu0 0
      %1177 = vmatprep.subr.bf16.mxu0 0
      %1178 = vmatpush1.bf16.msra.mxu0 0
      %1179 = vmatprep.subr.bf16.mxu0 0
      %1180 = vmatpush1.bf16.msra.mxu0 0
      %1181 = vmatprep.subr.bf16.mxu0 0
      %1182 = vmatpush1.bf16.msra.mxu0 0
      %1183 = vmatprep.subr.bf16.mxu0 0
      %1184 = vmatpush1.bf16.msra.mxu0 0
      %1185 = vmatprep.subr.bf16.mxu0 0
      %1186 = vmatpush1.bf16.msra.mxu0 0
      %1187 = vmatprep.subr.bf16.mxu0 0
      %1188 = vmatpush1.bf16.msra.mxu0 0
      %1189 = vmatprep.mubr.bf16.mxu0 0
      %1190 = vmatmul.mubr.bf16.gmra.mrb[0].mxu0 %v1032
      %v1191 = vpop.f32.mrb[0].mxu0
      %v1192 = vadd.f32 %v1151, %v1191
      %v1193 = vpop.f32.mrb[0].mxu0
      %v1194 = vadd.f32 %v1153, %v1193
      %v1195 = vpop.f32.mrb[0].mxu0
      %v1196 = vpop.f32.mrb[0].mxu0
      %1197 = vdwg.mxu0
      %1198 = vmatprep.subr.bf16.mxu0 0
      %1199 = vmatpush1.bf16.msra.mxu0 %v230
      %1200 = vmatprep.subr.bf16.mxu0 0
      %1201 = vmatpush1.bf16.msra.mxu0 %v239
      %1202 = vmatprep.subr.bf16.mxu0 0
      %1203 = vmatpush1.bf16.msra.mxu0 %v251
      %1204 = vmatprep.subr.bf16.mxu0 0
      %1205 = vmatpush1.bf16.msra.mxu0 %v263
      %1206 = vmatprep.subr.bf16.mxu0 0
      %1207 = vmatpush1.bf16.msra.mxu0 %v275
      %1208 = vmatprep.subr.bf16.mxu0 0
      %1209 = vmatpush1.bf16.msra.mxu0 %v287
      %1210 = vmatprep.subr.bf16.mxu0 0
      %1211 = vmatpush1.bf16.msra.mxu0 %v299
      %1212 = vmatprep.subr.bf16.mxu0 0
      %1213 = vmatpush1.bf16.msra.mxu0 %v311
      %1214 = vmatprep.subr.bf16.mxu0 0
      %1215 = vmatpush1.bf16.msra.mxu0 %v323
      %1216 = vmatprep.subr.bf16.mxu0 0
      %1217 = vmatpush1.bf16.msra.mxu0 %v335
      %1218 = vmatprep.subr.bf16.mxu0 0
      %1219 = vmatpush1.bf16.msra.mxu0 %v347
      %1220 = vmatprep.subr.bf16.mxu0 0
      %1221 = vmatpush1.bf16.msra.mxu0 %v359
      %1222 = vmatprep.subr.bf16.mxu0 0
      %1223 = vmatpush1.bf16.msra.mxu0 %v371
      %1224 = vmatprep.subr.bf16.mxu0 0
      %1225 = vmatpush1.bf16.msra.mxu0 %v383
      %1226 = vmatprep.subr.bf16.mxu0 0
      %1227 = vmatpush1.bf16.msra.mxu0 %v404
      %1228 = vmatprep.subr.bf16.mxu0 0
      %1229 = vmatpush1.bf16.msra.mxu0 %v419
      %1230 = vmatprep.mubr.bf16.mxu0 %v1018
      %1231 = vmatmul.mubr.bf16.gmra.mrb[0].mxu0 %v1017
      %v1232 = vpop.f32.mrb[0].mxu0
      %v1233 = vadd.f32 0.0, %v1232
      %v1234 = vpop.f32.mrb[0].mxu0
      %v1235 = vpop.f32.mrb[0].mxu0
      %v1236 = vpop.f32.mrb[0].mxu0
      %1237 = vdwg.mxu0
      %1238 = vmatprep.subr.bf16.mxu0 0
      %1239 = vmatpush1.bf16.msra.mxu0 %v671
      %1240 = vmatprep.subr.bf16.mxu0 0
      %1241 = vmatpush1.bf16.msra.mxu0 %v674
      %1242 = vmatprep.subr.bf16.mxu0 0
      %1243 = vmatpush1.bf16.msra.mxu0 %v677
      %1244 = vmatprep.subr.bf16.mxu0 0
      %1245 = vmatpush1.bf16.msra.mxu0 %v680
      %1246 = vmatprep.subr.bf16.mxu0 0
      %1247 = vmatpush1.bf16.msra.mxu0 %v683
      %1248 = vmatprep.subr.bf16.mxu0 0
      %1249 = vmatpush1.bf16.msra.mxu0 %v686
      %1250 = vmatprep.subr.bf16.mxu0 0
      %1251 = vmatpush1.bf16.msra.mxu0 %v689
      %1252 = vmatprep.subr.bf16.mxu0 0
      %1253 = vmatpush1.bf16.msra.mxu0 %v692
      %1254 = vmatprep.subr.bf16.mxu0 0
      %1255 = vmatpush1.bf16.msra.mxu0 %v695
      %1256 = vmatprep.subr.bf16.mxu0 0
      %1257 = vmatpush1.bf16.msra.mxu0 %v698
      %1258 = vmatprep.subr.bf16.mxu0 0
      %1259 = vmatpush1.bf16.msra.mxu0 %v701
      %1260 = vmatprep.subr.bf16.mxu0 0
      %1261 = vmatpush1.bf16.msra.mxu0 %v704
      %1262 = vmatprep.subr.bf16.mxu0 0
      %1263 = vmatpush1.bf16.msra.mxu0 %v707
      %1264 = vmatprep.subr.bf16.mxu0 0
      %1265 = vmatpush1.bf16.msra.mxu0 %v710
      %1266 = vmatprep.subr.bf16.mxu0 0
      %1267 = vmatpush1.bf16.msra.mxu0 %v713
      %1268 = vmatprep.subr.bf16.mxu0 0
      %1269 = vmatpush1.bf16.msra.mxu0 %v716
      %1270 = vmatprep.mubr.bf16.mxu0 %v1020
      %1271 = vmatmul.mubr.bf16.gmra.mrb[0].mxu0 %v1019
      %v1272 = vpop.f32.mrb[0].mxu0
      %v1273 = vadd.f32 %v1233, %v1272
      %v1274 = vpop.f32.mrb[0].mxu0
      %v1275 = vpop.f32.mrb[0].mxu0
      %v1276 = vpop.f32.mrb[0].mxu0
      %1277 = vdwg.mxu0
      %1278 = vmatprep.subr.bf16.mxu0 0
      %1279 = vmatpush1.bf16.msra.mxu0 %v896
      %1280 = vmatprep.subr.bf16.mxu0 0
      %1281 = vmatpush1.bf16.msra.mxu0 %v899
      %1282 = vmatprep.subr.bf16.mxu0 0
      %1283 = vmatpush1.bf16.msra.mxu0 %v902
      %1284 = vmatprep.subr.bf16.mxu0 0
      %1285 = vmatpush1.bf16.msra.mxu0 %v905
      %1286 = vmatprep.subr.bf16.mxu0 0
      %1287 = vmatpush1.bf16.msra.mxu0 %v908
      %1288 = vmatprep.subr.bf16.mxu0 0
      %1289 = vmatpush1.bf16.msra.mxu0 %v911
      %1290 = vmatprep.subr.bf16.mxu0 0
      %1291 = vmatpush1.bf16.msra.mxu0 %v914
      %1292 = vmatprep.subr.bf16.mxu0 0
      %1293 = vmatpush1.bf16.msra.mxu0 %v917
      %1294 = vmatprep.subr.bf16.mxu0 0
      %1295 = vmatpush1.bf16.msra.mxu0 %v920
      %1296 = vmatprep.subr.bf16.mxu0 0
      %1297 = vmatpush1.bf16.msra.mxu0 %v923
      %1298 = vmatprep.subr.bf16.mxu0 0
      %1299 = vmatpush1.bf16.msra.mxu0 %v926
      %1300 = vmatprep.subr.bf16.mxu0 0
      %1301 = vmatpush1.bf16.msra.mxu0 %v929
      %1302 = vmatprep.subr.bf16.mxu0 0
      %1303 = vmatpush1.bf16.msra.mxu0 %v932
      %1304 = vmatprep.subr.bf16.mxu0 0
      %1305 = vmatpush1.bf16.msra.mxu0 %v935
      %1306 = vmatprep.subr.bf16.mxu0 0
      %1307 = vmatpush1.bf16.msra.mxu0 %v938
      %1308 = vmatprep.subr.bf16.mxu0 0
      %1309 = vmatpush1.bf16.msra.mxu0 %v941
      %1310 = vmatprep.mubr.bf16.mxu0 %v1022
      %1311 = vmatmul.mubr.bf16.gmra.mrb[0].mxu0 %v1021
      %v1312 = vpop.f32.mrb[0].mxu0
      %v1313 = vadd.f32 %v1273, %v1312
      %v1314 = vpop.f32.mrb[0].mxu0
      %v1315 = vpop.f32.mrb[0].mxu0
      %v1316 = vpop.f32.mrb[0].mxu0
      %1317 = vdwg.mxu0
      %1318 = vmatprep.subr.bf16.mxu0 0
      %1319 = vmatpush1.bf16.msra.mxu0 %v995
      %1320 = vmatprep.subr.bf16.mxu0 0
      %1321 = vmatpush1.bf16.msra.mxu0 0
      %1322 = vmatprep.subr.bf16.mxu0 0
      %1323 = vmatpush1.bf16.msra.mxu0 0
      %1324 = vmatprep.subr.bf16.mxu0 0
      %1325 = vmatpush1.bf16.msra.mxu0 0
      %1326 = vmatprep.subr.bf16.mxu0 0
      %1327 = vmatpush1.bf16.msra.mxu0 0
      %1328 = vmatprep.subr.bf16.mxu0 0
      %1329 = vmatpush1.bf16.msra.mxu0 0
      %1330 = vmatprep.subr.bf16.mxu0 0
      %1331 = vmatpush1.bf16.msra.mxu0 0
      %1332 = vmatprep.subr.bf16.mxu0 0
      %1333 = vmatpush1.bf16.msra.mxu0 0
      %1334 = vmatprep.subr.bf16.mxu0 0
      %1335 = vmatpush1.bf16.msra.mxu0 0
      %1336 = vmatprep.subr.bf16.mxu0 0
      %1337 = vmatpush1.bf16.msra.mxu0 0
      %1338 = vmatprep.subr.bf16.mxu0 0
      %1339 = vmatpush1.bf16.msra.mxu0 0
      %1340 = vmatprep.subr.bf16.mxu0 0
      %1341 = vmatpush1.bf16.msra.mxu0 0
      %1342 = vmatprep.subr.bf16.mxu0 0
      %1343 = vmatpush1.bf16.msra.mxu0 0
      %1344 = vmatprep.subr.bf16.mxu0 0
      %1345 = vmatpush1.bf16.msra.mxu0 0
      %1346 = vmatprep.subr.bf16.mxu0 0
      %1347 = vmatpush1.bf16.msra.mxu0 0
      %1348 = vmatprep.subr.bf16.mxu0 0
      %1349 = vmatpush1.bf16.msra.mxu0 0
      %1350 = vmatprep.mubr.bf16.mxu0 0
      %1351 = vmatmul.mubr.bf16.gmra.mrb[0].mxu0 %v1032
      %v1352 = vpop.f32.mrb[0].mxu0
      %v1353 = vadd.f32 %v1313, %v1352
      %v1354 = vpop.f32.mrb[0].mxu0
      %v1355 = vpop.f32.mrb[0].mxu0
      %v1356 = vpop.f32.mrb[0].mxu0
      %1357 = vdwg.mxu0
      %v1358 = vld [vmem:[%s2] sm:$0x7]
      %v1360 = vlaneseq
      %v1361 = vshrl.u32 %v1360, 7
      %v1362 = vsub.s32 0, %v1361
      %v1363 = vrot.slane %v1358, %v1362
      %v1364 = vlaneseq
      %v1365 = vshrl.u32 %v1364, 7
      %v1366 = vsub.s32 1, %v1365
      %v1367 = vrot.slane %v1358, %v1366
      %v1368 = vlaneseq
      %v1369 = vshrl.u32 %v1368, 7
      %v1370 = vsub.s32 2, %v1369
      %v1371 = vrot.slane %v1358, %v1370
      %v1375 = vmul.f32 %v1192, %v1363
      %v1376 = vmul.f32 %v1194, %v1367
      %v1377 = vmul.f32 %v1353, %v1371
      %v1378 = vadd.f32 %v1375, %v1376
      %vm1379 = vcmask 785408
      %v1380 = vsel %vm1379, %v1377, 0.0
      %v1381 = vadd.f32 %v1378, %v1380
      %1382 = vadd.xlane.f32.xlu0 %v1381
      %v1383 = vpop.xlane.xlu0 %1382
      %v1384 = vmul.f32 %v1383, 0.00390625
      %v1385 = vsub.f32 %v1192, %v1384
      %v1386 = vsub.f32 %v1194, %v1384
      %v1387 = vsub.f32 %v1353, %v1384
      %v1388 = vmul.f32 %v1385, %v1363
      %v1389 = vmul.f32 %v1386, %v1367
      %v1390 = vmul.f32 %v1387, %v1371
      %v1391 = vmul.f32 %v1388, %v1388
      %v1392 = vmul.f32 %v1389, %v1389
      %v1393 = vmul.f32 %v1390, %v1390
      %v1394 = vadd.f32 %v1391, %v1392
      %v1395 = vsel %vm1379, %v1393, 0.0
      %v1396 = vadd.f32 %v1394, %v1395
      %1397 = vadd.xlane.f32.xlu0 %v1396
      %v1398 = vpop.xlane.xlu0 %1397
      %v1399 = vmul.f32 %v1398, 0.00390625
      %v1400 = vadd.f32 %v1399, 1e-05
      %v1401 = vrsqrt.pop %v1400
      %v1402 = vmul.f32 %v1388, %v1401
      %v1403 = vmul.f32 %v1389, %v1401
      %v1404 = vmul.f32 %v1390, %v1401
      %v1405 = vmax.f32 %v1402, 0.0
      %v1406 = vmax.f32 %v1403, 0.0
      %v1407 = vmax.f32 %v1404, 0.0
      %v1408 = vpack.c.bf16 %v1405, %v1405
      %v1409 = vpack.c.bf16 %v1406, %v1406
      %v1410 = vpack.c.bf16 %v1407, %v1407
      %v1414 = vunpack.c.l.b16 %v1408
      %v1415 = vunpack.c.l.b16 %v1409
      %v1416 = vunpack.c.l.b16 %v1410
      %v1417 = vpack.c.b16 %v1415, %v1414
      %v1418 = vpack.c.b16 %v1416, %v1416
      %1421 = vst [vmem:[%s212] sm:$0xff] %v1417
      %vm1422 = vcmask 781312
      %1423 = vst.msk [vmem:[%s212 + $0x8] sm:$0xf] %vm1422, %v1418
      %p1424 = scmp.lt.s32.totalorder %s18, 1
      %s1425 = scalar_select %p1424, %s18, 1
      %p1426 = scmp.lt.s32.totalorder %s19, 0
      %s1427 = scalar_select %p1426, %s19, 0
      %s1428 = smul.addr %s1427, 3
      %s1429 = smul.addr %s1425, 3
      %s1430 = sadd.s32 %s1428, %s1429
      %s1431 = smul.addr %s1430, 4
      %s1432 = scalar_lea.vmem %s3, %s1431
      // Predicated region
      $region33: #{resnet_generator_forward.10} parent=31 // pred_check
        %p1433 = pneg %p119
      $region34: #{resnet_generator_forward.10} parent=31 // pred_check_branch
        %1435 = sbr.rel (%p1433) target = $region36
      $region35: #{resnet_generator_forward.10} parent=31 // pred_region
        _
      $region36: #{resnet_generator_forward.10} parent=31 // pred_fallthru
        _
    $region32: #{resnet_generator_forward.10} parent=5 // pred_fallthru
      _
    %p1436 = scmp.le.s32.totalorder 2, %s9
    // Predicated region
    $region37: #{resnet_generator_forward.10} parent=5 // pred_check
      %p1437 = pneg %p1436
    $region38: #{resnet_generator_forward.10} parent=5 // pred_check_branch
      %1439 = sbr.rel (%p1437) target = $region40
    $region39: #{resnet_generator_forward.10} parent=5 // pred_region
      %s1440 = ssub.s32 %s9, 2
      // Predicated region
      $region41: #{resnet_generator_forward.10} parent=39 // pred_check
        %p1441 = pneg %p125
      $region42: #{resnet_generator_forward.10} parent=39 // pred_check_branch
        %1443 = sbr.rel (%p1441) target = $region44
      $region43: #{resnet_generator_forward.10} parent=39 // pred_region
        %p1444 = scmp.lt.s32.totalorder %s20, 1
        %s1445 = scalar_select %p1444, %s20, 1
        %p1446 = scmp.lt.s32.totalorder %s21, 0
        %s1447 = scalar_select %p1446, %s21, 0
        %s1448 = smul.addr %s1447, 3
        %s1449 = smul.addr %s1445, 3
        %s1450 = sadd.s32 %s1448, %s1449
        %s1451 = smul.addr %s1450, 4
        %s1452 = scalar_lea.vmem %s3, %s1451
      $region44: #{resnet_generator_forward.10} parent=39 // pred_fallthru
        _
    $region40: #{resnet_generator_forward.10} parent=5 // pred_fallthru
      _
  $region6: #{resnet_generator_forward.10} parent=0 // loop_footer
    %s13 = sadd.s32 1, %s9
  $region7: #{resnet_generator_forward.10} parent=0 // loop_footer_branch
    %8 = sbr.rel target = $region3
  $region8: #{resnet_generator_forward.10} parent=0 // loop_exit
    _

// kernel: resnet_generator_forward.11
$region0: #{resnet_generator_forward.11}
  #allocation0 [shape = 'u32[]', space=smem, size = 0x4, offset = 0x4, fixed_abs, tag = 'smem constant byte address 0x4 - core index']
  #allocation1 [shape = 'u32[144,128]{1,0:T(1,128)}', space=vmem, size = 0x12000, scoped, tag = 'internal scratch']
  %s0 = inlined_call_operand.vmem [shape: bf16[2,32,90], index: 0, kind: input, shape index: {}]
  %s1 = inlined_call_operand.vmem [shape: bf16[16,128], index: 1, kind: input, shape index: {}]
  %s2 = inlined_call_operand.vmem [shape: f32[1,72], index: 2, kind: input, shape index: {}]
  %s3 = inlined_call_operand.vmem [shape: bf16[2,16,72], index: 3, kind: output, shape index: {}]
  %s4 = sld [smem:[#allocation0]]
  $region45: #{resnet_generator_forward.11} parent=0
    _
  %s6 = ssub.s32 1, %s4
  %s7 = scalar_select 0, %s6, %s4
  loop: start=0, step=1, limit=4
  $region2: #{resnet_generator_forward.11} parent=0 // loop_pre_header
    _
  $region3: #{resnet_generator_forward.11} parent=0 // loop_header
    %s9 = sphi 0, %s13
    %p10 = scmp.ge.s32.totalorder %s9, 4
    %s16 = sphi 0, %s28
    %s17 = sphi 0, %s24
    %s18 = sphi 0, %s16
    %s19 = sphi 0, %s17
    %s20 = sphi 0, %s18
    %s21 = sphi 0, %s19
    %s31 = sphi 0, %s33
    %s34 = sphi 0, %s31
    %s35 = sphi 0, %s34
    %s51 = sphi 0, %s35
    %s57 = sphi 0, %s59
    %s60 = sphi 0, %s57
    %s61 = sphi 0, %s60
    %s77 = sphi 0, %s61
    %s81 = sphi 0, %s81
    %s83 = sphi 0, %s81
    %s84 = sphi 0, %s83
    %s98 = sphi 0, %s84
    %s106 = sphi 0, %s108
    %s109 = sphi 0, %s106
    %s110 = sphi 0, %s109
    %s126 = sphi 0, %s110
  $region4: #{resnet_generator_forward.11} parent=0 // loop_header_branch
    %12 = sbr.rel (%p10) target = $region8
  $region5: #{resnet_generator_forward.11} parent=0 // loop_body
    %s14 = ssub.s32 %s9, 1
    %s15 = ssub.s32 %s9, 2
    %s22 = sadd.s32 1, %s17
    %p23 = scmp.ge.s32.totalorder %s22, 1
    %s24 = scalar_select %p23, 0, %s22
    %s25 = sadd.s32 1, %s16
    %s26 = scalar_select %p23, %s25, %s16
    %p27 = scmp.ge.s32.totalorder %s26, 2
    %s28 = scalar_select %p27, 0, %s26
    %s29 = ssub.s32 %s16, %s28
    %p30 = scmp.eq.s32.totalorder %s29, 0
    %s32 = sadd.s32 %s31, 1
    %s33 = scalar_select %p30, %s31, %s32
    %p36 = pneg %p30
    %p37 = scmp.eq.s32.totalorder %s9, 1
    %p38 = por %p36, %p37
    %p39 = scmp.ne.s32.totalorder %s31, %s34
    %p40 = scmp.eq.s32.totalorder %s9, 0
    %p41 = por %p39, %p40
    %p42 = scmp.ne.s32.totalorder %s31, %s34
    %p43 = scmp.eq.s32.totalorder %s14, 1
    %p44 = por %p42, %p43
    %p45 = scmp.ne.s32.totalorder %s34, %s35
    %p46 = scmp.eq.s32.totalorder %s14, 0
    %p47 = por %p45, %p46
    %p48 = scmp.ne.s32.totalorder %s34, %s35
    %p49 = scmp.eq.s32.totalorder %s15, 1
    %p50 = por %p48, %p49
    %p52 = scmp.ne.s32.totalorder %s35, %s51
    %p53 = scmp.eq.s32.totalorder %s15, 0
    %p54 = por %p52, %p53
    %s55 = ssub.s32 %s17, %s24
    %p56 = scmp.eq.s32.totalorder %s55, 0
    %s58 = sadd.s32 %s57, 1
    %s59 = scalar_select %p56, %s57, %s58
    %p62 = pneg %p56
    %p63 = scmp.eq.s32.totalorder %s9, 1
    %p64 = por %p62, %p63
    %p65 = scmp.ne.s32.totalorder %s57, %s60
    %p66 = scmp.eq.s32.totalorder %s9, 0
    %p67 = por %p65, %p66
    %p68 = scmp.ne.s32.totalorder %s57, %s60
    %p69 = scmp.eq.s32.totalorder %s14, 1
    %p70 = por %p68, %p69
    %p71 = scmp.ne.s32.totalorder %s60, %s61
    %p72 = scmp.eq.s32.totalorder %s14, 0
    %p73 = por %p71, %p72
    %p74 = scmp.ne.s32.totalorder %s60, %s61
    %p75 = scmp.eq.s32.totalorder %s15, 1
    %p76 = por %p74, %p75
    %p78 = scmp.ne.s32.totalorder %s61, %s77
    %p79 = scmp.eq.s32.totalorder %s15, 0
    %p80 = por %p78, %p79
    %s82 = sadd.s32 %s81, 1
    %p85 = scmp.eq.s32.totalorder %s9, 1
    %p86 = scmp.ne.s32.totalorder %s81, %s83
    %p87 = scmp.eq.s32.totalorder %s9, 0
    %p88 = por %p86, %p87
    %p89 = scmp.ne.s32.totalorder %s81, %s83
    %p90 = scmp.eq.s32.totalorder %s14, 1
    %p91 = por %p89, %p90
    %p92 = scmp.ne.s32.totalorder %s83, %s84
    %p93 = scmp.eq.s32.totalorder %s14, 0
    %p94 = por %p92, %p93
    %p95 = scmp.ne.s32.totalorder %s83, %s84
    %p96 = scmp.eq.s32.totalorder %s15, 1
    %p97 = por %p95, %p96
    %p99 = scmp.ne.s32.totalorder %s84, %s98
    %p100 = scmp.eq.s32.totalorder %s15, 0
    %p101 = por %p99, %p100
    %s102 = ssub.s32 %s16, %s28
    %s103 = ssub.s32 %s17, %s24
    %s104 = sor.u32 %s102, %s103
    %p105 = scmp.eq.s32.totalorder %s104, 0
    %s107 = sadd.s32 %s106, 1
    %s108 = scalar_select %p105, %s106, %s107
    %p111 = pneg %p105
    %p112 = scmp.eq.s32.totalorder %s9, 1
    %p113 = por %p111, %p112
    %p114 = scmp.ne.s32.totalorder %s106, %s109
    %p115 = scmp.eq.s32.totalorder %s9, 0
    %p116 = por %p114, %p115
    %p117 = scmp.ne.s32.totalorder %s106, %s109
    %p118 = scmp.eq.s32.totalorder %s14, 1
    %p119 = por %p117, %p118
    %p120 = scmp.ne.s32.totalorder %s109, %s110
    %p121 = scmp.eq.s32.totalorder %s14, 0
    %p122 = por %p120, %p121
    %p123 = scmp.ne.s32.totalorder %s109, %s110
    %p124 = scmp.eq.s32.totalorder %s15, 1
    %p125 = por %p123, %p124
    %p127 = scmp.ne.s32.totalorder %s110, %s126
    %p128 = scmp.eq.s32.totalorder %s15, 0
    %p129 = por %p127, %p128
    %p130 = scmp.le.s32.totalorder 1, %s9
    %p131 = scmp.lt.s32.totalorder %s9, 3
    %p132 = pnand %p130, %p131
    %p133 = pneg %p132
    // Predicated region
    $region9: #{resnet_generator_forward.11} parent=5 // pred_check
      _
    $region10: #{resnet_generator_forward.11} parent=5 // pred_check_branch
      %135 = sbr.rel (%p132) target = $region12
    $region11: #{resnet_generator_forward.11} parent=5 // pred_region
      %s136 = ssub.s32 %s9, 1
      // Predicated region
      $region13: #{resnet_generator_forward.11} parent=11 // pred_check
        %p137 = pneg %p73
      $region14: #{resnet_generator_forward.11} parent=11 // pred_check_branch
        %139 = sbr.rel (%p137) target = $region16
      $region15: #{resnet_generator_forward.11} parent=11 // pred_region
        %s140 = smul.u32 2, %s19
        %p141 = scmp.lt.s32.totalorder %s140, 1
        %s142 = scalar_select %p141, %s140, 1
        %s143 = smul.addr %s142, 4
        %s144 = scalar_lea.vmem %s1, %s143
        %s145 = smul.u32 2, %s19
      $region16: #{resnet_generator_forward.11} parent=11 // pred_fallthru
        _
      // Predicated region
      $region17: #{resnet_generator_forward.11} parent=11 // pred_check
        %p146 = pneg %p94
      $region18: #{resnet_generator_forward.11} parent=11 // pred_check_branch
        %148 = sbr.rel (%p146) target = $region20
      $region19: #{resnet_generator_forward.11} parent=11 // pred_region
        _
      $region20: #{resnet_generator_forward.11} parent=11 // pred_fallthru
        _
    $region12: #{resnet_generator_forward.11} parent=5 // pred_fallthru
      _
    %p149 = scmp.lt.s32.totalorder %s9, 2
    // Predicated region
    $region21: #{resnet_generator_forward.11} parent=5 // pred_check
      %p150 = pneg %p149
    $region22: #{resnet_generator_forward.11} parent=5 // pred_check_branch
      %152 = sbr.rel (%p150) target = $region24
    $region23: #{resnet_generator_forward.11} parent=5 // pred_region
      // Predicated region
      $region25: #{resnet_generator_forward.11} parent=23 // pred_check
        %p153 = pneg %p41
      $region26: #{resnet_generator_forward.11} parent=23 // pred_check_branch
        %155 = sbr.rel (%p153) target = $region28
      $region27: #{resnet_generator_forward.11} parent=23 // pred_region
        %p156 = scmp.lt.s32.totalorder %s16, 1
        %s157 = scalar_select %p156, %s16, 1
        %s158 = smul.addr %s157, 4
        %s159 = smul.addr %s158, 4
        %s160 = scalar_lea.vmem %s0, %s159
      $region28: #{resnet_generator_forward.11} parent=23 // pred_fallthru
        _
    $region24: #{resnet_generator_forward.11} parent=5 // pred_fallthru
      _
    %p161 = scmp.le.s32.totalorder 1, %s9
    %p162 = scmp.lt.s32.totalorder %s9, 3
    %p163 = pnand %p161, %p162
    %p164 = pneg %p163
    // Predicated region
    $region29: #{resnet_generator_forward.11} parent=5 // pred_check
      _
    $region30: #{resnet_generator_forward.11} parent=5 // pred_check_branch
      %166 = sbr.rel (%p163) target = $region32
    $region31: #{resnet_generator_forward.11} parent=5 // pred_region
      %s167 = ssub.s32 %s9, 1
      %p168 = scmp.lt.s32.totalorder %s18, 1
      %s169 = scalar_select %p168, %s18, 1
      %s170 = smul.addr %s169, 4
      %s171 = smul.addr %s170, 4
      %s172 = scalar_lea.vmem %s0, %s171
      %p173 = pneg %p47
      %p174 = pneg %p44
      %s175 = smul.u32 2, %s19
      %p176 = scmp.lt.s32.totalorder %s175, 1
      %s177 = scalar_select %p176, %s175, 1
      %s178 = smul.addr %s177, 4
      %s179 = scalar_lea.vmem %s1, %s178
      %p180 = pneg %p73
      %p181 = pneg %p70
      %p182 = pneg %p94
      %p183 = pneg %p91
      %p184 = pneg %p122
      %p185 = pneg %p119
      %s186 = smul.u32 2, %s19
      %p187 = scmp.lt.s32.totalorder %s18, 1
      %s188 = scalar_select %p187, %s18, 1
      %p189 = scmp.lt.s32.totalorder %s186, 1
      %s190 = scalar_select %p189, %s186, 1
      %s191 = smul.addr %s188, 2
      %s192 = sadd.s32 %s190, %s191
      %s193 = smul.addr %s192, 4
      %s194 = scalar_lea.vmem %s3, %s193
      %p195 = scmp.lt.s32.totalorder %s18, 1
      %s196 = scalar_select %p195, %s18, 1
      %s197 = smul.addr %s196, 4
      %s198 = smul.addr %s197, 4
      %s199 = scalar_lea.vmem %s0, %s198
      %s200 = smul.u32 2, %s19
      %p201 = scmp.lt.s32.totalorder %s200, 1
      %s202 = scalar_select %p201, %s200, 1
      %s203 = smul.addr %s202, 4
      %s204 = scalar_lea.vmem %s1, %s203
      %s205 = smul.u32 2, %s19
      %s206 = smul.u32 2, %s19
      %p207 = scmp.lt.s32.totalorder %s18, 1
      %s208 = scalar_select %p207, %s18, 1
      %p209 = scmp.lt.s32.totalorder %s206, 1
      %s210 = scalar_select %p209, %s206, 1
      %s211 = smul.addr %s208, 2
      %s212 = sadd.s32 %s210, %s211
      %s213 = smul.addr %s212, 4
      %s214 = scalar_lea.vmem %s3, %s213
      %s215 = smul.u32 2, %s19
      %v217 = vld [vmem:[%s199] sm:$0xf]
      %v218 = vld [vmem:[%s199 + $0x4] sm:$0xf]
      %v219 = vld [vmem:[%s199 + $0x8] sm:$0xf]
      %v220 = vld [vmem:[%s199 + $0xc] sm:$0xf]
      %v225 = vunpack.c.l.b16 %v217
      %v226 = vunpack.c.l.b16 %v218
      %v227 = vunpack.c.l.b16 %v219
      %v228 = vunpack.c.l.b16 %v220
      %v229 = vpack.c.b16 %v226, %v225
      %v230 = vpack.c.b16 %v228, %v227
      %233 = vrot.lane.b32.xlu0 %v229, 127
      %v234 = vpop.permute.xlu0 %233
      %235 = vrot.lane.b32.xlu0 %v230, 127
      %v236 = vpop.permute.xlu0 %235
      %239 = vrot.lane.b32.xlu0 %v229, 119
      %v240 = vpop.permute.xlu0 %239
      %241 = vrot.lane.b32.xlu0 %v230, 119
      %v242 = vpop.permute.xlu0 %241
      %245 = vrot.lane.b32.xlu0 %v229, 118
      %v246 = vpop.permute.xlu0 %245
      %247 = vrot.lane.b32.xlu0 %v230, 118
      %v248 = vpop.permute.xlu0 %247
      %v251 = vld [vmem:[%s204] sm:$0xf]
      %v252 = vld [vmem:[%s204 + $0x4] sm:$0xf]
      %v255 = vunpack.c.l.b16 %v251
      %v256 = vunpack.c.l.b16 %v252
      %v257 = vpack.c.b16 %v256, %v255
      %259 = vmatprep.subr.bf16.mxu0 0
      %260 = vmatpush1.bf16.msra.mxu0 %v229
      %261 = vmatprep.subr.bf16.mxu0 0
      %262 = vmatpush1.bf16.msra.mxu0 %v230
      %263 = vmatprep.subr.bf16.mxu0 0
      %264 = vmatpush1.bf16.msra.mxu0 %v234
      %265 = vmatprep.subr.bf16.mxu0 0
      %266 = vmatpush1.bf16.msra.mxu0 %v236
      %267 = vmatprep.subr.bf16.mxu0 0
      %268 = vmatpush1.bf16.msra.mxu0 %v240
      %269 = vmatprep.subr.bf16.mxu0 0
      %270 = vmatpush1.bf16.msra.mxu0 %v242
      %271 = vmatprep.subr.bf16.mxu0 0
      %272 = vmatpush1.bf16.msra.mxu0 %v246
      %273 = vmatprep.subr.bf16.mxu0 0
      %274 = vmatpush1.bf16.msra.mxu0 %v248
      %275 = vmatprep.subr.bf16.mxu0 0
      %276 = vmatpush1.bf16.msra.mxu0 0
      %277 = vmatprep.subr.bf16.mxu0 0
      %278 = vmatpush1.bf16.msra.mxu0 0
      %279 = vmatprep.subr.bf16.mxu0 0
      %280 = vmatpush1.bf16.msra.mxu0 0
      %281 = vmatprep.subr.bf16.mxu0 0
      %282 = vmatpush1.bf16.msra.mxu0 0
      %283 = vmatprep.subr.bf16.mxu0 0
      %284 = vmatpush1.bf16.msra.mxu0 0
      %285 = vmatprep.subr.bf16.mxu0 0
      %286 = vmatpush1.bf16.msra.mxu0 0
      %287 = vmatprep.subr.bf16.mxu0 0
      %288 = vmatpush1.bf16.msra.mxu0 0
      %289 = vmatprep.subr.bf16.mxu0 0
      %290 = vmatpush1.bf16.msra.mxu0 0
      %291 = vmatprep.mubr.bf16.mxu0 0
      %292 = vmatmul.mubr.bf16.gmra.mrb[0].mxu0 %v257
      %v293 = vpop.f32.mrb[0].mxu0
      %v294 = vadd.f32 0.0, %v293
      %v295 = vpop.f32.mrb[0].mxu0
      %v296 = vpop.f32.mrb[0].mxu0
      %v297 = vadd.f32 0.0, %v296
      %v298 = vpop.f32.mrb[0].mxu0
      %299 = vdwg.mxu0
      %v300 = vld [vmem:[%s2] sm:$0x1]
      %v302 = vlaneseq
      %v303 = vshrl.u32 %v302, 7
      %v304 = vsub.s32 0, %v303
      %v305 = vrot.slane %v300, %v304
      %v307 = vmul.f32 %v294, %v305
      %v308 = vmul.f32 %v297, %v305
      %vm309 = vcmask 588800
      %v310 = vsel %vm309, %v307, 0.0
      %311 = vadd.xlane.f32.xlu0 %v310
      %v312 = vpop.xlane.xlu0 %311
      %v313 = vsel %vm309, %v308, 0.0
      %314 = vadd.xlane.f32.xlu0 %v313
      %v315 = vpop.xlane.xlu0 %314
      %v316 = vmul.f32 %v312, 0.015625
      %v317 = vmul.f32 %v315, 0.015625
      %v318 = vsub.f32 %v294, %v316
      %v319 = vsub.f32 %v297, %v317
      %v320 = vmul.f32 %v318, %v305
      %v321 = vmul.f32 %v319, %v305
      %v322 = vmul.f32 %v320, %v320
      %v323 = vmul.f32 %v321, %v321
      %v324 = vsel %vm309, %v322, 0.0
      %325 = vadd.xlane.f32.xlu0 %v324
      %v326 = vpop.xlane.xlu0 %325
      %v327 = vsel %vm309, %v323, 0.0
      %328 = vadd.xlane.f32.xlu0 %v327
      %v329 = vpop.xlane.xlu0 %328
      %v330 = vmul.f32 %v326, 0.015625
      %v331 = vmul.f32 %v329, 0.015625
      %v332 = vadd.f32 %v330, 1e-05
      %v333 = vadd.f32 %v331, 1e-05
      %v334 = vrsqrt.pop %v332
      %v335 = vrsqrt.pop %v333
      %v336 = vmul.f32 %v320, %v334
      %v337 = vmul.f32 %v321, %v335
      %v338 = vmax.f32 %v336, 0.0
      %v339 = vmax.f32 %v337, 0.0
      %v340 = vpack.c.bf16 %v339, %v338
      %v342 = vunpack.c.l.b16 %v340
      %v343 = vunpack.c.h.b16 %v340
      %v344 = vpack.c.b16 %v342, %v342
      %v345 = vpack.c.b16 %v343, %v343
      %vm348 = vcmask 584704
      %349 = vst.msk [vmem:[%s214] sm:$0xf] %vm348, %v344
      %350 = vst.msk [vmem:[%s214 + $0x4] sm:$0xf] %vm348, %v345
      %s351 = smul.u32 2, %s19
      %p352 = scmp.lt.s32.totalorder %s18, 1
      %s353 = scalar_select %p352, %s18, 1
      %p354 = scmp.lt.s32.totalorder %s351, 1
      %s355 = scalar_select %p354, %s351, 1
      %s356 = smul.addr %s353, 2
      %s357 = sadd.s32 %s355, %s356
      %s358 = smul.addr %s357, 4
      %s359 = scalar_lea.vmem %s3, %s358
      // Predicated region
      $region33: #{resnet_generator_forward.11} parent=31 // pred_check
        %p360 = pneg %p119
      $region34: #{resnet_generator_forward.11} parent=31 // pred_check_branch
        %362 = sbr.rel (%p360) target = $region36
      $region35: #{resnet_generator_forward.11} parent=31 // pred_region
        %s363 = smul.u32 2, %s19
      $region36: #{resnet_generator_forward.11} parent=31 // pred_fallthru
        _
    $region32: #{resnet_generator_forward.11} parent=5 // pred_fallthru
      _
    %p364 = scmp.le.s32.totalorder 2, %s9
    // Predicated region
    $region37: #{resnet_generator_forward.11} parent=5 // pred_check
      %p365 = pneg %p364
    $region38: #{resnet_generator_forward.11} parent=5 // pred_check_branch
      %367 = sbr.rel (%p365) target = $region40
    $region39: #{resnet_generator_forward.11} parent=5 // pred_region
      %s368 = ssub.s32 %s9, 2
      // Predicated region
      $region41: #{resnet_generator_forward.11} parent=39 // pred_check
        %p369 = pneg %p125
      $region42: #{resnet_generator_forward.11} parent=39 // pred_check_branch
        %371 = sbr.rel (%p369) target = $region44
      $region43: #{resnet_generator_forward.11} parent=39 // pred_region
        %s372 = smul.u32 2, %s21
        %p373 = scmp.lt.s32.totalorder %s20, 1
        %s374 = scalar_select %p373, %s20, 1
        %p375 = scmp.lt.s32.totalorder %s372, 1
        %s376 = scalar_select %p375, %s372, 1
        %s377 = smul.addr %s374, 2
        %s378 = sadd.s32 %s376, %s377
        %s379 = smul.addr %s378, 4
        %s380 = scalar_lea.vmem %s3, %s379
      $region44: #{resnet_generator_forward.11} parent=39 // pred_fallthru
        _
    $region40: #{resnet_generator_forward.11} parent=5 // pred_fallthru
      _
  $region6: #{resnet_generator_forward.11} parent=0 // loop_footer
    %s13 = sadd.s32 1, %s9
  $region7: #{resnet_generator_forward.11} parent=0 // loop_footer_branch
    %8 = sbr.rel target = $region3
  $region8: #{resnet_generator_forward.11} parent=0 // loop_exit
    _

// kernel: resnet_generator_forward.12
$region0: #{resnet_generator_forward.12}
  #allocation0 [shape = 'u32[]', space=smem, size = 0x4, offset = 0x4, fixed_abs, tag = 'smem constant byte address 0x4 - core index']
  #allocation1 [shape = 'u32[144,128]{1,0:T(1,128)}', space=vmem, size = 0x12000, scoped, tag = 'internal scratch']
  %s0 = inlined_call_operand.vmem [shape: bf16[2,64,30], index: 0, kind: input, shape index: {}]
  %s1 = inlined_call_operand.vmem [shape: bf16[32,256], index: 1, kind: input, shape index: {}]
  %s2 = inlined_call_operand.vmem [shape: f32[1,20], index: 2, kind: input, shape index: {}]
  %s3 = inlined_call_operand.vmem [shape: bf16[2,32,20], index: 3, kind: output, shape index: {}]
  %s4 = sld [smem:[#allocation0]]
  $region45: #{resnet_generator_forward.12} parent=0
    _
  %s6 = ssub.s32 1, %s4
  %s7 = scalar_select 0, %s6, %s4
  loop: start=0, step=1, limit=4
  $region2: #{resnet_generator_forward.12} parent=0 // loop_pre_header
    _
  $region3: #{resnet_generator_forward.12} parent=0 // loop_header
    %s9 = sphi 0, %s13
    %p10 = scmp.ge.s32.totalorder %s9, 4
    %s16 = sphi 0, %s28
    %s17 = sphi 0, %s24
    %s18 = sphi 0, %s16
    %s19 = sphi 0, %s17
    %s20 = sphi 0, %s18
    %s21 = sphi 0, %s19
    %s31 = sphi 0, %s33
    %s34 = sphi 0, %s31
    %s35 = sphi 0, %s34
    %s51 = sphi 0, %s35
    %s57 = sphi 0, %s59
    %s60 = sphi 0, %s57
    %s61 = sphi 0, %s60
    %s77 = sphi 0, %s61
    %s81 = sphi 0, %s81
    %s83 = sphi 0, %s81
    %s84 = sphi 0, %s83
    %s98 = sphi 0, %s84
    %s106 = sphi 0, %s108
    %s109 = sphi 0, %s106
    %s110 = sphi 0, %s109
    %s126 = sphi 0, %s110
  $region4: #{resnet_generator_forward.12} parent=0 // loop_header_branch
    %12 = sbr.rel (%p10) target = $region8
  $region5: #{resnet_generator_forward.12} parent=0 // loop_body
    %s14 = ssub.s32 %s9, 1
    %s15 = ssub.s32 %s9, 2
    %s22 = sadd.s32 1, %s17
    %p23 = scmp.ge.s32.totalorder %s22, 1
    %s24 = scalar_select %p23, 0, %s22
    %s25 = sadd.s32 1, %s16
    %s26 = scalar_select %p23, %s25, %s16
    %p27 = scmp.ge.s32.totalorder %s26, 2
    %s28 = scalar_select %p27, 0, %s26
    %s29 = ssub.s32 %s16, %s28
    %p30 = scmp.eq.s32.totalorder %s29, 0
    %s32 = sadd.s32 %s31, 1
    %s33 = scalar_select %p30, %s31, %s32
    %p36 = pneg %p30
    %p37 = scmp.eq.s32.totalorder %s9, 1
    %p38 = por %p36, %p37
    %p39 = scmp.ne.s32.totalorder %s31, %s34
    %p40 = scmp.eq.s32.totalorder %s9, 0
    %p41 = por %p39, %p40
    %p42 = scmp.ne.s32.totalorder %s31, %s34
    %p43 = scmp.eq.s32.totalorder %s14, 1
    %p44 = por %p42, %p43
    %p45 = scmp.ne.s32.totalorder %s34, %s35
    %p46 = scmp.eq.s32.totalorder %s14, 0
    %p47 = por %p45, %p46
    %p48 = scmp.ne.s32.totalorder %s34, %s35
    %p49 = scmp.eq.s32.totalorder %s15, 1
    %p50 = por %p48, %p49
    %p52 = scmp.ne.s32.totalorder %s35, %s51
    %p53 = scmp.eq.s32.totalorder %s15, 0
    %p54 = por %p52, %p53
    %s55 = ssub.s32 %s17, %s24
    %p56 = scmp.eq.s32.totalorder %s55, 0
    %s58 = sadd.s32 %s57, 1
    %s59 = scalar_select %p56, %s57, %s58
    %p62 = pneg %p56
    %p63 = scmp.eq.s32.totalorder %s9, 1
    %p64 = por %p62, %p63
    %p65 = scmp.ne.s32.totalorder %s57, %s60
    %p66 = scmp.eq.s32.totalorder %s9, 0
    %p67 = por %p65, %p66
    %p68 = scmp.ne.s32.totalorder %s57, %s60
    %p69 = scmp.eq.s32.totalorder %s14, 1
    %p70 = por %p68, %p69
    %p71 = scmp.ne.s32.totalorder %s60, %s61
    %p72 = scmp.eq.s32.totalorder %s14, 0
    %p73 = por %p71, %p72
    %p74 = scmp.ne.s32.totalorder %s60, %s61
    %p75 = scmp.eq.s32.totalorder %s15, 1
    %p76 = por %p74, %p75
    %p78 = scmp.ne.s32.totalorder %s61, %s77
    %p79 = scmp.eq.s32.totalorder %s15, 0
    %p80 = por %p78, %p79
    %s82 = sadd.s32 %s81, 1
    %p85 = scmp.eq.s32.totalorder %s9, 1
    %p86 = scmp.ne.s32.totalorder %s81, %s83
    %p87 = scmp.eq.s32.totalorder %s9, 0
    %p88 = por %p86, %p87
    %p89 = scmp.ne.s32.totalorder %s81, %s83
    %p90 = scmp.eq.s32.totalorder %s14, 1
    %p91 = por %p89, %p90
    %p92 = scmp.ne.s32.totalorder %s83, %s84
    %p93 = scmp.eq.s32.totalorder %s14, 0
    %p94 = por %p92, %p93
    %p95 = scmp.ne.s32.totalorder %s83, %s84
    %p96 = scmp.eq.s32.totalorder %s15, 1
    %p97 = por %p95, %p96
    %p99 = scmp.ne.s32.totalorder %s84, %s98
    %p100 = scmp.eq.s32.totalorder %s15, 0
    %p101 = por %p99, %p100
    %s102 = ssub.s32 %s16, %s28
    %s103 = ssub.s32 %s17, %s24
    %s104 = sor.u32 %s102, %s103
    %p105 = scmp.eq.s32.totalorder %s104, 0
    %s107 = sadd.s32 %s106, 1
    %s108 = scalar_select %p105, %s106, %s107
    %p111 = pneg %p105
    %p112 = scmp.eq.s32.totalorder %s9, 1
    %p113 = por %p111, %p112
    %p114 = scmp.ne.s32.totalorder %s106, %s109
    %p115 = scmp.eq.s32.totalorder %s9, 0
    %p116 = por %p114, %p115
    %p117 = scmp.ne.s32.totalorder %s106, %s109
    %p118 = scmp.eq.s32.totalorder %s14, 1
    %p119 = por %p117, %p118
    %p120 = scmp.ne.s32.totalorder %s109, %s110
    %p121 = scmp.eq.s32.totalorder %s14, 0
    %p122 = por %p120, %p121
    %p123 = scmp.ne.s32.totalorder %s109, %s110
    %p124 = scmp.eq.s32.totalorder %s15, 1
    %p125 = por %p123, %p124
    %p127 = scmp.ne.s32.totalorder %s110, %s126
    %p128 = scmp.eq.s32.totalorder %s15, 0
    %p129 = por %p127, %p128
    %p130 = scmp.le.s32.totalorder 1, %s9
    %p131 = scmp.lt.s32.totalorder %s9, 3
    %p132 = pnand %p130, %p131
    %p133 = pneg %p132
    // Predicated region
    $region9: #{resnet_generator_forward.12} parent=5 // pred_check
      _
    $region10: #{resnet_generator_forward.12} parent=5 // pred_check_branch
      %135 = sbr.rel (%p132) target = $region12
    $region11: #{resnet_generator_forward.12} parent=5 // pred_region
      %s136 = ssub.s32 %s9, 1
      // Predicated region
      $region13: #{resnet_generator_forward.12} parent=11 // pred_check
        %p137 = pneg %p73
      $region14: #{resnet_generator_forward.12} parent=11 // pred_check_branch
        %139 = sbr.rel (%p137) target = $region16
      $region15: #{resnet_generator_forward.12} parent=11 // pred_region
        %s140 = smul.u32 4, %s19
        %p141 = scmp.lt.s32.totalorder %s140, 3
        %s142 = scalar_select %p141, %s140, 3
        %s143 = smul.addr %s142, 2
        %s144 = smul.addr %s143, 4
        %s145 = scalar_lea.vmem %s1, %s144
        %s146 = smul.u32 4, %s19
      $region16: #{resnet_generator_forward.12} parent=11 // pred_fallthru
        _
      // Predicated region
      $region17: #{resnet_generator_forward.12} parent=11 // pred_check
        %p147 = pneg %p94
      $region18: #{resnet_generator_forward.12} parent=11 // pred_check_branch
        %149 = sbr.rel (%p147) target = $region20
      $region19: #{resnet_generator_forward.12} parent=11 // pred_region
        _
      $region20: #{resnet_generator_forward.12} parent=11 // pred_fallthru
        _
    $region12: #{resnet_generator_forward.12} parent=5 // pred_fallthru
      _
    %p150 = scmp.lt.s32.totalorder %s9, 2
    // Predicated region
    $region21: #{resnet_generator_forward.12} parent=5 // pred_check
      %p151 = pneg %p150
    $region22: #{resnet_generator_forward.12} parent=5 // pred_check_branch
      %153 = sbr.rel (%p151) target = $region24
    $region23: #{resnet_generator_forward.12} parent=5 // pred_region
      // Predicated region
      $region25: #{resnet_generator_forward.12} parent=23 // pred_check
        %p154 = pneg %p41
      $region26: #{resnet_generator_forward.12} parent=23 // pred_check_branch
        %156 = sbr.rel (%p154) target = $region28
      $region27: #{resnet_generator_forward.12} parent=23 // pred_region
        %p157 = scmp.lt.s32.totalorder %s16, 1
        %s158 = scalar_select %p157, %s16, 1
        %s159 = smul.addr %s158, 8
        %s160 = smul.addr %s159, 4
        %s161 = scalar_lea.vmem %s0, %s160
      $region28: #{resnet_generator_forward.12} parent=23 // pred_fallthru
        _
    $region24: #{resnet_generator_forward.12} parent=5 // pred_fallthru
      _
    %p162 = scmp.le.s32.totalorder 1, %s9
    %p163 = scmp.lt.s32.totalorder %s9, 3
    %p164 = pnand %p162, %p163
    %p165 = pneg %p164
    // Predicated region
    $region29: #{resnet_generator_forward.12} parent=5 // pred_check
      _
    $region30: #{resnet_generator_forward.12} parent=5 // pred_check_branch
      %167 = sbr.rel (%p164) target = $region32
    $region31: #{resnet_generator_forward.12} parent=5 // pred_region
      %s168 = ssub.s32 %s9, 1
      %p169 = scmp.lt.s32.totalorder %s18, 1
      %s170 = scalar_select %p169, %s18, 1
      %s171 = smul.addr %s170, 8
      %s172 = smul.addr %s171, 4
      %s173 = scalar_lea.vmem %s0, %s172
      %p174 = pneg %p47
      %p175 = pneg %p44
      %s176 = smul.u32 4, %s19
      %p177 = scmp.lt.s32.totalorder %s176, 3
      %s178 = scalar_select %p177, %s176, 3
      %s179 = smul.addr %s178, 2
      %s180 = smul.addr %s179, 4
      %s181 = scalar_lea.vmem %s1, %s180
      %p182 = pneg %p73
      %p183 = pneg %p70
      %p184 = pneg %p94
      %p185 = pneg %p91
      %p186 = pneg %p122
      %p187 = pneg %p119
      %s188 = smul.u32 4, %s19
      %p189 = scmp.lt.s32.totalorder %s18, 1
      %s190 = scalar_select %p189, %s18, 1
      %p191 = scmp.lt.s32.totalorder %s188, 3
      %s192 = scalar_select %p191, %s188, 3
      %s193 = smul.addr %s190, 4
      %s194 = sadd.s32 %s192, %s193
      %s195 = smul.addr %s194, 4
      %s196 = scalar_lea.vmem %s3, %s195
      %p197 = scmp.lt.s32.totalorder %s18, 1
      %s198 = scalar_select %p197, %s18, 1
      %s199 = smul.addr %s198, 8
      %s200 = smul.addr %s199, 4
      %s201 = scalar_lea.vmem %s0, %s200
      %s202 = smul.u32 4, %s19
      %p203 = scmp.lt.s32.totalorder %s202, 3
      %s204 = scalar_select %p203, %s202, 3
      %s205 = smul.addr %s204, 2
      %s206 = smul.addr %s205, 4
      %s207 = scalar_lea.vmem %s1, %s206
      %s208 = smul.u32 4, %s19
      %s209 = smul.u32 4, %s19
      %p210 = scmp.lt.s32.totalorder %s18, 1
      %s211 = scalar_select %p210, %s18, 1
      %p212 = scmp.lt.s32.totalorder %s209, 3
      %s213 = scalar_select %p212, %s209, 3
      %s214 = smul.addr %s211, 4
      %s215 = sadd.s32 %s213, %s214
      %s216 = smul.addr %s215, 4
      %s217 = scalar_lea.vmem %s3, %s216
      %s218 = smul.u32 4, %s19
      %v220 = vld [vmem:[%s201] sm:$0xf]
      %v221 = vld [vmem:[%s201 + $0x4] sm:$0xf]
      %v222 = vld [vmem:[%s201 + $0x8] sm:$0xf]
      %v223 = vld [vmem:[%s201 + $0xc] sm:$0xf]
      %v224 = vld [vmem:[%s201 + $0x10] sm:$0xf]
      %v225 = vld [vmem:[%s201 + $0x14] sm:$0xf]
      %v226 = vld [vmem:[%s201 + $0x18] sm:$0xf]
      %v227 = vld [vmem:[%s201 + $0x1c] sm:$0xf]
      %v236 = vunpack.c.l.b16 %v220
      %v237 = vunpack.c.l.b16 %v221
      %v238 = vunpack.c.l.b16 %v222
      %v239 = vunpack.c.l.b16 %v223
      %v240 = vunpack.c.l.b16 %v224
      %v241 = vunpack.c.l.b16 %v225
      %v242 = vunpack.c.l.b16 %v226
      %v243 = vunpack.c.l.b16 %v227
      %v244 = vpack.c.b16 %v237, %v236
      %v245 = vpack.c.b16 %v239, %v238
      %v246 = vpack.c.b16 %v241, %v240
      %v247 = vpack.c.b16 %v243, %v242
      %252 = vrot.lane.b32.xlu0 %v244, 127
      %v253 = vpop.permute.xlu0 %252
      %254 = vrot.lane.b32.xlu0 %v245, 127
      %v255 = vpop.permute.xlu0 %254
      %256 = vrot.lane.b32.xlu0 %v246, 127
      %v257 = vpop.permute.xlu0 %256
      %258 = vrot.lane.b32.xlu0 %v247, 127
      %v259 = vpop.permute.xlu0 %258
      %264 = vrot.lane.b32.xlu0 %v244, 123
      %v265 = vpop.permute.xlu0 %264
      %266 = vrot.lane.b32.xlu0 %v245, 123
      %v267 = vpop.permute.xlu0 %266
      %268 = vrot.lane.b32.xlu0 %v246, 123
      %v269 = vpop.permute.xlu0 %268
      %270 = vrot.lane.b32.xlu0 %v247, 123
      %v271 = vpop.permute.xlu0 %270
      %276 = vrot.lane.b32.xlu0 %v244, 122
      %v277 = vpop.permute.xlu0 %276
      %278 = vrot.lane.b32.xlu0 %v245, 122
      %v279 = vpop.permute.xlu0 %278
      %280 = vrot.lane.b32.xlu0 %v246, 122
      %v281 = vpop.permute.xlu0 %280
      %282 = vrot.lane.b32.xlu0 %v247, 122
      %v283 = vpop.permute.xlu0 %282
      %v288 = vld [vmem:[%s207] sm:$0xff]
      %v289 = vld [vmem:[%s207 + $0x8] sm:$0xff]
      %v290 = vld [vmem:[%s207 + $0x10] sm:$0xff]
      %v291 = vld [vmem:[%s207 + $0x18] sm:$0xff]
      %v296 = vunpack.c.l.b16 %v288
      %v297 = vunpack.c.h.b16 %v288
      %v298 = vunpack.c.l.b16 %v289
      %v299 = vunpack.c.h.b16 %v289
      %v300 = vunpack.c.l.b16 %v290
      %v301 = vunpack.c.h.b16 %v290
      %v302 = vunpack.c.l.b16 %v291
      %v303 = vunpack.c.h.b16 %v291
      %v304 = vpack.c.b16 %v298, %v296
      %v305 = vpack.c.b16 %v299, %v297
      %v306 = vpack.c.b16 %v302, %v300
      %v307 = vpack.c.b16 %v303, %v301
      %312 = vmatprep.subr.bf16.mxu0 0
      %313 = vmatpush1.bf16.msra.mxu0 %v244
      %314 = vmatprep.subr.bf16.mxu0 0
      %315 = vmatpush1.bf16.msra.mxu0 %v245
      %316 = vmatprep.subr.bf16.mxu0 0
      %317 = vmatpush1.bf16.msra.mxu0 %v246
      %318 = vmatprep.subr.bf16.mxu0 0
      %319 = vmatpush1.bf16.msra.mxu0 %v247
      %320 = vmatprep.subr.bf16.mxu0 0
      %321 = vmatpush1.bf16.msra.mxu0 %v253
      %322 = vmatprep.subr.bf16.mxu0 0
      %323 = vmatpush1.bf16.msra.mxu0 %v255
      %324 = vmatprep.subr.bf16.mxu0 0
      %325 = vmatpush1.bf16.msra.mxu0 %v257
      %326 = vmatprep.subr.bf16.mxu0 0
      %327 = vmatpush1.bf16.msra.mxu0 %v259
      %328 = vmatprep.subr.bf16.mxu0 0
      %329 = vmatpush1.bf16.msra.mxu0 %v265
      %330 = vmatprep.subr.bf16.mxu0 0
      %331 = vmatpush1.bf16.msra.mxu0 %v267
      %332 = vmatprep.subr.bf16.mxu0 0
      %333 = vmatpush1.bf16.msra.mxu0 %v269
      %334 = vmatprep.subr.bf16.mxu0 0
      %335 = vmatpush1.bf16.msra.mxu0 %v271
      %336 = vmatprep.subr.bf16.mxu0 0
      %337 = vmatpush1.bf16.msra.mxu0 %v277
      %338 = vmatprep.subr.bf16.mxu0 0
      %339 = vmatpush1.bf16.msra.mxu0 %v279
      %340 = vmatprep.subr.bf16.mxu0 0
      %341 = vmatpush1.bf16.msra.mxu0 %v281
      %342 = vmatprep.subr.bf16.mxu0 0
      %343 = vmatpush1.bf16.msra.mxu0 %v283
      %344 = vmatprep.mubr.bf16.mxu0 %v305
      %345 = vmatmul.mubr.bf16.gmra.mrb[0].mxu0 %v304
      %v346 = vpop.f32.mrb[0].mxu0
      %v347 = vadd.f32 0.0, %v346
      %v348 = vpop.f32.mrb[0].mxu0
      %v349 = vpop.f32.mrb[0].mxu0
      %v350 = vadd.f32 0.0, %v349
      %v351 = vpop.f32.mrb[0].mxu0
      %352 = vmatprep.mubr.bf16.mxu0 %v307
      %353 = vmatmul.mubr.bf16.gmra.mrb[0].mxu0 %v306
      %v354 = vpop.f32.mrb[0].mxu0
      %v355 = vadd.f32 0.0, %v354
      %v356 = vpop.f32.mrb[0].mxu0
      %v357 = vpop.f32.mrb[0].mxu0
      %v358 = vadd.f32 0.0, %v357
      %v359 = vpop.f32.mrb[0].mxu0
      %360 = vdwg.mxu0
      %v361 = vld [vmem:[%s2] sm:$0x1]
      %v363 = vlaneseq
      %v364 = vshrl.u32 %v363, 7
      %v365 = vsub.s32 0, %v364
      %v366 = vrot.slane %v361, %v365
      %v368 = vmul.f32 %v347, %v366
      %v369 = vmul.f32 %v350, %v366
      %v370 = vmul.f32 %v355, %v366
      %v371 = vmul.f32 %v358, %v366
      %vm372 = vcmask 162816
      %v373 = vsel %vm372, %v368, 0.0
      %374 = vadd.xlane.f32.xlu0 %v373
      %v375 = vpop.xlane.xlu0 %374
      %v376 = vsel %vm372, %v369, 0.0
      %377 = vadd.xlane.f32.xlu0 %v376
      %v378 = vpop.xlane.xlu0 %377
      %v379 = vsel %vm372, %v370, 0.0
      %380 = vadd.xlane.f32.xlu0 %v379
      %v381 = vpop.xlane.xlu0 %380
      %v382 = vsel %vm372, %v371, 0.0
      %383 = vadd.xlane.f32.xlu0 %v382
      %v384 = vpop.xlane.xlu0 %383
      %v385 = vmul.f32 %v375, 0.0625
      %v386 = vmul.f32 %v378, 0.0625
      %v387 = vmul.f32 %v381, 0.0625
      %v388 = vmul.f32 %v384, 0.0625
      %v389 = vsub.f32 %v347, %v385
      %v390 = vsub.f32 %v350, %v386
      %v391 = vsub.f32 %v355, %v387
      %v392 = vsub.f32 %v358, %v388
      %v393 = vmul.f32 %v389, %v366
      %v394 = vmul.f32 %v390, %v366
      %v395 = vmul.f32 %v391, %v366
      %v396 = vmul.f32 %v392, %v366
      %v397 = vmul.f32 %v393, %v393
      %v398 = vmul.f32 %v394, %v394
      %v399 = vmul.f32 %v395, %v395
      %v400 = vmul.f32 %v396, %v396
      %v401 = vsel %vm372, %v397, 0.0
      %402 = vadd.xlane.f32.xlu0 %v401
      %v403 = vpop.xlane.xlu0 %402
      %v404 = vsel %vm372, %v398, 0.0
      %405 = vadd.xlane.f32.xlu0 %v404
      %v406 = vpop.xlane.xlu0 %405
      %v407 = vsel %vm372, %v399, 0.0
      %408 = vadd.xlane.f32.xlu0 %v407
      %v409 = vpop.xlane.xlu0 %408
      %v410 = vsel %vm372, %v400, 0.0
      %411 = vadd.xlane.f32.xlu0 %v410
      %v412 = vpop.xlane.xlu0 %411
      %v413 = vmul.f32 %v403, 0.0625
      %v414 = vmul.f32 %v406, 0.0625
      %v415 = vmul.f32 %v409, 0.0625
      %v416 = vmul.f32 %v412, 0.0625
      %v417 = vadd.f32 %v413, 1e-05
      %v418 = vadd.f32 %v414, 1e-05
      %v419 = vadd.f32 %v415, 1e-05
      %v420 = vadd.f32 %v416, 1e-05
      %v421 = vrsqrt.pop %v417
      %v422 = vrsqrt.pop %v418
      %v423 = vrsqrt.pop %v419
      %v424 = vrsqrt.pop %v420
      %v425 = vmul.f32 %v393, %v421
      %v426 = vmul.f32 %v394, %v422
      %v427 = vmul.f32 %v395, %v423
      %v428 = vmul.f32 %v396, %v424
      %v429 = vmax.f32 %v425, 0.0
      %v430 = vmax.f32 %v426, 0.0
      %v431 = vmax.f32 %v427, 0.0
      %v432 = vmax.f32 %v428, 0.0
      %v433 = vpack.c.bf16 %v430, %v429
      %v434 = vpack.c.bf16 %v432, %v431
      %v437 = vunpack.c.l.b16 %v433
      %v438 = vunpack.c.h.b16 %v433
      %v439 = vunpack.c.l.b16 %v434
      %v440 = vunpack.c.h.b16 %v434
      %v441 = vpack.c.b16 %v437, %v437
      %v442 = vpack.c.b16 %v438, %v438
      %v443 = vpack.c.b16 %v439, %v439
      %v444 = vpack.c.b16 %v440, %v440
      %vm449 = vcmask 158720
      %450 = vst.msk [vmem:[%s217] sm:$0xf] %vm449, %v441
      %451 = vst.msk [vmem:[%s217 + $0x4] sm:$0xf] %vm449, %v442
      %452 = vst.msk [vmem:[%s217 + $0x8] sm:$0xf] %vm449, %v443
      %453 = vst.msk [vmem:[%s217 + $0xc] sm:$0xf] %vm449, %v444
      %s454 = smul.u32 4, %s19
      %p455 = scmp.lt.s32.totalorder %s18, 1
      %s456 = scalar_select %p455, %s18, 1
      %p457 = scmp.lt.s32.totalorder %s454, 3
      %s458 = scalar_select %p457, %s454, 3
      %s459 = smul.addr %s456, 4
      %s460 = sadd.s32 %s458, %s459
      %s461 = smul.addr %s460, 4
      %s462 = scalar_lea.vmem %s3, %s461
      // Predicated region
      $region33: #{resnet_generator_forward.12} parent=31 // pred_check
        %p463 = pneg %p119
      $region34: #{resnet_generator_forward.12} parent=31 // pred_check_branch
        %465 = sbr.rel (%p463) target = $region36
      $region35: #{resnet_generator_forward.12} parent=31 // pred_region
        %s466 = smul.u32 4, %s19
      $region36: #{resnet_generator_forward.12} parent=31 // pred_fallthru
        _
    $region32: #{resnet_generator_forward.12} parent=5 // pred_fallthru
      _
    %p467 = scmp.le.s32.totalorder 2, %s9
    // Predicated region
    $region37: #{resnet_generator_forward.12} parent=5 // pred_check
      %p468 = pneg %p467
    $region38: #{resnet_generator_forward.12} parent=5 // pred_check_branch
      %470 = sbr.rel (%p468) target = $region40
    $region39: #{resnet_generator_forward.12} parent=5 // pred_region
      %s471 = ssub.s32 %s9, 2
      // Predicated region
      $region41: #{resnet_generator_forward.12} parent=39 // pred_check
        %p472 = pneg %p125
      $region42: #{resnet_generator_forward.12} parent=39 // pred_check_branch
        %474 = sbr.rel (%p472) target = $region44
      $region43: #{resnet_generator_forward.12} parent=39 // pred_region
        %s475 = smul.u32 4, %s21
        %p476 = scmp.lt.s32.totalorder %s20, 1
        %s477 = scalar_select %p476, %s20, 1
        %p478 = scmp.lt.s32.totalorder %s475, 3
        %s479 = scalar_select %p478, %s475, 3
        %s480 = smul.addr %s477, 4
        %s481 = sadd.s32 %s479, %s480
        %s482 = smul.addr %s481, 4
        %s483 = scalar_lea.vmem %s3, %s482
      $region44: #{resnet_generator_forward.12} parent=39 // pred_fallthru
        _
    $region40: #{resnet_generator_forward.12} parent=5 // pred_fallthru
      _
  $region6: #{resnet_generator_forward.12} parent=0 // loop_footer
    %s13 = sadd.s32 1, %s9
  $region7: #{resnet_generator_forward.12} parent=0 // loop_footer_branch
    %8 = sbr.rel target = $region3
  $region8: #{resnet_generator_forward.12} parent=0 // loop_exit
    _

// kernel: resnet_generator_forward.14
$region0: #{resnet_generator_forward.14}
  #allocation0 [shape = 'u32[]', space=smem, size = 0x4, offset = 0x4, fixed_abs, tag = 'smem constant byte address 0x4 - core index']
  #allocation1 [shape = 'u32[144,128]{1,0:T(1,128)}', space=vmem, size = 0x12000, scoped, tag = 'internal scratch']
  %s0 = inlined_call_operand.vmem [shape: bf16[2,32,42], index: 0, kind: input, shape index: {}]
  %s1 = inlined_call_operand.vmem [shape: bf16[32,288], index: 1, kind: input, shape index: {}]
  %s2 = inlined_call_operand.vmem [shape: f32[1,24], index: 2, kind: input, shape index: {}]
  %s3 = inlined_call_operand.vmem [shape: bf16[2,32,24], index: 3, kind: output, shape index: {}]
  %s4 = sld [smem:[#allocation0]]
  $region45: #{resnet_generator_forward.14} parent=0
    _
  %s6 = ssub.s32 1, %s4
  %s7 = scalar_select 0, %s6, %s4
  loop: start=0, step=1, limit=4
  $region2: #{resnet_generator_forward.14} parent=0 // loop_pre_header
    _
  $region3: #{resnet_generator_forward.14} parent=0 // loop_header
    %s9 = sphi 0, %s13
    %p10 = scmp.ge.s32.totalorder %s9, 4
    %s16 = sphi 0, %s28
    %s17 = sphi 0, %s24
    %s18 = sphi 0, %s16
    %s19 = sphi 0, %s17
    %s20 = sphi 0, %s18
    %s21 = sphi 0, %s19
    %s31 = sphi 0, %s33
    %s34 = sphi 0, %s31
    %s35 = sphi 0, %s34
    %s51 = sphi 0, %s35
    %s57 = sphi 0, %s59
    %s60 = sphi 0, %s57
    %s61 = sphi 0, %s60
    %s77 = sphi 0, %s61
    %s81 = sphi 0, %s81
    %s83 = sphi 0, %s81
    %s84 = sphi 0, %s83
    %s98 = sphi 0, %s84
    %s106 = sphi 0, %s108
    %s109 = sphi 0, %s106
    %s110 = sphi 0, %s109
    %s126 = sphi 0, %s110
  $region4: #{resnet_generator_forward.14} parent=0 // loop_header_branch
    %12 = sbr.rel (%p10) target = $region8
  $region5: #{resnet_generator_forward.14} parent=0 // loop_body
    %s14 = ssub.s32 %s9, 1
    %s15 = ssub.s32 %s9, 2
    %s22 = sadd.s32 1, %s17
    %p23 = scmp.ge.s32.totalorder %s22, 1
    %s24 = scalar_select %p23, 0, %s22
    %s25 = sadd.s32 1, %s16
    %s26 = scalar_select %p23, %s25, %s16
    %p27 = scmp.ge.s32.totalorder %s26, 2
    %s28 = scalar_select %p27, 0, %s26
    %s29 = ssub.s32 %s16, %s28
    %p30 = scmp.eq.s32.totalorder %s29, 0
    %s32 = sadd.s32 %s31, 1
    %s33 = scalar_select %p30, %s31, %s32
    %p36 = pneg %p30
    %p37 = scmp.eq.s32.totalorder %s9, 1
    %p38 = por %p36, %p37
    %p39 = scmp.ne.s32.totalorder %s31, %s34
    %p40 = scmp.eq.s32.totalorder %s9, 0
    %p41 = por %p39, %p40
    %p42 = scmp.ne.s32.totalorder %s31, %s34
    %p43 = scmp.eq.s32.totalorder %s14, 1
    %p44 = por %p42, %p43
    %p45 = scmp.ne.s32.totalorder %s34, %s35
    %p46 = scmp.eq.s32.totalorder %s14, 0
    %p47 = por %p45, %p46
    %p48 = scmp.ne.s32.totalorder %s34, %s35
    %p49 = scmp.eq.s32.totalorder %s15, 1
    %p50 = por %p48, %p49
    %p52 = scmp.ne.s32.totalorder %s35, %s51
    %p53 = scmp.eq.s32.totalorder %s15, 0
    %p54 = por %p52, %p53
    %s55 = ssub.s32 %s17, %s24
    %p56 = scmp.eq.s32.totalorder %s55, 0
    %s58 = sadd.s32 %s57, 1
    %s59 = scalar_select %p56, %s57, %s58
    %p62 = pneg %p56
    %p63 = scmp.eq.s32.totalorder %s9, 1
    %p64 = por %p62, %p63
    %p65 = scmp.ne.s32.totalorder %s57, %s60
    %p66 = scmp.eq.s32.totalorder %s9, 0
    %p67 = por %p65, %p66
    %p68 = scmp.ne.s32.totalorder %s57, %s60
    %p69 = scmp.eq.s32.totalorder %s14, 1
    %p70 = por %p68, %p69
    %p71 = scmp.ne.s32.totalorder %s60, %s61
    %p72 = scmp.eq.s32.totalorder %s14, 0
    %p73 = por %p71, %p72
    %p74 = scmp.ne.s32.totalorder %s60, %s61
    %p75 = scmp.eq.s32.totalorder %s15, 1
    %p76 = por %p74, %p75
    %p78 = scmp.ne.s32.totalorder %s61, %s77
    %p79 = scmp.eq.s32.totalorder %s15, 0
    %p80 = por %p78, %p79
    %s82 = sadd.s32 %s81, 1
    %p85 = scmp.eq.s32.totalorder %s9, 1
    %p86 = scmp.ne.s32.totalorder %s81, %s83
    %p87 = scmp.eq.s32.totalorder %s9, 0
    %p88 = por %p86, %p87
    %p89 = scmp.ne.s32.totalorder %s81, %s83
    %p90 = scmp.eq.s32.totalorder %s14, 1
    %p91 = por %p89, %p90
    %p92 = scmp.ne.s32.totalorder %s83, %s84
    %p93 = scmp.eq.s32.totalorder %s14, 0
    %p94 = por %p92, %p93
    %p95 = scmp.ne.s32.totalorder %s83, %s84
    %p96 = scmp.eq.s32.totalorder %s15, 1
    %p97 = por %p95, %p96
    %p99 = scmp.ne.s32.totalorder %s84, %s98
    %p100 = scmp.eq.s32.totalorder %s15, 0
    %p101 = por %p99, %p100
    %s102 = ssub.s32 %s16, %s28
    %s103 = ssub.s32 %s17, %s24
    %s104 = sor.u32 %s102, %s103
    %p105 = scmp.eq.s32.totalorder %s104, 0
    %s107 = sadd.s32 %s106, 1
    %s108 = scalar_select %p105, %s106, %s107
    %p111 = pneg %p105
    %p112 = scmp.eq.s32.totalorder %s9, 1
    %p113 = por %p111, %p112
    %p114 = scmp.ne.s32.totalorder %s106, %s109
    %p115 = scmp.eq.s32.totalorder %s9, 0
    %p116 = por %p114, %p115
    %p117 = scmp.ne.s32.totalorder %s106, %s109
    %p118 = scmp.eq.s32.totalorder %s14, 1
    %p119 = por %p117, %p118
    %p120 = scmp.ne.s32.totalorder %s109, %s110
    %p121 = scmp.eq.s32.totalorder %s14, 0
    %p122 = por %p120, %p121
    %p123 = scmp.ne.s32.totalorder %s109, %s110
    %p124 = scmp.eq.s32.totalorder %s15, 1
    %p125 = por %p123, %p124
    %p127 = scmp.ne.s32.totalorder %s110, %s126
    %p128 = scmp.eq.s32.totalorder %s15, 0
    %p129 = por %p127, %p128
    %p130 = scmp.le.s32.totalorder 1, %s9
    %p131 = scmp.lt.s32.totalorder %s9, 3
    %p132 = pnand %p130, %p131
    %p133 = pneg %p132
    // Predicated region
    $region9: #{resnet_generator_forward.14} parent=5 // pred_check
      _
    $region10: #{resnet_generator_forward.14} parent=5 // pred_check_branch
      %135 = sbr.rel (%p132) target = $region12
    $region11: #{resnet_generator_forward.14} parent=5 // pred_region
      %s136 = ssub.s32 %s9, 1
      // Predicated region
      $region13: #{resnet_generator_forward.14} parent=11 // pred_check
        %p137 = pneg %p73
      $region14: #{resnet_generator_forward.14} parent=11 // pred_check_branch
        %139 = sbr.rel (%p137) target = $region16
      $region15: #{resnet_generator_forward.14} parent=11 // pred_region
        %s140 = smul.u32 4, %s19
        %p141 = scmp.lt.s32.totalorder %s140, 3
        %s142 = scalar_select %p141, %s140, 3
        %s143 = smul.addr %s142, 3
        %s144 = smul.addr %s143, 4
        %s145 = scalar_lea.vmem %s1, %s144
        %s146 = smul.u32 4, %s19
      $region16: #{resnet_generator_forward.14} parent=11 // pred_fallthru
        _
      // Predicated region
      $region17: #{resnet_generator_forward.14} parent=11 // pred_check
        %p147 = pneg %p94
      $region18: #{resnet_generator_forward.14} parent=11 // pred_check_branch
        %149 = sbr.rel (%p147) target = $region20
      $region19: #{resnet_generator_forward.14} parent=11 // pred_region
        _
      $region20: #{resnet_generator_forward.14} parent=11 // pred_fallthru
        _
    $region12: #{resnet_generator_forward.14} parent=5 // pred_fallthru
      _
    %p150 = scmp.lt.s32.totalorder %s9, 2
    // Predicated region
    $region21: #{resnet_generator_forward.14} parent=5 // pred_check
      %p151 = pneg %p150
    $region22: #{resnet_generator_forward.14} parent=5 // pred_check_branch
      %153 = sbr.rel (%p151) target = $region24
    $region23: #{resnet_generator_forward.14} parent=5 // pred_region
      // Predicated region
      $region25: #{resnet_generator_forward.14} parent=23 // pred_check
        %p154 = pneg %p41
      $region26: #{resnet_generator_forward.14} parent=23 // pred_check_branch
        %156 = sbr.rel (%p154) target = $region28
      $region27: #{resnet_generator_forward.14} parent=23 // pred_region
        %p157 = scmp.lt.s32.totalorder %s16, 1
        %s158 = scalar_select %p157, %s16, 1
        %s159 = smul.addr %s158, 4
        %s160 = smul.addr %s159, 4
        %s161 = scalar_lea.vmem %s0, %s160
      $region28: #{resnet_generator_forward.14} parent=23 // pred_fallthru
        _
    $region24: #{resnet_generator_forward.14} parent=5 // pred_fallthru
      _
    %p162 = scmp.le.s32.totalorder 1, %s9
    %p163 = scmp.lt.s32.totalorder %s9, 3
    %p164 = pnand %p162, %p163
    %p165 = pneg %p164
    // Predicated region
    $region29: #{resnet_generator_forward.14} parent=5 // pred_check
      _
    $region30: #{resnet_generator_forward.14} parent=5 // pred_check_branch
      %167 = sbr.rel (%p164) target = $region32
    $region31: #{resnet_generator_forward.14} parent=5 // pred_region
      %s168 = ssub.s32 %s9, 1
      %p169 = scmp.lt.s32.totalorder %s18, 1
      %s170 = scalar_select %p169, %s18, 1
      %s171 = smul.addr %s170, 4
      %s172 = smul.addr %s171, 4
      %s173 = scalar_lea.vmem %s0, %s172
      %p174 = pneg %p47
      %p175 = pneg %p44
      %s176 = smul.u32 4, %s19
      %p177 = scmp.lt.s32.totalorder %s176, 3
      %s178 = scalar_select %p177, %s176, 3
      %s179 = smul.addr %s178, 3
      %s180 = smul.addr %s179, 4
      %s181 = scalar_lea.vmem %s1, %s180
      %p182 = pneg %p73
      %p183 = pneg %p70
      %p184 = pneg %p94
      %p185 = pneg %p91
      %p186 = pneg %p122
      %p187 = pneg %p119
      %s188 = smul.u32 4, %s19
      %p189 = scmp.lt.s32.totalorder %s18, 1
      %s190 = scalar_select %p189, %s18, 1
      %p191 = scmp.lt.s32.totalorder %s188, 3
      %s192 = scalar_select %p191, %s188, 3
      %s193 = smul.addr %s190, 4
      %s194 = sadd.s32 %s192, %s193
      %s195 = smul.addr %s194, 4
      %s196 = scalar_lea.vmem %s3, %s195
      %p197 = scmp.lt.s32.totalorder %s18, 1
      %s198 = scalar_select %p197, %s18, 1
      %s199 = smul.addr %s198, 4
      %s200 = smul.addr %s199, 4
      %s201 = scalar_lea.vmem %s0, %s200
      %s202 = smul.u32 4, %s19
      %p203 = scmp.lt.s32.totalorder %s202, 3
      %s204 = scalar_select %p203, %s202, 3
      %s205 = smul.addr %s204, 3
      %s206 = smul.addr %s205, 4
      %s207 = scalar_lea.vmem %s1, %s206
      %s208 = smul.u32 4, %s19
      %s209 = smul.u32 4, %s19
      %p210 = scmp.lt.s32.totalorder %s18, 1
      %s211 = scalar_select %p210, %s18, 1
      %p212 = scmp.lt.s32.totalorder %s209, 3
      %s213 = scalar_select %p212, %s209, 3
      %s214 = smul.addr %s211, 4
      %s215 = sadd.s32 %s213, %s214
      %s216 = smul.addr %s215, 4
      %s217 = scalar_lea.vmem %s3, %s216
      %s218 = smul.u32 4, %s19
      %v220 = vld [vmem:[%s201] sm:$0xf]
      %v221 = vld [vmem:[%s201 + $0x4] sm:$0xf]
      %v222 = vld [vmem:[%s201 + $0x8] sm:$0xf]
      %v223 = vld [vmem:[%s201 + $0xc] sm:$0xf]
      %v228 = vunpack.c.l.b16 %v220
      %v229 = vunpack.c.l.b16 %v221
      %v230 = vunpack.c.l.b16 %v222
      %v231 = vunpack.c.l.b16 %v223
      %v232 = vpack.c.b16 %v229, %v228
      %v233 = vpack.c.b16 %v231, %v230
      %236 = vrot.lane.b32.xlu0 %v232, 127
      %v237 = vpop.permute.xlu0 %236
      %238 = vrot.lane.b32.xlu0 %v233, 127
      %v239 = vpop.permute.xlu0 %238
      %242 = vrot.lane.b32.xlu0 %v232, 126
      %v243 = vpop.permute.xlu0 %242
      %244 = vrot.lane.b32.xlu0 %v233, 126
      %v245 = vpop.permute.xlu0 %244
      %248 = vrot.lane.b32.xlu0 %v232, 122
      %v249 = vpop.permute.xlu0 %248
      %250 = vrot.lane.b32.xlu0 %v233, 122
      %v251 = vpop.permute.xlu0 %250
      %254 = vrot.lane.b32.xlu0 %v232, 121
      %v255 = vpop.permute.xlu0 %254
      %256 = vrot.lane.b32.xlu0 %v233, 121
      %v257 = vpop.permute.xlu0 %256
      %260 = vrot.lane.b32.xlu0 %v232, 120
      %v261 = vpop.permute.xlu0 %260
      %262 = vrot.lane.b32.xlu0 %v233, 120
      %v263 = vpop.permute.xlu0 %262
      %266 = vrot.lane.b32.xlu0 %v232, 116
      %v267 = vpop.permute.xlu0 %266
      %268 = vrot.lane.b32.xlu0 %v233, 116
      %v269 = vpop.permute.xlu0 %268
      %272 = vrot.lane.b32.xlu0 %v232, 115
      %v273 = vpop.permute.xlu0 %272
      %274 = vrot.lane.b32.xlu0 %v233, 115
      %v275 = vpop.permute.xlu0 %274
      %278 = vrot.lane.b32.xlu0 %v232, 114
      %v279 = vpop.permute.xlu0 %278
      %280 = vrot.lane.b32.xlu0 %v233, 114
      %v281 = vpop.permute.xlu0 %280
      %v284 = vld [vmem:[%s207] sm:$0xff]
      %v285 = vld [vmem:[%s207 + $0x8] sm:$0xf]
      %v286 = vld [vmem:[%s207 + $0xc] sm:$0xff]
      %v287 = vld [vmem:[%s207 + $0x14] sm:$0xf]
      %v288 = vld [vmem:[%s207 + $0x18] sm:$0xff]
      %v289 = vld [vmem:[%s207 + $0x20] sm:$0xf]
      %v290 = vld [vmem:[%s207 + $0x24] sm:$0xff]
      %v291 = vld [vmem:[%s207 + $0x2c] sm:$0xf]
      %v300 = vunpack.c.l.b16 %v284
      %v301 = vunpack.c.h.b16 %v284
      %v302 = vunpack.c.l.b16 %v285
      %v303 = vunpack.c.l.b16 %v286
      %v304 = vunpack.c.h.b16 %v286
      %v305 = vunpack.c.l.b16 %v287
      %v306 = vunpack.c.l.b16 %v288
      %v307 = vunpack.c.h.b16 %v288
      %v308 = vunpack.c.l.b16 %v289
      %v309 = vunpack.c.l.b16 %v290
      %v310 = vunpack.c.h.b16 %v290
      %v311 = vunpack.c.l.b16 %v291
      %v312 = vpack.c.b16 %v303, %v300
      %v313 = vpack.c.b16 %v304, %v301
      %v314 = vpack.c.b16 %v305, %v302
      %v315 = vpack.c.b16 %v309, %v306
      %v316 = vpack.c.b16 %v310, %v307
      %v317 = vpack.c.b16 %v311, %v308
      %vm322 = vcmask 261120
      %v324 = vsel %vm322, %v314, 0
      %v327 = vsel %vm322, %v317, 0
      %329 = vmatprep.subr.bf16.mxu0 0
      %330 = vmatpush1.bf16.msra.mxu0 %v232
      %331 = vmatprep.subr.bf16.mxu0 0
      %332 = vmatpush1.bf16.msra.mxu0 %v233
      %333 = vmatprep.subr.bf16.mxu0 0
      %334 = vmatpush1.bf16.msra.mxu0 %v237
      %335 = vmatprep.subr.bf16.mxu0 0
      %336 = vmatpush1.bf16.msra.mxu0 %v239
      %337 = vmatprep.subr.bf16.mxu0 0
      %338 = vmatpush1.bf16.msra.mxu0 %v243
      %339 = vmatprep.subr.bf16.mxu0 0
      %340 = vmatpush1.bf16.msra.mxu0 %v245
      %341 = vmatprep.subr.bf16.mxu0 0
      %342 = vmatpush1.bf16.msra.mxu0 %v249
      %343 = vmatprep.subr.bf16.mxu0 0
      %344 = vmatpush1.bf16.msra.mxu0 %v251
      %345 = vmatprep.subr.bf16.mxu0 0
      %346 = vmatpush1.bf16.msra.mxu0 %v255
      %347 = vmatprep.subr.bf16.mxu0 0
      %348 = vmatpush1.bf16.msra.mxu0 %v257
      %349 = vmatprep.subr.bf16.mxu0 0
      %350 = vmatpush1.bf16.msra.mxu0 %v261
      %351 = vmatprep.subr.bf16.mxu0 0
      %352 = vmatpush1.bf16.msra.mxu0 %v263
      %353 = vmatprep.subr.bf16.mxu0 0
      %354 = vmatpush1.bf16.msra.mxu0 %v267
      %355 = vmatprep.subr.bf16.mxu0 0
      %356 = vmatpush1.bf16.msra.mxu0 %v269
      %357 = vmatprep.subr.bf16.mxu0 0
      %358 = vmatpush1.bf16.msra.mxu0 %v273
      %359 = vmatprep.subr.bf16.mxu0 0
      %360 = vmatpush1.bf16.msra.mxu0 %v275
      %361 = vmatprep.mubr.bf16.mxu0 %v313
      %362 = vmatmul.mubr.bf16.gmra.mrb[0].mxu0 %v312
      %v363 = vpop.f32.mrb[0].mxu0
      %v364 = vadd.f32 0.0, %v363
      %v365 = vpop.f32.mrb[0].mxu0
      %v366 = vpop.f32.mrb[0].mxu0
      %v367 = vadd.f32 0.0, %v366
      %v368 = vpop.f32.mrb[0].mxu0
      %369 = vmatprep.mubr.bf16.mxu0 %v316
      %370 = vmatmul.mubr.bf16.gmra.mrb[0].mxu0 %v315
      %v371 = vpop.f32.mrb[0].mxu0
      %v372 = vadd.f32 0.0, %v371
      %v373 = vpop.f32.mrb[0].mxu0
      %v374 = vpop.f32.mrb[0].mxu0
      %v375 = vadd.f32 0.0, %v374
      %v376 = vpop.f32.mrb[0].mxu0
      %377 = vdwg.mxu0
      %378 = vmatprep.subr.bf16.mxu0 0
      %379 = vmatpush1.bf16.msra.mxu0 %v279
      %380 = vmatprep.subr.bf16.mxu0 0
      %381 = vmatpush1.bf16.msra.mxu0 %v281
      %382 = vmatprep.subr.bf16.mxu0 0
      %383 = vmatpush1.bf16.msra.mxu0 0
      %384 = vmatprep.subr.bf16.mxu0 0
      %385 = vmatpush1.bf16.msra.mxu0 0
      %386 = vmatprep.subr.bf16.mxu0 0
      %387 = vmatpush1.bf16.msra.mxu0 0
      %388 = vmatprep.subr.bf16.mxu0 0
      %389 = vmatpush1.bf16.msra.mxu0 0
      %390 = vmatprep.subr.bf16.mxu0 0
      %391 = vmatpush1.bf16.msra.mxu0 0
      %392 = vmatprep.subr.bf16.mxu0 0
      %393 = vmatpush1.bf16.msra.mxu0 0
      %394 = vmatprep.subr.bf16.mxu0 0
      %395 = vmatpush1.bf16.msra.mxu0 0
      %396 = vmatprep.subr.bf16.mxu0 0
      %397 = vmatpush1.bf16.msra.mxu0 0
      %398 = vmatprep.subr.bf16.mxu0 0
      %399 = vmatpush1.bf16.msra.mxu0 0
      %400 = vmatprep.subr.bf16.mxu0 0
      %401 = vmatpush1.bf16.msra.mxu0 0
      %402 = vmatprep.subr.bf16.mxu0 0
      %403 = vmatpush1.bf16.msra.mxu0 0
      %404 = vmatprep.subr.bf16.mxu0 0
      %405 = vmatpush1.bf16.msra.mxu0 0
      %406 = vmatprep.subr.bf16.mxu0 0
      %407 = vmatpush1.bf16.msra.mxu0 0
      %408 = vmatprep.subr.bf16.mxu0 0
      %409 = vmatpush1.bf16.msra.mxu0 0
      %410 = vmatprep.mubr.bf16.mxu0 0
      %411 = vmatmul.mubr.bf16.gmra.mrb[0].mxu0 %v324
      %v412 = vpop.f32.mrb[0].mxu0
      %v413 = vadd.f32 %v364, %v412
      %v414 = vpop.f32.mrb[0].mxu0
      %v415 = vpop.f32.mrb[0].mxu0
      %v416 = vadd.f32 %v367, %v415
      %v417 = vpop.f32.mrb[0].mxu0
      %418 = vmatprep.mubr.bf16.mxu0 0
      %419 = vmatmul.mubr.bf16.gmra.mrb[0].mxu0 %v327
      %v420 = vpop.f32.mrb[0].mxu0
      %v421 = vadd.f32 %v372, %v420
      %v422 = vpop.f32.mrb[0].mxu0
      %v423 = vpop.f32.mrb[0].mxu0
      %v424 = vadd.f32 %v375, %v423
      %v425 = vpop.f32.mrb[0].mxu0
      %426 = vdwg.mxu0
      %v427 = vld [vmem:[%s2] sm:$0x1]
      %v429 = vlaneseq
      %v430 = vshrl.u32 %v429, 7
      %v431 = vsub.s32 0, %v430
      %v432 = vrot.slane %v427, %v431
      %v434 = vmul.f32 %v413, %v432
      %v435 = vmul.f32 %v416, %v432
      %v436 = vmul.f32 %v421, %v432
      %v437 = vmul.f32 %v424, %v432
      %vm438 = vcmask 195584
      %v439 = vsel %vm438, %v434, 0.0
      %440 = vadd.xlane.f32.xlu0 %v439
      %v441 = vpop.xlane.xlu0 %440
      %v442 = vsel %vm438, %v435, 0.0
      %443 = vadd.xlane.f32.xlu0 %v442
      %v444 = vpop.xlane.xlu0 %443
      %v445 = vsel %vm438, %v436, 0.0
      %446 = vadd.xlane.f32.xlu0 %v445
      %v447 = vpop.xlane.xlu0 %446
      %v448 = vsel %vm438, %v437, 0.0
      %449 = vadd.xlane.f32.xlu0 %v448
      %v450 = vpop.xlane.xlu0 %449
      %v451 = vmul.f32 %v441, 0.0625
      %v452 = vmul.f32 %v444, 0.0625
      %v453 = vmul.f32 %v447, 0.0625
      %v454 = vmul.f32 %v450, 0.0625
      %v455 = vsub.f32 %v413, %v451
      %v456 = vsub.f32 %v416, %v452
      %v457 = vsub.f32 %v421, %v453
      %v458 = vsub.f32 %v424, %v454
      %v459 = vmul.f32 %v455, %v432
      %v460 = vmul.f32 %v456, %v432
      %v461 = vmul.f32 %v457, %v432
      %v462 = vmul.f32 %v458, %v432
      %v463 = vmul.f32 %v459, %v459
      %v464 = vmul.f32 %v460, %v460
      %v465 = vmul.f32 %v461, %v461
      %v466 = vmul.f32 %v462, %v462
      %v467 = vsel %vm438, %v463, 0.0
      %468 = vadd.xlane.f32.xlu0 %v467
      %v469 = vpop.xlane.xlu0 %468
      %v470 = vsel %vm438, %v464, 0.0
      %471 = vadd.xlane.f32.xlu0 %v470
      %v472 = vpop.xlane.xlu0 %471
      %v473 = vsel %vm438, %v465, 0.0
      %474 = vadd.xlane.f32.xlu0 %v473
      %v475 = vpop.xlane.xlu0 %474
      %v476 = vsel %vm438, %v466, 0.0
      %477 = vadd.xlane.f32.xlu0 %v476
      %v478 = vpop.xlane.xlu0 %477
      %v479 = vmul.f32 %v469, 0.0625
      %v480 = vmul.f32 %v472, 0.0625
      %v481 = vmul.f32 %v475, 0.0625
      %v482 = vmul.f32 %v478, 0.0625
      %v483 = vadd.f32 %v479, 1e-05
      %v484 = vadd.f32 %v480, 1e-05
      %v485 = vadd.f32 %v481, 1e-05
      %v486 = vadd.f32 %v482, 1e-05
      %v487 = vrsqrt.pop %v483
      %v488 = vrsqrt.pop %v484
      %v489 = vrsqrt.pop %v485
      %v490 = vrsqrt.pop %v486
      %v491 = vmul.f32 %v459, %v487
      %v492 = vmul.f32 %v460, %v488
      %v493 = vmul.f32 %v461, %v489
      %v494 = vmul.f32 %v462, %v490
      %v495 = vpack.c.bf16 %v492, %v491
      %v496 = vpack.c.bf16 %v494, %v493
      %v499 = vunpack.c.l.b16 %v495
      %v500 = vunpack.c.h.b16 %v495
      %v501 = vunpack.c.l.b16 %v496
      %v502 = vunpack.c.h.b16 %v496
      %v503 = vpack.c.b16 %v499, %v499
      %v504 = vpack.c.b16 %v500, %v500
      %v505 = vpack.c.b16 %v501, %v501
      %v506 = vpack.c.b16 %v502, %v502
      %vm511 = vcmask 191488
      %512 = vst.msk [vmem:[%s217] sm:$0xf] %vm511, %v503
      %513 = vst.msk [vmem:[%s217 + $0x4] sm:$0xf] %vm511, %v504
      %514 = vst.msk [vmem:[%s217 + $0x8] sm:$0xf] %vm511, %v505
      %515 = vst.msk [vmem:[%s217 + $0xc] sm:$0xf] %vm511, %v506
      %s516 = smul.u32 4, %s19
      %p517 = scmp.lt.s32.totalorder %s18, 1
      %s518 = scalar_select %p517, %s18, 1
      %p519 = scmp.lt.s32.totalorder %s516, 3
      %s520 = scalar_select %p519, %s516, 3
      %s521 = smul.addr %s518, 4
      %s522 = sadd.s32 %s520, %s521
      %s523 = smul.addr %s522, 4
      %s524 = scalar_lea.vmem %s3, %s523
      // Predicated region
      $region33: #{resnet_generator_forward.14} parent=31 // pred_check
        %p525 = pneg %p119
      $region34: #{resnet_generator_forward.14} parent=31 // pred_check_branch
        %527 = sbr.rel (%p525) target = $region36
      $region35: #{resnet_generator_forward.14} parent=31 // pred_region
        %s528 = smul.u32 4, %s19
      $region36: #{resnet_generator_forward.14} parent=31 // pred_fallthru
        _
    $region32: #{resnet_generator_forward.14} parent=5 // pred_fallthru
      _
    %p529 = scmp.le.s32.totalorder 2, %s9
    // Predicated region
    $region37: #{resnet_generator_forward.14} parent=5 // pred_check
      %p530 = pneg %p529
    $region38: #{resnet_generator_forward.14} parent=5 // pred_check_branch
      %532 = sbr.rel (%p530) target = $region40
    $region39: #{resnet_generator_forward.14} parent=5 // pred_region
      %s533 = ssub.s32 %s9, 2
      // Predicated region
      $region41: #{resnet_generator_forward.14} parent=39 // pred_check
        %p534 = pneg %p125
      $region42: #{resnet_generator_forward.14} parent=39 // pred_check_branch
        %536 = sbr.rel (%p534) target = $region44
      $region43: #{resnet_generator_forward.14} parent=39 // pred_region
        %s537 = smul.u32 4, %s21
        %p538 = scmp.lt.s32.totalorder %s20, 1
        %s539 = scalar_select %p538, %s20, 1
        %p540 = scmp.lt.s32.totalorder %s537, 3
        %s541 = scalar_select %p540, %s537, 3
        %s542 = smul.addr %s539, 4
        %s543 = sadd.s32 %s541, %s542
        %s544 = smul.addr %s543, 4
        %s545 = scalar_lea.vmem %s3, %s544
      $region44: #{resnet_generator_forward.14} parent=39 // pred_fallthru
        _
    $region40: #{resnet_generator_forward.14} parent=5 // pred_fallthru
      _
  $region6: #{resnet_generator_forward.14} parent=0 // loop_footer
    %s13 = sadd.s32 1, %s9
  $region7: #{resnet_generator_forward.14} parent=0 // loop_footer_branch
    %8 = sbr.rel target = $region3
  $region8: #{resnet_generator_forward.14} parent=0 // loop_exit
    _

// kernel: resnet_generator_forward.13
$region0: #{resnet_generator_forward.13}
  #allocation0 [shape = 'u32[]', space=smem, size = 0x4, offset = 0x4, fixed_abs, tag = 'smem constant byte address 0x4 - core index']
  #allocation1 [shape = 'u32[144,128]{1,0:T(1,128)}', space=vmem, size = 0x12000, scoped, tag = 'internal scratch']
  %s0 = inlined_call_operand.vmem [shape: bf16[2,32,42], index: 0, kind: input, shape index: {}]
  %s1 = inlined_call_operand.vmem [shape: bf16[32,288], index: 1, kind: input, shape index: {}]
  %s2 = inlined_call_operand.vmem [shape: f32[1,24], index: 2, kind: input, shape index: {}]
  %s3 = inlined_call_operand.vmem [shape: bf16[2,32,24], index: 3, kind: output, shape index: {}]
  %s4 = sld [smem:[#allocation0]]
  $region45: #{resnet_generator_forward.13} parent=0
    _
  %s6 = ssub.s32 1, %s4
  %s7 = scalar_select 0, %s6, %s4
  loop: start=0, step=1, limit=4
  $region2: #{resnet_generator_forward.13} parent=0 // loop_pre_header
    _
  $region3: #{resnet_generator_forward.13} parent=0 // loop_header
    %s9 = sphi 0, %s13
    %p10 = scmp.ge.s32.totalorder %s9, 4
    %s16 = sphi 0, %s28
    %s17 = sphi 0, %s24
    %s18 = sphi 0, %s16
    %s19 = sphi 0, %s17
    %s20 = sphi 0, %s18
    %s21 = sphi 0, %s19
    %s31 = sphi 0, %s33
    %s34 = sphi 0, %s31
    %s35 = sphi 0, %s34
    %s51 = sphi 0, %s35
    %s57 = sphi 0, %s59
    %s60 = sphi 0, %s57
    %s61 = sphi 0, %s60
    %s77 = sphi 0, %s61
    %s81 = sphi 0, %s81
    %s83 = sphi 0, %s81
    %s84 = sphi 0, %s83
    %s98 = sphi 0, %s84
    %s106 = sphi 0, %s108
    %s109 = sphi 0, %s106
    %s110 = sphi 0, %s109
    %s126 = sphi 0, %s110
  $region4: #{resnet_generator_forward.13} parent=0 // loop_header_branch
    %12 = sbr.rel (%p10) target = $region8
  $region5: #{resnet_generator_forward.13} parent=0 // loop_body
    %s14 = ssub.s32 %s9, 1
    %s15 = ssub.s32 %s9, 2
    %s22 = sadd.s32 1, %s17
    %p23 = scmp.ge.s32.totalorder %s22, 1
    %s24 = scalar_select %p23, 0, %s22
    %s25 = sadd.s32 1, %s16
    %s26 = scalar_select %p23, %s25, %s16
    %p27 = scmp.ge.s32.totalorder %s26, 2
    %s28 = scalar_select %p27, 0, %s26
    %s29 = ssub.s32 %s16, %s28
    %p30 = scmp.eq.s32.totalorder %s29, 0
    %s32 = sadd.s32 %s31, 1
    %s33 = scalar_select %p30, %s31, %s32
    %p36 = pneg %p30
    %p37 = scmp.eq.s32.totalorder %s9, 1
    %p38 = por %p36, %p37
    %p39 = scmp.ne.s32.totalorder %s31, %s34
    %p40 = scmp.eq.s32.totalorder %s9, 0
    %p41 = por %p39, %p40
    %p42 = scmp.ne.s32.totalorder %s31, %s34
    %p43 = scmp.eq.s32.totalorder %s14, 1
    %p44 = por %p42, %p43
    %p45 = scmp.ne.s32.totalorder %s34, %s35
    %p46 = scmp.eq.s32.totalorder %s14, 0
    %p47 = por %p45, %p46
    %p48 = scmp.ne.s32.totalorder %s34, %s35
    %p49 = scmp.eq.s32.totalorder %s15, 1
    %p50 = por %p48, %p49
    %p52 = scmp.ne.s32.totalorder %s35, %s51
    %p53 = scmp.eq.s32.totalorder %s15, 0
    %p54 = por %p52, %p53
    %s55 = ssub.s32 %s17, %s24
    %p56 = scmp.eq.s32.totalorder %s55, 0
    %s58 = sadd.s32 %s57, 1
    %s59 = scalar_select %p56, %s57, %s58
    %p62 = pneg %p56
    %p63 = scmp.eq.s32.totalorder %s9, 1
    %p64 = por %p62, %p63
    %p65 = scmp.ne.s32.totalorder %s57, %s60
    %p66 = scmp.eq.s32.totalorder %s9, 0
    %p67 = por %p65, %p66
    %p68 = scmp.ne.s32.totalorder %s57, %s60
    %p69 = scmp.eq.s32.totalorder %s14, 1
    %p70 = por %p68, %p69
    %p71 = scmp.ne.s32.totalorder %s60, %s61
    %p72 = scmp.eq.s32.totalorder %s14, 0
    %p73 = por %p71, %p72
    %p74 = scmp.ne.s32.totalorder %s60, %s61
    %p75 = scmp.eq.s32.totalorder %s15, 1
    %p76 = por %p74, %p75
    %p78 = scmp.ne.s32.totalorder %s61, %s77
    %p79 = scmp.eq.s32.totalorder %s15, 0
    %p80 = por %p78, %p79
    %s82 = sadd.s32 %s81, 1
    %p85 = scmp.eq.s32.totalorder %s9, 1
    %p86 = scmp.ne.s32.totalorder %s81, %s83
    %p87 = scmp.eq.s32.totalorder %s9, 0
    %p88 = por %p86, %p87
    %p89 = scmp.ne.s32.totalorder %s81, %s83
    %p90 = scmp.eq.s32.totalorder %s14, 1
    %p91 = por %p89, %p90
    %p92 = scmp.ne.s32.totalorder %s83, %s84
    %p93 = scmp.eq.s32.totalorder %s14, 0
    %p94 = por %p92, %p93
    %p95 = scmp.ne.s32.totalorder %s83, %s84
    %p96 = scmp.eq.s32.totalorder %s15, 1
    %p97 = por %p95, %p96
    %p99 = scmp.ne.s32.totalorder %s84, %s98
    %p100 = scmp.eq.s32.totalorder %s15, 0
    %p101 = por %p99, %p100
    %s102 = ssub.s32 %s16, %s28
    %s103 = ssub.s32 %s17, %s24
    %s104 = sor.u32 %s102, %s103
    %p105 = scmp.eq.s32.totalorder %s104, 0
    %s107 = sadd.s32 %s106, 1
    %s108 = scalar_select %p105, %s106, %s107
    %p111 = pneg %p105
    %p112 = scmp.eq.s32.totalorder %s9, 1
    %p113 = por %p111, %p112
    %p114 = scmp.ne.s32.totalorder %s106, %s109
    %p115 = scmp.eq.s32.totalorder %s9, 0
    %p116 = por %p114, %p115
    %p117 = scmp.ne.s32.totalorder %s106, %s109
    %p118 = scmp.eq.s32.totalorder %s14, 1
    %p119 = por %p117, %p118
    %p120 = scmp.ne.s32.totalorder %s109, %s110
    %p121 = scmp.eq.s32.totalorder %s14, 0
    %p122 = por %p120, %p121
    %p123 = scmp.ne.s32.totalorder %s109, %s110
    %p124 = scmp.eq.s32.totalorder %s15, 1
    %p125 = por %p123, %p124
    %p127 = scmp.ne.s32.totalorder %s110, %s126
    %p128 = scmp.eq.s32.totalorder %s15, 0
    %p129 = por %p127, %p128
    %p130 = scmp.le.s32.totalorder 1, %s9
    %p131 = scmp.lt.s32.totalorder %s9, 3
    %p132 = pnand %p130, %p131
    %p133 = pneg %p132
    // Predicated region
    $region9: #{resnet_generator_forward.13} parent=5 // pred_check
      _
    $region10: #{resnet_generator_forward.13} parent=5 // pred_check_branch
      %135 = sbr.rel (%p132) target = $region12
    $region11: #{resnet_generator_forward.13} parent=5 // pred_region
      %s136 = ssub.s32 %s9, 1
      // Predicated region
      $region13: #{resnet_generator_forward.13} parent=11 // pred_check
        %p137 = pneg %p73
      $region14: #{resnet_generator_forward.13} parent=11 // pred_check_branch
        %139 = sbr.rel (%p137) target = $region16
      $region15: #{resnet_generator_forward.13} parent=11 // pred_region
        %s140 = smul.u32 4, %s19
        %p141 = scmp.lt.s32.totalorder %s140, 3
        %s142 = scalar_select %p141, %s140, 3
        %s143 = smul.addr %s142, 3
        %s144 = smul.addr %s143, 4
        %s145 = scalar_lea.vmem %s1, %s144
        %s146 = smul.u32 4, %s19
      $region16: #{resnet_generator_forward.13} parent=11 // pred_fallthru
        _
      // Predicated region
      $region17: #{resnet_generator_forward.13} parent=11 // pred_check
        %p147 = pneg %p94
      $region18: #{resnet_generator_forward.13} parent=11 // pred_check_branch
        %149 = sbr.rel (%p147) target = $region20
      $region19: #{resnet_generator_forward.13} parent=11 // pred_region
        _
      $region20: #{resnet_generator_forward.13} parent=11 // pred_fallthru
        _
    $region12: #{resnet_generator_forward.13} parent=5 // pred_fallthru
      _
    %p150 = scmp.lt.s32.totalorder %s9, 2
    // Predicated region
    $region21: #{resnet_generator_forward.13} parent=5 // pred_check
      %p151 = pneg %p150
    $region22: #{resnet_generator_forward.13} parent=5 // pred_check_branch
      %153 = sbr.rel (%p151) target = $region24
    $region23: #{resnet_generator_forward.13} parent=5 // pred_region
      // Predicated region
      $region25: #{resnet_generator_forward.13} parent=23 // pred_check
        %p154 = pneg %p41
      $region26: #{resnet_generator_forward.13} parent=23 // pred_check_branch
        %156 = sbr.rel (%p154) target = $region28
      $region27: #{resnet_generator_forward.13} parent=23 // pred_region
        %p157 = scmp.lt.s32.totalorder %s16, 1
        %s158 = scalar_select %p157, %s16, 1
        %s159 = smul.addr %s158, 4
        %s160 = smul.addr %s159, 4
        %s161 = scalar_lea.vmem %s0, %s160
      $region28: #{resnet_generator_forward.13} parent=23 // pred_fallthru
        _
    $region24: #{resnet_generator_forward.13} parent=5 // pred_fallthru
      _
    %p162 = scmp.le.s32.totalorder 1, %s9
    %p163 = scmp.lt.s32.totalorder %s9, 3
    %p164 = pnand %p162, %p163
    %p165 = pneg %p164
    // Predicated region
    $region29: #{resnet_generator_forward.13} parent=5 // pred_check
      _
    $region30: #{resnet_generator_forward.13} parent=5 // pred_check_branch
      %167 = sbr.rel (%p164) target = $region32
    $region31: #{resnet_generator_forward.13} parent=5 // pred_region
      %s168 = ssub.s32 %s9, 1
      %p169 = scmp.lt.s32.totalorder %s18, 1
      %s170 = scalar_select %p169, %s18, 1
      %s171 = smul.addr %s170, 4
      %s172 = smul.addr %s171, 4
      %s173 = scalar_lea.vmem %s0, %s172
      %p174 = pneg %p47
      %p175 = pneg %p44
      %s176 = smul.u32 4, %s19
      %p177 = scmp.lt.s32.totalorder %s176, 3
      %s178 = scalar_select %p177, %s176, 3
      %s179 = smul.addr %s178, 3
      %s180 = smul.addr %s179, 4
      %s181 = scalar_lea.vmem %s1, %s180
      %p182 = pneg %p73
      %p183 = pneg %p70
      %p184 = pneg %p94
      %p185 = pneg %p91
      %p186 = pneg %p122
      %p187 = pneg %p119
      %s188 = smul.u32 4, %s19
      %p189 = scmp.lt.s32.totalorder %s18, 1
      %s190 = scalar_select %p189, %s18, 1
      %p191 = scmp.lt.s32.totalorder %s188, 3
      %s192 = scalar_select %p191, %s188, 3
      %s193 = smul.addr %s190, 4
      %s194 = sadd.s32 %s192, %s193
      %s195 = smul.addr %s194, 4
      %s196 = scalar_lea.vmem %s3, %s195
      %p197 = scmp.lt.s32.totalorder %s18, 1
      %s198 = scalar_select %p197, %s18, 1
      %s199 = smul.addr %s198, 4
      %s200 = smul.addr %s199, 4
      %s201 = scalar_lea.vmem %s0, %s200
      %s202 = smul.u32 4, %s19
      %p203 = scmp.lt.s32.totalorder %s202, 3
      %s204 = scalar_select %p203, %s202, 3
      %s205 = smul.addr %s204, 3
      %s206 = smul.addr %s205, 4
      %s207 = scalar_lea.vmem %s1, %s206
      %s208 = smul.u32 4, %s19
      %s209 = smul.u32 4, %s19
      %p210 = scmp.lt.s32.totalorder %s18, 1
      %s211 = scalar_select %p210, %s18, 1
      %p212 = scmp.lt.s32.totalorder %s209, 3
      %s213 = scalar_select %p212, %s209, 3
      %s214 = smul.addr %s211, 4
      %s215 = sadd.s32 %s213, %s214
      %s216 = smul.addr %s215, 4
      %s217 = scalar_lea.vmem %s3, %s216
      %s218 = smul.u32 4, %s19
      %v220 = vld [vmem:[%s201] sm:$0xf]
      %v221 = vld [vmem:[%s201 + $0x4] sm:$0xf]
      %v222 = vld [vmem:[%s201 + $0x8] sm:$0xf]
      %v223 = vld [vmem:[%s201 + $0xc] sm:$0xf]
      %v228 = vunpack.c.l.b16 %v220
      %v229 = vunpack.c.l.b16 %v221
      %v230 = vunpack.c.l.b16 %v222
      %v231 = vunpack.c.l.b16 %v223
      %v232 = vpack.c.b16 %v229, %v228
      %v233 = vpack.c.b16 %v231, %v230
      %236 = vrot.lane.b32.xlu0 %v232, 127
      %v237 = vpop.permute.xlu0 %236
      %238 = vrot.lane.b32.xlu0 %v233, 127
      %v239 = vpop.permute.xlu0 %238
      %242 = vrot.lane.b32.xlu0 %v232, 126
      %v243 = vpop.permute.xlu0 %242
      %244 = vrot.lane.b32.xlu0 %v233, 126
      %v245 = vpop.permute.xlu0 %244
      %248 = vrot.lane.b32.xlu0 %v232, 122
      %v249 = vpop.permute.xlu0 %248
      %250 = vrot.lane.b32.xlu0 %v233, 122
      %v251 = vpop.permute.xlu0 %250
      %254 = vrot.lane.b32.xlu0 %v232, 121
      %v255 = vpop.permute.xlu0 %254
      %256 = vrot.lane.b32.xlu0 %v233, 121
      %v257 = vpop.permute.xlu0 %256
      %260 = vrot.lane.b32.xlu0 %v232, 120
      %v261 = vpop.permute.xlu0 %260
      %262 = vrot.lane.b32.xlu0 %v233, 120
      %v263 = vpop.permute.xlu0 %262
      %266 = vrot.lane.b32.xlu0 %v232, 116
      %v267 = vpop.permute.xlu0 %266
      %268 = vrot.lane.b32.xlu0 %v233, 116
      %v269 = vpop.permute.xlu0 %268
      %272 = vrot.lane.b32.xlu0 %v232, 115
      %v273 = vpop.permute.xlu0 %272
      %274 = vrot.lane.b32.xlu0 %v233, 115
      %v275 = vpop.permute.xlu0 %274
      %278 = vrot.lane.b32.xlu0 %v232, 114
      %v279 = vpop.permute.xlu0 %278
      %280 = vrot.lane.b32.xlu0 %v233, 114
      %v281 = vpop.permute.xlu0 %280
      %v284 = vld [vmem:[%s207] sm:$0xff]
      %v285 = vld [vmem:[%s207 + $0x8] sm:$0xf]
      %v286 = vld [vmem:[%s207 + $0xc] sm:$0xff]
      %v287 = vld [vmem:[%s207 + $0x14] sm:$0xf]
      %v288 = vld [vmem:[%s207 + $0x18] sm:$0xff]
      %v289 = vld [vmem:[%s207 + $0x20] sm:$0xf]
      %v290 = vld [vmem:[%s207 + $0x24] sm:$0xff]
      %v291 = vld [vmem:[%s207 + $0x2c] sm:$0xf]
      %v300 = vunpack.c.l.b16 %v284
      %v301 = vunpack.c.h.b16 %v284
      %v302 = vunpack.c.l.b16 %v285
      %v303 = vunpack.c.l.b16 %v286
      %v304 = vunpack.c.h.b16 %v286
      %v305 = vunpack.c.l.b16 %v287
      %v306 = vunpack.c.l.b16 %v288
      %v307 = vunpack.c.h.b16 %v288
      %v308 = vunpack.c.l.b16 %v289
      %v309 = vunpack.c.l.b16 %v290
      %v310 = vunpack.c.h.b16 %v290
      %v311 = vunpack.c.l.b16 %v291
      %v312 = vpack.c.b16 %v303, %v300
      %v313 = vpack.c.b16 %v304, %v301
      %v314 = vpack.c.b16 %v305, %v302
      %v315 = vpack.c.b16 %v309, %v306
      %v316 = vpack.c.b16 %v310, %v307
      %v317 = vpack.c.b16 %v311, %v308
      %vm322 = vcmask 261120
      %v324 = vsel %vm322, %v314, 0
      %v327 = vsel %vm322, %v317, 0
      %329 = vmatprep.subr.bf16.mxu0 0
      %330 = vmatpush1.bf16.msra.mxu0 %v232
      %331 = vmatprep.subr.bf16.mxu0 0
      %332 = vmatpush1.bf16.msra.mxu0 %v233
      %333 = vmatprep.subr.bf16.mxu0 0
      %334 = vmatpush1.bf16.msra.mxu0 %v237
      %335 = vmatprep.subr.bf16.mxu0 0
      %336 = vmatpush1.bf16.msra.mxu0 %v239
      %337 = vmatprep.subr.bf16.mxu0 0
      %338 = vmatpush1.bf16.msra.mxu0 %v243
      %339 = vmatprep.subr.bf16.mxu0 0
      %340 = vmatpush1.bf16.msra.mxu0 %v245
      %341 = vmatprep.subr.bf16.mxu0 0
      %342 = vmatpush1.bf16.msra.mxu0 %v249
      %343 = vmatprep.subr.bf16.mxu0 0
      %344 = vmatpush1.bf16.msra.mxu0 %v251
      %345 = vmatprep.subr.bf16.mxu0 0
      %346 = vmatpush1.bf16.msra.mxu0 %v255
      %347 = vmatprep.subr.bf16.mxu0 0
      %348 = vmatpush1.bf16.msra.mxu0 %v257
      %349 = vmatprep.subr.bf16.mxu0 0
      %350 = vmatpush1.bf16.msra.mxu0 %v261
      %351 = vmatprep.subr.bf16.mxu0 0
      %352 = vmatpush1.bf16.msra.mxu0 %v263
      %353 = vmatprep.subr.bf16.mxu0 0
      %354 = vmatpush1.bf16.msra.mxu0 %v267
      %355 = vmatprep.subr.bf16.mxu0 0
      %356 = vmatpush1.bf16.msra.mxu0 %v269
      %357 = vmatprep.subr.bf16.mxu0 0
      %358 = vmatpush1.bf16.msra.mxu0 %v273
      %359 = vmatprep.subr.bf16.mxu0 0
      %360 = vmatpush1.bf16.msra.mxu0 %v275
      %361 = vmatprep.mubr.bf16.mxu0 %v313
      %362 = vmatmul.mubr.bf16.gmra.mrb[0].mxu0 %v312
      %v363 = vpop.f32.mrb[0].mxu0
      %v364 = vadd.f32 0.0, %v363
      %v365 = vpop.f32.mrb[0].mxu0
      %v366 = vpop.f32.mrb[0].mxu0
      %v367 = vadd.f32 0.0, %v366
      %v368 = vpop.f32.mrb[0].mxu0
      %369 = vmatprep.mubr.bf16.mxu0 %v316
      %370 = vmatmul.mubr.bf16.gmra.mrb[0].mxu0 %v315
      %v371 = vpop.f32.mrb[0].mxu0
      %v372 = vadd.f32 0.0, %v371
      %v373 = vpop.f32.mrb[0].mxu0
      %v374 = vpop.f32.mrb[0].mxu0
      %v375 = vadd.f32 0.0, %v374
      %v376 = vpop.f32.mrb[0].mxu0
      %377 = vdwg.mxu0
      %378 = vmatprep.subr.bf16.mxu0 0
      %379 = vmatpush1.bf16.msra.mxu0 %v279
      %380 = vmatprep.subr.bf16.mxu0 0
      %381 = vmatpush1.bf16.msra.mxu0 %v281
      %382 = vmatprep.subr.bf16.mxu0 0
      %383 = vmatpush1.bf16.msra.mxu0 0
      %384 = vmatprep.subr.bf16.mxu0 0
      %385 = vmatpush1.bf16.msra.mxu0 0
      %386 = vmatprep.subr.bf16.mxu0 0
      %387 = vmatpush1.bf16.msra.mxu0 0
      %388 = vmatprep.subr.bf16.mxu0 0
      %389 = vmatpush1.bf16.msra.mxu0 0
      %390 = vmatprep.subr.bf16.mxu0 0
      %391 = vmatpush1.bf16.msra.mxu0 0
      %392 = vmatprep.subr.bf16.mxu0 0
      %393 = vmatpush1.bf16.msra.mxu0 0
      %394 = vmatprep.subr.bf16.mxu0 0
      %395 = vmatpush1.bf16.msra.mxu0 0
      %396 = vmatprep.subr.bf16.mxu0 0
      %397 = vmatpush1.bf16.msra.mxu0 0
      %398 = vmatprep.subr.bf16.mxu0 0
      %399 = vmatpush1.bf16.msra.mxu0 0
      %400 = vmatprep.subr.bf16.mxu0 0
      %401 = vmatpush1.bf16.msra.mxu0 0
      %402 = vmatprep.subr.bf16.mxu0 0
      %403 = vmatpush1.bf16.msra.mxu0 0
      %404 = vmatprep.subr.bf16.mxu0 0
      %405 = vmatpush1.bf16.msra.mxu0 0
      %406 = vmatprep.subr.bf16.mxu0 0
      %407 = vmatpush1.bf16.msra.mxu0 0
      %408 = vmatprep.subr.bf16.mxu0 0
      %409 = vmatpush1.bf16.msra.mxu0 0
      %410 = vmatprep.mubr.bf16.mxu0 0
      %411 = vmatmul.mubr.bf16.gmra.mrb[0].mxu0 %v324
      %v412 = vpop.f32.mrb[0].mxu0
      %v413 = vadd.f32 %v364, %v412
      %v414 = vpop.f32.mrb[0].mxu0
      %v415 = vpop.f32.mrb[0].mxu0
      %v416 = vadd.f32 %v367, %v415
      %v417 = vpop.f32.mrb[0].mxu0
      %418 = vmatprep.mubr.bf16.mxu0 0
      %419 = vmatmul.mubr.bf16.gmra.mrb[0].mxu0 %v327
      %v420 = vpop.f32.mrb[0].mxu0
      %v421 = vadd.f32 %v372, %v420
      %v422 = vpop.f32.mrb[0].mxu0
      %v423 = vpop.f32.mrb[0].mxu0
      %v424 = vadd.f32 %v375, %v423
      %v425 = vpop.f32.mrb[0].mxu0
      %426 = vdwg.mxu0
      %v427 = vld [vmem:[%s2] sm:$0x1]
      %v429 = vlaneseq
      %v430 = vshrl.u32 %v429, 7
      %v431 = vsub.s32 0, %v430
      %v432 = vrot.slane %v427, %v431
      %v434 = vmul.f32 %v413, %v432
      %v435 = vmul.f32 %v416, %v432
      %v436 = vmul.f32 %v421, %v432
      %v437 = vmul.f32 %v424, %v432
      %vm438 = vcmask 195584
      %v439 = vsel %vm438, %v434, 0.0
      %440 = vadd.xlane.f32.xlu0 %v439
      %v441 = vpop.xlane.xlu0 %440
      %v442 = vsel %vm438, %v435, 0.0
      %443 = vadd.xlane.f32.xlu0 %v442
      %v444 = vpop.xlane.xlu0 %443
      %v445 = vsel %vm438, %v436, 0.0
      %446 = vadd.xlane.f32.xlu0 %v445
      %v447 = vpop.xlane.xlu0 %446
      %v448 = vsel %vm438, %v437, 0.0
      %449 = vadd.xlane.f32.xlu0 %v448
      %v450 = vpop.xlane.xlu0 %449
      %v451 = vmul.f32 %v441, 0.0625
      %v452 = vmul.f32 %v444, 0.0625
      %v453 = vmul.f32 %v447, 0.0625
      %v454 = vmul.f32 %v450, 0.0625
      %v455 = vsub.f32 %v413, %v451
      %v456 = vsub.f32 %v416, %v452
      %v457 = vsub.f32 %v421, %v453
      %v458 = vsub.f32 %v424, %v454
      %v459 = vmul.f32 %v455, %v432
      %v460 = vmul.f32 %v456, %v432
      %v461 = vmul.f32 %v457, %v432
      %v462 = vmul.f32 %v458, %v432
      %v463 = vmul.f32 %v459, %v459
      %v464 = vmul.f32 %v460, %v460
      %v465 = vmul.f32 %v461, %v461
      %v466 = vmul.f32 %v462, %v462
      %v467 = vsel %vm438, %v463, 0.0
      %468 = vadd.xlane.f32.xlu0 %v467
      %v469 = vpop.xlane.xlu0 %468
      %v470 = vsel %vm438, %v464, 0.0
      %471 = vadd.xlane.f32.xlu0 %v470
      %v472 = vpop.xlane.xlu0 %471
      %v473 = vsel %vm438, %v465, 0.0
      %474 = vadd.xlane.f32.xlu0 %v473
      %v475 = vpop.xlane.xlu0 %474
      %v476 = vsel %vm438, %v466, 0.0
      %477 = vadd.xlane.f32.xlu0 %v476
      %v478 = vpop.xlane.xlu0 %477
      %v479 = vmul.f32 %v469, 0.0625
      %v480 = vmul.f32 %v472, 0.0625
      %v481 = vmul.f32 %v475, 0.0625
      %v482 = vmul.f32 %v478, 0.0625
      %v483 = vadd.f32 %v479, 1e-05
      %v484 = vadd.f32 %v480, 1e-05
      %v485 = vadd.f32 %v481, 1e-05
      %v486 = vadd.f32 %v482, 1e-05
      %v487 = vrsqrt.pop %v483
      %v488 = vrsqrt.pop %v484
      %v489 = vrsqrt.pop %v485
      %v490 = vrsqrt.pop %v486
      %v491 = vmul.f32 %v459, %v487
      %v492 = vmul.f32 %v460, %v488
      %v493 = vmul.f32 %v461, %v489
      %v494 = vmul.f32 %v462, %v490
      %v495 = vmax.f32 %v491, 0.0
      %v496 = vmax.f32 %v492, 0.0
      %v497 = vmax.f32 %v493, 0.0
      %v498 = vmax.f32 %v494, 0.0
      %v499 = vpack.c.bf16 %v496, %v495
      %v500 = vpack.c.bf16 %v498, %v497
      %v503 = vunpack.c.l.b16 %v499
      %v504 = vunpack.c.h.b16 %v499
      %v505 = vunpack.c.l.b16 %v500
      %v506 = vunpack.c.h.b16 %v500
      %v507 = vpack.c.b16 %v503, %v503
      %v508 = vpack.c.b16 %v504, %v504
      %v509 = vpack.c.b16 %v505, %v505
      %v510 = vpack.c.b16 %v506, %v506
      %vm515 = vcmask 191488
      %516 = vst.msk [vmem:[%s217] sm:$0xf] %vm515, %v507
      %517 = vst.msk [vmem:[%s217 + $0x4] sm:$0xf] %vm515, %v508
      %518 = vst.msk [vmem:[%s217 + $0x8] sm:$0xf] %vm515, %v509
      %519 = vst.msk [vmem:[%s217 + $0xc] sm:$0xf] %vm515, %v510
      %s520 = smul.u32 4, %s19
      %p521 = scmp.lt.s32.totalorder %s18, 1
      %s522 = scalar_select %p521, %s18, 1
      %p523 = scmp.lt.s32.totalorder %s520, 3
      %s524 = scalar_select %p523, %s520, 3
      %s525 = smul.addr %s522, 4
      %s526 = sadd.s32 %s524, %s525
      %s527 = smul.addr %s526, 4
      %s528 = scalar_lea.vmem %s3, %s527
      // Predicated region
      $region33: #{resnet_generator_forward.13} parent=31 // pred_check
        %p529 = pneg %p119
      $region34: #{resnet_generator_forward.13} parent=31 // pred_check_branch
        %531 = sbr.rel (%p529) target = $region36
      $region35: #{resnet_generator_forward.13} parent=31 // pred_region
        %s532 = smul.u32 4, %s19
      $region36: #{resnet_generator_forward.13} parent=31 // pred_fallthru
        _
    $region32: #{resnet_generator_forward.13} parent=5 // pred_fallthru
      _
    %p533 = scmp.le.s32.totalorder 2, %s9
    // Predicated region
    $region37: #{resnet_generator_forward.13} parent=5 // pred_check
      %p534 = pneg %p533
    $region38: #{resnet_generator_forward.13} parent=5 // pred_check_branch
      %536 = sbr.rel (%p534) target = $region40
    $region39: #{resnet_generator_forward.13} parent=5 // pred_region
      %s537 = ssub.s32 %s9, 2
      // Predicated region
      $region41: #{resnet_generator_forward.13} parent=39 // pred_check
        %p538 = pneg %p125
      $region42: #{resnet_generator_forward.13} parent=39 // pred_check_branch
        %540 = sbr.rel (%p538) target = $region44
      $region43: #{resnet_generator_forward.13} parent=39 // pred_region
        %s541 = smul.u32 4, %s21
        %p542 = scmp.lt.s32.totalorder %s20, 1
        %s543 = scalar_select %p542, %s20, 1
        %p544 = scmp.lt.s32.totalorder %s541, 3
        %s545 = scalar_select %p544, %s541, 3
        %s546 = smul.addr %s543, 4
        %s547 = sadd.s32 %s545, %s546
        %s548 = smul.addr %s547, 4
        %s549 = scalar_lea.vmem %s3, %s548
      $region44: #{resnet_generator_forward.13} parent=39 // pred_fallthru
        _
    $region40: #{resnet_generator_forward.13} parent=5 // pred_fallthru
      _
  $region6: #{resnet_generator_forward.13} parent=0 // loop_footer
    %s13 = sadd.s32 1, %s9
  $region7: #{resnet_generator_forward.13} parent=0 // loop_footer_branch
    %8 = sbr.rel target = $region3
  $region8: #{resnet_generator_forward.13} parent=0 // loop_exit
    _

// kernel: resnet_generator_forward.17
$region0: #{resnet_generator_forward.17}
  #allocation0 [shape = 'u32[]', space=smem, size = 0x4, offset = 0x4, fixed_abs, tag = 'smem constant byte address 0x4 - core index']
  #allocation1 [shape = 'u32[144,128]{1,0:T(1,128)}', space=vmem, size = 0x12000, scoped, tag = 'internal scratch']
  %s0 = inlined_call_operand.vmem [shape: bf16[2,32,30], index: 0, kind: input, shape index: {}]
  %s1 = inlined_call_operand.vmem [shape: bf16[64,128], index: 1, kind: input, shape index: {}]
  %s2 = inlined_call_operand.vmem [shape: f32[1,20], index: 2, kind: input, shape index: {}]
  %s3 = inlined_call_operand.vmem [shape: bf16[2,64,20], index: 3, kind: output, shape index: {}]
  %s4 = sld [smem:[#allocation0]]
  $region45: #{resnet_generator_forward.17} parent=0
    _
  %s6 = ssub.s32 1, %s4
  %s7 = scalar_select 0, %s6, %s4
  loop: start=0, step=1, limit=4
  $region2: #{resnet_generator_forward.17} parent=0 // loop_pre_header
    _
  $region3: #{resnet_generator_forward.17} parent=0 // loop_header
    %s9 = sphi 0, %s13
    %p10 = scmp.ge.s32.totalorder %s9, 4
    %s16 = sphi 0, %s28
    %s17 = sphi 0, %s24
    %s18 = sphi 0, %s16
    %s19 = sphi 0, %s17
    %s20 = sphi 0, %s18
    %s21 = sphi 0, %s19
    %s31 = sphi 0, %s33
    %s34 = sphi 0, %s31
    %s35 = sphi 0, %s34
    %s51 = sphi 0, %s35
    %s57 = sphi 0, %s59
    %s60 = sphi 0, %s57
    %s61 = sphi 0, %s60
    %s77 = sphi 0, %s61
    %s81 = sphi 0, %s81
    %s83 = sphi 0, %s81
    %s84 = sphi 0, %s83
    %s98 = sphi 0, %s84
    %s106 = sphi 0, %s108
    %s109 = sphi 0, %s106
    %s110 = sphi 0, %s109
    %s126 = sphi 0, %s110
  $region4: #{resnet_generator_forward.17} parent=0 // loop_header_branch
    %12 = sbr.rel (%p10) target = $region8
  $region5: #{resnet_generator_forward.17} parent=0 // loop_body
    %s14 = ssub.s32 %s9, 1
    %s15 = ssub.s32 %s9, 2
    %s22 = sadd.s32 1, %s17
    %p23 = scmp.ge.s32.totalorder %s22, 1
    %s24 = scalar_select %p23, 0, %s22
    %s25 = sadd.s32 1, %s16
    %s26 = scalar_select %p23, %s25, %s16
    %p27 = scmp.ge.s32.totalorder %s26, 2
    %s28 = scalar_select %p27, 0, %s26
    %s29 = ssub.s32 %s16, %s28
    %p30 = scmp.eq.s32.totalorder %s29, 0
    %s32 = sadd.s32 %s31, 1
    %s33 = scalar_select %p30, %s31, %s32
    %p36 = pneg %p30
    %p37 = scmp.eq.s32.totalorder %s9, 1
    %p38 = por %p36, %p37
    %p39 = scmp.ne.s32.totalorder %s31, %s34
    %p40 = scmp.eq.s32.totalorder %s9, 0
    %p41 = por %p39, %p40
    %p42 = scmp.ne.s32.totalorder %s31, %s34
    %p43 = scmp.eq.s32.totalorder %s14, 1
    %p44 = por %p42, %p43
    %p45 = scmp.ne.s32.totalorder %s34, %s35
    %p46 = scmp.eq.s32.totalorder %s14, 0
    %p47 = por %p45, %p46
    %p48 = scmp.ne.s32.totalorder %s34, %s35
    %p49 = scmp.eq.s32.totalorder %s15, 1
    %p50 = por %p48, %p49
    %p52 = scmp.ne.s32.totalorder %s35, %s51
    %p53 = scmp.eq.s32.totalorder %s15, 0
    %p54 = por %p52, %p53
    %s55 = ssub.s32 %s17, %s24
    %p56 = scmp.eq.s32.totalorder %s55, 0
    %s58 = sadd.s32 %s57, 1
    %s59 = scalar_select %p56, %s57, %s58
    %p62 = pneg %p56
    %p63 = scmp.eq.s32.totalorder %s9, 1
    %p64 = por %p62, %p63
    %p65 = scmp.ne.s32.totalorder %s57, %s60
    %p66 = scmp.eq.s32.totalorder %s9, 0
    %p67 = por %p65, %p66
    %p68 = scmp.ne.s32.totalorder %s57, %s60
    %p69 = scmp.eq.s32.totalorder %s14, 1
    %p70 = por %p68, %p69
    %p71 = scmp.ne.s32.totalorder %s60, %s61
    %p72 = scmp.eq.s32.totalorder %s14, 0
    %p73 = por %p71, %p72
    %p74 = scmp.ne.s32.totalorder %s60, %s61
    %p75 = scmp.eq.s32.totalorder %s15, 1
    %p76 = por %p74, %p75
    %p78 = scmp.ne.s32.totalorder %s61, %s77
    %p79 = scmp.eq.s32.totalorder %s15, 0
    %p80 = por %p78, %p79
    %s82 = sadd.s32 %s81, 1
    %p85 = scmp.eq.s32.totalorder %s9, 1
    %p86 = scmp.ne.s32.totalorder %s81, %s83
    %p87 = scmp.eq.s32.totalorder %s9, 0
    %p88 = por %p86, %p87
    %p89 = scmp.ne.s32.totalorder %s81, %s83
    %p90 = scmp.eq.s32.totalorder %s14, 1
    %p91 = por %p89, %p90
    %p92 = scmp.ne.s32.totalorder %s83, %s84
    %p93 = scmp.eq.s32.totalorder %s14, 0
    %p94 = por %p92, %p93
    %p95 = scmp.ne.s32.totalorder %s83, %s84
    %p96 = scmp.eq.s32.totalorder %s15, 1
    %p97 = por %p95, %p96
    %p99 = scmp.ne.s32.totalorder %s84, %s98
    %p100 = scmp.eq.s32.totalorder %s15, 0
    %p101 = por %p99, %p100
    %s102 = ssub.s32 %s16, %s28
    %s103 = ssub.s32 %s17, %s24
    %s104 = sor.u32 %s102, %s103
    %p105 = scmp.eq.s32.totalorder %s104, 0
    %s107 = sadd.s32 %s106, 1
    %s108 = scalar_select %p105, %s106, %s107
    %p111 = pneg %p105
    %p112 = scmp.eq.s32.totalorder %s9, 1
    %p113 = por %p111, %p112
    %p114 = scmp.ne.s32.totalorder %s106, %s109
    %p115 = scmp.eq.s32.totalorder %s9, 0
    %p116 = por %p114, %p115
    %p117 = scmp.ne.s32.totalorder %s106, %s109
    %p118 = scmp.eq.s32.totalorder %s14, 1
    %p119 = por %p117, %p118
    %p120 = scmp.ne.s32.totalorder %s109, %s110
    %p121 = scmp.eq.s32.totalorder %s14, 0
    %p122 = por %p120, %p121
    %p123 = scmp.ne.s32.totalorder %s109, %s110
    %p124 = scmp.eq.s32.totalorder %s15, 1
    %p125 = por %p123, %p124
    %p127 = scmp.ne.s32.totalorder %s110, %s126
    %p128 = scmp.eq.s32.totalorder %s15, 0
    %p129 = por %p127, %p128
    %p130 = scmp.le.s32.totalorder 1, %s9
    %p131 = scmp.lt.s32.totalorder %s9, 3
    %p132 = pnand %p130, %p131
    %p133 = pneg %p132
    // Predicated region
    $region9: #{resnet_generator_forward.17} parent=5 // pred_check
      _
    $region10: #{resnet_generator_forward.17} parent=5 // pred_check_branch
      %135 = sbr.rel (%p132) target = $region12
    $region11: #{resnet_generator_forward.17} parent=5 // pred_region
      %s136 = ssub.s32 %s9, 1
      // Predicated region
      $region13: #{resnet_generator_forward.17} parent=11 // pred_check
        %p137 = pneg %p73
      $region14: #{resnet_generator_forward.17} parent=11 // pred_check_branch
        %139 = sbr.rel (%p137) target = $region16
      $region15: #{resnet_generator_forward.17} parent=11 // pred_region
        %s140 = smul.u32 8, %s19
        %p141 = scmp.lt.s32.totalorder %s140, 7
        %s142 = scalar_select %p141, %s140, 7
        %s143 = smul.addr %s142, 4
        %s144 = scalar_lea.vmem %s1, %s143
        %s145 = smul.u32 8, %s19
      $region16: #{resnet_generator_forward.17} parent=11 // pred_fallthru
        _
      // Predicated region
      $region17: #{resnet_generator_forward.17} parent=11 // pred_check
        %p146 = pneg %p94
      $region18: #{resnet_generator_forward.17} parent=11 // pred_check_branch
        %148 = sbr.rel (%p146) target = $region20
      $region19: #{resnet_generator_forward.17} parent=11 // pred_region
        _
      $region20: #{resnet_generator_forward.17} parent=11 // pred_fallthru
        _
    $region12: #{resnet_generator_forward.17} parent=5 // pred_fallthru
      _
    %p149 = scmp.lt.s32.totalorder %s9, 2
    // Predicated region
    $region21: #{resnet_generator_forward.17} parent=5 // pred_check
      %p150 = pneg %p149
    $region22: #{resnet_generator_forward.17} parent=5 // pred_check_branch
      %152 = sbr.rel (%p150) target = $region24
    $region23: #{resnet_generator_forward.17} parent=5 // pred_region
      // Predicated region
      $region25: #{resnet_generator_forward.17} parent=23 // pred_check
        %p153 = pneg %p41
      $region26: #{resnet_generator_forward.17} parent=23 // pred_check_branch
        %155 = sbr.rel (%p153) target = $region28
      $region27: #{resnet_generator_forward.17} parent=23 // pred_region
        %p156 = scmp.lt.s32.totalorder %s16, 1
        %s157 = scalar_select %p156, %s16, 1
        %s158 = smul.addr %s157, 4
        %s159 = smul.addr %s158, 4
        %s160 = scalar_lea.vmem %s0, %s159
      $region28: #{resnet_generator_forward.17} parent=23 // pred_fallthru
        _
    $region24: #{resnet_generator_forward.17} parent=5 // pred_fallthru
      _
    %p161 = scmp.le.s32.totalorder 1, %s9
    %p162 = scmp.lt.s32.totalorder %s9, 3
    %p163 = pnand %p161, %p162
    %p164 = pneg %p163
    // Predicated region
    $region29: #{resnet_generator_forward.17} parent=5 // pred_check
      _
    $region30: #{resnet_generator_forward.17} parent=5 // pred_check_branch
      %166 = sbr.rel (%p163) target = $region32
    $region31: #{resnet_generator_forward.17} parent=5 // pred_region
      %s167 = ssub.s32 %s9, 1
      %p168 = scmp.lt.s32.totalorder %s18, 1
      %s169 = scalar_select %p168, %s18, 1
      %s170 = smul.addr %s169, 4
      %s171 = smul.addr %s170, 4
      %s172 = scalar_lea.vmem %s0, %s171
      %p173 = pneg %p47
      %p174 = pneg %p44
      %s175 = smul.u32 8, %s19
      %p176 = scmp.lt.s32.totalorder %s175, 7
      %s177 = scalar_select %p176, %s175, 7
      %s178 = smul.addr %s177, 4
      %s179 = scalar_lea.vmem %s1, %s178
      %p180 = pneg %p73
      %p181 = pneg %p70
      %p182 = pneg %p94
      %p183 = pneg %p91
      %p184 = pneg %p122
      %p185 = pneg %p119
      %s186 = smul.u32 8, %s19
      %p187 = scmp.lt.s32.totalorder %s18, 1
      %s188 = scalar_select %p187, %s18, 1
      %p189 = scmp.lt.s32.totalorder %s186, 7
      %s190 = scalar_select %p189, %s186, 7
      %s191 = smul.addr %s188, 8
      %s192 = sadd.s32 %s190, %s191
      %s193 = smul.addr %s192, 4
      %s194 = scalar_lea.vmem %s3, %s193
      %p195 = scmp.lt.s32.totalorder %s18, 1
      %s196 = scalar_select %p195, %s18, 1
      %s197 = smul.addr %s196, 4
      %s198 = smul.addr %s197, 4
      %s199 = scalar_lea.vmem %s0, %s198
      %s200 = smul.u32 8, %s19
      %p201 = scmp.lt.s32.totalorder %s200, 7
      %s202 = scalar_select %p201, %s200, 7
      %s203 = smul.addr %s202, 4
      %s204 = scalar_lea.vmem %s1, %s203
      %s205 = smul.u32 8, %s19
      %s206 = smul.u32 8, %s19
      %p207 = scmp.lt.s32.totalorder %s18, 1
      %s208 = scalar_select %p207, %s18, 1
      %p209 = scmp.lt.s32.totalorder %s206, 7
      %s210 = scalar_select %p209, %s206, 7
      %s211 = smul.addr %s208, 8
      %s212 = sadd.s32 %s210, %s211
      %s213 = smul.addr %s212, 4
      %s214 = scalar_lea.vmem %s3, %s213
      %s215 = smul.u32 8, %s19
      %v217 = vld [vmem:[%s199] sm:$0xf]
      %v218 = vld [vmem:[%s199 + $0x4] sm:$0xf]
      %v219 = vld [vmem:[%s199 + $0x8] sm:$0xf]
      %v220 = vld [vmem:[%s199 + $0xc] sm:$0xf]
      %v225 = vunpack.c.l.b16 %v217
      %v226 = vunpack.c.l.b16 %v218
      %v227 = vunpack.c.l.b16 %v219
      %v228 = vunpack.c.l.b16 %v220
      %v229 = vpack.c.b16 %v226, %v225
      %v230 = vpack.c.b16 %v228, %v227
      %233 = vrot.lane.b32.xlu0 %v229, 127
      %v234 = vpop.permute.xlu0 %233
      %235 = vrot.lane.b32.xlu0 %v230, 127
      %v236 = vpop.permute.xlu0 %235
      %239 = vrot.lane.b32.xlu0 %v229, 123
      %v240 = vpop.permute.xlu0 %239
      %241 = vrot.lane.b32.xlu0 %v230, 123
      %v242 = vpop.permute.xlu0 %241
      %245 = vrot.lane.b32.xlu0 %v229, 122
      %v246 = vpop.permute.xlu0 %245
      %247 = vrot.lane.b32.xlu0 %v230, 122
      %v248 = vpop.permute.xlu0 %247
      %v251 = vld [vmem:[%s204] sm:$0xf]
      %v252 = vld [vmem:[%s204 + $0x4] sm:$0xf]
      %v253 = vld [vmem:[%s204 + $0x8] sm:$0xf]
      %v254 = vld [vmem:[%s204 + $0xc] sm:$0xf]
      %v255 = vld [vmem:[%s204 + $0x10] sm:$0xf]
      %v256 = vld [vmem:[%s204 + $0x14] sm:$0xf]
      %v257 = vld [vmem:[%s204 + $0x18] sm:$0xf]
      %v258 = vld [vmem:[%s204 + $0x1c] sm:$0xf]
      %v267 = vunpack.c.l.b16 %v251
      %v268 = vunpack.c.l.b16 %v252
      %v269 = vunpack.c.l.b16 %v253
      %v270 = vunpack.c.l.b16 %v254
      %v271 = vunpack.c.l.b16 %v255
      %v272 = vunpack.c.l.b16 %v256
      %v273 = vunpack.c.l.b16 %v257
      %v274 = vunpack.c.l.b16 %v258
      %v275 = vpack.c.b16 %v268, %v267
      %v276 = vpack.c.b16 %v270, %v269
      %v277 = vpack.c.b16 %v272, %v271
      %v278 = vpack.c.b16 %v274, %v273
      %283 = vmatprep.subr.bf16.mxu0 0
      %284 = vmatpush1.bf16.msra.mxu0 %v229
      %285 = vmatprep.subr.bf16.mxu0 0
      %286 = vmatpush1.bf16.msra.mxu0 %v230
      %287 = vmatprep.subr.bf16.mxu0 0
      %288 = vmatpush1.bf16.msra.mxu0 %v234
      %289 = vmatprep.subr.bf16.mxu0 0
      %290 = vmatpush1.bf16.msra.mxu0 %v236
      %291 = vmatprep.subr.bf16.mxu0 0
      %292 = vmatpush1.bf16.msra.mxu0 %v240
      %293 = vmatprep.subr.bf16.mxu0 0
      %294 = vmatpush1.bf16.msra.mxu0 %v242
      %295 = vmatprep.subr.bf16.mxu0 0
      %296 = vmatpush1.bf16.msra.mxu0 %v246
      %297 = vmatprep.subr.bf16.mxu0 0
      %298 = vmatpush1.bf16.msra.mxu0 %v248
      %299 = vmatprep.subr.bf16.mxu0 0
      %300 = vmatpush1.bf16.msra.mxu0 0
      %301 = vmatprep.subr.bf16.mxu0 0
      %302 = vmatpush1.bf16.msra.mxu0 0
      %303 = vmatprep.subr.bf16.mxu0 0
      %304 = vmatpush1.bf16.msra.mxu0 0
      %305 = vmatprep.subr.bf16.mxu0 0
      %306 = vmatpush1.bf16.msra.mxu0 0
      %307 = vmatprep.subr.bf16.mxu0 0
      %308 = vmatpush1.bf16.msra.mxu0 0
      %309 = vmatprep.subr.bf16.mxu0 0
      %310 = vmatpush1.bf16.msra.mxu0 0
      %311 = vmatprep.subr.bf16.mxu0 0
      %312 = vmatpush1.bf16.msra.mxu0 0
      %313 = vmatprep.subr.bf16.mxu0 0
      %314 = vmatpush1.bf16.msra.mxu0 0
      %315 = vmatprep.mubr.bf16.mxu0 0
      %316 = vmatmul.mubr.bf16.gmra.mrb[0].mxu0 %v275
      %v317 = vpop.f32.mrb[0].mxu0
      %v318 = vadd.f32 0.0, %v317
      %v319 = vpop.f32.mrb[0].mxu0
      %v320 = vpop.f32.mrb[0].mxu0
      %v321 = vadd.f32 0.0, %v320
      %v322 = vpop.f32.mrb[0].mxu0
      %323 = vmatprep.mubr.bf16.mxu0 0
      %324 = vmatmul.mubr.bf16.gmra.mrb[0].mxu0 %v276
      %v325 = vpop.f32.mrb[0].mxu0
      %v326 = vadd.f32 0.0, %v325
      %v327 = vpop.f32.mrb[0].mxu0
      %v328 = vpop.f32.mrb[0].mxu0
      %v329 = vadd.f32 0.0, %v328
      %v330 = vpop.f32.mrb[0].mxu0
      %331 = vmatprep.mubr.bf16.mxu0 0
      %332 = vmatmul.mubr.bf16.gmra.mrb[0].mxu0 %v277
      %v333 = vpop.f32.mrb[0].mxu0
      %v334 = vadd.f32 0.0, %v333
      %v335 = vpop.f32.mrb[0].mxu0
      %v336 = vpop.f32.mrb[0].mxu0
      %v337 = vadd.f32 0.0, %v336
      %v338 = vpop.f32.mrb[0].mxu0
      %339 = vmatprep.mubr.bf16.mxu0 0
      %340 = vmatmul.mubr.bf16.gmra.mrb[0].mxu0 %v278
      %v341 = vpop.f32.mrb[0].mxu0
      %v342 = vadd.f32 0.0, %v341
      %v343 = vpop.f32.mrb[0].mxu0
      %v344 = vpop.f32.mrb[0].mxu0
      %v345 = vadd.f32 0.0, %v344
      %v346 = vpop.f32.mrb[0].mxu0
      %347 = vdwg.mxu0
      %v348 = vld [vmem:[%s2] sm:$0x1]
      %v350 = vlaneseq
      %v351 = vshrl.u32 %v350, 7
      %v352 = vsub.s32 0, %v351
      %v353 = vrot.slane %v348, %v352
      %v355 = vmul.f32 %v318, %v353
      %v356 = vmul.f32 %v321, %v353
      %v357 = vmul.f32 %v326, %v353
      %v358 = vmul.f32 %v329, %v353
      %v359 = vmul.f32 %v334, %v353
      %v360 = vmul.f32 %v337, %v353
      %v361 = vmul.f32 %v342, %v353
      %v362 = vmul.f32 %v345, %v353
      %vm363 = vcmask 162816
      %v364 = vsel %vm363, %v355, 0.0
      %365 = vadd.xlane.f32.xlu0 %v364
      %v366 = vpop.xlane.xlu0 %365
      %v367 = vsel %vm363, %v356, 0.0
      %368 = vadd.xlane.f32.xlu0 %v367
      %v369 = vpop.xlane.xlu0 %368
      %v370 = vsel %vm363, %v357, 0.0
      %371 = vadd.xlane.f32.xlu0 %v370
      %v372 = vpop.xlane.xlu0 %371
      %v373 = vsel %vm363, %v358, 0.0
      %374 = vadd.xlane.f32.xlu0 %v373
      %v375 = vpop.xlane.xlu0 %374
      %v376 = vsel %vm363, %v359, 0.0
      %377 = vadd.xlane.f32.xlu0 %v376
      %v378 = vpop.xlane.xlu0 %377
      %v379 = vsel %vm363, %v360, 0.0
      %380 = vadd.xlane.f32.xlu0 %v379
      %v381 = vpop.xlane.xlu0 %380
      %v382 = vsel %vm363, %v361, 0.0
      %383 = vadd.xlane.f32.xlu0 %v382
      %v384 = vpop.xlane.xlu0 %383
      %v385 = vsel %vm363, %v362, 0.0
      %386 = vadd.xlane.f32.xlu0 %v385
      %v387 = vpop.xlane.xlu0 %386
      %v388 = vadd.f32 %v366, %v372
      %v389 = vadd.f32 %v369, %v375
      %v390 = vadd.f32 %v388, %v378
      %v391 = vadd.f32 %v389, %v381
      %v392 = vadd.f32 %v390, %v384
      %v393 = vadd.f32 %v391, %v387
      %v394 = vmul.f32 %v392, 0.015625
      %v395 = vmul.f32 %v393, 0.015625
      %397 = vset.pattern.permute.xlu0 0
      %398 = vperm.xlu0 %397, %v394
      %v399 = vpop.permute.xlu0 %398
      %402 = vset.pattern.permute.xlu0 0
      %403 = vperm.xlu0 %402, %v395
      %v404 = vpop.permute.xlu0 %403
      %v406 = vsub.f32 %v318, %v399
      %v407 = vsub.f32 %v321, %v404
      %v408 = vsub.f32 %v326, %v399
      %v409 = vsub.f32 %v329, %v404
      %v410 = vsub.f32 %v334, %v399
      %v411 = vsub.f32 %v337, %v404
      %v412 = vsub.f32 %v342, %v399
      %v413 = vsub.f32 %v345, %v404
      %v414 = vmul.f32 %v406, %v353
      %v415 = vmul.f32 %v407, %v353
      %v416 = vmul.f32 %v408, %v353
      %v417 = vmul.f32 %v409, %v353
      %v418 = vmul.f32 %v410, %v353
      %v419 = vmul.f32 %v411, %v353
      %v420 = vmul.f32 %v412, %v353
      %v421 = vmul.f32 %v413, %v353
      %v422 = vmul.f32 %v414, %v414
      %v423 = vmul.f32 %v415, %v415
      %v424 = vmul.f32 %v416, %v416
      %v425 = vmul.f32 %v417, %v417
      %v426 = vmul.f32 %v418, %v418
      %v427 = vmul.f32 %v419, %v419
      %v428 = vmul.f32 %v420, %v420
      %v429 = vmul.f32 %v421, %v421
      %v430 = vsel %vm363, %v422, 0.0
      %431 = vadd.xlane.f32.xlu0 %v430
      %v432 = vpop.xlane.xlu0 %431
      %v433 = vsel %vm363, %v423, 0.0
      %434 = vadd.xlane.f32.xlu0 %v433
      %v435 = vpop.xlane.xlu0 %434
      %v436 = vsel %vm363, %v424, 0.0
      %437 = vadd.xlane.f32.xlu0 %v436
      %v438 = vpop.xlane.xlu0 %437
      %v439 = vsel %vm363, %v425, 0.0
      %440 = vadd.xlane.f32.xlu0 %v439
      %v441 = vpop.xlane.xlu0 %440
      %v442 = vsel %vm363, %v426, 0.0
      %443 = vadd.xlane.f32.xlu0 %v442
      %v444 = vpop.xlane.xlu0 %443
      %v445 = vsel %vm363, %v427, 0.0
      %446 = vadd.xlane.f32.xlu0 %v445
      %v447 = vpop.xlane.xlu0 %446
      %v448 = vsel %vm363, %v428, 0.0
      %449 = vadd.xlane.f32.xlu0 %v448
      %v450 = vpop.xlane.xlu0 %449
      %v451 = vsel %vm363, %v429, 0.0
      %452 = vadd.xlane.f32.xlu0 %v451
      %v453 = vpop.xlane.xlu0 %452
      %v454 = vadd.f32 %v432, %v438
      %v455 = vadd.f32 %v435, %v441
      %v456 = vadd.f32 %v454, %v444
      %v457 = vadd.f32 %v455, %v447
      %v458 = vadd.f32 %v456, %v450
      %v459 = vadd.f32 %v457, %v453
      %v460 = vmul.f32 %v458, 0.015625
      %v461 = vmul.f32 %v459, 0.015625
      %v462 = vadd.f32 %v460, 1e-05
      %v463 = vadd.f32 %v461, 1e-05
      %v464 = vrsqrt.pop %v462
      %v465 = vrsqrt.pop %v463
      %467 = vset.pattern.permute.xlu0 0
      %468 = vperm.xlu0 %467, %v464
      %v469 = vpop.permute.xlu0 %468
      %472 = vset.pattern.permute.xlu0 0
      %473 = vperm.xlu0 %472, %v465
      %v474 = vpop.permute.xlu0 %473
      %v476 = vmul.f32 %v414, %v469
      %v477 = vmul.f32 %v415, %v474
      %v478 = vmul.f32 %v416, %v469
      %v479 = vmul.f32 %v417, %v474
      %v480 = vmul.f32 %v418, %v469
      %v481 = vmul.f32 %v419, %v474
      %v482 = vmul.f32 %v420, %v469
      %v483 = vmul.f32 %v421, %v474
      %v484 = vmax.f32 %v476, 0.0
      %v485 = vmax.f32 %v477, 0.0
      %v486 = vmax.f32 %v478, 0.0
      %v487 = vmax.f32 %v479, 0.0
      %v488 = vmax.f32 %v480, 0.0
      %v489 = vmax.f32 %v481, 0.0
      %v490 = vmax.f32 %v482, 0.0
      %v491 = vmax.f32 %v483, 0.0
      %v492 = vpack.c.bf16 %v485, %v484
      %v493 = vpack.c.bf16 %v487, %v486
      %v494 = vpack.c.bf16 %v489, %v488
      %v495 = vpack.c.bf16 %v491, %v490
      %v500 = vunpack.c.l.b16 %v492
      %v501 = vunpack.c.h.b16 %v492
      %v502 = vunpack.c.l.b16 %v493
      %v503 = vunpack.c.h.b16 %v493
      %v504 = vunpack.c.l.b16 %v494
      %v505 = vunpack.c.h.b16 %v494
      %v506 = vunpack.c.l.b16 %v495
      %v507 = vunpack.c.h.b16 %v495
      %v508 = vpack.c.b16 %v500, %v500
      %v509 = vpack.c.b16 %v501, %v501
      %v510 = vpack.c.b16 %v502, %v502
      %v511 = vpack.c.b16 %v503, %v503
      %v512 = vpack.c.b16 %v504, %v504
      %v513 = vpack.c.b16 %v505, %v505
      %v514 = vpack.c.b16 %v506, %v506
      %v515 = vpack.c.b16 %v507, %v507
      %vm524 = vcmask 158720
      %525 = vst.msk [vmem:[%s214] sm:$0xf] %vm524, %v508
      %526 = vst.msk [vmem:[%s214 + $0x4] sm:$0xf] %vm524, %v509
      %527 = vst.msk [vmem:[%s214 + $0x8] sm:$0xf] %vm524, %v510
      %528 = vst.msk [vmem:[%s214 + $0xc] sm:$0xf] %vm524, %v511
      %529 = vst.msk [vmem:[%s214 + $0x10] sm:$0xf] %vm524, %v512
      %530 = vst.msk [vmem:[%s214 + $0x14] sm:$0xf] %vm524, %v513
      %531 = vst.msk [vmem:[%s214 + $0x18] sm:$0xf] %vm524, %v514
      %532 = vst.msk [vmem:[%s214 + $0x1c] sm:$0xf] %vm524, %v515
      %s533 = smul.u32 8, %s19
      %p534 = scmp.lt.s32.totalorder %s18, 1
      %s535 = scalar_select %p534, %s18, 1
      %p536 = scmp.lt.s32.totalorder %s533, 7
      %s537 = scalar_select %p536, %s533, 7
      %s538 = smul.addr %s535, 8
      %s539 = sadd.s32 %s537, %s538
      %s540 = smul.addr %s539, 4
      %s541 = scalar_lea.vmem %s3, %s540
      // Predicated region
      $region33: #{resnet_generator_forward.17} parent=31 // pred_check
        %p542 = pneg %p119
      $region34: #{resnet_generator_forward.17} parent=31 // pred_check_branch
        %544 = sbr.rel (%p542) target = $region36
      $region35: #{resnet_generator_forward.17} parent=31 // pred_region
        %s545 = smul.u32 8, %s19
      $region36: #{resnet_generator_forward.17} parent=31 // pred_fallthru
        _
    $region32: #{resnet_generator_forward.17} parent=5 // pred_fallthru
      _
    %p546 = scmp.le.s32.totalorder 2, %s9
    // Predicated region
    $region37: #{resnet_generator_forward.17} parent=5 // pred_check
      %p547 = pneg %p546
    $region38: #{resnet_generator_forward.17} parent=5 // pred_check_branch
      %549 = sbr.rel (%p547) target = $region40
    $region39: #{resnet_generator_forward.17} parent=5 // pred_region
      %s550 = ssub.s32 %s9, 2
      // Predicated region
      $region41: #{resnet_generator_forward.17} parent=39 // pred_check
        %p551 = pneg %p125
      $region42: #{resnet_generator_forward.17} parent=39 // pred_check_branch
        %553 = sbr.rel (%p551) target = $region44
      $region43: #{resnet_generator_forward.17} parent=39 // pred_region
        %s554 = smul.u32 8, %s21
        %p555 = scmp.lt.s32.totalorder %s20, 1
        %s556 = scalar_select %p555, %s20, 1
        %p557 = scmp.lt.s32.totalorder %s554, 7
        %s558 = scalar_select %p557, %s554, 7
        %s559 = smul.addr %s556, 8
        %s560 = sadd.s32 %s558, %s559
        %s561 = smul.addr %s560, 4
        %s562 = scalar_lea.vmem %s3, %s561
      $region44: #{resnet_generator_forward.17} parent=39 // pred_fallthru
        _
    $region40: #{resnet_generator_forward.17} parent=5 // pred_fallthru
      _
  $region6: #{resnet_generator_forward.17} parent=0 // loop_footer
    %s13 = sadd.s32 1, %s9
  $region7: #{resnet_generator_forward.17} parent=0 // loop_footer_branch
    %8 = sbr.rel target = $region3
  $region8: #{resnet_generator_forward.17} parent=0 // loop_exit
    _

// kernel: resnet_generator_forward.18
$region0: #{resnet_generator_forward.18}
  #allocation0 [shape = 'u32[]', space=smem, size = 0x4, offset = 0x4, fixed_abs, tag = 'smem constant byte address 0x4 - core index']
  #allocation1 [shape = 'u32[144,128]{1,0:T(1,128)}', space=vmem, size = 0x12000, scoped, tag = 'internal scratch']
  %s0 = inlined_call_operand.vmem [shape: bf16[2,16,90], index: 0, kind: input, shape index: {}]
  %s1 = inlined_call_operand.vmem [shape: bf16[32,64], index: 1, kind: input, shape index: {}]
  %s2 = inlined_call_operand.vmem [shape: f32[1,72], index: 2, kind: input, shape index: {}]
  %s3 = inlined_call_operand.vmem [shape: bf16[2,32,72], index: 3, kind: output, shape index: {}]
  %s4 = sld [smem:[#allocation0]]
  $region45: #{resnet_generator_forward.18} parent=0
    _
  %s6 = ssub.s32 1, %s4
  %s7 = scalar_select 0, %s6, %s4
  loop: start=0, step=1, limit=4
  $region2: #{resnet_generator_forward.18} parent=0 // loop_pre_header
    _
  $region3: #{resnet_generator_forward.18} parent=0 // loop_header
    %s9 = sphi 0, %s13
    %p10 = scmp.ge.s32.totalorder %s9, 4
    %s16 = sphi 0, %s28
    %s17 = sphi 0, %s24
    %s18 = sphi 0, %s16
    %s19 = sphi 0, %s17
    %s20 = sphi 0, %s18
    %s21 = sphi 0, %s19
    %s31 = sphi 0, %s33
    %s34 = sphi 0, %s31
    %s35 = sphi 0, %s34
    %s51 = sphi 0, %s35
    %s57 = sphi 0, %s59
    %s60 = sphi 0, %s57
    %s61 = sphi 0, %s60
    %s77 = sphi 0, %s61
    %s81 = sphi 0, %s81
    %s83 = sphi 0, %s81
    %s84 = sphi 0, %s83
    %s98 = sphi 0, %s84
    %s106 = sphi 0, %s108
    %s109 = sphi 0, %s106
    %s110 = sphi 0, %s109
    %s126 = sphi 0, %s110
  $region4: #{resnet_generator_forward.18} parent=0 // loop_header_branch
    %12 = sbr.rel (%p10) target = $region8
  $region5: #{resnet_generator_forward.18} parent=0 // loop_body
    %s14 = ssub.s32 %s9, 1
    %s15 = ssub.s32 %s9, 2
    %s22 = sadd.s32 1, %s17
    %p23 = scmp.ge.s32.totalorder %s22, 1
    %s24 = scalar_select %p23, 0, %s22
    %s25 = sadd.s32 1, %s16
    %s26 = scalar_select %p23, %s25, %s16
    %p27 = scmp.ge.s32.totalorder %s26, 2
    %s28 = scalar_select %p27, 0, %s26
    %s29 = ssub.s32 %s16, %s28
    %p30 = scmp.eq.s32.totalorder %s29, 0
    %s32 = sadd.s32 %s31, 1
    %s33 = scalar_select %p30, %s31, %s32
    %p36 = pneg %p30
    %p37 = scmp.eq.s32.totalorder %s9, 1
    %p38 = por %p36, %p37
    %p39 = scmp.ne.s32.totalorder %s31, %s34
    %p40 = scmp.eq.s32.totalorder %s9, 0
    %p41 = por %p39, %p40
    %p42 = scmp.ne.s32.totalorder %s31, %s34
    %p43 = scmp.eq.s32.totalorder %s14, 1
    %p44 = por %p42, %p43
    %p45 = scmp.ne.s32.totalorder %s34, %s35
    %p46 = scmp.eq.s32.totalorder %s14, 0
    %p47 = por %p45, %p46
    %p48 = scmp.ne.s32.totalorder %s34, %s35
    %p49 = scmp.eq.s32.totalorder %s15, 1
    %p50 = por %p48, %p49
    %p52 = scmp.ne.s32.totalorder %s35, %s51
    %p53 = scmp.eq.s32.totalorder %s15, 0
    %p54 = por %p52, %p53
    %s55 = ssub.s32 %s17, %s24
    %p56 = scmp.eq.s32.totalorder %s55, 0
    %s58 = sadd.s32 %s57, 1
    %s59 = scalar_select %p56, %s57, %s58
    %p62 = pneg %p56
    %p63 = scmp.eq.s32.totalorder %s9, 1
    %p64 = por %p62, %p63
    %p65 = scmp.ne.s32.totalorder %s57, %s60
    %p66 = scmp.eq.s32.totalorder %s9, 0
    %p67 = por %p65, %p66
    %p68 = scmp.ne.s32.totalorder %s57, %s60
    %p69 = scmp.eq.s32.totalorder %s14, 1
    %p70 = por %p68, %p69
    %p71 = scmp.ne.s32.totalorder %s60, %s61
    %p72 = scmp.eq.s32.totalorder %s14, 0
    %p73 = por %p71, %p72
    %p74 = scmp.ne.s32.totalorder %s60, %s61
    %p75 = scmp.eq.s32.totalorder %s15, 1
    %p76 = por %p74, %p75
    %p78 = scmp.ne.s32.totalorder %s61, %s77
    %p79 = scmp.eq.s32.totalorder %s15, 0
    %p80 = por %p78, %p79
    %s82 = sadd.s32 %s81, 1
    %p85 = scmp.eq.s32.totalorder %s9, 1
    %p86 = scmp.ne.s32.totalorder %s81, %s83
    %p87 = scmp.eq.s32.totalorder %s9, 0
    %p88 = por %p86, %p87
    %p89 = scmp.ne.s32.totalorder %s81, %s83
    %p90 = scmp.eq.s32.totalorder %s14, 1
    %p91 = por %p89, %p90
    %p92 = scmp.ne.s32.totalorder %s83, %s84
    %p93 = scmp.eq.s32.totalorder %s14, 0
    %p94 = por %p92, %p93
    %p95 = scmp.ne.s32.totalorder %s83, %s84
    %p96 = scmp.eq.s32.totalorder %s15, 1
    %p97 = por %p95, %p96
    %p99 = scmp.ne.s32.totalorder %s84, %s98
    %p100 = scmp.eq.s32.totalorder %s15, 0
    %p101 = por %p99, %p100
    %s102 = ssub.s32 %s16, %s28
    %s103 = ssub.s32 %s17, %s24
    %s104 = sor.u32 %s102, %s103
    %p105 = scmp.eq.s32.totalorder %s104, 0
    %s107 = sadd.s32 %s106, 1
    %s108 = scalar_select %p105, %s106, %s107
    %p111 = pneg %p105
    %p112 = scmp.eq.s32.totalorder %s9, 1
    %p113 = por %p111, %p112
    %p114 = scmp.ne.s32.totalorder %s106, %s109
    %p115 = scmp.eq.s32.totalorder %s9, 0
    %p116 = por %p114, %p115
    %p117 = scmp.ne.s32.totalorder %s106, %s109
    %p118 = scmp.eq.s32.totalorder %s14, 1
    %p119 = por %p117, %p118
    %p120 = scmp.ne.s32.totalorder %s109, %s110
    %p121 = scmp.eq.s32.totalorder %s14, 0
    %p122 = por %p120, %p121
    %p123 = scmp.ne.s32.totalorder %s109, %s110
    %p124 = scmp.eq.s32.totalorder %s15, 1
    %p125 = por %p123, %p124
    %p127 = scmp.ne.s32.totalorder %s110, %s126
    %p128 = scmp.eq.s32.totalorder %s15, 0
    %p129 = por %p127, %p128
    %p130 = scmp.le.s32.totalorder 1, %s9
    %p131 = scmp.lt.s32.totalorder %s9, 3
    %p132 = pnand %p130, %p131
    %p133 = pneg %p132
    // Predicated region
    $region9: #{resnet_generator_forward.18} parent=5 // pred_check
      _
    $region10: #{resnet_generator_forward.18} parent=5 // pred_check_branch
      %135 = sbr.rel (%p132) target = $region12
    $region11: #{resnet_generator_forward.18} parent=5 // pred_region
      %s136 = ssub.s32 %s9, 1
      // Predicated region
      $region13: #{resnet_generator_forward.18} parent=11 // pred_check
        %p137 = pneg %p73
      $region14: #{resnet_generator_forward.18} parent=11 // pred_check_branch
        %139 = sbr.rel (%p137) target = $region16
      $region15: #{resnet_generator_forward.18} parent=11 // pred_region
        %s140 = smul.u32 4, %s19
        %p141 = scmp.lt.s32.totalorder %s140, 3
        %s142 = scalar_select %p141, %s140, 3
        %s143 = smul.addr %s142, 4
        %s144 = scalar_lea.vmem %s1, %s143
        %s145 = smul.u32 4, %s19
      $region16: #{resnet_generator_forward.18} parent=11 // pred_fallthru
        _
      // Predicated region
      $region17: #{resnet_generator_forward.18} parent=11 // pred_check
        %p146 = pneg %p94
      $region18: #{resnet_generator_forward.18} parent=11 // pred_check_branch
        %148 = sbr.rel (%p146) target = $region20
      $region19: #{resnet_generator_forward.18} parent=11 // pred_region
        _
      $region20: #{resnet_generator_forward.18} parent=11 // pred_fallthru
        _
    $region12: #{resnet_generator_forward.18} parent=5 // pred_fallthru
      _
    %p149 = scmp.lt.s32.totalorder %s9, 2
    // Predicated region
    $region21: #{resnet_generator_forward.18} parent=5 // pred_check
      %p150 = pneg %p149
    $region22: #{resnet_generator_forward.18} parent=5 // pred_check_branch
      %152 = sbr.rel (%p150) target = $region24
    $region23: #{resnet_generator_forward.18} parent=5 // pred_region
      // Predicated region
      $region25: #{resnet_generator_forward.18} parent=23 // pred_check
        %p153 = pneg %p41
      $region26: #{resnet_generator_forward.18} parent=23 // pred_check_branch
        %155 = sbr.rel (%p153) target = $region28
      $region27: #{resnet_generator_forward.18} parent=23 // pred_region
        %p156 = scmp.lt.s32.totalorder %s16, 1
        %s157 = scalar_select %p156, %s16, 1
        %s158 = smul.addr %s157, 2
        %s159 = smul.addr %s158, 4
        %s160 = scalar_lea.vmem %s0, %s159
      $region28: #{resnet_generator_forward.18} parent=23 // pred_fallthru
        _
    $region24: #{resnet_generator_forward.18} parent=5 // pred_fallthru
      _
    %p161 = scmp.le.s32.totalorder 1, %s9
    %p162 = scmp.lt.s32.totalorder %s9, 3
    %p163 = pnand %p161, %p162
    %p164 = pneg %p163
    // Predicated region
    $region29: #{resnet_generator_forward.18} parent=5 // pred_check
      _
    $region30: #{resnet_generator_forward.18} parent=5 // pred_check_branch
      %166 = sbr.rel (%p163) target = $region32
    $region31: #{resnet_generator_forward.18} parent=5 // pred_region
      %s167 = ssub.s32 %s9, 1
      %p168 = scmp.lt.s32.totalorder %s18, 1
      %s169 = scalar_select %p168, %s18, 1
      %s170 = smul.addr %s169, 2
      %s171 = smul.addr %s170, 4
      %s172 = scalar_lea.vmem %s0, %s171
      %p173 = pneg %p47
      %p174 = pneg %p44
      %s175 = smul.u32 4, %s19
      %p176 = scmp.lt.s32.totalorder %s175, 3
      %s177 = scalar_select %p176, %s175, 3
      %s178 = smul.addr %s177, 4
      %s179 = scalar_lea.vmem %s1, %s178
      %p180 = pneg %p73
      %p181 = pneg %p70
      %p182 = pneg %p94
      %p183 = pneg %p91
      %p184 = pneg %p122
      %p185 = pneg %p119
      %s186 = smul.u32 4, %s19
      %p187 = scmp.lt.s32.totalorder %s18, 1
      %s188 = scalar_select %p187, %s18, 1
      %p189 = scmp.lt.s32.totalorder %s186, 3
      %s190 = scalar_select %p189, %s186, 3
      %s191 = smul.addr %s188, 4
      %s192 = sadd.s32 %s190, %s191
      %s193 = smul.addr %s192, 4
      %s194 = scalar_lea.vmem %s3, %s193
      %p195 = scmp.lt.s32.totalorder %s18, 1
      %s196 = scalar_select %p195, %s18, 1
      %s197 = smul.addr %s196, 2
      %s198 = smul.addr %s197, 4
      %s199 = scalar_lea.vmem %s0, %s198
      %s200 = smul.u32 4, %s19
      %p201 = scmp.lt.s32.totalorder %s200, 3
      %s202 = scalar_select %p201, %s200, 3
      %s203 = smul.addr %s202, 4
      %s204 = scalar_lea.vmem %s1, %s203
      %s205 = smul.u32 4, %s19
      %s206 = smul.u32 4, %s19
      %p207 = scmp.lt.s32.totalorder %s18, 1
      %s208 = scalar_select %p207, %s18, 1
      %p209 = scmp.lt.s32.totalorder %s206, 3
      %s210 = scalar_select %p209, %s206, 3
      %s211 = smul.addr %s208, 4
      %s212 = sadd.s32 %s210, %s211
      %s213 = smul.addr %s212, 4
      %s214 = scalar_lea.vmem %s3, %s213
      %s215 = smul.u32 4, %s19
      %v217 = vld [vmem:[%s199] sm:$0xf]
      %v218 = vld [vmem:[%s199 + $0x4] sm:$0xf]
      %v221 = vunpack.c.l.b16 %v217
      %v222 = vunpack.c.l.b16 %v218
      %v223 = vpack.c.b16 %v222, %v221
      %225 = vrot.lane.b32.xlu0 %v223, 127
      %v226 = vpop.permute.xlu0 %225
      %228 = vrot.lane.b32.xlu0 %v223, 119
      %v229 = vpop.permute.xlu0 %228
      %231 = vrot.lane.b32.xlu0 %v223, 118
      %v232 = vpop.permute.xlu0 %231
      %v234 = vld [vmem:[%s204] sm:$0xf]
      %v235 = vld [vmem:[%s204 + $0x4] sm:$0xf]
      %v236 = vld [vmem:[%s204 + $0x8] sm:$0xf]
      %v237 = vld [vmem:[%s204 + $0xc] sm:$0xf]
      %v242 = vunpack.c.l.b16 %v234
      %v243 = vunpack.c.l.b16 %v235
      %v244 = vunpack.c.l.b16 %v236
      %v245 = vunpack.c.l.b16 %v237
      %v246 = vpack.c.b16 %v243, %v242
      %v247 = vpack.c.b16 %v245, %v244
      %vm248 = vcmask 523264
      %v250 = vsel %vm248, %v246, 0
      %v253 = vsel %vm248, %v247, 0
      %255 = vmatprep.subr.bf16.mxu0 0
      %256 = vmatpush1.bf16.msra.mxu0 %v223
      %257 = vmatprep.subr.bf16.mxu0 0
      %258 = vmatpush1.bf16.msra.mxu0 %v226
      %259 = vmatprep.subr.bf16.mxu0 0
      %260 = vmatpush1.bf16.msra.mxu0 %v229
      %261 = vmatprep.subr.bf16.mxu0 0
      %262 = vmatpush1.bf16.msra.mxu0 %v232
      %263 = vmatprep.subr.bf16.mxu0 0
      %264 = vmatpush1.bf16.msra.mxu0 0
      %265 = vmatprep.subr.bf16.mxu0 0
      %266 = vmatpush1.bf16.msra.mxu0 0
      %267 = vmatprep.subr.bf16.mxu0 0
      %268 = vmatpush1.bf16.msra.mxu0 0
      %269 = vmatprep.subr.bf16.mxu0 0
      %270 = vmatpush1.bf16.msra.mxu0 0
      %271 = vmatprep.subr.bf16.mxu0 0
      %272 = vmatpush1.bf16.msra.mxu0 0
      %273 = vmatprep.subr.bf16.mxu0 0
      %274 = vmatpush1.bf16.msra.mxu0 0
      %275 = vmatprep.subr.bf16.mxu0 0
      %276 = vmatpush1.bf16.msra.mxu0 0
      %277 = vmatprep.subr.bf16.mxu0 0
      %278 = vmatpush1.bf16.msra.mxu0 0
      %279 = vmatprep.subr.bf16.mxu0 0
      %280 = vmatpush1.bf16.msra.mxu0 0
      %281 = vmatprep.subr.bf16.mxu0 0
      %282 = vmatpush1.bf16.msra.mxu0 0
      %283 = vmatprep.subr.bf16.mxu0 0
      %284 = vmatpush1.bf16.msra.mxu0 0
      %285 = vmatprep.subr.bf16.mxu0 0
      %286 = vmatpush1.bf16.msra.mxu0 0
      %287 = vmatprep.mubr.bf16.mxu0 0
      %288 = vmatmul.mubr.bf16.gmra.mrb[0].mxu0 %v250
      %v289 = vpop.f32.mrb[0].mxu0
      %v290 = vadd.f32 0.0, %v289
      %v291 = vpop.f32.mrb[0].mxu0
      %v292 = vpop.f32.mrb[0].mxu0
      %v293 = vadd.f32 0.0, %v292
      %v294 = vpop.f32.mrb[0].mxu0
      %295 = vmatprep.mubr.bf16.mxu0 0
      %296 = vmatmul.mubr.bf16.gmra.mrb[0].mxu0 %v253
      %v297 = vpop.f32.mrb[0].mxu0
      %v298 = vadd.f32 0.0, %v297
      %v299 = vpop.f32.mrb[0].mxu0
      %v300 = vpop.f32.mrb[0].mxu0
      %v301 = vadd.f32 0.0, %v300
      %v302 = vpop.f32.mrb[0].mxu0
      %303 = vdwg.mxu0
      %v304 = vld [vmem:[%s2] sm:$0x1]
      %v306 = vlaneseq
      %v307 = vshrl.u32 %v306, 7
      %v308 = vsub.s32 0, %v307
      %v309 = vrot.slane %v304, %v308
      %v311 = vmul.f32 %v290, %v309
      %v312 = vmul.f32 %v293, %v309
      %v313 = vmul.f32 %v298, %v309
      %v314 = vmul.f32 %v301, %v309
      %vm315 = vcmask 588800
      %v316 = vsel %vm315, %v311, 0.0
      %317 = vadd.xlane.f32.xlu0 %v316
      %v318 = vpop.xlane.xlu0 %317
      %v319 = vsel %vm315, %v312, 0.0
      %320 = vadd.xlane.f32.xlu0 %v319
      %v321 = vpop.xlane.xlu0 %320
      %v322 = vsel %vm315, %v313, 0.0
      %323 = vadd.xlane.f32.xlu0 %v322
      %v324 = vpop.xlane.xlu0 %323
      %v325 = vsel %vm315, %v314, 0.0
      %326 = vadd.xlane.f32.xlu0 %v325
      %v327 = vpop.xlane.xlu0 %326
      %v328 = vadd.f32 %v318, %v321
      %v329 = vadd.f32 %v328, %v324
      %v330 = vadd.f32 %v329, %v327
      %v331 = vmul.f32 %v330, 0.00390625
      %333 = vset.pattern.permute.xlu0 0
      %334 = vperm.xlu0 %333, %v331
      %v335 = vpop.permute.xlu0 %334
      %v337 = vsub.f32 %v290, %v335
      %v338 = vsub.f32 %v293, %v335
      %v339 = vsub.f32 %v298, %v335
      %v340 = vsub.f32 %v301, %v335
      %v341 = vmul.f32 %v337, %v309
      %v342 = vmul.f32 %v338, %v309
      %v343 = vmul.f32 %v339, %v309
      %v344 = vmul.f32 %v340, %v309
      %v345 = vmul.f32 %v341, %v341
      %v346 = vmul.f32 %v342, %v342
      %v347 = vmul.f32 %v343, %v343
      %v348 = vmul.f32 %v344, %v344
      %v349 = vsel %vm315, %v345, 0.0
      %350 = vadd.xlane.f32.xlu0 %v349
      %v351 = vpop.xlane.xlu0 %350
      %v352 = vsel %vm315, %v346, 0.0
      %353 = vadd.xlane.f32.xlu0 %v352
      %v354 = vpop.xlane.xlu0 %353
      %v355 = vsel %vm315, %v347, 0.0
      %356 = vadd.xlane.f32.xlu0 %v355
      %v357 = vpop.xlane.xlu0 %356
      %v358 = vsel %vm315, %v348, 0.0
      %359 = vadd.xlane.f32.xlu0 %v358
      %v360 = vpop.xlane.xlu0 %359
      %v361 = vadd.f32 %v351, %v354
      %v362 = vadd.f32 %v361, %v357
      %v363 = vadd.f32 %v362, %v360
      %v364 = vmul.f32 %v363, 0.00390625
      %v365 = vadd.f32 %v364, 1e-05
      %v366 = vrsqrt.pop %v365
      %368 = vset.pattern.permute.xlu0 0
      %369 = vperm.xlu0 %368, %v366
      %v370 = vpop.permute.xlu0 %369
      %v372 = vmul.f32 %v341, %v370
      %v373 = vmul.f32 %v342, %v370
      %v374 = vmul.f32 %v343, %v370
      %v375 = vmul.f32 %v344, %v370
      %v376 = vmax.f32 %v372, 0.0
      %v377 = vmax.f32 %v373, 0.0
      %v378 = vmax.f32 %v374, 0.0
      %v379 = vmax.f32 %v375, 0.0
      %v380 = vpack.c.bf16 %v377, %v376
      %v381 = vpack.c.bf16 %v379, %v378
      %v384 = vunpack.c.l.b16 %v380
      %v385 = vunpack.c.h.b16 %v380
      %v386 = vunpack.c.l.b16 %v381
      %v387 = vunpack.c.h.b16 %v381
      %v388 = vpack.c.b16 %v384, %v384
      %v389 = vpack.c.b16 %v385, %v385
      %v390 = vpack.c.b16 %v386, %v386
      %v391 = vpack.c.b16 %v387, %v387
      %vm396 = vcmask 584704
      %397 = vst.msk [vmem:[%s214] sm:$0xf] %vm396, %v388
      %398 = vst.msk [vmem:[%s214 + $0x4] sm:$0xf] %vm396, %v389
      %399 = vst.msk [vmem:[%s214 + $0x8] sm:$0xf] %vm396, %v390
      %400 = vst.msk [vmem:[%s214 + $0xc] sm:$0xf] %vm396, %v391
      %s401 = smul.u32 4, %s19
      %p402 = scmp.lt.s32.totalorder %s18, 1
      %s403 = scalar_select %p402, %s18, 1
      %p404 = scmp.lt.s32.totalorder %s401, 3
      %s405 = scalar_select %p404, %s401, 3
      %s406 = smul.addr %s403, 4
      %s407 = sadd.s32 %s405, %s406
      %s408 = smul.addr %s407, 4
      %s409 = scalar_lea.vmem %s3, %s408
      // Predicated region
      $region33: #{resnet_generator_forward.18} parent=31 // pred_check
        %p410 = pneg %p119
      $region34: #{resnet_generator_forward.18} parent=31 // pred_check_branch
        %412 = sbr.rel (%p410) target = $region36
      $region35: #{resnet_generator_forward.18} parent=31 // pred_region
        %s413 = smul.u32 4, %s19
      $region36: #{resnet_generator_forward.18} parent=31 // pred_fallthru
        _
    $region32: #{resnet_generator_forward.18} parent=5 // pred_fallthru
      _
    %p414 = scmp.le.s32.totalorder 2, %s9
    // Predicated region
    $region37: #{resnet_generator_forward.18} parent=5 // pred_check
      %p415 = pneg %p414
    $region38: #{resnet_generator_forward.18} parent=5 // pred_check_branch
      %417 = sbr.rel (%p415) target = $region40
    $region39: #{resnet_generator_forward.18} parent=5 // pred_region
      %s418 = ssub.s32 %s9, 2
      // Predicated region
      $region41: #{resnet_generator_forward.18} parent=39 // pred_check
        %p419 = pneg %p125
      $region42: #{resnet_generator_forward.18} parent=39 // pred_check_branch
        %421 = sbr.rel (%p419) target = $region44
      $region43: #{resnet_generator_forward.18} parent=39 // pred_region
        %s422 = smul.u32 4, %s21
        %p423 = scmp.lt.s32.totalorder %s20, 1
        %s424 = scalar_select %p423, %s20, 1
        %p425 = scmp.lt.s32.totalorder %s422, 3
        %s426 = scalar_select %p425, %s422, 3
        %s427 = smul.addr %s424, 4
        %s428 = sadd.s32 %s426, %s427
        %s429 = smul.addr %s428, 4
        %s430 = scalar_lea.vmem %s3, %s429
      $region44: #{resnet_generator_forward.18} parent=39 // pred_fallthru
        _
    $region40: #{resnet_generator_forward.18} parent=5 // pred_fallthru
      _
  $region6: #{resnet_generator_forward.18} parent=0 // loop_footer
    %s13 = sadd.s32 1, %s9
  $region7: #{resnet_generator_forward.18} parent=0 // loop_footer_branch
    %8 = sbr.rel target = $region3
  $region8: #{resnet_generator_forward.18} parent=0 // loop_exit
    _

// kernel: resnet_generator_forward.19
$region0: #{resnet_generator_forward.19}
  #allocation0 [shape = 'u32[]', space=smem, size = 0x4, offset = 0x4, fixed_abs, tag = 'smem constant byte address 0x4 - core index']
  #allocation1 [shape = 'u32[144,128]{1,0:T(1,128)}', space=vmem, size = 0x12000, scoped, tag = 'internal scratch']
  %s0 = inlined_call_operand.vmem [shape: bf16[2,16,506], index: 0, kind: input, shape index: {}]
  %s1 = inlined_call_operand.vmem [shape: bf16[3,784], index: 1, kind: input, shape index: {}]
  %s2 = inlined_call_operand.vmem [shape: f32[3,1], index: 2, kind: input, shape index: {}]
  %s3 = inlined_call_operand.vmem [shape: f32[2,3,352], index: 3, kind: output, shape index: {}]
  %s4 = sld [smem:[#allocation0]]
  $region45: #{resnet_generator_forward.19} parent=0
    _
  %s6 = ssub.s32 1, %s4
  %s7 = scalar_select 0, %s6, %s4
  loop: start=0, step=1, limit=4
  $region2: #{resnet_generator_forward.19} parent=0 // loop_pre_header
    _
  $region3: #{resnet_generator_forward.19} parent=0 // loop_header
    %s9 = sphi 0, %s13
    %p10 = scmp.ge.s32.totalorder %s9, 4
    %s16 = sphi 0, %s28
    %s17 = sphi 0, %s24
    %s18 = sphi 0, %s16
    %s19 = sphi 0, %s17
    %s20 = sphi 0, %s18
    %s21 = sphi 0, %s19
    %s31 = sphi 0, %s33
    %s34 = sphi 0, %s31
    %s35 = sphi 0, %s34
    %s51 = sphi 0, %s35
    %s57 = sphi 0, %s59
    %s60 = sphi 0, %s57
    %s61 = sphi 0, %s60
    %s77 = sphi 0, %s61
    %s83 = sphi 0, %s85
    %s86 = sphi 0, %s83
    %s87 = sphi 0, %s86
    %s103 = sphi 0, %s87
    %s111 = sphi 0, %s113
    %s114 = sphi 0, %s111
    %s115 = sphi 0, %s114
    %s131 = sphi 0, %s115
  $region4: #{resnet_generator_forward.19} parent=0 // loop_header_branch
    %12 = sbr.rel (%p10) target = $region8
  $region5: #{resnet_generator_forward.19} parent=0 // loop_body
    %s14 = ssub.s32 %s9, 1
    %s15 = ssub.s32 %s9, 2
    %s22 = sadd.s32 1, %s17
    %p23 = scmp.ge.s32.totalorder %s22, 1
    %s24 = scalar_select %p23, 0, %s22
    %s25 = sadd.s32 1, %s16
    %s26 = scalar_select %p23, %s25, %s16
    %p27 = scmp.ge.s32.totalorder %s26, 2
    %s28 = scalar_select %p27, 0, %s26
    %s29 = ssub.s32 %s16, %s28
    %p30 = scmp.eq.s32.totalorder %s29, 0
    %s32 = sadd.s32 %s31, 1
    %s33 = scalar_select %p30, %s31, %s32
    %p36 = pneg %p30
    %p37 = scmp.eq.s32.totalorder %s9, 1
    %p38 = por %p36, %p37
    %p39 = scmp.ne.s32.totalorder %s31, %s34
    %p40 = scmp.eq.s32.totalorder %s9, 0
    %p41 = por %p39, %p40
    %p42 = scmp.ne.s32.totalorder %s31, %s34
    %p43 = scmp.eq.s32.totalorder %s14, 1
    %p44 = por %p42, %p43
    %p45 = scmp.ne.s32.totalorder %s34, %s35
    %p46 = scmp.eq.s32.totalorder %s14, 0
    %p47 = por %p45, %p46
    %p48 = scmp.ne.s32.totalorder %s34, %s35
    %p49 = scmp.eq.s32.totalorder %s15, 1
    %p50 = por %p48, %p49
    %p52 = scmp.ne.s32.totalorder %s35, %s51
    %p53 = scmp.eq.s32.totalorder %s15, 0
    %p54 = por %p52, %p53
    %s55 = ssub.s32 %s17, %s24
    %p56 = scmp.eq.s32.totalorder %s55, 0
    %s58 = sadd.s32 %s57, 1
    %s59 = scalar_select %p56, %s57, %s58
    %p62 = pneg %p56
    %p63 = scmp.eq.s32.totalorder %s9, 1
    %p64 = por %p62, %p63
    %p65 = scmp.ne.s32.totalorder %s57, %s60
    %p66 = scmp.eq.s32.totalorder %s9, 0
    %p67 = por %p65, %p66
    %p68 = scmp.ne.s32.totalorder %s57, %s60
    %p69 = scmp.eq.s32.totalorder %s14, 1
    %p70 = por %p68, %p69
    %p71 = scmp.ne.s32.totalorder %s60, %s61
    %p72 = scmp.eq.s32.totalorder %s14, 0
    %p73 = por %p71, %p72
    %p74 = scmp.ne.s32.totalorder %s60, %s61
    %p75 = scmp.eq.s32.totalorder %s15, 1
    %p76 = por %p74, %p75
    %p78 = scmp.ne.s32.totalorder %s61, %s77
    %p79 = scmp.eq.s32.totalorder %s15, 0
    %p80 = por %p78, %p79
    %s81 = ssub.s32 %s17, %s24
    %p82 = scmp.eq.s32.totalorder %s81, 0
    %s84 = sadd.s32 %s83, 1
    %s85 = scalar_select %p82, %s83, %s84
    %p88 = pneg %p82
    %p89 = scmp.eq.s32.totalorder %s9, 1
    %p90 = por %p88, %p89
    %p91 = scmp.ne.s32.totalorder %s83, %s86
    %p92 = scmp.eq.s32.totalorder %s9, 0
    %p93 = por %p91, %p92
    %p94 = scmp.ne.s32.totalorder %s83, %s86
    %p95 = scmp.eq.s32.totalorder %s14, 1
    %p96 = por %p94, %p95
    %p97 = scmp.ne.s32.totalorder %s86, %s87
    %p98 = scmp.eq.s32.totalorder %s14, 0
    %p99 = por %p97, %p98
    %p100 = scmp.ne.s32.totalorder %s86, %s87
    %p101 = scmp.eq.s32.totalorder %s15, 1
    %p102 = por %p100, %p101
    %p104 = scmp.ne.s32.totalorder %s87, %s103
    %p105 = scmp.eq.s32.totalorder %s15, 0
    %p106 = por %p104, %p105
    %s107 = ssub.s32 %s16, %s28
    %s108 = ssub.s32 %s17, %s24
    %s109 = sor.u32 %s107, %s108
    %p110 = scmp.eq.s32.totalorder %s109, 0
    %s112 = sadd.s32 %s111, 1
    %s113 = scalar_select %p110, %s111, %s112
    %p116 = pneg %p110
    %p117 = scmp.eq.s32.totalorder %s9, 1
    %p118 = por %p116, %p117
    %p119 = scmp.ne.s32.totalorder %s111, %s114
    %p120 = scmp.eq.s32.totalorder %s9, 0
    %p121 = por %p119, %p120
    %p122 = scmp.ne.s32.totalorder %s111, %s114
    %p123 = scmp.eq.s32.totalorder %s14, 1
    %p124 = por %p122, %p123
    %p125 = scmp.ne.s32.totalorder %s114, %s115
    %p126 = scmp.eq.s32.totalorder %s14, 0
    %p127 = por %p125, %p126
    %p128 = scmp.ne.s32.totalorder %s114, %s115
    %p129 = scmp.eq.s32.totalorder %s15, 1
    %p130 = por %p128, %p129
    %p132 = scmp.ne.s32.totalorder %s115, %s131
    %p133 = scmp.eq.s32.totalorder %s15, 0
    %p134 = por %p132, %p133
    %p135 = scmp.le.s32.totalorder 1, %s9
    %p136 = scmp.lt.s32.totalorder %s9, 3
    %p137 = pnand %p135, %p136
    %p138 = pneg %p137
    // Predicated region
    $region9: #{resnet_generator_forward.19} parent=5 // pred_check
      _
    $region10: #{resnet_generator_forward.19} parent=5 // pred_check_branch
      %140 = sbr.rel (%p137) target = $region12
    $region11: #{resnet_generator_forward.19} parent=5 // pred_region
      %s141 = ssub.s32 %s9, 1
      // Predicated region
      $region13: #{resnet_generator_forward.19} parent=11 // pred_check
        %p142 = pneg %p73
      $region14: #{resnet_generator_forward.19} parent=11 // pred_check_branch
        %144 = sbr.rel (%p142) target = $region16
      $region15: #{resnet_generator_forward.19} parent=11 // pred_region
        %p145 = scmp.lt.s32.totalorder %s19, 0
        %s146 = scalar_select %p145, %s19, 0
        %s147 = smul.addr %s146, 7
        %s148 = smul.addr %s147, 2
        %s149 = scalar_lea.vmem %s1, %s148
      $region16: #{resnet_generator_forward.19} parent=11 // pred_fallthru
        _
      // Predicated region
      $region17: #{resnet_generator_forward.19} parent=11 // pred_check
        %p150 = pneg %p99
      $region18: #{resnet_generator_forward.19} parent=11 // pred_check_branch
        %152 = sbr.rel (%p150) target = $region20
      $region19: #{resnet_generator_forward.19} parent=11 // pred_region
        %p153 = scmp.lt.s32.totalorder %s19, 0
        %s154 = scalar_select %p153, %s19, 0
        %s155 = smul.addr %s154, 4
        %s156 = scalar_lea.vmem %s2, %s155
      $region20: #{resnet_generator_forward.19} parent=11 // pred_fallthru
        _
    $region12: #{resnet_generator_forward.19} parent=5 // pred_fallthru
      _
    %p157 = scmp.lt.s32.totalorder %s9, 2
    // Predicated region
    $region21: #{resnet_generator_forward.19} parent=5 // pred_check
      %p158 = pneg %p157
    $region22: #{resnet_generator_forward.19} parent=5 // pred_check_branch
      %160 = sbr.rel (%p158) target = $region24
    $region23: #{resnet_generator_forward.19} parent=5 // pred_region
      // Predicated region
      $region25: #{resnet_generator_forward.19} parent=23 // pred_check
        %p161 = pneg %p41
      $region26: #{resnet_generator_forward.19} parent=23 // pred_check_branch
        %163 = sbr.rel (%p161) target = $region28
      $region27: #{resnet_generator_forward.19} parent=23 // pred_region
        %p164 = scmp.lt.s32.totalorder %s16, 1
        %s165 = scalar_select %p164, %s16, 1
        %s166 = smul.addr %s165, 8
        %s167 = smul.addr %s166, 4
        %s168 = scalar_lea.vmem %s0, %s167
      $region28: #{resnet_generator_forward.19} parent=23 // pred_fallthru
        _
    $region24: #{resnet_generator_forward.19} parent=5 // pred_fallthru
      _
    %p169 = scmp.le.s32.totalorder 1, %s9
    %p170 = scmp.lt.s32.totalorder %s9, 3
    %p171 = pnand %p169, %p170
    %p172 = pneg %p171
    // Predicated region
    $region29: #{resnet_generator_forward.19} parent=5 // pred_check
      _
    $region30: #{resnet_generator_forward.19} parent=5 // pred_check_branch
      %174 = sbr.rel (%p171) target = $region32
    $region31: #{resnet_generator_forward.19} parent=5 // pred_region
      %s175 = ssub.s32 %s9, 1
      %p176 = scmp.lt.s32.totalorder %s18, 1
      %s177 = scalar_select %p176, %s18, 1
      %s178 = smul.addr %s177, 8
      %s179 = smul.addr %s178, 4
      %s180 = scalar_lea.vmem %s0, %s179
      %p181 = pneg %p47
      %p182 = pneg %p44
      %p183 = scmp.lt.s32.totalorder %s19, 0
      %s184 = scalar_select %p183, %s19, 0
      %s185 = smul.addr %s184, 7
      %s186 = smul.addr %s185, 2
      %s187 = scalar_lea.vmem %s1, %s186
      %p188 = pneg %p73
      %p189 = pneg %p70
      %p190 = scmp.lt.s32.totalorder %s19, 0
      %s191 = scalar_select %p190, %s19, 0
      %s192 = smul.addr %s191, 4
      %s193 = scalar_lea.vmem %s2, %s192
      %p194 = pneg %p99
      %p195 = pneg %p96
      %p196 = pneg %p127
      %p197 = pneg %p124
      %p198 = scmp.lt.s32.totalorder %s18, 1
      %s199 = scalar_select %p198, %s18, 1
      %p200 = scmp.lt.s32.totalorder %s19, 0
      %s201 = scalar_select %p200, %s19, 0
      %s202 = smul.addr %s201, 3
      %s203 = smul.addr %s199, 3
      %s204 = sadd.s32 %s202, %s203
      %s205 = smul.addr %s204, 4
      %s206 = scalar_lea.vmem %s3, %s205
      %p207 = scmp.lt.s32.totalorder %s18, 1
      %s208 = scalar_select %p207, %s18, 1
      %s209 = smul.addr %s208, 8
      %s210 = smul.addr %s209, 4
      %s211 = scalar_lea.vmem %s0, %s210
      %p212 = scmp.lt.s32.totalorder %s19, 0
      %s213 = scalar_select %p212, %s19, 0
      %s214 = smul.addr %s213, 7
      %s215 = smul.addr %s214, 2
      %s216 = scalar_lea.vmem %s1, %s215
      %p217 = scmp.lt.s32.totalorder %s19, 0
      %s218 = scalar_select %p217, %s19, 0
      %s219 = smul.addr %s218, 4
      %s220 = scalar_lea.vmem %s2, %s219
      %p221 = scmp.lt.s32.totalorder %s18, 1
      %s222 = scalar_select %p221, %s18, 1
      %p223 = scmp.lt.s32.totalorder %s19, 0
      %s224 = scalar_select %p223, %s19, 0
      %s225 = smul.addr %s224, 3
      %s226 = smul.addr %s222, 3
      %s227 = sadd.s32 %s225, %s226
      %s228 = smul.addr %s227, 4
      %s229 = scalar_lea.vmem %s3, %s228
      %v231 = vld [vmem:[%s211] sm:$0xff]
      %v232 = vld [vmem:[%s211 + $0x8] sm:$0xff]
      %v233 = vld [vmem:[%s211 + $0x10] sm:$0xff]
      %v234 = vld [vmem:[%s211 + $0x18] sm:$0xff]
      %v239 = vunpack.c.l.b16 %v231
      %v240 = vunpack.c.h.b16 %v231
      %v241 = vunpack.c.l.b16 %v232
      %v242 = vunpack.c.l.b16 %v233
      %v243 = vunpack.c.h.b16 %v233
      %v244 = vunpack.c.l.b16 %v234
      %v245 = vpack.c.b16 %v242, %v239
      %v246 = vpack.c.b16 %v243, %v240
      %v247 = vpack.c.b16 %v244, %v241
      %251 = vrot.lane.b32.xlu0 %v245, 127
      %v252 = vpop.permute.xlu0 %251
      %253 = vrot.lane.b32.xlu0 %v246, 127
      %v254 = vpop.permute.xlu0 %253
      %255 = vrot.lane.b32.xlu0 %v247, 127
      %v256 = vpop.permute.xlu0 %255
      %vm257 = vcmask 1039360
      %v258 = vsel %vm257, %v252, %v254
      %v259 = vsel %vm257, %v254, %v256
      %263 = vrot.lane.b32.xlu0 %v245, 126
      %v264 = vpop.permute.xlu0 %263
      %265 = vrot.lane.b32.xlu0 %v246, 126
      %v266 = vpop.permute.xlu0 %265
      %267 = vrot.lane.b32.xlu0 %v247, 126
      %v268 = vpop.permute.xlu0 %267
      %vm269 = vcmask 1031168
      %v270 = vsel %vm269, %v264, %v266
      %v271 = vsel %vm269, %v266, %v268
      %275 = vrot.lane.b32.xlu0 %v245, 125
      %v276 = vpop.permute.xlu0 %275
      %277 = vrot.lane.b32.xlu0 %v246, 125
      %v278 = vpop.permute.xlu0 %277
      %279 = vrot.lane.b32.xlu0 %v247, 125
      %v280 = vpop.permute.xlu0 %279
      %vm281 = vcmask 1022976
      %v282 = vsel %vm281, %v276, %v278
      %v283 = vsel %vm281, %v278, %v280
      %287 = vrot.lane.b32.xlu0 %v245, 124
      %v288 = vpop.permute.xlu0 %287
      %289 = vrot.lane.b32.xlu0 %v246, 124
      %v290 = vpop.permute.xlu0 %289
      %291 = vrot.lane.b32.xlu0 %v247, 124
      %v292 = vpop.permute.xlu0 %291
      %vm293 = vcmask 1014784
      %v294 = vsel %vm293, %v288, %v290
      %v295 = vsel %vm293, %v290, %v292
      %299 = vrot.lane.b32.xlu0 %v245, 123
      %v300 = vpop.permute.xlu0 %299
      %301 = vrot.lane.b32.xlu0 %v246, 123
      %v302 = vpop.permute.xlu0 %301
      %303 = vrot.lane.b32.xlu0 %v247, 123
      %v304 = vpop.permute.xlu0 %303
      %vm305 = vcmask 1006592
      %v306 = vsel %vm305, %v300, %v302
      %v307 = vsel %vm305, %v302, %v304
      %311 = vrot.lane.b32.xlu0 %v245, 122
      %v312 = vpop.permute.xlu0 %311
      %313 = vrot.lane.b32.xlu0 %v246, 122
      %v314 = vpop.permute.xlu0 %313
      %315 = vrot.lane.b32.xlu0 %v247, 122
      %v316 = vpop.permute.xlu0 %315
      %vm317 = vcmask 998400
      %v318 = vsel %vm317, %v312, %v314
      %v319 = vsel %vm317, %v314, %v316
      %323 = vrot.lane.b32.xlu0 %v245, 106
      %v324 = vpop.permute.xlu0 %323
      %325 = vrot.lane.b32.xlu0 %v246, 106
      %v326 = vpop.permute.xlu0 %325
      %327 = vrot.lane.b32.xlu0 %v247, 106
      %v328 = vpop.permute.xlu0 %327
      %vm329 = vcmask 867328
      %v330 = vsel %vm329, %v324, %v326
      %v331 = vsel %vm329, %v326, %v328
      %335 = vrot.lane.b32.xlu0 %v245, 105
      %v336 = vpop.permute.xlu0 %335
      %337 = vrot.lane.b32.xlu0 %v246, 105
      %v338 = vpop.permute.xlu0 %337
      %339 = vrot.lane.b32.xlu0 %v247, 105
      %v340 = vpop.permute.xlu0 %339
      %vm341 = vcmask 859136
      %v342 = vsel %vm341, %v336, %v338
      %v343 = vsel %vm341, %v338, %v340
      %347 = vrot.lane.b32.xlu0 %v245, 104
      %v348 = vpop.permute.xlu0 %347
      %349 = vrot.lane.b32.xlu0 %v246, 104
      %v350 = vpop.permute.xlu0 %349
      %351 = vrot.lane.b32.xlu0 %v247, 104
      %v352 = vpop.permute.xlu0 %351
      %vm353 = vcmask 850944
      %v354 = vsel %vm353, %v348, %v350
      %v355 = vsel %vm353, %v350, %v352
      %359 = vrot.lane.b32.xlu0 %v245, 103
      %v360 = vpop.permute.xlu0 %359
      %361 = vrot.lane.b32.xlu0 %v246, 103
      %v362 = vpop.permute.xlu0 %361
      %363 = vrot.lane.b32.xlu0 %v247, 103
      %v364 = vpop.permute.xlu0 %363
      %vm365 = vcmask 842752
      %v366 = vsel %vm365, %v360, %v362
      %v367 = vsel %vm365, %v362, %v364
      %371 = vrot.lane.b32.xlu0 %v245, 102
      %v372 = vpop.permute.xlu0 %371
      %373 = vrot.lane.b32.xlu0 %v246, 102
      %v374 = vpop.permute.xlu0 %373
      %375 = vrot.lane.b32.xlu0 %v247, 102
      %v376 = vpop.permute.xlu0 %375
      %vm377 = vcmask 834560
      %v378 = vsel %vm377, %v372, %v374
      %v379 = vsel %vm377, %v374, %v376
      %383 = vrot.lane.b32.xlu0 %v245, 101
      %v384 = vpop.permute.xlu0 %383
      %385 = vrot.lane.b32.xlu0 %v246, 101
      %v386 = vpop.permute.xlu0 %385
      %387 = vrot.lane.b32.xlu0 %v247, 101
      %v388 = vpop.permute.xlu0 %387
      %vm389 = vcmask 826368
      %v390 = vsel %vm389, %v384, %v386
      %v391 = vsel %vm389, %v386, %v388
      %395 = vrot.lane.b32.xlu0 %v245, 100
      %v396 = vpop.permute.xlu0 %395
      %397 = vrot.lane.b32.xlu0 %v246, 100
      %v398 = vpop.permute.xlu0 %397
      %399 = vrot.lane.b32.xlu0 %v247, 100
      %v400 = vpop.permute.xlu0 %399
      %vm401 = vcmask 818176
      %v402 = vsel %vm401, %v396, %v398
      %v403 = vsel %vm401, %v398, %v400
      %v407 = vunpack.c.h.b16 %v232
      %v408 = vunpack.c.h.b16 %v234
      %v409 = vpack.c.b16 %v408, %v407
      %410 = vrot.lane.b32.xlu0 %v245, 84
      %v411 = vpop.permute.xlu0 %410
      %412 = vrot.lane.b32.xlu0 %v246, 84
      %v413 = vpop.permute.xlu0 %412
      %414 = vrot.lane.b32.xlu0 %v247, 84
      %v415 = vpop.permute.xlu0 %414
      %416 = vrot.lane.b32.xlu0 %v409, 84
      %v417 = vpop.permute.xlu0 %416
      %vm418 = vcmask 687104
      %v419 = vsel %vm418, %v411, %v413
      %v420 = vsel %vm418, %v413, %v415
      %v421 = vsel %vm418, %v415, %v417
      %425 = vrot.lane.b32.xlu0 %v245, 83
      %v426 = vpop.permute.xlu0 %425
      %427 = vrot.lane.b32.xlu0 %v246, 83
      %v428 = vpop.permute.xlu0 %427
      %429 = vrot.lane.b32.xlu0 %v247, 83
      %v430 = vpop.permute.xlu0 %429
      %431 = vrot.lane.b32.xlu0 %v409, 83
      %v432 = vpop.permute.xlu0 %431
      %vm433 = vcmask 678912
      %v434 = vsel %vm433, %v426, %v428
      %v435 = vsel %vm433, %v428, %v430
      %v436 = vsel %vm433, %v430, %v432
      %440 = vrot.lane.b32.xlu0 %v409, 127
      %v441 = vpop.permute.xlu0 %440
      %v442 = vsel %vm257, %v256, %v441
      %443 = vrot.lane.b32.xlu0 %v409, 126
      %v444 = vpop.permute.xlu0 %443
      %v445 = vsel %vm269, %v268, %v444
      %446 = vrot.lane.b32.xlu0 %v409, 125
      %v447 = vpop.permute.xlu0 %446
      %v448 = vsel %vm281, %v280, %v447
      %449 = vrot.lane.b32.xlu0 %v409, 124
      %v450 = vpop.permute.xlu0 %449
      %v451 = vsel %vm293, %v292, %v450
      %452 = vrot.lane.b32.xlu0 %v245, 108
      %v453 = vpop.permute.xlu0 %452
      %454 = vrot.lane.b32.xlu0 %v246, 108
      %v455 = vpop.permute.xlu0 %454
      %456 = vrot.lane.b32.xlu0 %v247, 108
      %v457 = vpop.permute.xlu0 %456
      %458 = vrot.lane.b32.xlu0 %v409, 108
      %v459 = vpop.permute.xlu0 %458
      %vm460 = vcmask 883712
      %v461 = vsel %vm460, %v453, %v455
      %v462 = vsel %vm460, %v455, %v457
      %v463 = vsel %vm460, %v457, %v459
      %464 = vrot.lane.b32.xlu0 %v245, 107
      %v465 = vpop.permute.xlu0 %464
      %466 = vrot.lane.b32.xlu0 %v246, 107
      %v467 = vpop.permute.xlu0 %466
      %468 = vrot.lane.b32.xlu0 %v247, 107
      %v469 = vpop.permute.xlu0 %468
      %470 = vrot.lane.b32.xlu0 %v409, 107
      %v471 = vpop.permute.xlu0 %470
      %vm472 = vcmask 875520
      %v473 = vsel %vm472, %v465, %v467
      %v474 = vsel %vm472, %v467, %v469
      %v475 = vsel %vm472, %v469, %v471
      %476 = vrot.lane.b32.xlu0 %v409, 106
      %v477 = vpop.permute.xlu0 %476
      %v478 = vsel %vm329, %v328, %v477
      %479 = vrot.lane.b32.xlu0 %v409, 105
      %v480 = vpop.permute.xlu0 %479
      %v481 = vsel %vm341, %v340, %v480
      %482 = vrot.lane.b32.xlu0 %v409, 104
      %v483 = vpop.permute.xlu0 %482
      %v484 = vsel %vm353, %v352, %v483
      %485 = vrot.lane.b32.xlu0 %v409, 103
      %v486 = vpop.permute.xlu0 %485
      %v487 = vsel %vm365, %v364, %v486
      %488 = vrot.lane.b32.xlu0 %v409, 102
      %v489 = vpop.permute.xlu0 %488
      %v490 = vsel %vm377, %v376, %v489
      %491 = vrot.lane.b32.xlu0 %v245, 86
      %v492 = vpop.permute.xlu0 %491
      %493 = vrot.lane.b32.xlu0 %v246, 86
      %v494 = vpop.permute.xlu0 %493
      %495 = vrot.lane.b32.xlu0 %v247, 86
      %v496 = vpop.permute.xlu0 %495
      %497 = vrot.lane.b32.xlu0 %v409, 86
      %v498 = vpop.permute.xlu0 %497
      %vm499 = vcmask 703488
      %v500 = vsel %vm499, %v492, %v494
      %v501 = vsel %vm499, %v494, %v496
      %v502 = vsel %vm499, %v496, %v498
      %503 = vrot.lane.b32.xlu0 %v245, 85
      %v504 = vpop.permute.xlu0 %503
      %505 = vrot.lane.b32.xlu0 %v246, 85
      %v506 = vpop.permute.xlu0 %505
      %507 = vrot.lane.b32.xlu0 %v247, 85
      %v508 = vpop.permute.xlu0 %507
      %509 = vrot.lane.b32.xlu0 %v409, 85
      %v510 = vpop.permute.xlu0 %509
      %vm511 = vcmask 695296
      %v512 = vsel %vm511, %v504, %v506
      %v513 = vsel %vm511, %v506, %v508
      %v514 = vsel %vm511, %v508, %v510
      %515 = vrot.lane.b32.xlu0 %v245, 110
      %v516 = vpop.permute.xlu0 %515
      %517 = vrot.lane.b32.xlu0 %v246, 110
      %v518 = vpop.permute.xlu0 %517
      %519 = vrot.lane.b32.xlu0 %v247, 110
      %v520 = vpop.permute.xlu0 %519
      %521 = vrot.lane.b32.xlu0 %v409, 110
      %v522 = vpop.permute.xlu0 %521
      %vm523 = vcmask 900096
      %v524 = vsel %vm523, %v516, %v518
      %v525 = vsel %vm523, %v518, %v520
      %v526 = vsel %vm523, %v520, %v522
      %527 = vrot.lane.b32.xlu0 %v245, 109
      %v528 = vpop.permute.xlu0 %527
      %529 = vrot.lane.b32.xlu0 %v246, 109
      %v530 = vpop.permute.xlu0 %529
      %531 = vrot.lane.b32.xlu0 %v247, 109
      %v532 = vpop.permute.xlu0 %531
      %533 = vrot.lane.b32.xlu0 %v409, 109
      %v534 = vpop.permute.xlu0 %533
      %vm535 = vcmask 891904
      %v536 = vsel %vm535, %v528, %v530
      %v537 = vsel %vm535, %v530, %v532
      %v538 = vsel %vm535, %v532, %v534
      %539 = vrot.lane.b32.xlu0 %v246, 88
      %v540 = vpop.permute.xlu0 %539
      %541 = vrot.lane.b32.xlu0 %v247, 88
      %v542 = vpop.permute.xlu0 %541
      %543 = vrot.lane.b32.xlu0 %v409, 88
      %v544 = vpop.permute.xlu0 %543
      %vm545 = vcmask 719872
      %v546 = vsel %vm545, %v540, %v542
      %v547 = vsel %vm545, %v542, %v544
      %548 = vrot.lane.b32.xlu0 %v246, 87
      %v549 = vpop.permute.xlu0 %548
      %550 = vrot.lane.b32.xlu0 %v247, 87
      %v551 = vpop.permute.xlu0 %550
      %552 = vrot.lane.b32.xlu0 %v409, 87
      %v553 = vpop.permute.xlu0 %552
      %vm554 = vcmask 711680
      %v555 = vsel %vm554, %v549, %v551
      %v556 = vsel %vm554, %v551, %v553
      %557 = vrot.lane.b32.xlu0 %v245, 82
      %v558 = vpop.permute.xlu0 %557
      %559 = vrot.lane.b32.xlu0 %v246, 82
      %v560 = vpop.permute.xlu0 %559
      %561 = vrot.lane.b32.xlu0 %v247, 82
      %v562 = vpop.permute.xlu0 %561
      %563 = vrot.lane.b32.xlu0 %v409, 82
      %v564 = vpop.permute.xlu0 %563
      %565 = vrot.lane.b32.xlu0 %v258, 82
      %v566 = vpop.permute.xlu0 %565
      %567 = vrot.lane.b32.xlu0 %v259, 82
      %v568 = vpop.permute.xlu0 %567
      %569 = vrot.lane.b32.xlu0 %v442, 82
      %v570 = vpop.permute.xlu0 %569
      %571 = vrot.lane.b32.xlu0 %v441, 82
      %v572 = vpop.permute.xlu0 %571
      %573 = vrot.lane.b32.xlu0 %v270, 82
      %v574 = vpop.permute.xlu0 %573
      %575 = vrot.lane.b32.xlu0 %v271, 82
      %v576 = vpop.permute.xlu0 %575
      %577 = vrot.lane.b32.xlu0 %v445, 82
      %v578 = vpop.permute.xlu0 %577
      %579 = vrot.lane.b32.xlu0 %v444, 82
      %v580 = vpop.permute.xlu0 %579
      %581 = vrot.lane.b32.xlu0 %v282, 82
      %v582 = vpop.permute.xlu0 %581
      %583 = vrot.lane.b32.xlu0 %v283, 82
      %v584 = vpop.permute.xlu0 %583
      %585 = vrot.lane.b32.xlu0 %v448, 82
      %v586 = vpop.permute.xlu0 %585
      %587 = vrot.lane.b32.xlu0 %v447, 82
      %v588 = vpop.permute.xlu0 %587
      %589 = vrot.lane.b32.xlu0 %v294, 82
      %v590 = vpop.permute.xlu0 %589
      %591 = vrot.lane.b32.xlu0 %v295, 82
      %v592 = vpop.permute.xlu0 %591
      %593 = vrot.lane.b32.xlu0 %v451, 82
      %v594 = vpop.permute.xlu0 %593
      %595 = vrot.lane.b32.xlu0 %v450, 82
      %v596 = vpop.permute.xlu0 %595
      %597 = vrot.lane.b32.xlu0 %v461, 82
      %v598 = vpop.permute.xlu0 %597
      %599 = vrot.lane.b32.xlu0 %v462, 82
      %v600 = vpop.permute.xlu0 %599
      %601 = vrot.lane.b32.xlu0 %v463, 82
      %v602 = vpop.permute.xlu0 %601
      %603 = vrot.lane.b32.xlu0 %v459, 82
      %v604 = vpop.permute.xlu0 %603
      %605 = vrot.lane.b32.xlu0 %v473, 82
      %v606 = vpop.permute.xlu0 %605
      %607 = vrot.lane.b32.xlu0 %v474, 82
      %v608 = vpop.permute.xlu0 %607
      %609 = vrot.lane.b32.xlu0 %v475, 82
      %v610 = vpop.permute.xlu0 %609
      %611 = vrot.lane.b32.xlu0 %v471, 82
      %v612 = vpop.permute.xlu0 %611
      %613 = vrot.lane.b32.xlu0 %v330, 82
      %v614 = vpop.permute.xlu0 %613
      %615 = vrot.lane.b32.xlu0 %v331, 82
      %v616 = vpop.permute.xlu0 %615
      %617 = vrot.lane.b32.xlu0 %v478, 82
      %v618 = vpop.permute.xlu0 %617
      %619 = vrot.lane.b32.xlu0 %v477, 82
      %v620 = vpop.permute.xlu0 %619
      %621 = vrot.lane.b32.xlu0 %v342, 82
      %v622 = vpop.permute.xlu0 %621
      %623 = vrot.lane.b32.xlu0 %v343, 82
      %v624 = vpop.permute.xlu0 %623
      %625 = vrot.lane.b32.xlu0 %v481, 82
      %v626 = vpop.permute.xlu0 %625
      %627 = vrot.lane.b32.xlu0 %v480, 82
      %v628 = vpop.permute.xlu0 %627
      %629 = vrot.lane.b32.xlu0 %v354, 82
      %v630 = vpop.permute.xlu0 %629
      %631 = vrot.lane.b32.xlu0 %v355, 82
      %v632 = vpop.permute.xlu0 %631
      %633 = vrot.lane.b32.xlu0 %v484, 82
      %v634 = vpop.permute.xlu0 %633
      %635 = vrot.lane.b32.xlu0 %v483, 82
      %v636 = vpop.permute.xlu0 %635
      %637 = vrot.lane.b32.xlu0 %v366, 82
      %v638 = vpop.permute.xlu0 %637
      %639 = vrot.lane.b32.xlu0 %v367, 82
      %v640 = vpop.permute.xlu0 %639
      %641 = vrot.lane.b32.xlu0 %v487, 82
      %v642 = vpop.permute.xlu0 %641
      %643 = vrot.lane.b32.xlu0 %v486, 82
      %v644 = vpop.permute.xlu0 %643
      %645 = vrot.lane.b32.xlu0 %v378, 82
      %v646 = vpop.permute.xlu0 %645
      %647 = vrot.lane.b32.xlu0 %v379, 82
      %v648 = vpop.permute.xlu0 %647
      %649 = vrot.lane.b32.xlu0 %v490, 82
      %v650 = vpop.permute.xlu0 %649
      %651 = vrot.lane.b32.xlu0 %v489, 82
      %v652 = vpop.permute.xlu0 %651
      %653 = vrot.lane.b32.xlu0 %v500, 82
      %v654 = vpop.permute.xlu0 %653
      %655 = vrot.lane.b32.xlu0 %v501, 82
      %v656 = vpop.permute.xlu0 %655
      %657 = vrot.lane.b32.xlu0 %v502, 82
      %v658 = vpop.permute.xlu0 %657
      %659 = vrot.lane.b32.xlu0 %v498, 82
      %v660 = vpop.permute.xlu0 %659
      %661 = vrot.lane.b32.xlu0 %v512, 82
      %v662 = vpop.permute.xlu0 %661
      %663 = vrot.lane.b32.xlu0 %v513, 82
      %v664 = vpop.permute.xlu0 %663
      %665 = vrot.lane.b32.xlu0 %v514, 82
      %v666 = vpop.permute.xlu0 %665
      %667 = vrot.lane.b32.xlu0 %v510, 82
      %v668 = vpop.permute.xlu0 %667
      %669 = vrot.lane.b32.xlu0 %v419, 82
      %v670 = vpop.permute.xlu0 %669
      %671 = vrot.lane.b32.xlu0 %v420, 82
      %v672 = vpop.permute.xlu0 %671
      %673 = vrot.lane.b32.xlu0 %v421, 82
      %v674 = vpop.permute.xlu0 %673
      %675 = vrot.lane.b32.xlu0 %v417, 82
      %v676 = vpop.permute.xlu0 %675
      %677 = vrot.lane.b32.xlu0 %v434, 82
      %v678 = vpop.permute.xlu0 %677
      %679 = vrot.lane.b32.xlu0 %v435, 82
      %v680 = vpop.permute.xlu0 %679
      %681 = vrot.lane.b32.xlu0 %v436, 82
      %v682 = vpop.permute.xlu0 %681
      %683 = vrot.lane.b32.xlu0 %v432, 82
      %v684 = vpop.permute.xlu0 %683
      %vm685 = vcmask 670720
      %v686 = vsel %vm685, %v558, %v560
      %v687 = vsel %vm685, %v560, %v562
      %v688 = vsel %vm685, %v562, %v564
      %v689 = vsel %vm685, %v566, %v568
      %v690 = vsel %vm685, %v568, %v570
      %v691 = vsel %vm685, %v570, %v572
      %v692 = vsel %vm685, %v574, %v576
      %v693 = vsel %vm685, %v576, %v578
      %v694 = vsel %vm685, %v578, %v580
      %v695 = vsel %vm685, %v582, %v584
      %v696 = vsel %vm685, %v584, %v586
      %v697 = vsel %vm685, %v586, %v588
      %v698 = vsel %vm685, %v590, %v592
      %v699 = vsel %vm685, %v592, %v594
      %v700 = vsel %vm685, %v594, %v596
      %v701 = vsel %vm685, %v598, %v600
      %v702 = vsel %vm685, %v600, %v602
      %v703 = vsel %vm685, %v602, %v604
      %v704 = vsel %vm685, %v606, %v608
      %v705 = vsel %vm685, %v608, %v610
      %v706 = vsel %vm685, %v610, %v612
      %v707 = vsel %vm685, %v614, %v616
      %v708 = vsel %vm685, %v616, %v618
      %v709 = vsel %vm685, %v618, %v620
      %v710 = vsel %vm685, %v622, %v624
      %v711 = vsel %vm685, %v624, %v626
      %v712 = vsel %vm685, %v626, %v628
      %v713 = vsel %vm685, %v630, %v632
      %v714 = vsel %vm685, %v632, %v634
      %v715 = vsel %vm685, %v634, %v636
      %v716 = vsel %vm685, %v638, %v640
      %v717 = vsel %vm685, %v640, %v642
      %v718 = vsel %vm685, %v642, %v644
      %v719 = vsel %vm685, %v646, %v648
      %v720 = vsel %vm685, %v648, %v650
      %v721 = vsel %vm685, %v650, %v652
      %v722 = vsel %vm685, %v654, %v656
      %v723 = vsel %vm685, %v656, %v658
      %v724 = vsel %vm685, %v658, %v660
      %v725 = vsel %vm685, %v662, %v664
      %v726 = vsel %vm685, %v664, %v666
      %v727 = vsel %vm685, %v666, %v668
      %v728 = vsel %vm685, %v670, %v672
      %v729 = vsel %vm685, %v672, %v674
      %v730 = vsel %vm685, %v674, %v676
      %v731 = vsel %vm685, %v678, %v680
      %v732 = vsel %vm685, %v680, %v682
      %v733 = vsel %vm685, %v682, %v684
      %782 = vrot.lane.b32.xlu0 %v245, 36
      %v783 = vpop.permute.xlu0 %782
      %784 = vrot.lane.b32.xlu0 %v246, 36
      %v785 = vpop.permute.xlu0 %784
      %786 = vrot.lane.b32.xlu0 %v247, 36
      %v787 = vpop.permute.xlu0 %786
      %788 = vrot.lane.b32.xlu0 %v409, 36
      %v789 = vpop.permute.xlu0 %788
      %790 = vrot.lane.b32.xlu0 %v258, 36
      %v791 = vpop.permute.xlu0 %790
      %792 = vrot.lane.b32.xlu0 %v259, 36
      %v793 = vpop.permute.xlu0 %792
      %794 = vrot.lane.b32.xlu0 %v442, 36
      %v795 = vpop.permute.xlu0 %794
      %796 = vrot.lane.b32.xlu0 %v441, 36
      %v797 = vpop.permute.xlu0 %796
      %798 = vrot.lane.b32.xlu0 %v270, 36
      %v799 = vpop.permute.xlu0 %798
      %800 = vrot.lane.b32.xlu0 %v271, 36
      %v801 = vpop.permute.xlu0 %800
      %802 = vrot.lane.b32.xlu0 %v445, 36
      %v803 = vpop.permute.xlu0 %802
      %804 = vrot.lane.b32.xlu0 %v444, 36
      %v805 = vpop.permute.xlu0 %804
      %806 = vrot.lane.b32.xlu0 %v524, 36
      %v807 = vpop.permute.xlu0 %806
      %808 = vrot.lane.b32.xlu0 %v525, 36
      %v809 = vpop.permute.xlu0 %808
      %810 = vrot.lane.b32.xlu0 %v526, 36
      %v811 = vpop.permute.xlu0 %810
      %812 = vrot.lane.b32.xlu0 %v522, 36
      %v813 = vpop.permute.xlu0 %812
      %814 = vrot.lane.b32.xlu0 %v536, 36
      %v815 = vpop.permute.xlu0 %814
      %816 = vrot.lane.b32.xlu0 %v537, 36
      %v817 = vpop.permute.xlu0 %816
      %818 = vrot.lane.b32.xlu0 %v538, 36
      %v819 = vpop.permute.xlu0 %818
      %820 = vrot.lane.b32.xlu0 %v534, 36
      %v821 = vpop.permute.xlu0 %820
      %822 = vrot.lane.b32.xlu0 %v461, 36
      %v823 = vpop.permute.xlu0 %822
      %824 = vrot.lane.b32.xlu0 %v462, 36
      %v825 = vpop.permute.xlu0 %824
      %826 = vrot.lane.b32.xlu0 %v463, 36
      %v827 = vpop.permute.xlu0 %826
      %828 = vrot.lane.b32.xlu0 %v459, 36
      %v829 = vpop.permute.xlu0 %828
      %830 = vrot.lane.b32.xlu0 %v473, 36
      %v831 = vpop.permute.xlu0 %830
      %832 = vrot.lane.b32.xlu0 %v474, 36
      %v833 = vpop.permute.xlu0 %832
      %834 = vrot.lane.b32.xlu0 %v475, 36
      %v835 = vpop.permute.xlu0 %834
      %836 = vrot.lane.b32.xlu0 %v471, 36
      %v837 = vpop.permute.xlu0 %836
      %838 = vrot.lane.b32.xlu0 %v330, 36
      %v839 = vpop.permute.xlu0 %838
      %840 = vrot.lane.b32.xlu0 %v331, 36
      %v841 = vpop.permute.xlu0 %840
      %842 = vrot.lane.b32.xlu0 %v478, 36
      %v843 = vpop.permute.xlu0 %842
      %844 = vrot.lane.b32.xlu0 %v477, 36
      %v845 = vpop.permute.xlu0 %844
      %846 = vrot.lane.b32.xlu0 %v342, 36
      %v847 = vpop.permute.xlu0 %846
      %848 = vrot.lane.b32.xlu0 %v343, 36
      %v849 = vpop.permute.xlu0 %848
      %850 = vrot.lane.b32.xlu0 %v481, 36
      %v851 = vpop.permute.xlu0 %850
      %852 = vrot.lane.b32.xlu0 %v480, 36
      %v853 = vpop.permute.xlu0 %852
      %854 = vrot.lane.b32.xlu0 %v354, 36
      %v855 = vpop.permute.xlu0 %854
      %856 = vrot.lane.b32.xlu0 %v355, 36
      %v857 = vpop.permute.xlu0 %856
      %858 = vrot.lane.b32.xlu0 %v484, 36
      %v859 = vpop.permute.xlu0 %858
      %860 = vrot.lane.b32.xlu0 %v483, 36
      %v861 = vpop.permute.xlu0 %860
      %862 = vrot.lane.b32.xlu0 %v540, 36
      %v863 = vpop.permute.xlu0 %862
      %864 = vrot.lane.b32.xlu0 %v546, 36
      %v865 = vpop.permute.xlu0 %864
      %866 = vrot.lane.b32.xlu0 %v547, 36
      %v867 = vpop.permute.xlu0 %866
      %868 = vrot.lane.b32.xlu0 %v544, 36
      %v869 = vpop.permute.xlu0 %868
      %870 = vrot.lane.b32.xlu0 %v549, 36
      %v871 = vpop.permute.xlu0 %870
      %872 = vrot.lane.b32.xlu0 %v555, 36
      %v873 = vpop.permute.xlu0 %872
      %874 = vrot.lane.b32.xlu0 %v556, 36
      %v875 = vpop.permute.xlu0 %874
      %876 = vrot.lane.b32.xlu0 %v553, 36
      %v877 = vpop.permute.xlu0 %876
      %878 = vrot.lane.b32.xlu0 %v494, 36
      %v879 = vpop.permute.xlu0 %878
      %880 = vrot.lane.b32.xlu0 %v501, 36
      %v881 = vpop.permute.xlu0 %880
      %882 = vrot.lane.b32.xlu0 %v502, 36
      %v883 = vpop.permute.xlu0 %882
      %884 = vrot.lane.b32.xlu0 %v498, 36
      %v885 = vpop.permute.xlu0 %884
      %886 = vrot.lane.b32.xlu0 %v506, 36
      %v887 = vpop.permute.xlu0 %886
      %888 = vrot.lane.b32.xlu0 %v513, 36
      %v889 = vpop.permute.xlu0 %888
      %890 = vrot.lane.b32.xlu0 %v514, 36
      %v891 = vpop.permute.xlu0 %890
      %892 = vrot.lane.b32.xlu0 %v510, 36
      %v893 = vpop.permute.xlu0 %892
      %894 = vrot.lane.b32.xlu0 %v413, 36
      %v895 = vpop.permute.xlu0 %894
      %896 = vrot.lane.b32.xlu0 %v420, 36
      %v897 = vpop.permute.xlu0 %896
      %898 = vrot.lane.b32.xlu0 %v421, 36
      %v899 = vpop.permute.xlu0 %898
      %900 = vrot.lane.b32.xlu0 %v417, 36
      %v901 = vpop.permute.xlu0 %900
      %902 = vrot.lane.b32.xlu0 %v428, 36
      %v903 = vpop.permute.xlu0 %902
      %904 = vrot.lane.b32.xlu0 %v435, 36
      %v905 = vpop.permute.xlu0 %904
      %906 = vrot.lane.b32.xlu0 %v436, 36
      %v907 = vpop.permute.xlu0 %906
      %908 = vrot.lane.b32.xlu0 %v432, 36
      %v909 = vpop.permute.xlu0 %908
      %vm910 = vcmask 293888
      %v911 = vsel %vm910, %v783, %v785
      %v912 = vsel %vm910, %v785, %v787
      %v913 = vsel %vm910, %v787, %v789
      %v914 = vsel %vm910, %v791, %v793
      %v915 = vsel %vm910, %v793, %v795
      %v916 = vsel %vm910, %v795, %v797
      %v917 = vsel %vm910, %v799, %v801
      %v918 = vsel %vm910, %v801, %v803
      %v919 = vsel %vm910, %v803, %v805
      %v920 = vsel %vm910, %v807, %v809
      %v921 = vsel %vm910, %v809, %v811
      %v922 = vsel %vm910, %v811, %v813
      %v923 = vsel %vm910, %v815, %v817
      %v924 = vsel %vm910, %v817, %v819
      %v925 = vsel %vm910, %v819, %v821
      %v926 = vsel %vm910, %v823, %v825
      %v927 = vsel %vm910, %v825, %v827
      %v928 = vsel %vm910, %v827, %v829
      %v929 = vsel %vm910, %v831, %v833
      %v930 = vsel %vm910, %v833, %v835
      %v931 = vsel %vm910, %v835, %v837
      %v932 = vsel %vm910, %v839, %v841
      %v933 = vsel %vm910, %v841, %v843
      %v934 = vsel %vm910, %v843, %v845
      %v935 = vsel %vm910, %v847, %v849
      %v936 = vsel %vm910, %v849, %v851
      %v937 = vsel %vm910, %v851, %v853
      %v938 = vsel %vm910, %v855, %v857
      %v939 = vsel %vm910, %v857, %v859
      %v940 = vsel %vm910, %v859, %v861
      %v941 = vsel %vm910, %v863, %v865
      %v942 = vsel %vm910, %v865, %v867
      %v943 = vsel %vm910, %v867, %v869
      %v944 = vsel %vm910, %v871, %v873
      %v945 = vsel %vm910, %v873, %v875
      %v946 = vsel %vm910, %v875, %v877
      %v947 = vsel %vm910, %v879, %v881
      %v948 = vsel %vm910, %v881, %v883
      %v949 = vsel %vm910, %v883, %v885
      %v950 = vsel %vm910, %v887, %v889
      %v951 = vsel %vm910, %v889, %v891
      %v952 = vsel %vm910, %v891, %v893
      %v953 = vsel %vm910, %v895, %v897
      %v954 = vsel %vm910, %v897, %v899
      %v955 = vsel %vm910, %v899, %v901
      %v956 = vsel %vm910, %v903, %v905
      %v957 = vsel %vm910, %v905, %v907
      %v958 = vsel %vm910, %v907, %v909
      %1007 = vrot.lane.b32.xlu0 %v246, 118
      %v1008 = vpop.permute.xlu0 %1007
      %1009 = vrot.lane.b32.xlu0 %v247, 118
      %v1010 = vpop.permute.xlu0 %1009
      %1011 = vrot.lane.b32.xlu0 %v409, 118
      %v1012 = vpop.permute.xlu0 %1011
      %vm1013 = vcmask 965632
      %v1014 = vsel %vm1013, %v1008, %v1010
      %v1015 = vsel %vm1013, %v1010, %v1012
      %v1019 = vld [vmem:[%s216] sm:$0xff]
      %v1020 = vld [vmem:[%s216 + $0x8] sm:$0x3f]
      %v1021 = vld [vmem:[%s220] sm:$0x7]
      %1023 = vset.pattern.permute.xlu0 0
      %1024 = vperm.xlu0 %1023, %v1021
      %v1025 = vpop.permute.xlu0 %1024
      %v1029 = vcombine.high %v1019, %v1019
      %v1031 = vunpack.c.l.s4 1983009808
      %v1032 = vunpack.c.0.s8 %v1031
      %v1033 = vlaneseq
      %v1034 = vshrl.u32 %v1033, 7
      %v1035 = vsub.s32 %v1032, %v1034
      %v1036 = vrot.slane %v1019, %v1035
      %v1038 = vunpack.c.l.s4 1983009808
      %v1039 = vunpack.c.0.s8 %v1038
      %v1040 = vlaneseq
      %v1041 = vshrl.u32 %v1040, 7
      %v1042 = vsub.s32 %v1039, %v1041
      %v1043 = vrot.slane %v1029, %v1042
      %v1044 = vcombine.high %v1036, %v1036
      %v1045 = vcombine.high %v1043, %v1043
      %v1046 = vcombine.high %v1020, %v1020
      %v1048 = vunpack.c.l.s4 1983009808
      %v1049 = vunpack.c.0.s8 %v1048
      %v1050 = vlaneseq
      %v1051 = vshrl.u32 %v1050, 7
      %v1052 = vsub.s32 %v1049, %v1051
      %v1053 = vrot.slane %v1020, %v1052
      %v1055 = vunpack.c.l.s4 1983009808
      %v1056 = vunpack.c.0.s8 %v1055
      %v1057 = vlaneseq
      %v1058 = vshrl.u32 %v1057, 7
      %v1059 = vsub.s32 %v1056, %v1058
      %v1060 = vrot.slane %v1046, %v1059
      %v1061 = vcombine.high %v1053, %v1053
      %vm1068 = vcmask 130048
      %v1070 = vsel %vm1068, %v1060, 0
      %1072 = vmatprep.subr.bf16.mxu0 %v246
      %1073 = vmatpush1.bf16.msra.mxu0 %v245
      %1074 = vmatprep.subr.bf16.mxu0 %v259
      %1075 = vmatpush1.bf16.msra.mxu0 %v258
      %1076 = vmatprep.subr.bf16.mxu0 %v271
      %1077 = vmatpush1.bf16.msra.mxu0 %v270
      %1078 = vmatprep.subr.bf16.mxu0 %v283
      %1079 = vmatpush1.bf16.msra.mxu0 %v282
      %1080 = vmatprep.subr.bf16.mxu0 %v295
      %1081 = vmatpush1.bf16.msra.mxu0 %v294
      %1082 = vmatprep.subr.bf16.mxu0 %v307
      %1083 = vmatpush1.bf16.msra.mxu0 %v306
      %1084 = vmatprep.subr.bf16.mxu0 %v319
      %1085 = vmatpush1.bf16.msra.mxu0 %v318
      %1086 = vmatprep.subr.bf16.mxu0 %v331
      %1087 = vmatpush1.bf16.msra.mxu0 %v330
      %1088 = vmatprep.subr.bf16.mxu0 %v343
      %1089 = vmatpush1.bf16.msra.mxu0 %v342
      %1090 = vmatprep.subr.bf16.mxu0 %v355
      %1091 = vmatpush1.bf16.msra.mxu0 %v354
      %1092 = vmatprep.subr.bf16.mxu0 %v367
      %1093 = vmatpush1.bf16.msra.mxu0 %v366
      %1094 = vmatprep.subr.bf16.mxu0 %v379
      %1095 = vmatpush1.bf16.msra.mxu0 %v378
      %1096 = vmatprep.subr.bf16.mxu0 %v391
      %1097 = vmatpush1.bf16.msra.mxu0 %v390
      %1098 = vmatprep.subr.bf16.mxu0 %v403
      %1099 = vmatpush1.bf16.msra.mxu0 %v402
      %1100 = vmatprep.subr.bf16.mxu0 %v420
      %1101 = vmatpush1.bf16.msra.mxu0 %v419
      %1102 = vmatprep.subr.bf16.mxu0 %v435
      %1103 = vmatpush1.bf16.msra.mxu0 %v434
      %1104 = vmatprep.mubr.bf16.mxu0 %v1044
      %1105 = vmatmul.mubr.bf16.gmra.mrb[0].mxu0 %v1036
      %v1106 = vpop.f32.mrb[0].mxu0
      %v1107 = vadd.f32 %v1025, %v1106
      %v1108 = vpop.f32.mrb[0].mxu0
      %v1109 = vadd.f32 %v1025, %v1108
      %v1110 = vpop.f32.mrb[0].mxu0
      %v1111 = vpop.f32.mrb[0].mxu0
      %1112 = vdwg.mxu0
      %1113 = vmatprep.subr.bf16.mxu0 %v687
      %1114 = vmatpush1.bf16.msra.mxu0 %v686
      %1115 = vmatprep.subr.bf16.mxu0 %v690
      %1116 = vmatpush1.bf16.msra.mxu0 %v689
      %1117 = vmatprep.subr.bf16.mxu0 %v693
      %1118 = vmatpush1.bf16.msra.mxu0 %v692
      %1119 = vmatprep.subr.bf16.mxu0 %v696
      %1120 = vmatpush1.bf16.msra.mxu0 %v695
      %1121 = vmatprep.subr.bf16.mxu0 %v699
      %1122 = vmatpush1.bf16.msra.mxu0 %v698
      %1123 = vmatprep.subr.bf16.mxu0 %v702
      %1124 = vmatpush1.bf16.msra.mxu0 %v701
      %1125 = vmatprep.subr.bf16.mxu0 %v705
      %1126 = vmatpush1.bf16.msra.mxu0 %v704
      %1127 = vmatprep.subr.bf16.mxu0 %v708
      %1128 = vmatpush1.bf16.msra.mxu0 %v707
      %1129 = vmatprep.subr.bf16.mxu0 %v711
      %1130 = vmatpush1.bf16.msra.mxu0 %v710
      %1131 = vmatprep.subr.bf16.mxu0 %v714
      %1132 = vmatpush1.bf16.msra.mxu0 %v713
      %1133 = vmatprep.subr.bf16.mxu0 %v717
      %1134 = vmatpush1.bf16.msra.mxu0 %v716
      %1135 = vmatprep.subr.bf16.mxu0 %v720
      %1136 = vmatpush1.bf16.msra.mxu0 %v719
      %1137 = vmatprep.subr.bf16.mxu0 %v723
      %1138 = vmatpush1.bf16.msra.mxu0 %v722
      %1139 = vmatprep.subr.bf16.mxu0 %v726
      %1140 = vmatpush1.bf16.msra.mxu0 %v725
      %1141 = vmatprep.subr.bf16.mxu0 %v729
      %1142 = vmatpush1.bf16.msra.mxu0 %v728
      %1143 = vmatprep.subr.bf16.mxu0 %v732
      %1144 = vmatpush1.bf16.msra.mxu0 %v731
      %1145 = vmatprep.mubr.bf16.mxu0 %v1045
      %1146 = vmatmul.mubr.bf16.gmra.mrb[0].mxu0 %v1043
      %v1147 = vpop.f32.mrb[0].mxu0
      %v1148 = vadd.f32 %v1107, %v1147
      %v1149 = vpop.f32.mrb[0].mxu0
      %v1150 = vadd.f32 %v1109, %v1149
      %v1151 = vpop.f32.mrb[0].mxu0
      %v1152 = vpop.f32.mrb[0].mxu0
      %1153 = vdwg.mxu0
      %1154 = vmatprep.subr.bf16.mxu0 %v912
      %1155 = vmatpush1.bf16.msra.mxu0 %v911
      %1156 = vmatprep.subr.bf16.mxu0 %v915
      %1157 = vmatpush1.bf16.msra.mxu0 %v914
      %1158 = vmatprep.subr.bf16.mxu0 %v918
      %1159 = vmatpush1.bf16.msra.mxu0 %v917
      %1160 = vmatprep.subr.bf16.mxu0 %v921
      %1161 = vmatpush1.bf16.msra.mxu0 %v920
      %1162 = vmatprep.subr.bf16.mxu0 %v924
      %1163 = vmatpush1.bf16.msra.mxu0 %v923
      %1164 = vmatprep.subr.bf16.mxu0 %v927
      %1165 = vmatpush1.bf16.msra.mxu0 %v926
      %1166 = vmatprep.subr.bf16.mxu0 %v930
      %1167 = vmatpush1.bf16.msra.mxu0 %v929
      %1168 = vmatprep.subr.bf16.mxu0 %v933
      %1169 = vmatpush1.bf16.msra.mxu0 %v932
      %1170 = vmatprep.subr.bf16.mxu0 %v936
      %1171 = vmatpush1.bf16.msra.mxu0 %v935
      %1172 = vmatprep.subr.bf16.mxu0 %v939
      %1173 = vmatpush1.bf16.msra.mxu0 %v938
      %1174 = vmatprep.subr.bf16.mxu0 %v942
      %1175 = vmatpush1.bf16.msra.mxu0 %v941
      %1176 = vmatprep.subr.bf16.mxu0 %v945
      %1177 = vmatpush1.bf16.msra.mxu0 %v944
      %1178 = vmatprep.subr.bf16.mxu0 %v948
      %1179 = vmatpush1.bf16.msra.mxu0 %v947
      %1180 = vmatprep.subr.bf16.mxu0 %v951
      %1181 = vmatpush1.bf16.msra.mxu0 %v950
      %1182 = vmatprep.subr.bf16.mxu0 %v954
      %1183 = vmatpush1.bf16.msra.mxu0 %v953
      %1184 = vmatprep.subr.bf16.mxu0 %v957
      %1185 = vmatpush1.bf16.msra.mxu0 %v956
      %1186 = vmatprep.mubr.bf16.mxu0 %v1061
      %1187 = vmatmul.mubr.bf16.gmra.mrb[0].mxu0 %v1053
      %v1188 = vpop.f32.mrb[0].mxu0
      %v1189 = vadd.f32 %v1148, %v1188
      %v1190 = vpop.f32.mrb[0].mxu0
      %v1191 = vadd.f32 %v1150, %v1190
      %v1192 = vpop.f32.mrb[0].mxu0
      %v1193 = vpop.f32.mrb[0].mxu0
      %1194 = vdwg.mxu0
      %1195 = vmatprep.subr.bf16.mxu0 %v1015
      %1196 = vmatpush1.bf16.msra.mxu0 %v1014
      %1197 = vmatprep.subr.bf16.mxu0 0
      %1198 = vmatpush1.bf16.msra.mxu0 0
      %1199 = vmatprep.subr.bf16.mxu0 0
      %1200 = vmatpush1.bf16.msra.mxu0 0
      %1201 = vmatprep.subr.bf16.mxu0 0
      %1202 = vmatpush1.bf16.msra.mxu0 0
      %1203 = vmatprep.subr.bf16.mxu0 0
      %1204 = vmatpush1.bf16.msra.mxu0 0
      %1205 = vmatprep.subr.bf16.mxu0 0
      %1206 = vmatpush1.bf16.msra.mxu0 0
      %1207 = vmatprep.subr.bf16.mxu0 0
      %1208 = vmatpush1.bf16.msra.mxu0 0
      %1209 = vmatprep.subr.bf16.mxu0 0
      %1210 = vmatpush1.bf16.msra.mxu0 0
      %1211 = vmatprep.subr.bf16.mxu0 0
      %1212 = vmatpush1.bf16.msra.mxu0 0
      %1213 = vmatprep.subr.bf16.mxu0 0
      %1214 = vmatpush1.bf16.msra.mxu0 0
      %1215 = vmatprep.subr.bf16.mxu0 0
      %1216 = vmatpush1.bf16.msra.mxu0 0
      %1217 = vmatprep.subr.bf16.mxu0 0
      %1218 = vmatpush1.bf16.msra.mxu0 0
      %1219 = vmatprep.subr.bf16.mxu0 0
      %1220 = vmatpush1.bf16.msra.mxu0 0
      %1221 = vmatprep.subr.bf16.mxu0 0
      %1222 = vmatpush1.bf16.msra.mxu0 0
      %1223 = vmatprep.subr.bf16.mxu0 0
      %1224 = vmatpush1.bf16.msra.mxu0 0
      %1225 = vmatprep.subr.bf16.mxu0 0
      %1226 = vmatpush1.bf16.msra.mxu0 0
      %1227 = vmatprep.mubr.bf16.mxu0 0
      %1228 = vmatmul.mubr.bf16.gmra.mrb[0].mxu0 %v1070
      %v1229 = vpop.f32.mrb[0].mxu0
      %v1230 = vadd.f32 %v1189, %v1229
      %v1231 = vpop.f32.mrb[0].mxu0
      %v1232 = vadd.f32 %v1191, %v1231
      %v1233 = vpop.f32.mrb[0].mxu0
      %v1234 = vpop.f32.mrb[0].mxu0
      %1235 = vdwg.mxu0
      %1236 = vmatprep.subr.bf16.mxu0 0
      %1237 = vmatpush1.bf16.msra.mxu0 %v247
      %1238 = vmatprep.subr.bf16.mxu0 0
      %1239 = vmatpush1.bf16.msra.mxu0 %v256
      %1240 = vmatprep.subr.bf16.mxu0 0
      %1241 = vmatpush1.bf16.msra.mxu0 %v268
      %1242 = vmatprep.subr.bf16.mxu0 0
      %1243 = vmatpush1.bf16.msra.mxu0 %v280
      %1244 = vmatprep.subr.bf16.mxu0 0
      %1245 = vmatpush1.bf16.msra.mxu0 %v292
      %1246 = vmatprep.subr.bf16.mxu0 0
      %1247 = vmatpush1.bf16.msra.mxu0 %v304
      %1248 = vmatprep.subr.bf16.mxu0 0
      %1249 = vmatpush1.bf16.msra.mxu0 %v316
      %1250 = vmatprep.subr.bf16.mxu0 0
      %1251 = vmatpush1.bf16.msra.mxu0 %v328
      %1252 = vmatprep.subr.bf16.mxu0 0
      %1253 = vmatpush1.bf16.msra.mxu0 %v340
      %1254 = vmatprep.subr.bf16.mxu0 0
      %1255 = vmatpush1.bf16.msra.mxu0 %v352
      %1256 = vmatprep.subr.bf16.mxu0 0
      %1257 = vmatpush1.bf16.msra.mxu0 %v364
      %1258 = vmatprep.subr.bf16.mxu0 0
      %1259 = vmatpush1.bf16.msra.mxu0 %v376
      %1260 = vmatprep.subr.bf16.mxu0 0
      %1261 = vmatpush1.bf16.msra.mxu0 %v388
      %1262 = vmatprep.subr.bf16.mxu0 0
      %1263 = vmatpush1.bf16.msra.mxu0 %v400
      %1264 = vmatprep.subr.bf16.mxu0 0
      %1265 = vmatpush1.bf16.msra.mxu0 %v421
      %1266 = vmatprep.subr.bf16.mxu0 0
      %1267 = vmatpush1.bf16.msra.mxu0 %v436
      %1268 = vmatprep.mubr.bf16.mxu0 %v1044
      %1269 = vmatmul.mubr.bf16.gmra.mrb[0].mxu0 %v1036
      %v1270 = vpop.f32.mrb[0].mxu0
      %v1271 = vadd.f32 %v1025, %v1270
      %v1272 = vpop.f32.mrb[0].mxu0
      %v1273 = vpop.f32.mrb[0].mxu0
      %v1274 = vpop.f32.mrb[0].mxu0
      %1275 = vdwg.mxu0
      %1276 = vmatprep.subr.bf16.mxu0 0
      %1277 = vmatpush1.bf16.msra.mxu0 %v688
      %1278 = vmatprep.subr.bf16.mxu0 0
      %1279 = vmatpush1.bf16.msra.mxu0 %v691
      %1280 = vmatprep.subr.bf16.mxu0 0
      %1281 = vmatpush1.bf16.msra.mxu0 %v694
      %1282 = vmatprep.subr.bf16.mxu0 0
      %1283 = vmatpush1.bf16.msra.mxu0 %v697
      %1284 = vmatprep.subr.bf16.mxu0 0
      %1285 = vmatpush1.bf16.msra.mxu0 %v700
      %1286 = vmatprep.subr.bf16.mxu0 0
      %1287 = vmatpush1.bf16.msra.mxu0 %v703
      %1288 = vmatprep.subr.bf16.mxu0 0
      %1289 = vmatpush1.bf16.msra.mxu0 %v706
      %1290 = vmatprep.subr.bf16.mxu0 0
      %1291 = vmatpush1.bf16.msra.mxu0 %v709
      %1292 = vmatprep.subr.bf16.mxu0 0
      %1293 = vmatpush1.bf16.msra.mxu0 %v712
      %1294 = vmatprep.subr.bf16.mxu0 0
      %1295 = vmatpush1.bf16.msra.mxu0 %v715
      %1296 = vmatprep.subr.bf16.mxu0 0
      %1297 = vmatpush1.bf16.msra.mxu0 %v718
      %1298 = vmatprep.subr.bf16.mxu0 0
      %1299 = vmatpush1.bf16.msra.mxu0 %v721
      %1300 = vmatprep.subr.bf16.mxu0 0
      %1301 = vmatpush1.bf16.msra.mxu0 %v724
      %1302 = vmatprep.subr.bf16.mxu0 0
      %1303 = vmatpush1.bf16.msra.mxu0 %v727
      %1304 = vmatprep.subr.bf16.mxu0 0
      %1305 = vmatpush1.bf16.msra.mxu0 %v730
      %1306 = vmatprep.subr.bf16.mxu0 0
      %1307 = vmatpush1.bf16.msra.mxu0 %v733
      %1308 = vmatprep.mubr.bf16.mxu0 %v1045
      %1309 = vmatmul.mubr.bf16.gmra.mrb[0].mxu0 %v1043
      %v1310 = vpop.f32.mrb[0].mxu0
      %v1311 = vadd.f32 %v1271, %v1310
      %v1312 = vpop.f32.mrb[0].mxu0
      %v1313 = vpop.f32.mrb[0].mxu0
      %v1314 = vpop.f32.mrb[0].mxu0
      %1315 = vdwg.mxu0
      %1316 = vmatprep.subr.bf16.mxu0 0
      %1317 = vmatpush1.bf16.msra.mxu0 %v913
      %1318 = vmatprep.subr.bf16.mxu0 0
      %1319 = vmatpush1.bf16.msra.mxu0 %v916
      %1320 = vmatprep.subr.bf16.mxu0 0
      %1321 = vmatpush1.bf16.msra.mxu0 %v919
      %1322 = vmatprep.subr.bf16.mxu0 0
      %1323 = vmatpush1.bf16.msra.mxu0 %v922
      %1324 = vmatprep.subr.bf16.mxu0 0
      %1325 = vmatpush1.bf16.msra.mxu0 %v925
      %1326 = vmatprep.subr.bf16.mxu0 0
      %1327 = vmatpush1.bf16.msra.mxu0 %v928
      %1328 = vmatprep.subr.bf16.mxu0 0
      %1329 = vmatpush1.bf16.msra.mxu0 %v931
      %1330 = vmatprep.subr.bf16.mxu0 0
      %1331 = vmatpush1.bf16.msra.mxu0 %v934
      %1332 = vmatprep.subr.bf16.mxu0 0
      %1333 = vmatpush1.bf16.msra.mxu0 %v937
      %1334 = vmatprep.subr.bf16.mxu0 0
      %1335 = vmatpush1.bf16.msra.mxu0 %v940
      %1336 = vmatprep.subr.bf16.mxu0 0
      %1337 = vmatpush1.bf16.msra.mxu0 %v943
      %1338 = vmatprep.subr.bf16.mxu0 0
      %1339 = vmatpush1.bf16.msra.mxu0 %v946
      %1340 = vmatprep.subr.bf16.mxu0 0
      %1341 = vmatpush1.bf16.msra.mxu0 %v949
      %1342 = vmatprep.subr.bf16.mxu0 0
      %1343 = vmatpush1.bf16.msra.mxu0 %v952
      %1344 = vmatprep.subr.bf16.mxu0 0
      %1345 = vmatpush1.bf16.msra.mxu0 %v955
      %1346 = vmatprep.subr.bf16.mxu0 0
      %1347 = vmatpush1.bf16.msra.mxu0 %v958
      %1348 = vmatprep.mubr.bf16.mxu0 %v1061
      %1349 = vmatmul.mubr.bf16.gmra.mrb[0].mxu0 %v1053
      %v1350 = vpop.f32.mrb[0].mxu0
      %v1351 = vadd.f32 %v1311, %v1350
      %v1352 = vpop.f32.mrb[0].mxu0
      %v1353 = vpop.f32.mrb[0].mxu0
      %v1354 = vpop.f32.mrb[0].mxu0
      %1355 = vdwg.mxu0
      %1356 = vmatprep.subr.bf16.mxu0 0
      %1357 = vmatpush1.bf16.msra.mxu0 %v1012
      %1358 = vmatprep.subr.bf16.mxu0 0
      %1359 = vmatpush1.bf16.msra.mxu0 0
      %1360 = vmatprep.subr.bf16.mxu0 0
      %1361 = vmatpush1.bf16.msra.mxu0 0
      %1362 = vmatprep.subr.bf16.mxu0 0
      %1363 = vmatpush1.bf16.msra.mxu0 0
      %1364 = vmatprep.subr.bf16.mxu0 0
      %1365 = vmatpush1.bf16.msra.mxu0 0
      %1366 = vmatprep.subr.bf16.mxu0 0
      %1367 = vmatpush1.bf16.msra.mxu0 0
      %1368 = vmatprep.subr.bf16.mxu0 0
      %1369 = vmatpush1.bf16.msra.mxu0 0
      %1370 = vmatprep.subr.bf16.mxu0 0
      %1371 = vmatpush1.bf16.msra.mxu0 0
      %1372 = vmatprep.subr.bf16.mxu0 0
      %1373 = vmatpush1.bf16.msra.mxu0 0
      %1374 = vmatprep.subr.bf16.mxu0 0
      %1375 = vmatpush1.bf16.msra.mxu0 0
      %1376 = vmatprep.subr.bf16.mxu0 0
      %1377 = vmatpush1.bf16.msra.mxu0 0
      %1378 = vmatprep.subr.bf16.mxu0 0
      %1379 = vmatpush1.bf16.msra.mxu0 0
      %1380 = vmatprep.subr.bf16.mxu0 0
      %1381 = vmatpush1.bf16.msra.mxu0 0
      %1382 = vmatprep.subr.bf16.mxu0 0
      %1383 = vmatpush1.bf16.msra.mxu0 0
      %1384 = vmatprep.subr.bf16.mxu0 0
      %1385 = vmatpush1.bf16.msra.mxu0 0
      %1386 = vmatprep.subr.bf16.mxu0 0
      %1387 = vmatpush1.bf16.msra.mxu0 0
      %1388 = vmatprep.mubr.bf16.mxu0 0
      %1389 = vmatmul.mubr.bf16.gmra.mrb[0].mxu0 %v1070
      %v1390 = vpop.f32.mrb[0].mxu0
      %v1391 = vadd.f32 %v1351, %v1390
      %v1392 = vpop.f32.mrb[0].mxu0
      %v1393 = vpop.f32.mrb[0].mxu0
      %v1394 = vpop.f32.mrb[0].mxu0
      %1395 = vdwg.mxu0
      %v1396 = vtanh.pop %v1230
      %v1397 = vtanh.pop %v1232
      %v1398 = vtanh.pop %v1391
      %v1401 = vcombine.low %v1396, %v1397
      %1403 = vst [vmem:[%s229] sm:$0x77] %v1401
      %vm1404 = vcmask 780288
      %1405 = vst.msk [vmem:[%s229 + $0x8] sm:$0x7] %vm1404, %v1398
      %p1406 = scmp.lt.s32.totalorder %s18, 1
      %s1407 = scalar_select %p1406, %s18, 1
      %p1408 = scmp.lt.s32.totalorder %s19, 0
      %s1409 = scalar_select %p1408, %s19, 0
      %s1410 = smul.addr %s1409, 3
      %s1411 = smul.addr %s1407, 3
      %s1412 = sadd.s32 %s1410, %s1411
      %s1413 = smul.addr %s1412, 4
      %s1414 = scalar_lea.vmem %s3, %s1413
      // Predicated region
      $region33: #{resnet_generator_forward.19} parent=31 // pred_check
        %p1415 = pneg %p124
      $region34: #{resnet_generator_forward.19} parent=31 // pred_check_branch
        %1417 = sbr.rel (%p1415) target = $region36
      $region35: #{resnet_generator_forward.19} parent=31 // pred_region
        _
      $region36: #{resnet_generator_forward.19} parent=31 // pred_fallthru
        _
    $region32: #{resnet_generator_forward.19} parent=5 // pred_fallthru
      _
    %p1418 = scmp.le.s32.totalorder 2, %s9
    // Predicated region
    $region37: #{resnet_generator_forward.19} parent=5 // pred_check
      %p1419 = pneg %p1418
    $region38: #{resnet_generator_forward.19} parent=5 // pred_check_branch
      %1421 = sbr.rel (%p1419) target = $region40
    $region39: #{resnet_generator_forward.19} parent=5 // pred_region
      %s1422 = ssub.s32 %s9, 2
      // Predicated region
      $region41: #{resnet_generator_forward.19} parent=39 // pred_check
        %p1423 = pneg %p130
      $region42: #{resnet_generator_forward.19} parent=39 // pred_check_branch
        %1425 = sbr.rel (%p1423) target = $region44
      $region43: #{resnet_generator_forward.19} parent=39 // pred_region
        %p1426 = scmp.lt.s32.totalorder %s20, 1
        %s1427 = scalar_select %p1426, %s20, 1
        %p1428 = scmp.lt.s32.totalorder %s21, 0
        %s1429 = scalar_select %p1428, %s21, 0
        %s1430 = smul.addr %s1429, 3
        %s1431 = smul.addr %s1427, 3
        %s1432 = sadd.s32 %s1430, %s1431
        %s1433 = smul.addr %s1432, 4
        %s1434 = scalar_lea.vmem %s3, %s1433
      $region44: #{resnet_generator_forward.19} parent=39 // pred_fallthru
        _
    $region40: #{resnet_generator_forward.19} parent=5 // pred_fallthru
      _
  $region6: #{resnet_generator_forward.19} parent=0 // loop_footer
    %s13 = sadd.s32 1, %s9
  $region7: #{resnet_generator_forward.19} parent=0 // loop_footer_branch
    %8 = sbr.rel target = $region3
  $region8: #{resnet_generator_forward.19} parent=0 // loop_exit
    _

</llo_original>
